<compile_context>
chip_gen: v5e
topology: v5e:2x2
jax: 0.10.0
libtpu: 0.0.40
codegen_flags: <defaults>
</compile_context>

<pallas_src>
import numpy as np
import jax
import jax.numpy as jnp
from jax import lax
from jax.experimental import pallas as pl
from jax.experimental.pallas import tpu as pltpu

# ----------------------------- hyper-parameters -----------------------------
VOCAB = 100
WORD_EMB = 48          # hps.word_emb_dim (divisible by 6 sent2word heads)
HIDDEN = 32            # hps.hidden_size
N_HEAD_W2S = 4         # hps.n_head
N_HEAD_S2W = 6         # fixed to 6 in the module
N_FEATURE = 32         # hps.n_feature_size
FEAT_EMB = 16          # hps.feat_embed_size
FFN_INNER = 64         # hps.ffn_inner_hidden_size
LSTM_HIDDEN = 16       # hps.lstm_hidden_state
LSTM_LAYERS = 2        # hps.lstm_layers
BIDIRECTIONAL = True   # hps.bidirectional
DOC_MAX_T = 16         # hps.doc_max_timesteps
N_ITER = 1             # hps.n_iter

N_WORD = 24            # word nodes in the (single) graph
N_SENT = 8             # sentence nodes
SENT_LEN = 10          # words per sentence (for the sentence encoder)

DH_W2S = HIDDEN // N_HEAD_W2S      # 8
DH_S2W = WORD_EMB // N_HEAD_S2W    # 8


# --------------------------- in-kernel helper math ---------------------------
def _sigmoid(x):
    # explicit form (exp only) to keep the Mosaic lowering trivial
    return 1.0 / (1.0 + jnp.exp(-x))


def _lstm_dir(x, w_ih_t, w_hh_t, bias, n_steps, reverse):
    """One LSTM direction, fully unrolled.

    The input->gate matmul has no recurrence, so it is hoisted into ONE matmul
    for all timesteps; only the h @ W_hh part runs inside the unrolled loop.
    """
    xg = jnp.dot(x, w_ih_t, preferred_element_type=jnp.float32) + bias        # [S, 4H]
    h = jnp.zeros((1, LSTM_HIDDEN), jnp.float32)
    c = jnp.zeros((1, LSTM_HIDDEN), jnp.float32)
    hs = [None] * n_steps
    order = range(n_steps - 1, -1, -1) if reverse else range(n_steps)
    for t in order:                                    # static unroll (n_steps = 8)
        gates = xg[t:t + 1, :] + jnp.dot(h, w_hh_t, preferred_element_type=jnp.float32)
        i = _sigmoid(gates[:, 0 * LSTM_HIDDEN:1 * LSTM_HIDDEN])
        f = _sigmoid(gates[:, 1 * LSTM_HIDDEN:2 * LSTM_HIDDEN])
        g = jnp.tanh(gates[:, 2 * LSTM_HIDDEN:3 * LSTM_HIDDEN])
        o = _sigmoid(gates[:, 3 * LSTM_HIDDEN:4 * LSTM_HIDDEN])
        c = f * c + i * g
        h = o * jnp.tanh(c)
        hs[t] = h
    return jnp.concatenate(hs, axis=0)                 # [S, LSTM_HIDDEN]


def _gat_ffn(src, origin, wfc, amat, tf3, mask, bm,
             w1, b1, w2, b2, gamma, beta, heads, n_src):
    """Head-vectorized bipartite GAT + ELU/residual + FFN + LayerNorm.

    score[h,d,s] = leaky_relu( (fc(src)[s] . a1_h) + tf_score[h,d,s] )
    alpha        = masked softmax over s (all heads at once)
    gat[d]       = concat_h( sum_s alpha[h,d,s] * fc(src)[s, head-h slice] )
                   realized as ONE matmul against a block-masked stacked z.
    """
    z = jnp.dot(src, wfc, preferred_element_type=jnp.float32)                 # [Ns, H]
    e_t = jnp.dot(z, amat, preferred_element_type=jnp.float32).T              # [heads, Ns]
    sc = e_t[:, None, :] + tf3                                                # [heads, Nd, Ns]
    sc = jnp.where(sc >= 0.0, sc, 0.01 * sc)                                  # F.leaky_relu
    mask3 = mask[None, :, :]                                                  # [1, Nd, Ns]
    sc = jnp.where(mask3 > 0.0, sc, -1e30)
    sc = sc - jnp.max(sc, axis=-1, keepdims=True)
    p = jnp.exp(sc) * mask3
    denom = jnp.maximum(jnp.sum(p, axis=-1, keepdims=True), 1e-9)
    alpha = p / denom                                                         # [heads, Nd, Ns]

    # single MXU matmul for the aggregation of ALL heads
    alpha_flat = jnp.concatenate([alpha[h] for h in range(heads)], axis=-1)   # [Nd, heads*Ns]
    z_stack = jnp.concatenate([z] * heads, axis=0) * bm                       # [heads*Ns, H]
    g = jnp.dot(alpha_flat, z_stack, preferred_element_type=jnp.float32)      # [Nd, H]

    # WSWGAT tail: h = elu(gat)+origin ; y = FFN(h)+h ; out = LayerNorm(y)
    h = jnp.where(g > 0.0, g, jnp.exp(jnp.minimum(g, 0.0)) - 1.0) + origin
    inner = jnp.maximum(jnp.dot(h, w1, preferred_element_type=jnp.float32) + b1, 0.0)
    y = jnp.dot(inner, w2, preferred_element_type=jnp.float32) + b2 + h
    mu = jnp.mean(y, axis=-1, keepdims=True)
    var = jnp.mean((y - mu) ** 2, axis=-1, keepdims=True)
    return (y - mu) * lax.rsqrt(var + 1e-5) * gamma + beta


# ------------------------------ the fused kernel ------------------------------
def fused_forward_kernel(*refs):
    o_ref = refs[-1]
    (word_feat, sent_cnn_in, ngram,
     wih0f, whh0f, b0f, wih0b, whh0b, b0b,
     wih1f, whh1f, b1f, wih1b, whh1b, b1b,
     cnn_w, lstm_w, sent_b,
     w2s_wfc, w2s_amat, w2s_tf, w2s_mask, w2s_bm,
     w2s_w1, w2s_b1, w2s_w2, w2s_b2, w2s_g, w2s_beta,
     s2w_wfc, s2w_amat, s2w_tf, s2w_mask, s2w_bm,
     s2w_w1, s2w_b1, s2w_w2, s2w_b2, s2w_g, s2w_beta,
     wh_w, wh_b) = [r[...] for r in refs[:-1]]

    # ---- sentence features: in-kernel BiLSTM + pre-composed projections ----
    l0 = jnp.concatenate(
        [_lstm_dir(ngram, wih0f, whh0f, b0f, N_SENT, reverse=False),
         _lstm_dir(ngram, wih0b, whh0b, b0b, N_SENT, reverse=True)], axis=-1)   # [S, 32]
    lstm_out = jnp.concatenate(
        [_lstm_dir(l0, wih1f, whh1f, b1f, N_SENT, reverse=False),
         _lstm_dir(l0, wih1b, whh1b, b1b, N_SENT, reverse=True)], axis=-1)      # [S, 32]
    # sent_feature = n_feature_proj(concat[cnn_proj(ngram+pos), lstm_proj(lstm_out)])
    #              = (ngram+pos) @ (Wc@Wn_top) + lstm_out @ (Wl@Wn_bot) + composed bias
    sent_feature = (jnp.dot(sent_cnn_in, cnn_w, preferred_element_type=jnp.float32)
                    + jnp.dot(lstm_out, lstm_w, preferred_element_type=jnp.float32)
                    + sent_b)                                                   # [S, HIDDEN]

    # ---- WSWGAT message passing (all heads vectorized, one matmul per pass) ----
    def w2s(word_state, sent_origin):
        return _gat_ffn(word_state, sent_origin, w2s_wfc, w2s_amat, w2s_tf, w2s_mask,
                        w2s_bm, w2s_w1, w2s_b1, w2s_w2, w2s_b2, w2s_g, w2s_beta,
                        N_HEAD_W2S, N_WORD)

    def s2w(sent_state, word_origin):
        return _gat_ffn(sent_state, word_origin, s2w_wfc, s2w_amat, s2w_tf, s2w_mask,
                        s2w_bm, s2w_w1, s2w_b1, s2w_w2, s2w_b2, s2w_g, s2w_beta,
                        N_HEAD_S2W, N_SENT)

    word_state = word_feat
    sent_state = w2s(word_state, sent_feature)
    for _ in range(N_ITER):
        word_state = s2w(sent_state, word_state)
        sent_state = w2s(word_state, sent_state)

    # ---- classifier head (wh) ----
    o_ref[...] = jnp.dot(sent_state, wh_w, preferred_element_type=jnp.float32) + wh_b


def fused_forward(args):
    return pl.pallas_call(
        fused_forward_kernel,
        out_shape=jax.ShapeDtypeStruct((N_SENT, 2), jnp.float32),
        in_specs=[pl.BlockSpec(memory_space=pltpu.MemorySpace.VMEM)] * len(args),
        out_specs=pl.BlockSpec(memory_space=pltpu.MemorySpace.VMEM),
    )(*args)


# ------------------------------ plain-JAX glue --------------------------------
def get_sinusoid_encoding_table(n_position, d_hid, padding_idx=None):
    def angle(pos, j):
        return pos / np.power(10000, 2 * (j // 2) / d_hid)
    table = np.array([[angle(pos, j) for j in range(d_hid)] for pos in range(n_position)],
                     dtype=np.float64)
    table[:, 0::2] = np.sin(table[:, 0::2])
    table[:, 1::2] = np.cos(table[:, 1::2])
    if padding_idx is not None:
        table[padding_idx] = 0.0
    return jnp.asarray(table, dtype=jnp.float32)


def build_amat(a1):
    """Pack per-head attention vectors into a block-diagonal [H, heads] matrix."""
    heads, dh = a1.shape
    amat = jnp.zeros((heads * dh, heads), jnp.float32)
    for h in range(heads):
        amat = amat.at[h * dh:(h + 1) * dh, h].set(a1[h])
    return amat


def build_blockmask(heads, n_src, dh):
    """Block mask so that (stacked z * mask) is block-diagonal over heads."""
    bm = np.zeros((heads * n_src, heads * dh), np.float32)
    for h in range(heads):
        bm[h * n_src:(h + 1) * n_src, h * dh:(h + 1) * dh] = 1.0
    return jnp.asarray(bm)


def edge_tf_scores(gp, tf_embed, tf_ids):
    """Per-head scalar contribution of feat_fc(TFembed[tf]) . a2 for every edge."""
    dfeat = jnp.einsum('tf,hfd->thd', tf_embed, gp['wfeat']) + gp['bfeat'][None]   # [10,h,dh]
    table = jnp.einsum('thd,hd->th', dfeat, gp['a2'])                              # [10,h]
    return jnp.transpose(table[tf_ids], (2, 0, 1)).astype(jnp.float32)             # [h,Nd,Ns]


# ------------------------------ parameter init --------------------------------
def init_gat(nrm, in_dim, out_dim, heads):
    dh = out_dim // heads
    return dict(
        wfc=nrm((in_dim, out_dim)),
        a1=nrm((heads, dh)),
        a2=nrm((heads, dh)),
        wfeat=nrm((heads, FEAT_EMB, dh)),
        bfeat=jnp.zeros((heads, dh), jnp.float32),
        ffn_w1=nrm((out_dim, FFN_INNER)), ffn_b1=jnp.zeros((FFN_INNER,), jnp.float32),
        ffn_w2=nrm((FFN_INNER, out_dim)), ffn_b2=jnp.zeros((out_dim,), jnp.float32),
        ln_g=jnp.ones((out_dim,), jnp.float32), ln_b=jnp.zeros((out_dim,), jnp.float32),
    )


def init_params(key):
    ks = iter(jax.random.split(key, 64))

    def nrm(shape, scale=0.02):
        return (scale * jax.random.normal(next(ks), shape)).astype(jnp.float32)

    p = {}
    p['word_embed'] = nrm((VOCAB, WORD_EMB), 0.1)            # self._embed
    p['tf_embed'] = nrm((10, FEAT_EMB), 0.1)                 # self._TFembed (Embedding(10, feat))
    p['pos_embed'] = get_sinusoid_encoding_table(DOC_MAX_T + 1, WORD_EMB, padding_idx=0)
    p['cnn_proj_w'] = nrm((WORD_EMB, N_FEATURE))
    p['cnn_proj_b'] = jnp.zeros((N_FEATURE,), jnp.float32)
    lstm_out = LSTM_HIDDEN * (2 if BIDIRECTIONAL else 1)
    p['lstm_proj_w'] = nrm((lstm_out, N_FEATURE))
    p['lstm_proj_b'] = jnp.zeros((N_FEATURE,), jnp.float32)
    p['nfeat_proj_w'] = nrm((2 * N_FEATURE, HIDDEN))         # n_feature_proj, bias=False
    p['wh_w'] = nrm((HIDDEN, 2))
    p['wh_b'] = jnp.zeros((2,), jnp.float32)

    lstm = []
    for layer in range(LSTM_LAYERS):
        in_size = WORD_EMB if layer == 0 else lstm_out
        dirs = []
        for _ in range(2 if BIDIRECTIONAL else 1):
            dirs.append(dict(
                w_ih=nrm((4 * LSTM_HIDDEN, in_size)),
                w_hh=nrm((4 * LSTM_HIDDEN, LSTM_HIDDEN)),
                b_ih=jnp.zeros((4 * LSTM_HIDDEN,), jnp.float32),
                b_hh=jnp.zeros((4 * LSTM_HIDDEN,), jnp.float32),
            ))
        lstm.append(dirs)
    p['lstm'] = lstm

    p['w2s'] = init_gat(nrm, in_dim=WORD_EMB, out_dim=HIDDEN, heads=N_HEAD_W2S)   # word2sent
    p['s2w'] = init_gat(nrm, in_dim=HIDDEN, out_dim=WORD_EMB, heads=N_HEAD_S2W)   # sent2word
    return p


# ------------------------------- forward pass ---------------------------------
def hsum_graph_forward(params, word_ids, sent_words, sent_pos, tf_ids, adj):
    # ---- set_wnfeature (embedding gather, glue) ----
    word_feature = params['word_embed'][word_ids]                                # [W, WORD_EMB]

    # ---- set_snfeature inputs ----
    # TODO(synk): pretrained BERT sentEncoder (ngram_enc) has no Pallas equivalent
    # without the checkpoint; using mean-pooled word embeddings as sent_embedding.
    ngram_feature = jnp.mean(params['word_embed'][sent_words], axis=1)           # [S, WORD_EMB]
    position_embedding = params['pos_embed'][sent_pos]                           # [S, WORD_EMB]
    sent_cnn_in = ngram_feature + position_embedding

    # ---- trace-time weight pre-composition: cnn/lstm_proj composed with n_feature_proj ----
    nfeat_top = params['nfeat_proj_w'][:N_FEATURE]                               # [32, HIDDEN]
    nfeat_bot = params['nfeat_proj_w'][N_FEATURE:]                               # [32, HIDDEN]
    cnn_comp_w = params['cnn_proj_w'] @ nfeat_top                                # [48, HIDDEN]
    lstm_comp_w = params['lstm_proj_w'] @ nfeat_bot                              # [32, HIDDEN]
    sent_bias = (params['cnn_proj_b'] @ nfeat_top
                 + params['lstm_proj_b'] @ nfeat_bot).reshape(1, -1)             # [1, HIDDEN]

    # ---- dense edge tables / per-direction constants (replace DGL graph) ----
    gw, gs = params['w2s'], params['s2w']
    tf_w2s = edge_tf_scores(gw, params['tf_embed'], tf_ids)                      # [4, S, W]
    tf_s2w = edge_tf_scores(gs, params['tf_embed'], tf_ids.T)                    # [6, W, S]
    amat_w2s = build_amat(gw['a1'])                                              # [32, 4]
    amat_s2w = build_amat(gs['a1'])                                              # [48, 6]
    bm_w2s = build_blockmask(N_HEAD_W2S, N_WORD, DH_W2S)                         # [96, 32]
    bm_s2w = build_blockmask(N_HEAD_S2W, N_SENT, DH_S2W)                         # [48, 48]

    # ---- LSTM weights: transpose once, fold biases ----
    lstm_args = []
    for layer in params['lstm']:
        for d in layer:                                                          # fwd, bwd
            lstm_args += [d['w_ih'].T, d['w_hh'].T,
                          (d['b_ih'] + d['b_hh']).reshape(1, -1)]

    args = [word_feature, sent_cnn_in, ngram_feature, *lstm_args,
            cnn_comp_w, lstm_comp_w, sent_bias,
            gw['wfc'], amat_w2s, tf_w2s, adj, bm_w2s,
            gw['ffn_w1'], gw['ffn_b1'].reshape(1, -1),
            gw['ffn_w2'], gw['ffn_b2'].reshape(1, -1),
            gw['ln_g'].reshape(1, -1), gw['ln_b'].reshape(1, -1),
            gs['wfc'], amat_s2w, tf_s2w, adj.T, bm_s2w,
            gs['ffn_w1'], gs['ffn_b1'].reshape(1, -1),
            gs['ffn_w2'], gs['ffn_b2'].reshape(1, -1),
            gs['ln_g'].reshape(1, -1), gs['ln_b'].reshape(1, -1),
            params['wh_w'], params['wh_b'].reshape(1, -1)]

    return fused_forward(args)                                                   # [S, 2]


# ----------------------------------- main --------------------------------------
if __name__ == "__main__":
    key = jax.random.PRNGKey(0)
    pkey, dkey = jax.random.split(key)
    params = init_params(pkey)

    k1, k2, k3, k4 = jax.random.split(dkey, 4)
    word_ids = jax.random.randint(k1, (N_WORD,), 0, VOCAB)
    sent_words = jax.random.randint(k2, (N_SENT, SENT_LEN), 0, VOCAB)
    sent_pos = jnp.arange(1, N_SENT + 1, dtype=jnp.int32)            # 0 is padding_idx
    tf_ids = jax.random.randint(k3, (N_SENT, N_WORD), 0, 10)
    adj = (jax.random.uniform(k4, (N_SENT, N_WORD)) > 0.3).astype(jnp.float32)
    adj = adj.at[:, 0].set(1.0).at[0, :].set(1.0)                    # every node has >=1 edge

    forward = jax.jit(hsum_graph_forward)
    out = forward(params, word_ids, sent_words, sent_pos, tf_ids, adj)
    out = jax.block_until_ready(out)
    assert out.shape == (N_SENT, 2) and out.dtype == jnp.float32
    assert bool(jnp.all(jnp.isfinite(out)))
    print("KERNEL_OK")
</pallas_src>

<mosaic_0001>
module attributes {stable_mosaic.version = 11 : i64} {
  func.func @fused_forward_kernel(%arg0: memref<24x48xf32, #tpu.memory_space<vmem>>, %arg1: memref<8x48xf32, #tpu.memory_space<vmem>>, %arg2: memref<8x48xf32, #tpu.memory_space<vmem>>, %arg3: memref<48x64xf32, #tpu.memory_space<vmem>>, %arg4: memref<16x64xf32, #tpu.memory_space<vmem>>, %arg5: memref<1x64xf32, #tpu.memory_space<vmem>>, %arg6: memref<48x64xf32, #tpu.memory_space<vmem>>, %arg7: memref<16x64xf32, #tpu.memory_space<vmem>>, %arg8: memref<1x64xf32, #tpu.memory_space<vmem>>, %arg9: memref<32x64xf32, #tpu.memory_space<vmem>>, %arg10: memref<16x64xf32, #tpu.memory_space<vmem>>, %arg11: memref<1x64xf32, #tpu.memory_space<vmem>>, %arg12: memref<32x64xf32, #tpu.memory_space<vmem>>, %arg13: memref<16x64xf32, #tpu.memory_space<vmem>>, %arg14: memref<1x64xf32, #tpu.memory_space<vmem>>, %arg15: memref<48x32xf32, #tpu.memory_space<vmem>>, %arg16: memref<32x32xf32, #tpu.memory_space<vmem>>, %arg17: memref<1x32xf32, #tpu.memory_space<vmem>>, %arg18: memref<48x32xf32, #tpu.memory_space<vmem>>, %arg19: memref<32x4xf32, #tpu.memory_space<vmem>>, %arg20: memref<4x8x24xf32, #tpu.memory_space<vmem>>, %arg21: memref<8x24xf32, #tpu.memory_space<vmem>>, %arg22: memref<96x32xf32, #tpu.memory_space<vmem>>, %arg23: memref<32x64xf32, #tpu.memory_space<vmem>>, %arg24: memref<1x64xf32, #tpu.memory_space<vmem>>, %arg25: memref<64x32xf32, #tpu.memory_space<vmem>>, %arg26: memref<1x32xf32, #tpu.memory_space<vmem>>, %arg27: memref<1x32xf32, #tpu.memory_space<vmem>>, %arg28: memref<1x32xf32, #tpu.memory_space<vmem>>, %arg29: memref<32x48xf32, #tpu.memory_space<vmem>>, %arg30: memref<48x6xf32, #tpu.memory_space<vmem>>, %arg31: memref<6x24x8xf32, #tpu.memory_space<vmem>>, %arg32: memref<24x8xf32, #tpu.memory_space<vmem>>, %arg33: memref<48x48xf32, #tpu.memory_space<vmem>>, %arg34: memref<48x64xf32, #tpu.memory_space<vmem>>, %arg35: memref<1x64xf32, #tpu.memory_space<vmem>>, %arg36: memref<64x48xf32, #tpu.memory_space<vmem>>, %arg37: memref<1x48xf32, #tpu.memory_space<vmem>>, %arg38: memref<1x48xf32, #tpu.memory_space<vmem>>, %arg39: memref<1x48xf32, #tpu.memory_space<vmem>>, %arg40: memref<32x2xf32, #tpu.memory_space<vmem>>, %arg41: memref<1x2xf32, #tpu.memory_space<vmem>>, %arg42: memref<8x2xf32, #tpu.memory_space<vmem>>) attributes {dimension_semantics = [], scalar_prefetch = 0 : i64, scratch_operands = 0 : i64, tpu.core_type = #tpu.core_type<tc>} {
    %c0 = arith.constant 0 : index
    %c0_0 = arith.constant 0 : index
    %0 = vector.load %arg0[%c0, %c0_0] : memref<24x48xf32, #tpu.memory_space<vmem>>, vector<24x48xf32>
    %c0_1 = arith.constant 0 : index
    %c0_2 = arith.constant 0 : index
    %1 = vector.load %arg1[%c0_1, %c0_2] : memref<8x48xf32, #tpu.memory_space<vmem>>, vector<8x48xf32>
    %c0_3 = arith.constant 0 : index
    %c0_4 = arith.constant 0 : index
    %2 = vector.load %arg2[%c0_3, %c0_4] : memref<8x48xf32, #tpu.memory_space<vmem>>, vector<8x48xf32>
    %c0_5 = arith.constant 0 : index
    %c0_6 = arith.constant 0 : index
    %3 = vector.load %arg3[%c0_5, %c0_6] : memref<48x64xf32, #tpu.memory_space<vmem>>, vector<48x64xf32>
    %c0_7 = arith.constant 0 : index
    %c0_8 = arith.constant 0 : index
    %4 = vector.load %arg4[%c0_7, %c0_8] : memref<16x64xf32, #tpu.memory_space<vmem>>, vector<16x64xf32>
    %c0_9 = arith.constant 0 : index
    %c0_10 = arith.constant 0 : index
    %5 = vector.load %arg5[%c0_9, %c0_10] : memref<1x64xf32, #tpu.memory_space<vmem>>, vector<1x64xf32>
    %c0_11 = arith.constant 0 : index
    %c0_12 = arith.constant 0 : index
    %6 = vector.load %arg6[%c0_11, %c0_12] : memref<48x64xf32, #tpu.memory_space<vmem>>, vector<48x64xf32>
    %c0_13 = arith.constant 0 : index
    %c0_14 = arith.constant 0 : index
    %7 = vector.load %arg7[%c0_13, %c0_14] : memref<16x64xf32, #tpu.memory_space<vmem>>, vector<16x64xf32>
    %c0_15 = arith.constant 0 : index
    %c0_16 = arith.constant 0 : index
    %8 = vector.load %arg8[%c0_15, %c0_16] : memref<1x64xf32, #tpu.memory_space<vmem>>, vector<1x64xf32>
    %c0_17 = arith.constant 0 : index
    %c0_18 = arith.constant 0 : index
    %9 = vector.load %arg9[%c0_17, %c0_18] : memref<32x64xf32, #tpu.memory_space<vmem>>, vector<32x64xf32>
    %c0_19 = arith.constant 0 : index
    %c0_20 = arith.constant 0 : index
    %10 = vector.load %arg10[%c0_19, %c0_20] : memref<16x64xf32, #tpu.memory_space<vmem>>, vector<16x64xf32>
    %c0_21 = arith.constant 0 : index
    %c0_22 = arith.constant 0 : index
    %11 = vector.load %arg11[%c0_21, %c0_22] : memref<1x64xf32, #tpu.memory_space<vmem>>, vector<1x64xf32>
    %c0_23 = arith.constant 0 : index
    %c0_24 = arith.constant 0 : index
    %12 = vector.load %arg12[%c0_23, %c0_24] : memref<32x64xf32, #tpu.memory_space<vmem>>, vector<32x64xf32>
    %c0_25 = arith.constant 0 : index
    %c0_26 = arith.constant 0 : index
    %13 = vector.load %arg13[%c0_25, %c0_26] : memref<16x64xf32, #tpu.memory_space<vmem>>, vector<16x64xf32>
    %c0_27 = arith.constant 0 : index
    %c0_28 = arith.constant 0 : index
    %14 = vector.load %arg14[%c0_27, %c0_28] : memref<1x64xf32, #tpu.memory_space<vmem>>, vector<1x64xf32>
    %c0_29 = arith.constant 0 : index
    %c0_30 = arith.constant 0 : index
    %15 = vector.load %arg15[%c0_29, %c0_30] : memref<48x32xf32, #tpu.memory_space<vmem>>, vector<48x32xf32>
    %c0_31 = arith.constant 0 : index
    %c0_32 = arith.constant 0 : index
    %16 = vector.load %arg16[%c0_31, %c0_32] : memref<32x32xf32, #tpu.memory_space<vmem>>, vector<32x32xf32>
    %c0_33 = arith.constant 0 : index
    %c0_34 = arith.constant 0 : index
    %17 = vector.load %arg17[%c0_33, %c0_34] : memref<1x32xf32, #tpu.memory_space<vmem>>, vector<1x32xf32>
    %c0_35 = arith.constant 0 : index
    %c0_36 = arith.constant 0 : index
    %18 = vector.load %arg18[%c0_35, %c0_36] : memref<48x32xf32, #tpu.memory_space<vmem>>, vector<48x32xf32>
    %c0_37 = arith.constant 0 : index
    %c0_38 = arith.constant 0 : index
    %19 = vector.load %arg19[%c0_37, %c0_38] : memref<32x4xf32, #tpu.memory_space<vmem>>, vector<32x4xf32>
    %c0_39 = arith.constant 0 : index
    %c0_40 = arith.constant 0 : index
    %c0_41 = arith.constant 0 : index
    %20 = vector.load %arg20[%c0_39, %c0_40, %c0_41] : memref<4x8x24xf32, #tpu.memory_space<vmem>>, vector<4x8x24xf32>
    %c0_42 = arith.constant 0 : index
    %c0_43 = arith.constant 0 : index
    %21 = vector.load %arg21[%c0_42, %c0_43] : memref<8x24xf32, #tpu.memory_space<vmem>>, vector<8x24xf32>
    %c0_44 = arith.constant 0 : index
    %c0_45 = arith.constant 0 : index
    %22 = vector.load %arg22[%c0_44, %c0_45] : memref<96x32xf32, #tpu.memory_space<vmem>>, vector<96x32xf32>
    %c0_46 = arith.constant 0 : index
    %c0_47 = arith.constant 0 : index
    %23 = vector.load %arg23[%c0_46, %c0_47] : memref<32x64xf32, #tpu.memory_space<vmem>>, vector<32x64xf32>
    %c0_48 = arith.constant 0 : index
    %c0_49 = arith.constant 0 : index
    %24 = vector.load %arg24[%c0_48, %c0_49] : memref<1x64xf32, #tpu.memory_space<vmem>>, vector<1x64xf32>
    %c0_50 = arith.constant 0 : index
    %c0_51 = arith.constant 0 : index
    %25 = vector.load %arg25[%c0_50, %c0_51] : memref<64x32xf32, #tpu.memory_space<vmem>>, vector<64x32xf32>
    %c0_52 = arith.constant 0 : index
    %c0_53 = arith.constant 0 : index
    %26 = vector.load %arg26[%c0_52, %c0_53] : memref<1x32xf32, #tpu.memory_space<vmem>>, vector<1x32xf32>
    %c0_54 = arith.constant 0 : index
    %c0_55 = arith.constant 0 : index
    %27 = vector.load %arg27[%c0_54, %c0_55] : memref<1x32xf32, #tpu.memory_space<vmem>>, vector<1x32xf32>
    %c0_56 = arith.constant 0 : index
    %c0_57 = arith.constant 0 : index
    %28 = vector.load %arg28[%c0_56, %c0_57] : memref<1x32xf32, #tpu.memory_space<vmem>>, vector<1x32xf32>
    %c0_58 = arith.constant 0 : index
    %c0_59 = arith.constant 0 : index
    %29 = vector.load %arg29[%c0_58, %c0_59] : memref<32x48xf32, #tpu.memory_space<vmem>>, vector<32x48xf32>
    %c0_60 = arith.constant 0 : index
    %c0_61 = arith.constant 0 : index
    %30 = vector.load %arg30[%c0_60, %c0_61] : memref<48x6xf32, #tpu.memory_space<vmem>>, vector<48x6xf32>
    %c0_62 = arith.constant 0 : index
    %c0_63 = arith.constant 0 : index
    %c0_64 = arith.constant 0 : index
    %31 = vector.load %arg31[%c0_62, %c0_63, %c0_64] : memref<6x24x8xf32, #tpu.memory_space<vmem>>, vector<6x24x8xf32>
    %c0_65 = arith.constant 0 : index
    %c0_66 = arith.constant 0 : index
    %32 = vector.load %arg32[%c0_65, %c0_66] : memref<24x8xf32, #tpu.memory_space<vmem>>, vector<24x8xf32>
    %c0_67 = arith.constant 0 : index
    %c0_68 = arith.constant 0 : index
    %33 = vector.load %arg33[%c0_67, %c0_68] : memref<48x48xf32, #tpu.memory_space<vmem>>, vector<48x48xf32>
    %c0_69 = arith.constant 0 : index
    %c0_70 = arith.constant 0 : index
    %34 = vector.load %arg34[%c0_69, %c0_70] : memref<48x64xf32, #tpu.memory_space<vmem>>, vector<48x64xf32>
    %c0_71 = arith.constant 0 : index
    %c0_72 = arith.constant 0 : index
    %35 = vector.load %arg35[%c0_71, %c0_72] : memref<1x64xf32, #tpu.memory_space<vmem>>, vector<1x64xf32>
    %c0_73 = arith.constant 0 : index
    %c0_74 = arith.constant 0 : index
    %36 = vector.load %arg36[%c0_73, %c0_74] : memref<64x48xf32, #tpu.memory_space<vmem>>, vector<64x48xf32>
    %c0_75 = arith.constant 0 : index
    %c0_76 = arith.constant 0 : index
    %37 = vector.load %arg37[%c0_75, %c0_76] : memref<1x48xf32, #tpu.memory_space<vmem>>, vector<1x48xf32>
    %c0_77 = arith.constant 0 : index
    %c0_78 = arith.constant 0 : index
    %38 = vector.load %arg38[%c0_77, %c0_78] : memref<1x48xf32, #tpu.memory_space<vmem>>, vector<1x48xf32>
    %c0_79 = arith.constant 0 : index
    %c0_80 = arith.constant 0 : index
    %39 = vector.load %arg39[%c0_79, %c0_80] : memref<1x48xf32, #tpu.memory_space<vmem>>, vector<1x48xf32>
    %c0_81 = arith.constant 0 : index
    %c0_82 = arith.constant 0 : index
    %40 = vector.load %arg40[%c0_81, %c0_82] : memref<32x2xf32, #tpu.memory_space<vmem>>, vector<32x2xf32>
    %c0_83 = arith.constant 0 : index
    %c0_84 = arith.constant 0 : index
    %41 = vector.load %arg41[%c0_83, %c0_84] : memref<1x2xf32, #tpu.memory_space<vmem>>, vector<1x2xf32>
    %cst = arith.constant dense<0.000000e+00> : vector<8x64xf32>
    %42 = tpu.matmul %2, %3, %cst {dimension_numbers = #tpu.dot_dimension_numbers<[1], [0], [0], [1], [0, 0, 1, 1], [], []>} : vector<8x48xf32>, vector<48x64xf32>, vector<8x64xf32> -> vector<8x64xf32>
    %43 = vector.broadcast %5 : vector<1x64xf32> to vector<8x64xf32>
    %44 = arith.addf %42, %43 : vector<8x64xf32>
    %cst_85 = arith.constant 0.000000e+00 : f32
    %45 = vector.broadcast %cst_85 : f32 to vector<1x16xf32>
    %cst_86 = arith.constant 0.000000e+00 : f32
    %46 = vector.broadcast %cst_86 : f32 to vector<1x16xf32>
    %47 = vector.extract_strided_slice %44 {offsets = [0, 0], sizes = [1, 64], strides = [1, 1]} : vector<8x64xf32> to vector<1x64xf32>
    %cst_87 = arith.constant dense<0.000000e+00> : vector<1x64xf32>
    %48 = tpu.matmul %45, %4, %cst_87 {dimension_numbers = #tpu.dot_dimension_numbers<[1], [0], [0], [1], [0, 0, 1, 1], [], []>} : vector<1x16xf32>, vector<16x64xf32>, vector<1x64xf32> -> vector<1x64xf32>
    %49 = arith.addf %47, %48 : vector<1x64xf32>
    %50 = vector.extract_strided_slice %49 {offsets = [0, 0], sizes = [1, 16], strides = [1, 1]} : vector<1x64xf32> to vector<1x16xf32>
    %cst_88 = arith.constant 0.000000e+00 : f32
    %51 = vector.broadcast %cst_88 : f32 to vector<1x16xf32>
    %52 = arith.subf %51, %50 : vector<1x16xf32>
    %53 = math.exp %52 : vector<1x16xf32>
    %cst_89 = arith.constant 1.000000e+00 : f32
    %54 = vector.broadcast %cst_89 : f32 to vector<1x16xf32>
    %55 = arith.addf %54, %53 : vector<1x16xf32>
    %cst_90 = arith.constant 1.000000e+00 : f32
    %56 = vector.broadcast %cst_90 : f32 to vector<1x16xf32>
    %57 = arith.divf %56, %55 : vector<1x16xf32>
    %58 = vector.extract_strided_slice %49 {offsets = [0, 16], sizes = [1, 16], strides = [1, 1]} : vector<1x64xf32> to vector<1x16xf32>
    %cst_91 = arith.constant 0.000000e+00 : f32
    %59 = vector.broadcast %cst_91 : f32 to vector<1x16xf32>
    %60 = arith.subf %59, %58 : vector<1x16xf32>
    %61 = math.exp %60 : vector<1x16xf32>
    %cst_92 = arith.constant 1.000000e+00 : f32
    %62 = vector.broadcast %cst_92 : f32 to vector<1x16xf32>
    %63 = arith.addf %62, %61 : vector<1x16xf32>
    %cst_93 = arith.constant 1.000000e+00 : f32
    %64 = vector.broadcast %cst_93 : f32 to vector<1x16xf32>
    %65 = arith.divf %64, %63 : vector<1x16xf32>
    %66 = vector.extract_strided_slice %49 {offsets = [0, 32], sizes = [1, 16], strides = [1, 1]} : vector<1x64xf32> to vector<1x16xf32>
    %67 = math.tanh %66 : vector<1x16xf32>
    %68 = vector.extract_strided_slice %49 {offsets = [0, 48], sizes = [1, 16], strides = [1, 1]} : vector<1x64xf32> to vector<1x16xf32>
    %cst_94 = arith.constant 0.000000e+00 : f32
    %69 = vector.broadcast %cst_94 : f32 to vector<1x16xf32>
    %70 = arith.subf %69, %68 : vector<1x16xf32>
    %71 = math.exp %70 : vector<1x16xf32>
    %cst_95 = arith.constant 1.000000e+00 : f32
    %72 = vector.broadcast %cst_95 : f32 to vector<1x16xf32>
    %73 = arith.addf %72, %71 : vector<1x16xf32>
    %cst_96 = arith.constant 1.000000e+00 : f32
    %74 = vector.broadcast %cst_96 : f32 to vector<1x16xf32>
    %75 = arith.divf %74, %73 : vector<1x16xf32>
    %76 = arith.mulf %65, %46 : vector<1x16xf32>
    %77 = arith.mulf %57, %67 : vector<1x16xf32>
    %78 = arith.addf %76, %77 : vector<1x16xf32>
    %79 = math.tanh %78 : vector<1x16xf32>
    %80 = arith.mulf %75, %79 : vector<1x16xf32>
    %81 = vector.extract_strided_slice %44 {offsets = [1, 0], sizes = [1, 64], strides = [1, 1]} : vector<8x64xf32> to vector<1x64xf32>
    %cst_97 = arith.constant dense<0.000000e+00> : vector<1x64xf32>
    %82 = tpu.matmul %80, %4, %cst_97 {dimension_numbers = #tpu.dot_dimension_numbers<[1], [0], [0], [1], [0, 0, 1, 1], [], []>} : vector<1x16xf32>, vector<16x64xf32>, vector<1x64xf32> -> vector<1x64xf32>
    %83 = arith.addf %81, %82 : vector<1x64xf32>
    %84 = vector.extract_strided_slice %83 {offsets = [0, 0], sizes = [1, 16], strides = [1, 1]} : vector<1x64xf32> to vector<1x16xf32>
    %cst_98 = arith.constant 0.000000e+00 : f32
    %85 = vector.broadcast %cst_98 : f32 to vector<1x16xf32>
    %86 = arith.subf %85, %84 : vector<1x16xf32>
    %87 = math.exp %86 : vector<1x16xf32>
    %cst_99 = arith.constant 1.000000e+00 : f32
    %88 = vector.broadcast %cst_99 : f32 to vector<1x16xf32>
    %89 = arith.addf %88, %87 : vector<1x16xf32>
    %cst_100 = arith.constant 1.000000e+00 : f32
    %90 = vector.broadcast %cst_100 : f32 to vector<1x16xf32>
    %91 = arith.divf %90, %89 : vector<1x16xf32>
    %92 = vector.extract_strided_slice %83 {offsets = [0, 16], sizes = [1, 16], strides = [1, 1]} : vector<1x64xf32> to vector<1x16xf32>
    %cst_101 = arith.constant 0.000000e+00 : f32
    %93 = vector.broadcast %cst_101 : f32 to vector<1x16xf32>
    %94 = arith.subf %93, %92 : vector<1x16xf32>
    %95 = math.exp %94 : vector<1x16xf32>
    %cst_102 = arith.constant 1.000000e+00 : f32
    %96 = vector.broadcast %cst_102 : f32 to vector<1x16xf32>
    %97 = arith.addf %96, %95 : vector<1x16xf32>
    %cst_103 = arith.constant 1.000000e+00 : f32
    %98 = vector.broadcast %cst_103 : f32 to vector<1x16xf32>
    %99 = arith.divf %98, %97 : vector<1x16xf32>
    %100 = vector.extract_strided_slice %83 {offsets = [0, 32], sizes = [1, 16], strides = [1, 1]} : vector<1x64xf32> to vector<1x16xf32>
    %101 = math.tanh %100 : vector<1x16xf32>
    %102 = vector.extract_strided_slice %83 {offsets = [0, 48], sizes = [1, 16], strides = [1, 1]} : vector<1x64xf32> to vector<1x16xf32>
    %cst_104 = arith.constant 0.000000e+00 : f32
    %103 = vector.broadcast %cst_104 : f32 to vector<1x16xf32>
    %104 = arith.subf %103, %102 : vector<1x16xf32>
    %105 = math.exp %104 : vector<1x16xf32>
    %cst_105 = arith.constant 1.000000e+00 : f32
    %106 = vector.broadcast %cst_105 : f32 to vector<1x16xf32>
    %107 = arith.addf %106, %105 : vector<1x16xf32>
    %cst_106 = arith.constant 1.000000e+00 : f32
    %108 = vector.broadcast %cst_106 : f32 to vector<1x16xf32>
    %109 = arith.divf %108, %107 : vector<1x16xf32>
    %110 = arith.mulf %99, %78 : vector<1x16xf32>
    %111 = arith.mulf %91, %101 : vector<1x16xf32>
    %112 = arith.addf %110, %111 : vector<1x16xf32>
    %113 = math.tanh %112 : vector<1x16xf32>
    %114 = arith.mulf %109, %113 : vector<1x16xf32>
    %115 = vector.extract_strided_slice %44 {offsets = [2, 0], sizes = [1, 64], strides = [1, 1]} : vector<8x64xf32> to vector<1x64xf32>
    %cst_107 = arith.constant dense<0.000000e+00> : vector<1x64xf32>
    %116 = tpu.matmul %114, %4, %cst_107 {dimension_numbers = #tpu.dot_dimension_numbers<[1], [0], [0], [1], [0, 0, 1, 1], [], []>} : vector<1x16xf32>, vector<16x64xf32>, vector<1x64xf32> -> vector<1x64xf32>
    %117 = arith.addf %115, %116 : vector<1x64xf32>
    %118 = vector.extract_strided_slice %117 {offsets = [0, 0], sizes = [1, 16], strides = [1, 1]} : vector<1x64xf32> to vector<1x16xf32>
    %cst_108 = arith.constant 0.000000e+00 : f32
    %119 = vector.broadcast %cst_108 : f32 to vector<1x16xf32>
    %120 = arith.subf %119, %118 : vector<1x16xf32>
    %121 = math.exp %120 : vector<1x16xf32>
    %cst_109 = arith.constant 1.000000e+00 : f32
    %122 = vector.broadcast %cst_109 : f32 to vector<1x16xf32>
    %123 = arith.addf %122, %121 : vector<1x16xf32>
    %cst_110 = arith.constant 1.000000e+00 : f32
    %124 = vector.broadcast %cst_110 : f32 to vector<1x16xf32>
    %125 = arith.divf %124, %123 : vector<1x16xf32>
    %126 = vector.extract_strided_slice %117 {offsets = [0, 16], sizes = [1, 16], strides = [1, 1]} : vector<1x64xf32> to vector<1x16xf32>
    %cst_111 = arith.constant 0.000000e+00 : f32
    %127 = vector.broadcast %cst_111 : f32 to vector<1x16xf32>
    %128 = arith.subf %127, %126 : vector<1x16xf32>
    %129 = math.exp %128 : vector<1x16xf32>
    %cst_112 = arith.constant 1.000000e+00 : f32
    %130 = vector.broadcast %cst_112 : f32 to vector<1x16xf32>
    %131 = arith.addf %130, %129 : vector<1x16xf32>
    %cst_113 = arith.constant 1.000000e+00 : f32
    %132 = vector.broadcast %cst_113 : f32 to vector<1x16xf32>
    %133 = arith.divf %132, %131 : vector<1x16xf32>
    %134 = vector.extract_strided_slice %117 {offsets = [0, 32], sizes = [1, 16], strides = [1, 1]} : vector<1x64xf32> to vector<1x16xf32>
    %135 = math.tanh %134 : vector<1x16xf32>
    %136 = vector.extract_strided_slice %117 {offsets = [0, 48], sizes = [1, 16], strides = [1, 1]} : vector<1x64xf32> to vector<1x16xf32>
    %cst_114 = arith.constant 0.000000e+00 : f32
    %137 = vector.broadcast %cst_114 : f32 to vector<1x16xf32>
    %138 = arith.subf %137, %136 : vector<1x16xf32>
    %139 = math.exp %138 : vector<1x16xf32>
    %cst_115 = arith.constant 1.000000e+00 : f32
    %140 = vector.broadcast %cst_115 : f32 to vector<1x16xf32>
    %141 = arith.addf %140, %139 : vector<1x16xf32>
    %cst_116 = arith.constant 1.000000e+00 : f32
    %142 = vector.broadcast %cst_116 : f32 to vector<1x16xf32>
    %143 = arith.divf %142, %141 : vector<1x16xf32>
    %144 = arith.mulf %133, %112 : vector<1x16xf32>
    %145 = arith.mulf %125, %135 : vector<1x16xf32>
    %146 = arith.addf %144, %145 : vector<1x16xf32>
    %147 = math.tanh %146 : vector<1x16xf32>
    %148 = arith.mulf %143, %147 : vector<1x16xf32>
    %149 = vector.extract_strided_slice %44 {offsets = [3, 0], sizes = [1, 64], strides = [1, 1]} : vector<8x64xf32> to vector<1x64xf32>
    %cst_117 = arith.constant dense<0.000000e+00> : vector<1x64xf32>
    %150 = tpu.matmul %148, %4, %cst_117 {dimension_numbers = #tpu.dot_dimension_numbers<[1], [0], [0], [1], [0, 0, 1, 1], [], []>} : vector<1x16xf32>, vector<16x64xf32>, vector<1x64xf32> -> vector<1x64xf32>
    %151 = arith.addf %149, %150 : vector<1x64xf32>
    %152 = vector.extract_strided_slice %151 {offsets = [0, 0], sizes = [1, 16], strides = [1, 1]} : vector<1x64xf32> to vector<1x16xf32>
    %cst_118 = arith.constant 0.000000e+00 : f32
    %153 = vector.broadcast %cst_118 : f32 to vector<1x16xf32>
    %154 = arith.subf %153, %152 : vector<1x16xf32>
    %155 = math.exp %154 : vector<1x16xf32>
    %cst_119 = arith.constant 1.000000e+00 : f32
    %156 = vector.broadcast %cst_119 : f32 to vector<1x16xf32>
    %157 = arith.addf %156, %155 : vector<1x16xf32>
    %cst_120 = arith.constant 1.000000e+00 : f32
    %158 = vector.broadcast %cst_120 : f32 to vector<1x16xf32>
    %159 = arith.divf %158, %157 : vector<1x16xf32>
    %160 = vector.extract_strided_slice %151 {offsets = [0, 16], sizes = [1, 16], strides = [1, 1]} : vector<1x64xf32> to vector<1x16xf32>
    %cst_121 = arith.constant 0.000000e+00 : f32
    %161 = vector.broadcast %cst_121 : f32 to vector<1x16xf32>
    %162 = arith.subf %161, %160 : vector<1x16xf32>
    %163 = math.exp %162 : vector<1x16xf32>
    %cst_122 = arith.constant 1.000000e+00 : f32
    %164 = vector.broadcast %cst_122 : f32 to vector<1x16xf32>
    %165 = arith.addf %164, %163 : vector<1x16xf32>
    %cst_123 = arith.constant 1.000000e+00 : f32
    %166 = vector.broadcast %cst_123 : f32 to vector<1x16xf32>
    %167 = arith.divf %166, %165 : vector<1x16xf32>
    %168 = vector.extract_strided_slice %151 {offsets = [0, 32], sizes = [1, 16], strides = [1, 1]} : vector<1x64xf32> to vector<1x16xf32>
    %169 = math.tanh %168 : vector<1x16xf32>
    %170 = vector.extract_strided_slice %151 {offsets = [0, 48], sizes = [1, 16], strides = [1, 1]} : vector<1x64xf32> to vector<1x16xf32>
    %cst_124 = arith.constant 0.000000e+00 : f32
    %171 = vector.broadcast %cst_124 : f32 to vector<1x16xf32>
    %172 = arith.subf %171, %170 : vector<1x16xf32>
    %173 = math.exp %172 : vector<1x16xf32>
    %cst_125 = arith.constant 1.000000e+00 : f32
    %174 = vector.broadcast %cst_125 : f32 to vector<1x16xf32>
    %175 = arith.addf %174, %173 : vector<1x16xf32>
    %cst_126 = arith.constant 1.000000e+00 : f32
    %176 = vector.broadcast %cst_126 : f32 to vector<1x16xf32>
    %177 = arith.divf %176, %175 : vector<1x16xf32>
    %178 = arith.mulf %167, %146 : vector<1x16xf32>
    %179 = arith.mulf %159, %169 : vector<1x16xf32>
    %180 = arith.addf %178, %179 : vector<1x16xf32>
    %181 = math.tanh %180 : vector<1x16xf32>
    %182 = arith.mulf %177, %181 : vector<1x16xf32>
    %183 = vector.extract_strided_slice %44 {offsets = [4, 0], sizes = [1, 64], strides = [1, 1]} : vector<8x64xf32> to vector<1x64xf32>
    %cst_127 = arith.constant dense<0.000000e+00> : vector<1x64xf32>
    %184 = tpu.matmul %182, %4, %cst_127 {dimension_numbers = #tpu.dot_dimension_numbers<[1], [0], [0], [1], [0, 0, 1, 1], [], []>} : vector<1x16xf32>, vector<16x64xf32>, vector<1x64xf32> -> vector<1x64xf32>
    %185 = arith.addf %183, %184 : vector<1x64xf32>
    %186 = vector.extract_strided_slice %185 {offsets = [0, 0], sizes = [1, 16], strides = [1, 1]} : vector<1x64xf32> to vector<1x16xf32>
    %cst_128 = arith.constant 0.000000e+00 : f32
    %187 = vector.broadcast %cst_128 : f32 to vector<1x16xf32>
    %188 = arith.subf %187, %186 : vector<1x16xf32>
    %189 = math.exp %188 : vector<1x16xf32>
    %cst_129 = arith.constant 1.000000e+00 : f32
    %190 = vector.broadcast %cst_129 : f32 to vector<1x16xf32>
    %191 = arith.addf %190, %189 : vector<1x16xf32>
    %cst_130 = arith.constant 1.000000e+00 : f32
    %192 = vector.broadcast %cst_130 : f32 to vector<1x16xf32>
    %193 = arith.divf %192, %191 : vector<1x16xf32>
    %194 = vector.extract_strided_slice %185 {offsets = [0, 16], sizes = [1, 16], strides = [1, 1]} : vector<1x64xf32> to vector<1x16xf32>
    %cst_131 = arith.constant 0.000000e+00 : f32
    %195 = vector.broadcast %cst_131 : f32 to vector<1x16xf32>
    %196 = arith.subf %195, %194 : vector<1x16xf32>
    %197 = math.exp %196 : vector<1x16xf32>
    %cst_132 = arith.constant 1.000000e+00 : f32
    %198 = vector.broadcast %cst_132 : f32 to vector<1x16xf32>
    %199 = arith.addf %198, %197 : vector<1x16xf32>
    %cst_133 = arith.constant 1.000000e+00 : f32
    %200 = vector.broadcast %cst_133 : f32 to vector<1x16xf32>
    %201 = arith.divf %200, %199 : vector<1x16xf32>
    %202 = vector.extract_strided_slice %185 {offsets = [0, 32], sizes = [1, 16], strides = [1, 1]} : vector<1x64xf32> to vector<1x16xf32>
    %203 = math.tanh %202 : vector<1x16xf32>
    %204 = vector.extract_strided_slice %185 {offsets = [0, 48], sizes = [1, 16], strides = [1, 1]} : vector<1x64xf32> to vector<1x16xf32>
    %cst_134 = arith.constant 0.000000e+00 : f32
    %205 = vector.broadcast %cst_134 : f32 to vector<1x16xf32>
    %206 = arith.subf %205, %204 : vector<1x16xf32>
    %207 = math.exp %206 : vector<1x16xf32>
    %cst_135 = arith.constant 1.000000e+00 : f32
    %208 = vector.broadcast %cst_135 : f32 to vector<1x16xf32>
    %209 = arith.addf %208, %207 : vector<1x16xf32>
    %cst_136 = arith.constant 1.000000e+00 : f32
    %210 = vector.broadcast %cst_136 : f32 to vector<1x16xf32>
    %211 = arith.divf %210, %209 : vector<1x16xf32>
    %212 = arith.mulf %201, %180 : vector<1x16xf32>
    %213 = arith.mulf %193, %203 : vector<1x16xf32>
    %214 = arith.addf %212, %213 : vector<1x16xf32>
    %215 = math.tanh %214 : vector<1x16xf32>
    %216 = arith.mulf %211, %215 : vector<1x16xf32>
    %217 = vector.extract_strided_slice %44 {offsets = [5, 0], sizes = [1, 64], strides = [1, 1]} : vector<8x64xf32> to vector<1x64xf32>
    %cst_137 = arith.constant dense<0.000000e+00> : vector<1x64xf32>
    %218 = tpu.matmul %216, %4, %cst_137 {dimension_numbers = #tpu.dot_dimension_numbers<[1], [0], [0], [1], [0, 0, 1, 1], [], []>} : vector<1x16xf32>, vector<16x64xf32>, vector<1x64xf32> -> vector<1x64xf32>
    %219 = arith.addf %217, %218 : vector<1x64xf32>
    %220 = vector.extract_strided_slice %219 {offsets = [0, 0], sizes = [1, 16], strides = [1, 1]} : vector<1x64xf32> to vector<1x16xf32>
    %cst_138 = arith.constant 0.000000e+00 : f32
    %221 = vector.broadcast %cst_138 : f32 to vector<1x16xf32>
    %222 = arith.subf %221, %220 : vector<1x16xf32>
    %223 = math.exp %222 : vector<1x16xf32>
    %cst_139 = arith.constant 1.000000e+00 : f32
    %224 = vector.broadcast %cst_139 : f32 to vector<1x16xf32>
    %225 = arith.addf %224, %223 : vector<1x16xf32>
    %cst_140 = arith.constant 1.000000e+00 : f32
    %226 = vector.broadcast %cst_140 : f32 to vector<1x16xf32>
    %227 = arith.divf %226, %225 : vector<1x16xf32>
    %228 = vector.extract_strided_slice %219 {offsets = [0, 16], sizes = [1, 16], strides = [1, 1]} : vector<1x64xf32> to vector<1x16xf32>
    %cst_141 = arith.constant 0.000000e+00 : f32
    %229 = vector.broadcast %cst_141 : f32 to vector<1x16xf32>
    %230 = arith.subf %229, %228 : vector<1x16xf32>
    %231 = math.exp %230 : vector<1x16xf32>
    %cst_142 = arith.constant 1.000000e+00 : f32
    %232 = vector.broadcast %cst_142 : f32 to vector<1x16xf32>
    %233 = arith.addf %232, %231 : vector<1x16xf32>
    %cst_143 = arith.constant 1.000000e+00 : f32
    %234 = vector.broadcast %cst_143 : f32 to vector<1x16xf32>
    %235 = arith.divf %234, %233 : vector<1x16xf32>
    %236 = vector.extract_strided_slice %219 {offsets = [0, 32], sizes = [1, 16], strides = [1, 1]} : vector<1x64xf32> to vector<1x16xf32>
    %237 = math.tanh %236 : vector<1x16xf32>
    %238 = vector.extract_strided_slice %219 {offsets = [0, 48], sizes = [1, 16], strides = [1, 1]} : vector<1x64xf32> to vector<1x16xf32>
    %cst_144 = arith.constant 0.000000e+00 : f32
    %239 = vector.broadcast %cst_144 : f32 to vector<1x16xf32>
    %240 = arith.subf %239, %238 : vector<1x16xf32>
    %241 = math.exp %240 : vector<1x16xf32>
    %cst_145 = arith.constant 1.000000e+00 : f32
    %242 = vector.broadcast %cst_145 : f32 to vector<1x16xf32>
    %243 = arith.addf %242, %241 : vector<1x16xf32>
    %cst_146 = arith.constant 1.000000e+00 : f32
    %244 = vector.broadcast %cst_146 : f32 to vector<1x16xf32>
    %245 = arith.divf %244, %243 : vector<1x16xf32>
    %246 = arith.mulf %235, %214 : vector<1x16xf32>
    %247 = arith.mulf %227, %237 : vector<1x16xf32>
    %248 = arith.addf %246, %247 : vector<1x16xf32>
    %249 = math.tanh %248 : vector<1x16xf32>
    %250 = arith.mulf %245, %249 : vector<1x16xf32>
    %251 = vector.extract_strided_slice %44 {offsets = [6, 0], sizes = [1, 64], strides = [1, 1]} : vector<8x64xf32> to vector<1x64xf32>
    %cst_147 = arith.constant dense<0.000000e+00> : vector<1x64xf32>
    %252 = tpu.matmul %250, %4, %cst_147 {dimension_numbers = #tpu.dot_dimension_numbers<[1], [0], [0], [1], [0, 0, 1, 1], [], []>} : vector<1x16xf32>, vector<16x64xf32>, vector<1x64xf32> -> vector<1x64xf32>
    %253 = arith.addf %251, %252 : vector<1x64xf32>
    %254 = vector.extract_strided_slice %253 {offsets = [0, 0], sizes = [1, 16], strides = [1, 1]} : vector<1x64xf32> to vector<1x16xf32>
    %cst_148 = arith.constant 0.000000e+00 : f32
    %255 = vector.broadcast %cst_148 : f32 to vector<1x16xf32>
    %256 = arith.subf %255, %254 : vector<1x16xf32>
    %257 = math.exp %256 : vector<1x16xf32>
    %cst_149 = arith.constant 1.000000e+00 : f32
    %258 = vector.broadcast %cst_149 : f32 to vector<1x16xf32>
    %259 = arith.addf %258, %257 : vector<1x16xf32>
    %cst_150 = arith.constant 1.000000e+00 : f32
    %260 = vector.broadcast %cst_150 : f32 to vector<1x16xf32>
    %261 = arith.divf %260, %259 : vector<1x16xf32>
    %262 = vector.extract_strided_slice %253 {offsets = [0, 16], sizes = [1, 16], strides = [1, 1]} : vector<1x64xf32> to vector<1x16xf32>
    %cst_151 = arith.constant 0.000000e+00 : f32
    %263 = vector.broadcast %cst_151 : f32 to vector<1x16xf32>
    %264 = arith.subf %263, %262 : vector<1x16xf32>
    %265 = math.exp %264 : vector<1x16xf32>
    %cst_152 = arith.constant 1.000000e+00 : f32
    %266 = vector.broadcast %cst_152 : f32 to vector<1x16xf32>
    %267 = arith.addf %266, %265 : vector<1x16xf32>
    %cst_153 = arith.constant 1.000000e+00 : f32
    %268 = vector.broadcast %cst_153 : f32 to vector<1x16xf32>
    %269 = arith.divf %268, %267 : vector<1x16xf32>
    %270 = vector.extract_strided_slice %253 {offsets = [0, 32], sizes = [1, 16], strides = [1, 1]} : vector<1x64xf32> to vector<1x16xf32>
    %271 = math.tanh %270 : vector<1x16xf32>
    %272 = vector.extract_strided_slice %253 {offsets = [0, 48], sizes = [1, 16], strides = [1, 1]} : vector<1x64xf32> to vector<1x16xf32>
    %cst_154 = arith.constant 0.000000e+00 : f32
    %273 = vector.broadcast %cst_154 : f32 to vector<1x16xf32>
    %274 = arith.subf %273, %272 : vector<1x16xf32>
    %275 = math.exp %274 : vector<1x16xf32>
    %cst_155 = arith.constant 1.000000e+00 : f32
    %276 = vector.broadcast %cst_155 : f32 to vector<1x16xf32>
    %277 = arith.addf %276, %275 : vector<1x16xf32>
    %cst_156 = arith.constant 1.000000e+00 : f32
    %278 = vector.broadcast %cst_156 : f32 to vector<1x16xf32>
    %279 = arith.divf %278, %277 : vector<1x16xf32>
    %280 = arith.mulf %269, %248 : vector<1x16xf32>
    %281 = arith.mulf %261, %271 : vector<1x16xf32>
    %282 = arith.addf %280, %281 : vector<1x16xf32>
    %283 = math.tanh %282 : vector<1x16xf32>
    %284 = arith.mulf %279, %283 : vector<1x16xf32>
    %285 = vector.extract_strided_slice %44 {offsets = [7, 0], sizes = [1, 64], strides = [1, 1]} : vector<8x64xf32> to vector<1x64xf32>
    %cst_157 = arith.constant dense<0.000000e+00> : vector<1x64xf32>
    %286 = tpu.matmul %284, %4, %cst_157 {dimension_numbers = #tpu.dot_dimension_numbers<[1], [0], [0], [1], [0, 0, 1, 1], [], []>} : vector<1x16xf32>, vector<16x64xf32>, vector<1x64xf32> -> vector<1x64xf32>
    %287 = arith.addf %285, %286 : vector<1x64xf32>
    %288 = vector.extract_strided_slice %287 {offsets = [0, 0], sizes = [1, 16], strides = [1, 1]} : vector<1x64xf32> to vector<1x16xf32>
    %cst_158 = arith.constant 0.000000e+00 : f32
    %289 = vector.broadcast %cst_158 : f32 to vector<1x16xf32>
    %290 = arith.subf %289, %288 : vector<1x16xf32>
    %291 = math.exp %290 : vector<1x16xf32>
    %cst_159 = arith.constant 1.000000e+00 : f32
    %292 = vector.broadcast %cst_159 : f32 to vector<1x16xf32>
    %293 = arith.addf %292, %291 : vector<1x16xf32>
    %cst_160 = arith.constant 1.000000e+00 : f32
    %294 = vector.broadcast %cst_160 : f32 to vector<1x16xf32>
    %295 = arith.divf %294, %293 : vector<1x16xf32>
    %296 = vector.extract_strided_slice %287 {offsets = [0, 16], sizes = [1, 16], strides = [1, 1]} : vector<1x64xf32> to vector<1x16xf32>
    %cst_161 = arith.constant 0.000000e+00 : f32
    %297 = vector.broadcast %cst_161 : f32 to vector<1x16xf32>
    %298 = arith.subf %297, %296 : vector<1x16xf32>
    %299 = math.exp %298 : vector<1x16xf32>
    %cst_162 = arith.constant 1.000000e+00 : f32
    %300 = vector.broadcast %cst_162 : f32 to vector<1x16xf32>
    %301 = arith.addf %300, %299 : vector<1x16xf32>
    %cst_163 = arith.constant 1.000000e+00 : f32
    %302 = vector.broadcast %cst_163 : f32 to vector<1x16xf32>
    %303 = arith.divf %302, %301 : vector<1x16xf32>
    %304 = vector.extract_strided_slice %287 {offsets = [0, 32], sizes = [1, 16], strides = [1, 1]} : vector<1x64xf32> to vector<1x16xf32>
    %305 = math.tanh %304 : vector<1x16xf32>
    %306 = vector.extract_strided_slice %287 {offsets = [0, 48], sizes = [1, 16], strides = [1, 1]} : vector<1x64xf32> to vector<1x16xf32>
    %cst_164 = arith.constant 0.000000e+00 : f32
    %307 = vector.broadcast %cst_164 : f32 to vector<1x16xf32>
    %308 = arith.subf %307, %306 : vector<1x16xf32>
    %309 = math.exp %308 : vector<1x16xf32>
    %cst_165 = arith.constant 1.000000e+00 : f32
    %310 = vector.broadcast %cst_165 : f32 to vector<1x16xf32>
    %311 = arith.addf %310, %309 : vector<1x16xf32>
    %cst_166 = arith.constant 1.000000e+00 : f32
    %312 = vector.broadcast %cst_166 : f32 to vector<1x16xf32>
    %313 = arith.divf %312, %311 : vector<1x16xf32>
    %314 = arith.mulf %303, %282 : vector<1x16xf32>
    %315 = arith.mulf %295, %305 : vector<1x16xf32>
    %316 = arith.addf %314, %315 : vector<1x16xf32>
    %317 = math.tanh %316 : vector<1x16xf32>
    %318 = arith.mulf %313, %317 : vector<1x16xf32>
    %319 = tpu.concatenate %80, %114, %148, %182, %216, %250, %284, %318 in 0 : vector<1x16xf32>, vector<1x16xf32>, vector<1x16xf32>, vector<1x16xf32>, vector<1x16xf32>, vector<1x16xf32>, vector<1x16xf32>, vector<1x16xf32> -> vector<8x16xf32>
    %cst_167 = arith.constant dense<0.000000e+00> : vector<8x64xf32>
    %320 = tpu.matmul %2, %6, %cst_167 {dimension_numbers = #tpu.dot_dimension_numbers<[1], [0], [0], [1], [0, 0, 1, 1], [], []>} : vector<8x48xf32>, vector<48x64xf32>, vector<8x64xf32> -> vector<8x64xf32>
    %321 = vector.broadcast %8 : vector<1x64xf32> to vector<8x64xf32>
    %322 = arith.addf %320, %321 : vector<8x64xf32>
    %cst_168 = arith.constant 0.000000e+00 : f32
    %323 = vector.broadcast %cst_168 : f32 to vector<1x16xf32>
    %cst_169 = arith.constant 0.000000e+00 : f32
    %324 = vector.broadcast %cst_169 : f32 to vector<1x16xf32>
    %325 = vector.extract_strided_slice %322 {offsets = [7, 0], sizes = [1, 64], strides = [1, 1]} : vector<8x64xf32> to vector<1x64xf32>
    %cst_170 = arith.constant dense<0.000000e+00> : vector<1x64xf32>
    %326 = tpu.matmul %323, %7, %cst_170 {dimension_numbers = #tpu.dot_dimension_numbers<[1], [0], [0], [1], [0, 0, 1, 1], [], []>} : vector<1x16xf32>, vector<16x64xf32>, vector<1x64xf32> -> vector<1x64xf32>
    %327 = arith.addf %325, %326 : vector<1x64xf32>
    %328 = vector.extract_strided_slice %327 {offsets = [0, 0], sizes = [1, 16], strides = [1, 1]} : vector<1x64xf32> to vector<1x16xf32>
    %cst_171 = arith.constant 0.000000e+00 : f32
    %329 = vector.broadcast %cst_171 : f32 to vector<1x16xf32>
    %330 = arith.subf %329, %328 : vector<1x16xf32>
    %331 = math.exp %330 : vector<1x16xf32>
    %cst_172 = arith.constant 1.000000e+00 : f32
    %332 = vector.broadcast %cst_172 : f32 to vector<1x16xf32>
    %333 = arith.addf %332, %331 : vector<1x16xf32>
    %cst_173 = arith.constant 1.000000e+00 : f32
    %334 = vector.broadcast %cst_173 : f32 to vector<1x16xf32>
    %335 = arith.divf %334, %333 : vector<1x16xf32>
    %336 = vector.extract_strided_slice %327 {offsets = [0, 16], sizes = [1, 16], strides = [1, 1]} : vector<1x64xf32> to vector<1x16xf32>
    %cst_174 = arith.constant 0.000000e+00 : f32
    %337 = vector.broadcast %cst_174 : f32 to vector<1x16xf32>
    %338 = arith.subf %337, %336 : vector<1x16xf32>
    %339 = math.exp %338 : vector<1x16xf32>
    %cst_175 = arith.constant 1.000000e+00 : f32
    %340 = vector.broadcast %cst_175 : f32 to vector<1x16xf32>
    %341 = arith.addf %340, %339 : vector<1x16xf32>
    %cst_176 = arith.constant 1.000000e+00 : f32
    %342 = vector.broadcast %cst_176 : f32 to vector<1x16xf32>
    %343 = arith.divf %342, %341 : vector<1x16xf32>
    %344 = vector.extract_strided_slice %327 {offsets = [0, 32], sizes = [1, 16], strides = [1, 1]} : vector<1x64xf32> to vector<1x16xf32>
    %345 = math.tanh %344 : vector<1x16xf32>
    %346 = vector.extract_strided_slice %327 {offsets = [0, 48], sizes = [1, 16], strides = [1, 1]} : vector<1x64xf32> to vector<1x16xf32>
    %cst_177 = arith.constant 0.000000e+00 : f32
    %347 = vector.broadcast %cst_177 : f32 to vector<1x16xf32>
    %348 = arith.subf %347, %346 : vector<1x16xf32>
    %349 = math.exp %348 : vector<1x16xf32>
    %cst_178 = arith.constant 1.000000e+00 : f32
    %350 = vector.broadcast %cst_178 : f32 to vector<1x16xf32>
    %351 = arith.addf %350, %349 : vector<1x16xf32>
    %cst_179 = arith.constant 1.000000e+00 : f32
    %352 = vector.broadcast %cst_179 : f32 to vector<1x16xf32>
    %353 = arith.divf %352, %351 : vector<1x16xf32>
    %354 = arith.mulf %343, %324 : vector<1x16xf32>
    %355 = arith.mulf %335, %345 : vector<1x16xf32>
    %356 = arith.addf %354, %355 : vector<1x16xf32>
    %357 = math.tanh %356 : vector<1x16xf32>
    %358 = arith.mulf %353, %357 : vector<1x16xf32>
    %359 = vector.extract_strided_slice %322 {offsets = [6, 0], sizes = [1, 64], strides = [1, 1]} : vector<8x64xf32> to vector<1x64xf32>
    %cst_180 = arith.constant dense<0.000000e+00> : vector<1x64xf32>
    %360 = tpu.matmul %358, %7, %cst_180 {dimension_numbers = #tpu.dot_dimension_numbers<[1], [0], [0], [1], [0, 0, 1, 1], [], []>} : vector<1x16xf32>, vector<16x64xf32>, vector<1x64xf32> -> vector<1x64xf32>
    %361 = arith.addf %359, %360 : vector<1x64xf32>
    %362 = vector.extract_strided_slice %361 {offsets = [0, 0], sizes = [1, 16], strides = [1, 1]} : vector<1x64xf32> to vector<1x16xf32>
    %cst_181 = arith.constant 0.000000e+00 : f32
    %363 = vector.broadcast %cst_181 : f32 to vector<1x16xf32>
    %364 = arith.subf %363, %362 : vector<1x16xf32>
    %365 = math.exp %364 : vector<1x16xf32>
    %cst_182 = arith.constant 1.000000e+00 : f32
    %366 = vector.broadcast %cst_182 : f32 to vector<1x16xf32>
    %367 = arith.addf %366, %365 : vector<1x16xf32>
    %cst_183 = arith.constant 1.000000e+00 : f32
    %368 = vector.broadcast %cst_183 : f32 to vector<1x16xf32>
    %369 = arith.divf %368, %367 : vector<1x16xf32>
    %370 = vector.extract_strided_slice %361 {offsets = [0, 16], sizes = [1, 16], strides = [1, 1]} : vector<1x64xf32> to vector<1x16xf32>
    %cst_184 = arith.constant 0.000000e+00 : f32
    %371 = vector.broadcast %cst_184 : f32 to vector<1x16xf32>
    %372 = arith.subf %371, %370 : vector<1x16xf32>
    %373 = math.exp %372 : vector<1x16xf32>
    %cst_185 = arith.constant 1.000000e+00 : f32
    %374 = vector.broadcast %cst_185 : f32 to vector<1x16xf32>
    %375 = arith.addf %374, %373 : vector<1x16xf32>
    %cst_186 = arith.constant 1.000000e+00 : f32
    %376 = vector.broadcast %cst_186 : f32 to vector<1x16xf32>
    %377 = arith.divf %376, %375 : vector<1x16xf32>
    %378 = vector.extract_strided_slice %361 {offsets = [0, 32], sizes = [1, 16], strides = [1, 1]} : vector<1x64xf32> to vector<1x16xf32>
    %379 = math.tanh %378 : vector<1x16xf32>
    %380 = vector.extract_strided_slice %361 {offsets = [0, 48], sizes = [1, 16], strides = [1, 1]} : vector<1x64xf32> to vector<1x16xf32>
    %cst_187 = arith.constant 0.000000e+00 : f32
    %381 = vector.broadcast %cst_187 : f32 to vector<1x16xf32>
    %382 = arith.subf %381, %380 : vector<1x16xf32>
    %383 = math.exp %382 : vector<1x16xf32>
    %cst_188 = arith.constant 1.000000e+00 : f32
    %384 = vector.broadcast %cst_188 : f32 to vector<1x16xf32>
    %385 = arith.addf %384, %383 : vector<1x16xf32>
    %cst_189 = arith.constant 1.000000e+00 : f32
    %386 = vector.broadcast %cst_189 : f32 to vector<1x16xf32>
    %387 = arith.divf %386, %385 : vector<1x16xf32>
    %388 = arith.mulf %377, %356 : vector<1x16xf32>
    %389 = arith.mulf %369, %379 : vector<1x16xf32>
    %390 = arith.addf %388, %389 : vector<1x16xf32>
    %391 = math.tanh %390 : vector<1x16xf32>
    %392 = arith.mulf %387, %391 : vector<1x16xf32>
    %393 = vector.extract_strided_slice %322 {offsets = [5, 0], sizes = [1, 64], strides = [1, 1]} : vector<8x64xf32> to vector<1x64xf32>
    %cst_190 = arith.constant dense<0.000000e+00> : vector<1x64xf32>
    %394 = tpu.matmul %392, %7, %cst_190 {dimension_numbers = #tpu.dot_dimension_numbers<[1], [0], [0], [1], [0, 0, 1, 1], [], []>} : vector<1x16xf32>, vector<16x64xf32>, vector<1x64xf32> -> vector<1x64xf32>
    %395 = arith.addf %393, %394 : vector<1x64xf32>
    %396 = vector.extract_strided_slice %395 {offsets = [0, 0], sizes = [1, 16], strides = [1, 1]} : vector<1x64xf32> to vector<1x16xf32>
    %cst_191 = arith.constant 0.000000e+00 : f32
    %397 = vector.broadcast %cst_191 : f32 to vector<1x16xf32>
    %398 = arith.subf %397, %396 : vector<1x16xf32>
    %399 = math.exp %398 : vector<1x16xf32>
    %cst_192 = arith.constant 1.000000e+00 : f32
    %400 = vector.broadcast %cst_192 : f32 to vector<1x16xf32>
    %401 = arith.addf %400, %399 : vector<1x16xf32>
    %cst_193 = arith.constant 1.000000e+00 : f32
    %402 = vector.broadcast %cst_193 : f32 to vector<1x16xf32>
    %403 = arith.divf %402, %401 : vector<1x16xf32>
    %404 = vector.extract_strided_slice %395 {offsets = [0, 16], sizes = [1, 16], strides = [1, 1]} : vector<1x64xf32> to vector<1x16xf32>
    %cst_194 = arith.constant 0.000000e+00 : f32
    %405 = vector.broadcast %cst_194 : f32 to vector<1x16xf32>
    %406 = arith.subf %405, %404 : vector<1x16xf32>
    %407 = math.exp %406 : vector<1x16xf32>
    %cst_195 = arith.constant 1.000000e+00 : f32
    %408 = vector.broadcast %cst_195 : f32 to vector<1x16xf32>
    %409 = arith.addf %408, %407 : vector<1x16xf32>
    %cst_196 = arith.constant 1.000000e+00 : f32
    %410 = vector.broadcast %cst_196 : f32 to vector<1x16xf32>
    %411 = arith.divf %410, %409 : vector<1x16xf32>
    %412 = vector.extract_strided_slice %395 {offsets = [0, 32], sizes = [1, 16], strides = [1, 1]} : vector<1x64xf32> to vector<1x16xf32>
    %413 = math.tanh %412 : vector<1x16xf32>
    %414 = vector.extract_strided_slice %395 {offsets = [0, 48], sizes = [1, 16], strides = [1, 1]} : vector<1x64xf32> to vector<1x16xf32>
    %cst_197 = arith.constant 0.000000e+00 : f32
    %415 = vector.broadcast %cst_197 : f32 to vector<1x16xf32>
    %416 = arith.subf %415, %414 : vector<1x16xf32>
    %417 = math.exp %416 : vector<1x16xf32>
    %cst_198 = arith.constant 1.000000e+00 : f32
    %418 = vector.broadcast %cst_198 : f32 to vector<1x16xf32>
    %419 = arith.addf %418, %417 : vector<1x16xf32>
    %cst_199 = arith.constant 1.000000e+00 : f32
    %420 = vector.broadcast %cst_199 : f32 to vector<1x16xf32>
    %421 = arith.divf %420, %419 : vector<1x16xf32>
    %422 = arith.mulf %411, %390 : vector<1x16xf32>
    %423 = arith.mulf %403, %413 : vector<1x16xf32>
    %424 = arith.addf %422, %423 : vector<1x16xf32>
    %425 = math.tanh %424 : vector<1x16xf32>
    %426 = arith.mulf %421, %425 : vector<1x16xf32>
    %427 = vector.extract_strided_slice %322 {offsets = [4, 0], sizes = [1, 64], strides = [1, 1]} : vector<8x64xf32> to vector<1x64xf32>
    %cst_200 = arith.constant dense<0.000000e+00> : vector<1x64xf32>
    %428 = tpu.matmul %426, %7, %cst_200 {dimension_numbers = #tpu.dot_dimension_numbers<[1], [0], [0], [1], [0, 0, 1, 1], [], []>} : vector<1x16xf32>, vector<16x64xf32>, vector<1x64xf32> -> vector<1x64xf32>
    %429 = arith.addf %427, %428 : vector<1x64xf32>
    %430 = vector.extract_strided_slice %429 {offsets = [0, 0], sizes = [1, 16], strides = [1, 1]} : vector<1x64xf32> to vector<1x16xf32>
    %cst_201 = arith.constant 0.000000e+00 : f32
    %431 = vector.broadcast %cst_201 : f32 to vector<1x16xf32>
    %432 = arith.subf %431, %430 : vector<1x16xf32>
    %433 = math.exp %432 : vector<1x16xf32>
    %cst_202 = arith.constant 1.000000e+00 : f32
    %434 = vector.broadcast %cst_202 : f32 to vector<1x16xf32>
    %435 = arith.addf %434, %433 : vector<1x16xf32>
    %cst_203 = arith.constant 1.000000e+00 : f32
    %436 = vector.broadcast %cst_203 : f32 to vector<1x16xf32>
    %437 = arith.divf %436, %435 : vector<1x16xf32>
    %438 = vector.extract_strided_slice %429 {offsets = [0, 16], sizes = [1, 16], strides = [1, 1]} : vector<1x64xf32> to vector<1x16xf32>
    %cst_204 = arith.constant 0.000000e+00 : f32
    %439 = vector.broadcast %cst_204 : f32 to vector<1x16xf32>
    %440 = arith.subf %439, %438 : vector<1x16xf32>
    %441 = math.exp %440 : vector<1x16xf32>
    %cst_205 = arith.constant 1.000000e+00 : f32
    %442 = vector.broadcast %cst_205 : f32 to vector<1x16xf32>
    %443 = arith.addf %442, %441 : vector<1x16xf32>
    %cst_206 = arith.constant 1.000000e+00 : f32
    %444 = vector.broadcast %cst_206 : f32 to vector<1x16xf32>
    %445 = arith.divf %444, %443 : vector<1x16xf32>
    %446 = vector.extract_strided_slice %429 {offsets = [0, 32], sizes = [1, 16], strides = [1, 1]} : vector<1x64xf32> to vector<1x16xf32>
    %447 = math.tanh %446 : vector<1x16xf32>
    %448 = vector.extract_strided_slice %429 {offsets = [0, 48], sizes = [1, 16], strides = [1, 1]} : vector<1x64xf32> to vector<1x16xf32>
    %cst_207 = arith.constant 0.000000e+00 : f32
    %449 = vector.broadcast %cst_207 : f32 to vector<1x16xf32>
    %450 = arith.subf %449, %448 : vector<1x16xf32>
    %451 = math.exp %450 : vector<1x16xf32>
    %cst_208 = arith.constant 1.000000e+00 : f32
    %452 = vector.broadcast %cst_208 : f32 to vector<1x16xf32>
    %453 = arith.addf %452, %451 : vector<1x16xf32>
    %cst_209 = arith.constant 1.000000e+00 : f32
    %454 = vector.broadcast %cst_209 : f32 to vector<1x16xf32>
    %455 = arith.divf %454, %453 : vector<1x16xf32>
    %456 = arith.mulf %445, %424 : vector<1x16xf32>
    %457 = arith.mulf %437, %447 : vector<1x16xf32>
    %458 = arith.addf %456, %457 : vector<1x16xf32>
    %459 = math.tanh %458 : vector<1x16xf32>
    %460 = arith.mulf %455, %459 : vector<1x16xf32>
    %461 = vector.extract_strided_slice %322 {offsets = [3, 0], sizes = [1, 64], strides = [1, 1]} : vector<8x64xf32> to vector<1x64xf32>
    %cst_210 = arith.constant dense<0.000000e+00> : vector<1x64xf32>
    %462 = tpu.matmul %460, %7, %cst_210 {dimension_numbers = #tpu.dot_dimension_numbers<[1], [0], [0], [1], [0, 0, 1, 1], [], []>} : vector<1x16xf32>, vector<16x64xf32>, vector<1x64xf32> -> vector<1x64xf32>
    %463 = arith.addf %461, %462 : vector<1x64xf32>
    %464 = vector.extract_strided_slice %463 {offsets = [0, 0], sizes = [1, 16], strides = [1, 1]} : vector<1x64xf32> to vector<1x16xf32>
    %cst_211 = arith.constant 0.000000e+00 : f32
    %465 = vector.broadcast %cst_211 : f32 to vector<1x16xf32>
    %466 = arith.subf %465, %464 : vector<1x16xf32>
    %467 = math.exp %466 : vector<1x16xf32>
    %cst_212 = arith.constant 1.000000e+00 : f32
    %468 = vector.broadcast %cst_212 : f32 to vector<1x16xf32>
    %469 = arith.addf %468, %467 : vector<1x16xf32>
    %cst_213 = arith.constant 1.000000e+00 : f32
    %470 = vector.broadcast %cst_213 : f32 to vector<1x16xf32>
    %471 = arith.divf %470, %469 : vector<1x16xf32>
    %472 = vector.extract_strided_slice %463 {offsets = [0, 16], sizes = [1, 16], strides = [1, 1]} : vector<1x64xf32> to vector<1x16xf32>
    %cst_214 = arith.constant 0.000000e+00 : f32
    %473 = vector.broadcast %cst_214 : f32 to vector<1x16xf32>
    %474 = arith.subf %473, %472 : vector<1x16xf32>
    %475 = math.exp %474 : vector<1x16xf32>
    %cst_215 = arith.constant 1.000000e+00 : f32
    %476 = vector.broadcast %cst_215 : f32 to vector<1x16xf32>
    %477 = arith.addf %476, %475 : vector<1x16xf32>
    %cst_216 = arith.constant 1.000000e+00 : f32
    %478 = vector.broadcast %cst_216 : f32 to vector<1x16xf32>
    %479 = arith.divf %478, %477 : vector<1x16xf32>
    %480 = vector.extract_strided_slice %463 {offsets = [0, 32], sizes = [1, 16], strides = [1, 1]} : vector<1x64xf32> to vector<1x16xf32>
    %481 = math.tanh %480 : vector<1x16xf32>
    %482 = vector.extract_strided_slice %463 {offsets = [0, 48], sizes = [1, 16], strides = [1, 1]} : vector<1x64xf32> to vector<1x16xf32>
    %cst_217 = arith.constant 0.000000e+00 : f32
    %483 = vector.broadcast %cst_217 : f32 to vector<1x16xf32>
    %484 = arith.subf %483, %482 : vector<1x16xf32>
    %485 = math.exp %484 : vector<1x16xf32>
    %cst_218 = arith.constant 1.000000e+00 : f32
    %486 = vector.broadcast %cst_218 : f32 to vector<1x16xf32>
    %487 = arith.addf %486, %485 : vector<1x16xf32>
    %cst_219 = arith.constant 1.000000e+00 : f32
    %488 = vector.broadcast %cst_219 : f32 to vector<1x16xf32>
    %489 = arith.divf %488, %487 : vector<1x16xf32>
    %490 = arith.mulf %479, %458 : vector<1x16xf32>
    %491 = arith.mulf %471, %481 : vector<1x16xf32>
    %492 = arith.addf %490, %491 : vector<1x16xf32>
    %493 = math.tanh %492 : vector<1x16xf32>
    %494 = arith.mulf %489, %493 : vector<1x16xf32>
    %495 = vector.extract_strided_slice %322 {offsets = [2, 0], sizes = [1, 64], strides = [1, 1]} : vector<8x64xf32> to vector<1x64xf32>
    %cst_220 = arith.constant dense<0.000000e+00> : vector<1x64xf32>
    %496 = tpu.matmul %494, %7, %cst_220 {dimension_numbers = #tpu.dot_dimension_numbers<[1], [0], [0], [1], [0, 0, 1, 1], [], []>} : vector<1x16xf32>, vector<16x64xf32>, vector<1x64xf32> -> vector<1x64xf32>
    %497 = arith.addf %495, %496 : vector<1x64xf32>
    %498 = vector.extract_strided_slice %497 {offsets = [0, 0], sizes = [1, 16], strides = [1, 1]} : vector<1x64xf32> to vector<1x16xf32>
    %cst_221 = arith.constant 0.000000e+00 : f32
    %499 = vector.broadcast %cst_221 : f32 to vector<1x16xf32>
    %500 = arith.subf %499, %498 : vector<1x16xf32>
    %501 = math.exp %500 : vector<1x16xf32>
    %cst_222 = arith.constant 1.000000e+00 : f32
    %502 = vector.broadcast %cst_222 : f32 to vector<1x16xf32>
    %503 = arith.addf %502, %501 : vector<1x16xf32>
    %cst_223 = arith.constant 1.000000e+00 : f32
    %504 = vector.broadcast %cst_223 : f32 to vector<1x16xf32>
    %505 = arith.divf %504, %503 : vector<1x16xf32>
    %506 = vector.extract_strided_slice %497 {offsets = [0, 16], sizes = [1, 16], strides = [1, 1]} : vector<1x64xf32> to vector<1x16xf32>
    %cst_224 = arith.constant 0.000000e+00 : f32
    %507 = vector.broadcast %cst_224 : f32 to vector<1x16xf32>
    %508 = arith.subf %507, %506 : vector<1x16xf32>
    %509 = math.exp %508 : vector<1x16xf32>
    %cst_225 = arith.constant 1.000000e+00 : f32
    %510 = vector.broadcast %cst_225 : f32 to vector<1x16xf32>
    %511 = arith.addf %510, %509 : vector<1x16xf32>
    %cst_226 = arith.constant 1.000000e+00 : f32
    %512 = vector.broadcast %cst_226 : f32 to vector<1x16xf32>
    %513 = arith.divf %512, %511 : vector<1x16xf32>
    %514 = vector.extract_strided_slice %497 {offsets = [0, 32], sizes = [1, 16], strides = [1, 1]} : vector<1x64xf32> to vector<1x16xf32>
    %515 = math.tanh %514 : vector<1x16xf32>
    %516 = vector.extract_strided_slice %497 {offsets = [0, 48], sizes = [1, 16], strides = [1, 1]} : vector<1x64xf32> to vector<1x16xf32>
    %cst_227 = arith.constant 0.000000e+00 : f32
    %517 = vector.broadcast %cst_227 : f32 to vector<1x16xf32>
    %518 = arith.subf %517, %516 : vector<1x16xf32>
    %519 = math.exp %518 : vector<1x16xf32>
    %cst_228 = arith.constant 1.000000e+00 : f32
    %520 = vector.broadcast %cst_228 : f32 to vector<1x16xf32>
    %521 = arith.addf %520, %519 : vector<1x16xf32>
    %cst_229 = arith.constant 1.000000e+00 : f32
    %522 = vector.broadcast %cst_229 : f32 to vector<1x16xf32>
    %523 = arith.divf %522, %521 : vector<1x16xf32>
    %524 = arith.mulf %513, %492 : vector<1x16xf32>
    %525 = arith.mulf %505, %515 : vector<1x16xf32>
    %526 = arith.addf %524, %525 : vector<1x16xf32>
    %527 = math.tanh %526 : vector<1x16xf32>
    %528 = arith.mulf %523, %527 : vector<1x16xf32>
    %529 = vector.extract_strided_slice %322 {offsets = [1, 0], sizes = [1, 64], strides = [1, 1]} : vector<8x64xf32> to vector<1x64xf32>
    %cst_230 = arith.constant dense<0.000000e+00> : vector<1x64xf32>
    %530 = tpu.matmul %528, %7, %cst_230 {dimension_numbers = #tpu.dot_dimension_numbers<[1], [0], [0], [1], [0, 0, 1, 1], [], []>} : vector<1x16xf32>, vector<16x64xf32>, vector<1x64xf32> -> vector<1x64xf32>
    %531 = arith.addf %529, %530 : vector<1x64xf32>
    %532 = vector.extract_strided_slice %531 {offsets = [0, 0], sizes = [1, 16], strides = [1, 1]} : vector<1x64xf32> to vector<1x16xf32>
    %cst_231 = arith.constant 0.000000e+00 : f32
    %533 = vector.broadcast %cst_231 : f32 to vector<1x16xf32>
    %534 = arith.subf %533, %532 : vector<1x16xf32>
    %535 = math.exp %534 : vector<1x16xf32>
    %cst_232 = arith.constant 1.000000e+00 : f32
    %536 = vector.broadcast %cst_232 : f32 to vector<1x16xf32>
    %537 = arith.addf %536, %535 : vector<1x16xf32>
    %cst_233 = arith.constant 1.000000e+00 : f32
    %538 = vector.broadcast %cst_233 : f32 to vector<1x16xf32>
    %539 = arith.divf %538, %537 : vector<1x16xf32>
    %540 = vector.extract_strided_slice %531 {offsets = [0, 16], sizes = [1, 16], strides = [1, 1]} : vector<1x64xf32> to vector<1x16xf32>
    %cst_234 = arith.constant 0.000000e+00 : f32
    %541 = vector.broadcast %cst_234 : f32 to vector<1x16xf32>
    %542 = arith.subf %541, %540 : vector<1x16xf32>
    %543 = math.exp %542 : vector<1x16xf32>
    %cst_235 = arith.constant 1.000000e+00 : f32
    %544 = vector.broadcast %cst_235 : f32 to vector<1x16xf32>
    %545 = arith.addf %544, %543 : vector<1x16xf32>
    %cst_236 = arith.constant 1.000000e+00 : f32
    %546 = vector.broadcast %cst_236 : f32 to vector<1x16xf32>
    %547 = arith.divf %546, %545 : vector<1x16xf32>
    %548 = vector.extract_strided_slice %531 {offsets = [0, 32], sizes = [1, 16], strides = [1, 1]} : vector<1x64xf32> to vector<1x16xf32>
    %549 = math.tanh %548 : vector<1x16xf32>
    %550 = vector.extract_strided_slice %531 {offsets = [0, 48], sizes = [1, 16], strides = [1, 1]} : vector<1x64xf32> to vector<1x16xf32>
    %cst_237 = arith.constant 0.000000e+00 : f32
    %551 = vector.broadcast %cst_237 : f32 to vector<1x16xf32>
    %552 = arith.subf %551, %550 : vector<1x16xf32>
    %553 = math.exp %552 : vector<1x16xf32>
    %cst_238 = arith.constant 1.000000e+00 : f32
    %554 = vector.broadcast %cst_238 : f32 to vector<1x16xf32>
    %555 = arith.addf %554, %553 : vector<1x16xf32>
    %cst_239 = arith.constant 1.000000e+00 : f32
    %556 = vector.broadcast %cst_239 : f32 to vector<1x16xf32>
    %557 = arith.divf %556, %555 : vector<1x16xf32>
    %558 = arith.mulf %547, %526 : vector<1x16xf32>
    %559 = arith.mulf %539, %549 : vector<1x16xf32>
    %560 = arith.addf %558, %559 : vector<1x16xf32>
    %561 = math.tanh %560 : vector<1x16xf32>
    %562 = arith.mulf %557, %561 : vector<1x16xf32>
    %563 = vector.extract_strided_slice %322 {offsets = [0, 0], sizes = [1, 64], strides = [1, 1]} : vector<8x64xf32> to vector<1x64xf32>
    %cst_240 = arith.constant dense<0.000000e+00> : vector<1x64xf32>
    %564 = tpu.matmul %562, %7, %cst_240 {dimension_numbers = #tpu.dot_dimension_numbers<[1], [0], [0], [1], [0, 0, 1, 1], [], []>} : vector<1x16xf32>, vector<16x64xf32>, vector<1x64xf32> -> vector<1x64xf32>
    %565 = arith.addf %563, %564 : vector<1x64xf32>
    %566 = vector.extract_strided_slice %565 {offsets = [0, 0], sizes = [1, 16], strides = [1, 1]} : vector<1x64xf32> to vector<1x16xf32>
    %cst_241 = arith.constant 0.000000e+00 : f32
    %567 = vector.broadcast %cst_241 : f32 to vector<1x16xf32>
    %568 = arith.subf %567, %566 : vector<1x16xf32>
    %569 = math.exp %568 : vector<1x16xf32>
    %cst_242 = arith.constant 1.000000e+00 : f32
    %570 = vector.broadcast %cst_242 : f32 to vector<1x16xf32>
    %571 = arith.addf %570, %569 : vector<1x16xf32>
    %cst_243 = arith.constant 1.000000e+00 : f32
    %572 = vector.broadcast %cst_243 : f32 to vector<1x16xf32>
    %573 = arith.divf %572, %571 : vector<1x16xf32>
    %574 = vector.extract_strided_slice %565 {offsets = [0, 16], sizes = [1, 16], strides = [1, 1]} : vector<1x64xf32> to vector<1x16xf32>
    %cst_244 = arith.constant 0.000000e+00 : f32
    %575 = vector.broadcast %cst_244 : f32 to vector<1x16xf32>
    %576 = arith.subf %575, %574 : vector<1x16xf32>
    %577 = math.exp %576 : vector<1x16xf32>
    %cst_245 = arith.constant 1.000000e+00 : f32
    %578 = vector.broadcast %cst_245 : f32 to vector<1x16xf32>
    %579 = arith.addf %578, %577 : vector<1x16xf32>
    %cst_246 = arith.constant 1.000000e+00 : f32
    %580 = vector.broadcast %cst_246 : f32 to vector<1x16xf32>
    %581 = arith.divf %580, %579 : vector<1x16xf32>
    %582 = vector.extract_strided_slice %565 {offsets = [0, 32], sizes = [1, 16], strides = [1, 1]} : vector<1x64xf32> to vector<1x16xf32>
    %583 = math.tanh %582 : vector<1x16xf32>
    %584 = vector.extract_strided_slice %565 {offsets = [0, 48], sizes = [1, 16], strides = [1, 1]} : vector<1x64xf32> to vector<1x16xf32>
    %cst_247 = arith.constant 0.000000e+00 : f32
    %585 = vector.broadcast %cst_247 : f32 to vector<1x16xf32>
    %586 = arith.subf %585, %584 : vector<1x16xf32>
    %587 = math.exp %586 : vector<1x16xf32>
    %cst_248 = arith.constant 1.000000e+00 : f32
    %588 = vector.broadcast %cst_248 : f32 to vector<1x16xf32>
    %589 = arith.addf %588, %587 : vector<1x16xf32>
    %cst_249 = arith.constant 1.000000e+00 : f32
    %590 = vector.broadcast %cst_249 : f32 to vector<1x16xf32>
    %591 = arith.divf %590, %589 : vector<1x16xf32>
    %592 = arith.mulf %581, %560 : vector<1x16xf32>
    %593 = arith.mulf %573, %583 : vector<1x16xf32>
    %594 = arith.addf %592, %593 : vector<1x16xf32>
    %595 = math.tanh %594 : vector<1x16xf32>
    %596 = arith.mulf %591, %595 : vector<1x16xf32>
    %597 = tpu.concatenate %596, %562, %528, %494, %460, %426, %392, %358 in 0 : vector<1x16xf32>, vector<1x16xf32>, vector<1x16xf32>, vector<1x16xf32>, vector<1x16xf32>, vector<1x16xf32>, vector<1x16xf32>, vector<1x16xf32> -> vector<8x16xf32>
    %598 = tpu.concatenate %319, %597 in 1 : vector<8x16xf32>, vector<8x16xf32> -> vector<8x32xf32>
    %cst_250 = arith.constant dense<0.000000e+00> : vector<8x64xf32>
    %599 = tpu.matmul %598, %9, %cst_250 {dimension_numbers = #tpu.dot_dimension_numbers<[1], [0], [0], [1], [0, 0, 1, 1], [], []>} : vector<8x32xf32>, vector<32x64xf32>, vector<8x64xf32> -> vector<8x64xf32>
    %600 = vector.broadcast %11 : vector<1x64xf32> to vector<8x64xf32>
    %601 = arith.addf %599, %600 : vector<8x64xf32>
    %cst_251 = arith.constant 0.000000e+00 : f32
    %602 = vector.broadcast %cst_251 : f32 to vector<1x16xf32>
    %cst_252 = arith.constant 0.000000e+00 : f32
    %603 = vector.broadcast %cst_252 : f32 to vector<1x16xf32>
    %604 = vector.extract_strided_slice %601 {offsets = [0, 0], sizes = [1, 64], strides = [1, 1]} : vector<8x64xf32> to vector<1x64xf32>
    %cst_253 = arith.constant dense<0.000000e+00> : vector<1x64xf32>
    %605 = tpu.matmul %602, %10, %cst_253 {dimension_numbers = #tpu.dot_dimension_numbers<[1], [0], [0], [1], [0, 0, 1, 1], [], []>} : vector<1x16xf32>, vector<16x64xf32>, vector<1x64xf32> -> vector<1x64xf32>
    %606 = arith.addf %604, %605 : vector<1x64xf32>
    %607 = vector.extract_strided_slice %606 {offsets = [0, 0], sizes = [1, 16], strides = [1, 1]} : vector<1x64xf32> to vector<1x16xf32>
    %cst_254 = arith.constant 0.000000e+00 : f32
    %608 = vector.broadcast %cst_254 : f32 to vector<1x16xf32>
    %609 = arith.subf %608, %607 : vector<1x16xf32>
    %610 = math.exp %609 : vector<1x16xf32>
    %cst_255 = arith.constant 1.000000e+00 : f32
    %611 = vector.broadcast %cst_255 : f32 to vector<1x16xf32>
    %612 = arith.addf %611, %610 : vector<1x16xf32>
    %cst_256 = arith.constant 1.000000e+00 : f32
    %613 = vector.broadcast %cst_256 : f32 to vector<1x16xf32>
    %614 = arith.divf %613, %612 : vector<1x16xf32>
    %615 = vector.extract_strided_slice %606 {offsets = [0, 16], sizes = [1, 16], strides = [1, 1]} : vector<1x64xf32> to vector<1x16xf32>
    %cst_257 = arith.constant 0.000000e+00 : f32
    %616 = vector.broadcast %cst_257 : f32 to vector<1x16xf32>
    %617 = arith.subf %616, %615 : vector<1x16xf32>
    %618 = math.exp %617 : vector<1x16xf32>
    %cst_258 = arith.constant 1.000000e+00 : f32
    %619 = vector.broadcast %cst_258 : f32 to vector<1x16xf32>
    %620 = arith.addf %619, %618 : vector<1x16xf32>
    %cst_259 = arith.constant 1.000000e+00 : f32
    %621 = vector.broadcast %cst_259 : f32 to vector<1x16xf32>
    %622 = arith.divf %621, %620 : vector<1x16xf32>
    %623 = vector.extract_strided_slice %606 {offsets = [0, 32], sizes = [1, 16], strides = [1, 1]} : vector<1x64xf32> to vector<1x16xf32>
    %624 = math.tanh %623 : vector<1x16xf32>
    %625 = vector.extract_strided_slice %606 {offsets = [0, 48], sizes = [1, 16], strides = [1, 1]} : vector<1x64xf32> to vector<1x16xf32>
    %cst_260 = arith.constant 0.000000e+00 : f32
    %626 = vector.broadcast %cst_260 : f32 to vector<1x16xf32>
    %627 = arith.subf %626, %625 : vector<1x16xf32>
    %628 = math.exp %627 : vector<1x16xf32>
    %cst_261 = arith.constant 1.000000e+00 : f32
    %629 = vector.broadcast %cst_261 : f32 to vector<1x16xf32>
    %630 = arith.addf %629, %628 : vector<1x16xf32>
    %cst_262 = arith.constant 1.000000e+00 : f32
    %631 = vector.broadcast %cst_262 : f32 to vector<1x16xf32>
    %632 = arith.divf %631, %630 : vector<1x16xf32>
    %633 = arith.mulf %622, %603 : vector<1x16xf32>
    %634 = arith.mulf %614, %624 : vector<1x16xf32>
    %635 = arith.addf %633, %634 : vector<1x16xf32>
    %636 = math.tanh %635 : vector<1x16xf32>
    %637 = arith.mulf %632, %636 : vector<1x16xf32>
    %638 = vector.extract_strided_slice %601 {offsets = [1, 0], sizes = [1, 64], strides = [1, 1]} : vector<8x64xf32> to vector<1x64xf32>
    %cst_263 = arith.constant dense<0.000000e+00> : vector<1x64xf32>
    %639 = tpu.matmul %637, %10, %cst_263 {dimension_numbers = #tpu.dot_dimension_numbers<[1], [0], [0], [1], [0, 0, 1, 1], [], []>} : vector<1x16xf32>, vector<16x64xf32>, vector<1x64xf32> -> vector<1x64xf32>
    %640 = arith.addf %638, %639 : vector<1x64xf32>
    %641 = vector.extract_strided_slice %640 {offsets = [0, 0], sizes = [1, 16], strides = [1, 1]} : vector<1x64xf32> to vector<1x16xf32>
    %cst_264 = arith.constant 0.000000e+00 : f32
    %642 = vector.broadcast %cst_264 : f32 to vector<1x16xf32>
    %643 = arith.subf %642, %641 : vector<1x16xf32>
    %644 = math.exp %643 : vector<1x16xf32>
    %cst_265 = arith.constant 1.000000e+00 : f32
    %645 = vector.broadcast %cst_265 : f32 to vector<1x16xf32>
    %646 = arith.addf %645, %644 : vector<1x16xf32>
    %cst_266 = arith.constant 1.000000e+00 : f32
    %647 = vector.broadcast %cst_266 : f32 to vector<1x16xf32>
    %648 = arith.divf %647, %646 : vector<1x16xf32>
    %649 = vector.extract_strided_slice %640 {offsets = [0, 16], sizes = [1, 16], strides = [1, 1]} : vector<1x64xf32> to vector<1x16xf32>
    %cst_267 = arith.constant 0.000000e+00 : f32
    %650 = vector.broadcast %cst_267 : f32 to vector<1x16xf32>
    %651 = arith.subf %650, %649 : vector<1x16xf32>
    %652 = math.exp %651 : vector<1x16xf32>
    %cst_268 = arith.constant 1.000000e+00 : f32
    %653 = vector.broadcast %cst_268 : f32 to vector<1x16xf32>
    %654 = arith.addf %653, %652 : vector<1x16xf32>
    %cst_269 = arith.constant 1.000000e+00 : f32
    %655 = vector.broadcast %cst_269 : f32 to vector<1x16xf32>
    %656 = arith.divf %655, %654 : vector<1x16xf32>
    %657 = vector.extract_strided_slice %640 {offsets = [0, 32], sizes = [1, 16], strides = [1, 1]} : vector<1x64xf32> to vector<1x16xf32>
    %658 = math.tanh %657 : vector<1x16xf32>
    %659 = vector.extract_strided_slice %640 {offsets = [0, 48], sizes = [1, 16], strides = [1, 1]} : vector<1x64xf32> to vector<1x16xf32>
    %cst_270 = arith.constant 0.000000e+00 : f32
    %660 = vector.broadcast %cst_270 : f32 to vector<1x16xf32>
    %661 = arith.subf %660, %659 : vector<1x16xf32>
    %662 = math.exp %661 : vector<1x16xf32>
    %cst_271 = arith.constant 1.000000e+00 : f32
    %663 = vector.broadcast %cst_271 : f32 to vector<1x16xf32>
    %664 = arith.addf %663, %662 : vector<1x16xf32>
    %cst_272 = arith.constant 1.000000e+00 : f32
    %665 = vector.broadcast %cst_272 : f32 to vector<1x16xf32>
    %666 = arith.divf %665, %664 : vector<1x16xf32>
    %667 = arith.mulf %656, %635 : vector<1x16xf32>
    %668 = arith.mulf %648, %658 : vector<1x16xf32>
    %669 = arith.addf %667, %668 : vector<1x16xf32>
    %670 = math.tanh %669 : vector<1x16xf32>
    %671 = arith.mulf %666, %670 : vector<1x16xf32>
    %672 = vector.extract_strided_slice %601 {offsets = [2, 0], sizes = [1, 64], strides = [1, 1]} : vector<8x64xf32> to vector<1x64xf32>
    %cst_273 = arith.constant dense<0.000000e+00> : vector<1x64xf32>
    %673 = tpu.matmul %671, %10, %cst_273 {dimension_numbers = #tpu.dot_dimension_numbers<[1], [0], [0], [1], [0, 0, 1, 1], [], []>} : vector<1x16xf32>, vector<16x64xf32>, vector<1x64xf32> -> vector<1x64xf32>
    %674 = arith.addf %672, %673 : vector<1x64xf32>
    %675 = vector.extract_strided_slice %674 {offsets = [0, 0], sizes = [1, 16], strides = [1, 1]} : vector<1x64xf32> to vector<1x16xf32>
    %cst_274 = arith.constant 0.000000e+00 : f32
    %676 = vector.broadcast %cst_274 : f32 to vector<1x16xf32>
    %677 = arith.subf %676, %675 : vector<1x16xf32>
    %678 = math.exp %677 : vector<1x16xf32>
    %cst_275 = arith.constant 1.000000e+00 : f32
    %679 = vector.broadcast %cst_275 : f32 to vector<1x16xf32>
    %680 = arith.addf %679, %678 : vector<1x16xf32>
    %cst_276 = arith.constant 1.000000e+00 : f32
    %681 = vector.broadcast %cst_276 : f32 to vector<1x16xf32>
    %682 = arith.divf %681, %680 : vector<1x16xf32>
    %683 = vector.extract_strided_slice %674 {offsets = [0, 16], sizes = [1, 16], strides = [1, 1]} : vector<1x64xf32> to vector<1x16xf32>
    %cst_277 = arith.constant 0.000000e+00 : f32
    %684 = vector.broadcast %cst_277 : f32 to vector<1x16xf32>
    %685 = arith.subf %684, %683 : vector<1x16xf32>
    %686 = math.exp %685 : vector<1x16xf32>
    %cst_278 = arith.constant 1.000000e+00 : f32
    %687 = vector.broadcast %cst_278 : f32 to vector<1x16xf32>
    %688 = arith.addf %687, %686 : vector<1x16xf32>
    %cst_279 = arith.constant 1.000000e+00 : f32
    %689 = vector.broadcast %cst_279 : f32 to vector<1x16xf32>
    %690 = arith.divf %689, %688 : vector<1x16xf32>
    %691 = vector.extract_strided_slice %674 {offsets = [0, 32], sizes = [1, 16], strides = [1, 1]} : vector<1x64xf32> to vector<1x16xf32>
    %692 = math.tanh %691 : vector<1x16xf32>
    %693 = vector.extract_strided_slice %674 {offsets = [0, 48], sizes = [1, 16], strides = [1, 1]} : vector<1x64xf32> to vector<1x16xf32>
    %cst_280 = arith.constant 0.000000e+00 : f32
    %694 = vector.broadcast %cst_280 : f32 to vector<1x16xf32>
    %695 = arith.subf %694, %693 : vector<1x16xf32>
    %696 = math.exp %695 : vector<1x16xf32>
    %cst_281 = arith.constant 1.000000e+00 : f32
    %697 = vector.broadcast %cst_281 : f32 to vector<1x16xf32>
    %698 = arith.addf %697, %696 : vector<1x16xf32>
    %cst_282 = arith.constant 1.000000e+00 : f32
    %699 = vector.broadcast %cst_282 : f32 to vector<1x16xf32>
    %700 = arith.divf %699, %698 : vector<1x16xf32>
    %701 = arith.mulf %690, %669 : vector<1x16xf32>
    %702 = arith.mulf %682, %692 : vector<1x16xf32>
    %703 = arith.addf %701, %702 : vector<1x16xf32>
    %704 = math.tanh %703 : vector<1x16xf32>
    %705 = arith.mulf %700, %704 : vector<1x16xf32>
    %706 = vector.extract_strided_slice %601 {offsets = [3, 0], sizes = [1, 64], strides = [1, 1]} : vector<8x64xf32> to vector<1x64xf32>
    %cst_283 = arith.constant dense<0.000000e+00> : vector<1x64xf32>
    %707 = tpu.matmul %705, %10, %cst_283 {dimension_numbers = #tpu.dot_dimension_numbers<[1], [0], [0], [1], [0, 0, 1, 1], [], []>} : vector<1x16xf32>, vector<16x64xf32>, vector<1x64xf32> -> vector<1x64xf32>
    %708 = arith.addf %706, %707 : vector<1x64xf32>
    %709 = vector.extract_strided_slice %708 {offsets = [0, 0], sizes = [1, 16], strides = [1, 1]} : vector<1x64xf32> to vector<1x16xf32>
    %cst_284 = arith.constant 0.000000e+00 : f32
    %710 = vector.broadcast %cst_284 : f32 to vector<1x16xf32>
    %711 = arith.subf %710, %709 : vector<1x16xf32>
    %712 = math.exp %711 : vector<1x16xf32>
    %cst_285 = arith.constant 1.000000e+00 : f32
    %713 = vector.broadcast %cst_285 : f32 to vector<1x16xf32>
    %714 = arith.addf %713, %712 : vector<1x16xf32>
    %cst_286 = arith.constant 1.000000e+00 : f32
    %715 = vector.broadcast %cst_286 : f32 to vector<1x16xf32>
    %716 = arith.divf %715, %714 : vector<1x16xf32>
    %717 = vector.extract_strided_slice %708 {offsets = [0, 16], sizes = [1, 16], strides = [1, 1]} : vector<1x64xf32> to vector<1x16xf32>
    %cst_287 = arith.constant 0.000000e+00 : f32
    %718 = vector.broadcast %cst_287 : f32 to vector<1x16xf32>
    %719 = arith.subf %718, %717 : vector<1x16xf32>
    %720 = math.exp %719 : vector<1x16xf32>
    %cst_288 = arith.constant 1.000000e+00 : f32
    %721 = vector.broadcast %cst_288 : f32 to vector<1x16xf32>
    %722 = arith.addf %721, %720 : vector<1x16xf32>
    %cst_289 = arith.constant 1.000000e+00 : f32
    %723 = vector.broadcast %cst_289 : f32 to vector<1x16xf32>
    %724 = arith.divf %723, %722 : vector<1x16xf32>
    %725 = vector.extract_strided_slice %708 {offsets = [0, 32], sizes = [1, 16], strides = [1, 1]} : vector<1x64xf32> to vector<1x16xf32>
    %726 = math.tanh %725 : vector<1x16xf32>
    %727 = vector.extract_strided_slice %708 {offsets = [0, 48], sizes = [1, 16], strides = [1, 1]} : vector<1x64xf32> to vector<1x16xf32>
    %cst_290 = arith.constant 0.000000e+00 : f32
    %728 = vector.broadcast %cst_290 : f32 to vector<1x16xf32>
    %729 = arith.subf %728, %727 : vector<1x16xf32>
    %730 = math.exp %729 : vector<1x16xf32>
    %cst_291 = arith.constant 1.000000e+00 : f32
    %731 = vector.broadcast %cst_291 : f32 to vector<1x16xf32>
    %732 = arith.addf %731, %730 : vector<1x16xf32>
    %cst_292 = arith.constant 1.000000e+00 : f32
    %733 = vector.broadcast %cst_292 : f32 to vector<1x16xf32>
    %734 = arith.divf %733, %732 : vector<1x16xf32>
    %735 = arith.mulf %724, %703 : vector<1x16xf32>
    %736 = arith.mulf %716, %726 : vector<1x16xf32>
    %737 = arith.addf %735, %736 : vector<1x16xf32>
    %738 = math.tanh %737 : vector<1x16xf32>
    %739 = arith.mulf %734, %738 : vector<1x16xf32>
    %740 = vector.extract_strided_slice %601 {offsets = [4, 0], sizes = [1, 64], strides = [1, 1]} : vector<8x64xf32> to vector<1x64xf32>
    %cst_293 = arith.constant dense<0.000000e+00> : vector<1x64xf32>
    %741 = tpu.matmul %739, %10, %cst_293 {dimension_numbers = #tpu.dot_dimension_numbers<[1], [0], [0], [1], [0, 0, 1, 1], [], []>} : vector<1x16xf32>, vector<16x64xf32>, vector<1x64xf32> -> vector<1x64xf32>
    %742 = arith.addf %740, %741 : vector<1x64xf32>
    %743 = vector.extract_strided_slice %742 {offsets = [0, 0], sizes = [1, 16], strides = [1, 1]} : vector<1x64xf32> to vector<1x16xf32>
    %cst_294 = arith.constant 0.000000e+00 : f32
    %744 = vector.broadcast %cst_294 : f32 to vector<1x16xf32>
    %745 = arith.subf %744, %743 : vector<1x16xf32>
    %746 = math.exp %745 : vector<1x16xf32>
    %cst_295 = arith.constant 1.000000e+00 : f32
    %747 = vector.broadcast %cst_295 : f32 to vector<1x16xf32>
    %748 = arith.addf %747, %746 : vector<1x16xf32>
    %cst_296 = arith.constant 1.000000e+00 : f32
    %749 = vector.broadcast %cst_296 : f32 to vector<1x16xf32>
    %750 = arith.divf %749, %748 : vector<1x16xf32>
    %751 = vector.extract_strided_slice %742 {offsets = [0, 16], sizes = [1, 16], strides = [1, 1]} : vector<1x64xf32> to vector<1x16xf32>
    %cst_297 = arith.constant 0.000000e+00 : f32
    %752 = vector.broadcast %cst_297 : f32 to vector<1x16xf32>
    %753 = arith.subf %752, %751 : vector<1x16xf32>
    %754 = math.exp %753 : vector<1x16xf32>
    %cst_298 = arith.constant 1.000000e+00 : f32
    %755 = vector.broadcast %cst_298 : f32 to vector<1x16xf32>
    %756 = arith.addf %755, %754 : vector<1x16xf32>
    %cst_299 = arith.constant 1.000000e+00 : f32
    %757 = vector.broadcast %cst_299 : f32 to vector<1x16xf32>
    %758 = arith.divf %757, %756 : vector<1x16xf32>
    %759 = vector.extract_strided_slice %742 {offsets = [0, 32], sizes = [1, 16], strides = [1, 1]} : vector<1x64xf32> to vector<1x16xf32>
    %760 = math.tanh %759 : vector<1x16xf32>
    %761 = vector.extract_strided_slice %742 {offsets = [0, 48], sizes = [1, 16], strides = [1, 1]} : vector<1x64xf32> to vector<1x16xf32>
    %cst_300 = arith.constant 0.000000e+00 : f32
    %762 = vector.broadcast %cst_300 : f32 to vector<1x16xf32>
    %763 = arith.subf %762, %761 : vector<1x16xf32>
    %764 = math.exp %763 : vector<1x16xf32>
    %cst_301 = arith.constant 1.000000e+00 : f32
    %765 = vector.broadcast %cst_301 : f32 to vector<1x16xf32>
    %766 = arith.addf %765, %764 : vector<1x16xf32>
    %cst_302 = arith.constant 1.000000e+00 : f32
    %767 = vector.broadcast %cst_302 : f32 to vector<1x16xf32>
    %768 = arith.divf %767, %766 : vector<1x16xf32>
    %769 = arith.mulf %758, %737 : vector<1x16xf32>
    %770 = arith.mulf %750, %760 : vector<1x16xf32>
    %771 = arith.addf %769, %770 : vector<1x16xf32>
    %772 = math.tanh %771 : vector<1x16xf32>
    %773 = arith.mulf %768, %772 : vector<1x16xf32>
    %774 = vector.extract_strided_slice %601 {offsets = [5, 0], sizes = [1, 64], strides = [1, 1]} : vector<8x64xf32> to vector<1x64xf32>
    %cst_303 = arith.constant dense<0.000000e+00> : vector<1x64xf32>
    %775 = tpu.matmul %773, %10, %cst_303 {dimension_numbers = #tpu.dot_dimension_numbers<[1], [0], [0], [1], [0, 0, 1, 1], [], []>} : vector<1x16xf32>, vector<16x64xf32>, vector<1x64xf32> -> vector<1x64xf32>
    %776 = arith.addf %774, %775 : vector<1x64xf32>
    %777 = vector.extract_strided_slice %776 {offsets = [0, 0], sizes = [1, 16], strides = [1, 1]} : vector<1x64xf32> to vector<1x16xf32>
    %cst_304 = arith.constant 0.000000e+00 : f32
    %778 = vector.broadcast %cst_304 : f32 to vector<1x16xf32>
    %779 = arith.subf %778, %777 : vector<1x16xf32>
    %780 = math.exp %779 : vector<1x16xf32>
    %cst_305 = arith.constant 1.000000e+00 : f32
    %781 = vector.broadcast %cst_305 : f32 to vector<1x16xf32>
    %782 = arith.addf %781, %780 : vector<1x16xf32>
    %cst_306 = arith.constant 1.000000e+00 : f32
    %783 = vector.broadcast %cst_306 : f32 to vector<1x16xf32>
    %784 = arith.divf %783, %782 : vector<1x16xf32>
    %785 = vector.extract_strided_slice %776 {offsets = [0, 16], sizes = [1, 16], strides = [1, 1]} : vector<1x64xf32> to vector<1x16xf32>
    %cst_307 = arith.constant 0.000000e+00 : f32
    %786 = vector.broadcast %cst_307 : f32 to vector<1x16xf32>
    %787 = arith.subf %786, %785 : vector<1x16xf32>
    %788 = math.exp %787 : vector<1x16xf32>
    %cst_308 = arith.constant 1.000000e+00 : f32
    %789 = vector.broadcast %cst_308 : f32 to vector<1x16xf32>
    %790 = arith.addf %789, %788 : vector<1x16xf32>
    %cst_309 = arith.constant 1.000000e+00 : f32
    %791 = vector.broadcast %cst_309 : f32 to vector<1x16xf32>
    %792 = arith.divf %791, %790 : vector<1x16xf32>
    %793 = vector.extract_strided_slice %776 {offsets = [0, 32], sizes = [1, 16], strides = [1, 1]} : vector<1x64xf32> to vector<1x16xf32>
    %794 = math.tanh %793 : vector<1x16xf32>
    %795 = vector.extract_strided_slice %776 {offsets = [0, 48], sizes = [1, 16], strides = [1, 1]} : vector<1x64xf32> to vector<1x16xf32>
    %cst_310 = arith.constant 0.000000e+00 : f32
    %796 = vector.broadcast %cst_310 : f32 to vector<1x16xf32>
    %797 = arith.subf %796, %795 : vector<1x16xf32>
    %798 = math.exp %797 : vector<1x16xf32>
    %cst_311 = arith.constant 1.000000e+00 : f32
    %799 = vector.broadcast %cst_311 : f32 to vector<1x16xf32>
    %800 = arith.addf %799, %798 : vector<1x16xf32>
    %cst_312 = arith.constant 1.000000e+00 : f32
    %801 = vector.broadcast %cst_312 : f32 to vector<1x16xf32>
    %802 = arith.divf %801, %800 : vector<1x16xf32>
    %803 = arith.mulf %792, %771 : vector<1x16xf32>
    %804 = arith.mulf %784, %794 : vector<1x16xf32>
    %805 = arith.addf %803, %804 : vector<1x16xf32>
    %806 = math.tanh %805 : vector<1x16xf32>
    %807 = arith.mulf %802, %806 : vector<1x16xf32>
    %808 = vector.extract_strided_slice %601 {offsets = [6, 0], sizes = [1, 64], strides = [1, 1]} : vector<8x64xf32> to vector<1x64xf32>
    %cst_313 = arith.constant dense<0.000000e+00> : vector<1x64xf32>
    %809 = tpu.matmul %807, %10, %cst_313 {dimension_numbers = #tpu.dot_dimension_numbers<[1], [0], [0], [1], [0, 0, 1, 1], [], []>} : vector<1x16xf32>, vector<16x64xf32>, vector<1x64xf32> -> vector<1x64xf32>
    %810 = arith.addf %808, %809 : vector<1x64xf32>
    %811 = vector.extract_strided_slice %810 {offsets = [0, 0], sizes = [1, 16], strides = [1, 1]} : vector<1x64xf32> to vector<1x16xf32>
    %cst_314 = arith.constant 0.000000e+00 : f32
    %812 = vector.broadcast %cst_314 : f32 to vector<1x16xf32>
    %813 = arith.subf %812, %811 : vector<1x16xf32>
    %814 = math.exp %813 : vector<1x16xf32>
    %cst_315 = arith.constant 1.000000e+00 : f32
    %815 = vector.broadcast %cst_315 : f32 to vector<1x16xf32>
    %816 = arith.addf %815, %814 : vector<1x16xf32>
    %cst_316 = arith.constant 1.000000e+00 : f32
    %817 = vector.broadcast %cst_316 : f32 to vector<1x16xf32>
    %818 = arith.divf %817, %816 : vector<1x16xf32>
    %819 = vector.extract_strided_slice %810 {offsets = [0, 16], sizes = [1, 16], strides = [1, 1]} : vector<1x64xf32> to vector<1x16xf32>
    %cst_317 = arith.constant 0.000000e+00 : f32
    %820 = vector.broadcast %cst_317 : f32 to vector<1x16xf32>
    %821 = arith.subf %820, %819 : vector<1x16xf32>
    %822 = math.exp %821 : vector<1x16xf32>
    %cst_318 = arith.constant 1.000000e+00 : f32
    %823 = vector.broadcast %cst_318 : f32 to vector<1x16xf32>
    %824 = arith.addf %823, %822 : vector<1x16xf32>
    %cst_319 = arith.constant 1.000000e+00 : f32
    %825 = vector.broadcast %cst_319 : f32 to vector<1x16xf32>
    %826 = arith.divf %825, %824 : vector<1x16xf32>
    %827 = vector.extract_strided_slice %810 {offsets = [0, 32], sizes = [1, 16], strides = [1, 1]} : vector<1x64xf32> to vector<1x16xf32>
    %828 = math.tanh %827 : vector<1x16xf32>
    %829 = vector.extract_strided_slice %810 {offsets = [0, 48], sizes = [1, 16], strides = [1, 1]} : vector<1x64xf32> to vector<1x16xf32>
    %cst_320 = arith.constant 0.000000e+00 : f32
    %830 = vector.broadcast %cst_320 : f32 to vector<1x16xf32>
    %831 = arith.subf %830, %829 : vector<1x16xf32>
    %832 = math.exp %831 : vector<1x16xf32>
    %cst_321 = arith.constant 1.000000e+00 : f32
    %833 = vector.broadcast %cst_321 : f32 to vector<1x16xf32>
    %834 = arith.addf %833, %832 : vector<1x16xf32>
    %cst_322 = arith.constant 1.000000e+00 : f32
    %835 = vector.broadcast %cst_322 : f32 to vector<1x16xf32>
    %836 = arith.divf %835, %834 : vector<1x16xf32>
    %837 = arith.mulf %826, %805 : vector<1x16xf32>
    %838 = arith.mulf %818, %828 : vector<1x16xf32>
    %839 = arith.addf %837, %838 : vector<1x16xf32>
    %840 = math.tanh %839 : vector<1x16xf32>
    %841 = arith.mulf %836, %840 : vector<1x16xf32>
    %842 = vector.extract_strided_slice %601 {offsets = [7, 0], sizes = [1, 64], strides = [1, 1]} : vector<8x64xf32> to vector<1x64xf32>
    %cst_323 = arith.constant dense<0.000000e+00> : vector<1x64xf32>
    %843 = tpu.matmul %841, %10, %cst_323 {dimension_numbers = #tpu.dot_dimension_numbers<[1], [0], [0], [1], [0, 0, 1, 1], [], []>} : vector<1x16xf32>, vector<16x64xf32>, vector<1x64xf32> -> vector<1x64xf32>
    %844 = arith.addf %842, %843 : vector<1x64xf32>
    %845 = vector.extract_strided_slice %844 {offsets = [0, 0], sizes = [1, 16], strides = [1, 1]} : vector<1x64xf32> to vector<1x16xf32>
    %cst_324 = arith.constant 0.000000e+00 : f32
    %846 = vector.broadcast %cst_324 : f32 to vector<1x16xf32>
    %847 = arith.subf %846, %845 : vector<1x16xf32>
    %848 = math.exp %847 : vector<1x16xf32>
    %cst_325 = arith.constant 1.000000e+00 : f32
    %849 = vector.broadcast %cst_325 : f32 to vector<1x16xf32>
    %850 = arith.addf %849, %848 : vector<1x16xf32>
    %cst_326 = arith.constant 1.000000e+00 : f32
    %851 = vector.broadcast %cst_326 : f32 to vector<1x16xf32>
    %852 = arith.divf %851, %850 : vector<1x16xf32>
    %853 = vector.extract_strided_slice %844 {offsets = [0, 16], sizes = [1, 16], strides = [1, 1]} : vector<1x64xf32> to vector<1x16xf32>
    %cst_327 = arith.constant 0.000000e+00 : f32
    %854 = vector.broadcast %cst_327 : f32 to vector<1x16xf32>
    %855 = arith.subf %854, %853 : vector<1x16xf32>
    %856 = math.exp %855 : vector<1x16xf32>
    %cst_328 = arith.constant 1.000000e+00 : f32
    %857 = vector.broadcast %cst_328 : f32 to vector<1x16xf32>
    %858 = arith.addf %857, %856 : vector<1x16xf32>
    %cst_329 = arith.constant 1.000000e+00 : f32
    %859 = vector.broadcast %cst_329 : f32 to vector<1x16xf32>
    %860 = arith.divf %859, %858 : vector<1x16xf32>
    %861 = vector.extract_strided_slice %844 {offsets = [0, 32], sizes = [1, 16], strides = [1, 1]} : vector<1x64xf32> to vector<1x16xf32>
    %862 = math.tanh %861 : vector<1x16xf32>
    %863 = vector.extract_strided_slice %844 {offsets = [0, 48], sizes = [1, 16], strides = [1, 1]} : vector<1x64xf32> to vector<1x16xf32>
    %cst_330 = arith.constant 0.000000e+00 : f32
    %864 = vector.broadcast %cst_330 : f32 to vector<1x16xf32>
    %865 = arith.subf %864, %863 : vector<1x16xf32>
    %866 = math.exp %865 : vector<1x16xf32>
    %cst_331 = arith.constant 1.000000e+00 : f32
    %867 = vector.broadcast %cst_331 : f32 to vector<1x16xf32>
    %868 = arith.addf %867, %866 : vector<1x16xf32>
    %cst_332 = arith.constant 1.000000e+00 : f32
    %869 = vector.broadcast %cst_332 : f32 to vector<1x16xf32>
    %870 = arith.divf %869, %868 : vector<1x16xf32>
    %871 = arith.mulf %860, %839 : vector<1x16xf32>
    %872 = arith.mulf %852, %862 : vector<1x16xf32>
    %873 = arith.addf %871, %872 : vector<1x16xf32>
    %874 = math.tanh %873 : vector<1x16xf32>
    %875 = arith.mulf %870, %874 : vector<1x16xf32>
    %876 = tpu.concatenate %637, %671, %705, %739, %773, %807, %841, %875 in 0 : vector<1x16xf32>, vector<1x16xf32>, vector<1x16xf32>, vector<1x16xf32>, vector<1x16xf32>, vector<1x16xf32>, vector<1x16xf32>, vector<1x16xf32> -> vector<8x16xf32>
    %cst_333 = arith.constant dense<0.000000e+00> : vector<8x64xf32>
    %877 = tpu.matmul %598, %12, %cst_333 {dimension_numbers = #tpu.dot_dimension_numbers<[1], [0], [0], [1], [0, 0, 1, 1], [], []>} : vector<8x32xf32>, vector<32x64xf32>, vector<8x64xf32> -> vector<8x64xf32>
    %878 = vector.broadcast %14 : vector<1x64xf32> to vector<8x64xf32>
    %879 = arith.addf %877, %878 : vector<8x64xf32>
    %cst_334 = arith.constant 0.000000e+00 : f32
    %880 = vector.broadcast %cst_334 : f32 to vector<1x16xf32>
    %cst_335 = arith.constant 0.000000e+00 : f32
    %881 = vector.broadcast %cst_335 : f32 to vector<1x16xf32>
    %882 = vector.extract_strided_slice %879 {offsets = [7, 0], sizes = [1, 64], strides = [1, 1]} : vector<8x64xf32> to vector<1x64xf32>
    %cst_336 = arith.constant dense<0.000000e+00> : vector<1x64xf32>
    %883 = tpu.matmul %880, %13, %cst_336 {dimension_numbers = #tpu.dot_dimension_numbers<[1], [0], [0], [1], [0, 0, 1, 1], [], []>} : vector<1x16xf32>, vector<16x64xf32>, vector<1x64xf32> -> vector<1x64xf32>
    %884 = arith.addf %882, %883 : vector<1x64xf32>
    %885 = vector.extract_strided_slice %884 {offsets = [0, 0], sizes = [1, 16], strides = [1, 1]} : vector<1x64xf32> to vector<1x16xf32>
    %cst_337 = arith.constant 0.000000e+00 : f32
    %886 = vector.broadcast %cst_337 : f32 to vector<1x16xf32>
    %887 = arith.subf %886, %885 : vector<1x16xf32>
    %888 = math.exp %887 : vector<1x16xf32>
    %cst_338 = arith.constant 1.000000e+00 : f32
    %889 = vector.broadcast %cst_338 : f32 to vector<1x16xf32>
    %890 = arith.addf %889, %888 : vector<1x16xf32>
    %cst_339 = arith.constant 1.000000e+00 : f32
    %891 = vector.broadcast %cst_339 : f32 to vector<1x16xf32>
    %892 = arith.divf %891, %890 : vector<1x16xf32>
    %893 = vector.extract_strided_slice %884 {offsets = [0, 16], sizes = [1, 16], strides = [1, 1]} : vector<1x64xf32> to vector<1x16xf32>
    %cst_340 = arith.constant 0.000000e+00 : f32
    %894 = vector.broadcast %cst_340 : f32 to vector<1x16xf32>
    %895 = arith.subf %894, %893 : vector<1x16xf32>
    %896 = math.exp %895 : vector<1x16xf32>
    %cst_341 = arith.constant 1.000000e+00 : f32
    %897 = vector.broadcast %cst_341 : f32 to vector<1x16xf32>
    %898 = arith.addf %897, %896 : vector<1x16xf32>
    %cst_342 = arith.constant 1.000000e+00 : f32
    %899 = vector.broadcast %cst_342 : f32 to vector<1x16xf32>
    %900 = arith.divf %899, %898 : vector<1x16xf32>
    %901 = vector.extract_strided_slice %884 {offsets = [0, 32], sizes = [1, 16], strides = [1, 1]} : vector<1x64xf32> to vector<1x16xf32>
    %902 = math.tanh %901 : vector<1x16xf32>
    %903 = vector.extract_strided_slice %884 {offsets = [0, 48], sizes = [1, 16], strides = [1, 1]} : vector<1x64xf32> to vector<1x16xf32>
    %cst_343 = arith.constant 0.000000e+00 : f32
    %904 = vector.broadcast %cst_343 : f32 to vector<1x16xf32>
    %905 = arith.subf %904, %903 : vector<1x16xf32>
    %906 = math.exp %905 : vector<1x16xf32>
    %cst_344 = arith.constant 1.000000e+00 : f32
    %907 = vector.broadcast %cst_344 : f32 to vector<1x16xf32>
    %908 = arith.addf %907, %906 : vector<1x16xf32>
    %cst_345 = arith.constant 1.000000e+00 : f32
    %909 = vector.broadcast %cst_345 : f32 to vector<1x16xf32>
    %910 = arith.divf %909, %908 : vector<1x16xf32>
    %911 = arith.mulf %900, %881 : vector<1x16xf32>
    %912 = arith.mulf %892, %902 : vector<1x16xf32>
    %913 = arith.addf %911, %912 : vector<1x16xf32>
    %914 = math.tanh %913 : vector<1x16xf32>
    %915 = arith.mulf %910, %914 : vector<1x16xf32>
    %916 = vector.extract_strided_slice %879 {offsets = [6, 0], sizes = [1, 64], strides = [1, 1]} : vector<8x64xf32> to vector<1x64xf32>
    %cst_346 = arith.constant dense<0.000000e+00> : vector<1x64xf32>
    %917 = tpu.matmul %915, %13, %cst_346 {dimension_numbers = #tpu.dot_dimension_numbers<[1], [0], [0], [1], [0, 0, 1, 1], [], []>} : vector<1x16xf32>, vector<16x64xf32>, vector<1x64xf32> -> vector<1x64xf32>
    %918 = arith.addf %916, %917 : vector<1x64xf32>
    %919 = vector.extract_strided_slice %918 {offsets = [0, 0], sizes = [1, 16], strides = [1, 1]} : vector<1x64xf32> to vector<1x16xf32>
    %cst_347 = arith.constant 0.000000e+00 : f32
    %920 = vector.broadcast %cst_347 : f32 to vector<1x16xf32>
    %921 = arith.subf %920, %919 : vector<1x16xf32>
    %922 = math.exp %921 : vector<1x16xf32>
    %cst_348 = arith.constant 1.000000e+00 : f32
    %923 = vector.broadcast %cst_348 : f32 to vector<1x16xf32>
    %924 = arith.addf %923, %922 : vector<1x16xf32>
    %cst_349 = arith.constant 1.000000e+00 : f32
    %925 = vector.broadcast %cst_349 : f32 to vector<1x16xf32>
    %926 = arith.divf %925, %924 : vector<1x16xf32>
    %927 = vector.extract_strided_slice %918 {offsets = [0, 16], sizes = [1, 16], strides = [1, 1]} : vector<1x64xf32> to vector<1x16xf32>
    %cst_350 = arith.constant 0.000000e+00 : f32
    %928 = vector.broadcast %cst_350 : f32 to vector<1x16xf32>
    %929 = arith.subf %928, %927 : vector<1x16xf32>
    %930 = math.exp %929 : vector<1x16xf32>
    %cst_351 = arith.constant 1.000000e+00 : f32
    %931 = vector.broadcast %cst_351 : f32 to vector<1x16xf32>
    %932 = arith.addf %931, %930 : vector<1x16xf32>
    %cst_352 = arith.constant 1.000000e+00 : f32
    %933 = vector.broadcast %cst_352 : f32 to vector<1x16xf32>
    %934 = arith.divf %933, %932 : vector<1x16xf32>
    %935 = vector.extract_strided_slice %918 {offsets = [0, 32], sizes = [1, 16], strides = [1, 1]} : vector<1x64xf32> to vector<1x16xf32>
    %936 = math.tanh %935 : vector<1x16xf32>
    %937 = vector.extract_strided_slice %918 {offsets = [0, 48], sizes = [1, 16], strides = [1, 1]} : vector<1x64xf32> to vector<1x16xf32>
    %cst_353 = arith.constant 0.000000e+00 : f32
    %938 = vector.broadcast %cst_353 : f32 to vector<1x16xf32>
    %939 = arith.subf %938, %937 : vector<1x16xf32>
    %940 = math.exp %939 : vector<1x16xf32>
    %cst_354 = arith.constant 1.000000e+00 : f32
    %941 = vector.broadcast %cst_354 : f32 to vector<1x16xf32>
    %942 = arith.addf %941, %940 : vector<1x16xf32>
    %cst_355 = arith.constant 1.000000e+00 : f32
    %943 = vector.broadcast %cst_355 : f32 to vector<1x16xf32>
    %944 = arith.divf %943, %942 : vector<1x16xf32>
    %945 = arith.mulf %934, %913 : vector<1x16xf32>
    %946 = arith.mulf %926, %936 : vector<1x16xf32>
    %947 = arith.addf %945, %946 : vector<1x16xf32>
    %948 = math.tanh %947 : vector<1x16xf32>
    %949 = arith.mulf %944, %948 : vector<1x16xf32>
    %950 = vector.extract_strided_slice %879 {offsets = [5, 0], sizes = [1, 64], strides = [1, 1]} : vector<8x64xf32> to vector<1x64xf32>
    %cst_356 = arith.constant dense<0.000000e+00> : vector<1x64xf32>
    %951 = tpu.matmul %949, %13, %cst_356 {dimension_numbers = #tpu.dot_dimension_numbers<[1], [0], [0], [1], [0, 0, 1, 1], [], []>} : vector<1x16xf32>, vector<16x64xf32>, vector<1x64xf32> -> vector<1x64xf32>
    %952 = arith.addf %950, %951 : vector<1x64xf32>
    %953 = vector.extract_strided_slice %952 {offsets = [0, 0], sizes = [1, 16], strides = [1, 1]} : vector<1x64xf32> to vector<1x16xf32>
    %cst_357 = arith.constant 0.000000e+00 : f32
    %954 = vector.broadcast %cst_357 : f32 to vector<1x16xf32>
    %955 = arith.subf %954, %953 : vector<1x16xf32>
    %956 = math.exp %955 : vector<1x16xf32>
    %cst_358 = arith.constant 1.000000e+00 : f32
    %957 = vector.broadcast %cst_358 : f32 to vector<1x16xf32>
    %958 = arith.addf %957, %956 : vector<1x16xf32>
    %cst_359 = arith.constant 1.000000e+00 : f32
    %959 = vector.broadcast %cst_359 : f32 to vector<1x16xf32>
    %960 = arith.divf %959, %958 : vector<1x16xf32>
    %961 = vector.extract_strided_slice %952 {offsets = [0, 16], sizes = [1, 16], strides = [1, 1]} : vector<1x64xf32> to vector<1x16xf32>
    %cst_360 = arith.constant 0.000000e+00 : f32
    %962 = vector.broadcast %cst_360 : f32 to vector<1x16xf32>
    %963 = arith.subf %962, %961 : vector<1x16xf32>
    %964 = math.exp %963 : vector<1x16xf32>
    %cst_361 = arith.constant 1.000000e+00 : f32
    %965 = vector.broadcast %cst_361 : f32 to vector<1x16xf32>
    %966 = arith.addf %965, %964 : vector<1x16xf32>
    %cst_362 = arith.constant 1.000000e+00 : f32
    %967 = vector.broadcast %cst_362 : f32 to vector<1x16xf32>
    %968 = arith.divf %967, %966 : vector<1x16xf32>
    %969 = vector.extract_strided_slice %952 {offsets = [0, 32], sizes = [1, 16], strides = [1, 1]} : vector<1x64xf32> to vector<1x16xf32>
    %970 = math.tanh %969 : vector<1x16xf32>
    %971 = vector.extract_strided_slice %952 {offsets = [0, 48], sizes = [1, 16], strides = [1, 1]} : vector<1x64xf32> to vector<1x16xf32>
    %cst_363 = arith.constant 0.000000e+00 : f32
    %972 = vector.broadcast %cst_363 : f32 to vector<1x16xf32>
    %973 = arith.subf %972, %971 : vector<1x16xf32>
    %974 = math.exp %973 : vector<1x16xf32>
    %cst_364 = arith.constant 1.000000e+00 : f32
    %975 = vector.broadcast %cst_364 : f32 to vector<1x16xf32>
    %976 = arith.addf %975, %974 : vector<1x16xf32>
    %cst_365 = arith.constant 1.000000e+00 : f32
    %977 = vector.broadcast %cst_365 : f32 to vector<1x16xf32>
    %978 = arith.divf %977, %976 : vector<1x16xf32>
    %979 = arith.mulf %968, %947 : vector<1x16xf32>
    %980 = arith.mulf %960, %970 : vector<1x16xf32>
    %981 = arith.addf %979, %980 : vector<1x16xf32>
    %982 = math.tanh %981 : vector<1x16xf32>
    %983 = arith.mulf %978, %982 : vector<1x16xf32>
    %984 = vector.extract_strided_slice %879 {offsets = [4, 0], sizes = [1, 64], strides = [1, 1]} : vector<8x64xf32> to vector<1x64xf32>
    %cst_366 = arith.constant dense<0.000000e+00> : vector<1x64xf32>
    %985 = tpu.matmul %983, %13, %cst_366 {dimension_numbers = #tpu.dot_dimension_numbers<[1], [0], [0], [1], [0, 0, 1, 1], [], []>} : vector<1x16xf32>, vector<16x64xf32>, vector<1x64xf32> -> vector<1x64xf32>
    %986 = arith.addf %984, %985 : vector<1x64xf32>
    %987 = vector.extract_strided_slice %986 {offsets = [0, 0], sizes = [1, 16], strides = [1, 1]} : vector<1x64xf32> to vector<1x16xf32>
    %cst_367 = arith.constant 0.000000e+00 : f32
    %988 = vector.broadcast %cst_367 : f32 to vector<1x16xf32>
    %989 = arith.subf %988, %987 : vector<1x16xf32>
    %990 = math.exp %989 : vector<1x16xf32>
    %cst_368 = arith.constant 1.000000e+00 : f32
    %991 = vector.broadcast %cst_368 : f32 to vector<1x16xf32>
    %992 = arith.addf %991, %990 : vector<1x16xf32>
    %cst_369 = arith.constant 1.000000e+00 : f32
    %993 = vector.broadcast %cst_369 : f32 to vector<1x16xf32>
    %994 = arith.divf %993, %992 : vector<1x16xf32>
    %995 = vector.extract_strided_slice %986 {offsets = [0, 16], sizes = [1, 16], strides = [1, 1]} : vector<1x64xf32> to vector<1x16xf32>
    %cst_370 = arith.constant 0.000000e+00 : f32
    %996 = vector.broadcast %cst_370 : f32 to vector<1x16xf32>
    %997 = arith.subf %996, %995 : vector<1x16xf32>
    %998 = math.exp %997 : vector<1x16xf32>
    %cst_371 = arith.constant 1.000000e+00 : f32
    %999 = vector.broadcast %cst_371 : f32 to vector<1x16xf32>
    %1000 = arith.addf %999, %998 : vector<1x16xf32>
    %cst_372 = arith.constant 1.000000e+00 : f32
    %1001 = vector.broadcast %cst_372 : f32 to vector<1x16xf32>
    %1002 = arith.divf %1001, %1000 : vector<1x16xf32>
    %1003 = vector.extract_strided_slice %986 {offsets = [0, 32], sizes = [1, 16], strides = [1, 1]} : vector<1x64xf32> to vector<1x16xf32>
    %1004 = math.tanh %1003 : vector<1x16xf32>
    %1005 = vector.extract_strided_slice %986 {offsets = [0, 48], sizes = [1, 16], strides = [1, 1]} : vector<1x64xf32> to vector<1x16xf32>
    %cst_373 = arith.constant 0.000000e+00 : f32
    %1006 = vector.broadcast %cst_373 : f32 to vector<1x16xf32>
    %1007 = arith.subf %1006, %1005 : vector<1x16xf32>
    %1008 = math.exp %1007 : vector<1x16xf32>
    %cst_374 = arith.constant 1.000000e+00 : f32
    %1009 = vector.broadcast %cst_374 : f32 to vector<1x16xf32>
    %1010 = arith.addf %1009, %1008 : vector<1x16xf32>
    %cst_375 = arith.constant 1.000000e+00 : f32
    %1011 = vector.broadcast %cst_375 : f32 to vector<1x16xf32>
    %1012 = arith.divf %1011, %1010 : vector<1x16xf32>
    %1013 = arith.mulf %1002, %981 : vector<1x16xf32>
    %1014 = arith.mulf %994, %1004 : vector<1x16xf32>
    %1015 = arith.addf %1013, %1014 : vector<1x16xf32>
    %1016 = math.tanh %1015 : vector<1x16xf32>
    %1017 = arith.mulf %1012, %1016 : vector<1x16xf32>
    %1018 = vector.extract_strided_slice %879 {offsets = [3, 0], sizes = [1, 64], strides = [1, 1]} : vector<8x64xf32> to vector<1x64xf32>
    %cst_376 = arith.constant dense<0.000000e+00> : vector<1x64xf32>
    %1019 = tpu.matmul %1017, %13, %cst_376 {dimension_numbers = #tpu.dot_dimension_numbers<[1], [0], [0], [1], [0, 0, 1, 1], [], []>} : vector<1x16xf32>, vector<16x64xf32>, vector<1x64xf32> -> vector<1x64xf32>
    %1020 = arith.addf %1018, %1019 : vector<1x64xf32>
    %1021 = vector.extract_strided_slice %1020 {offsets = [0, 0], sizes = [1, 16], strides = [1, 1]} : vector<1x64xf32> to vector<1x16xf32>
    %cst_377 = arith.constant 0.000000e+00 : f32
    %1022 = vector.broadcast %cst_377 : f32 to vector<1x16xf32>
    %1023 = arith.subf %1022, %1021 : vector<1x16xf32>
    %1024 = math.exp %1023 : vector<1x16xf32>
    %cst_378 = arith.constant 1.000000e+00 : f32
    %1025 = vector.broadcast %cst_378 : f32 to vector<1x16xf32>
    %1026 = arith.addf %1025, %1024 : vector<1x16xf32>
    %cst_379 = arith.constant 1.000000e+00 : f32
    %1027 = vector.broadcast %cst_379 : f32 to vector<1x16xf32>
    %1028 = arith.divf %1027, %1026 : vector<1x16xf32>
    %1029 = vector.extract_strided_slice %1020 {offsets = [0, 16], sizes = [1, 16], strides = [1, 1]} : vector<1x64xf32> to vector<1x16xf32>
    %cst_380 = arith.constant 0.000000e+00 : f32
    %1030 = vector.broadcast %cst_380 : f32 to vector<1x16xf32>
    %1031 = arith.subf %1030, %1029 : vector<1x16xf32>
    %1032 = math.exp %1031 : vector<1x16xf32>
    %cst_381 = arith.constant 1.000000e+00 : f32
    %1033 = vector.broadcast %cst_381 : f32 to vector<1x16xf32>
    %1034 = arith.addf %1033, %1032 : vector<1x16xf32>
    %cst_382 = arith.constant 1.000000e+00 : f32
    %1035 = vector.broadcast %cst_382 : f32 to vector<1x16xf32>
    %1036 = arith.divf %1035, %1034 : vector<1x16xf32>
    %1037 = vector.extract_strided_slice %1020 {offsets = [0, 32], sizes = [1, 16], strides = [1, 1]} : vector<1x64xf32> to vector<1x16xf32>
    %1038 = math.tanh %1037 : vector<1x16xf32>
    %1039 = vector.extract_strided_slice %1020 {offsets = [0, 48], sizes = [1, 16], strides = [1, 1]} : vector<1x64xf32> to vector<1x16xf32>
    %cst_383 = arith.constant 0.000000e+00 : f32
    %1040 = vector.broadcast %cst_383 : f32 to vector<1x16xf32>
    %1041 = arith.subf %1040, %1039 : vector<1x16xf32>
    %1042 = math.exp %1041 : vector<1x16xf32>
    %cst_384 = arith.constant 1.000000e+00 : f32
    %1043 = vector.broadcast %cst_384 : f32 to vector<1x16xf32>
    %1044 = arith.addf %1043, %1042 : vector<1x16xf32>
    %cst_385 = arith.constant 1.000000e+00 : f32
    %1045 = vector.broadcast %cst_385 : f32 to vector<1x16xf32>
    %1046 = arith.divf %1045, %1044 : vector<1x16xf32>
    %1047 = arith.mulf %1036, %1015 : vector<1x16xf32>
    %1048 = arith.mulf %1028, %1038 : vector<1x16xf32>
    %1049 = arith.addf %1047, %1048 : vector<1x16xf32>
    %1050 = math.tanh %1049 : vector<1x16xf32>
    %1051 = arith.mulf %1046, %1050 : vector<1x16xf32>
    %1052 = vector.extract_strided_slice %879 {offsets = [2, 0], sizes = [1, 64], strides = [1, 1]} : vector<8x64xf32> to vector<1x64xf32>
    %cst_386 = arith.constant dense<0.000000e+00> : vector<1x64xf32>
    %1053 = tpu.matmul %1051, %13, %cst_386 {dimension_numbers = #tpu.dot_dimension_numbers<[1], [0], [0], [1], [0, 0, 1, 1], [], []>} : vector<1x16xf32>, vector<16x64xf32>, vector<1x64xf32> -> vector<1x64xf32>
    %1054 = arith.addf %1052, %1053 : vector<1x64xf32>
    %1055 = vector.extract_strided_slice %1054 {offsets = [0, 0], sizes = [1, 16], strides = [1, 1]} : vector<1x64xf32> to vector<1x16xf32>
    %cst_387 = arith.constant 0.000000e+00 : f32
    %1056 = vector.broadcast %cst_387 : f32 to vector<1x16xf32>
    %1057 = arith.subf %1056, %1055 : vector<1x16xf32>
    %1058 = math.exp %1057 : vector<1x16xf32>
    %cst_388 = arith.constant 1.000000e+00 : f32
    %1059 = vector.broadcast %cst_388 : f32 to vector<1x16xf32>
    %1060 = arith.addf %1059, %1058 : vector<1x16xf32>
    %cst_389 = arith.constant 1.000000e+00 : f32
    %1061 = vector.broadcast %cst_389 : f32 to vector<1x16xf32>
    %1062 = arith.divf %1061, %1060 : vector<1x16xf32>
    %1063 = vector.extract_strided_slice %1054 {offsets = [0, 16], sizes = [1, 16], strides = [1, 1]} : vector<1x64xf32> to vector<1x16xf32>
    %cst_390 = arith.constant 0.000000e+00 : f32
    %1064 = vector.broadcast %cst_390 : f32 to vector<1x16xf32>
    %1065 = arith.subf %1064, %1063 : vector<1x16xf32>
    %1066 = math.exp %1065 : vector<1x16xf32>
    %cst_391 = arith.constant 1.000000e+00 : f32
    %1067 = vector.broadcast %cst_391 : f32 to vector<1x16xf32>
    %1068 = arith.addf %1067, %1066 : vector<1x16xf32>
    %cst_392 = arith.constant 1.000000e+00 : f32
    %1069 = vector.broadcast %cst_392 : f32 to vector<1x16xf32>
    %1070 = arith.divf %1069, %1068 : vector<1x16xf32>
    %1071 = vector.extract_strided_slice %1054 {offsets = [0, 32], sizes = [1, 16], strides = [1, 1]} : vector<1x64xf32> to vector<1x16xf32>
    %1072 = math.tanh %1071 : vector<1x16xf32>
    %1073 = vector.extract_strided_slice %1054 {offsets = [0, 48], sizes = [1, 16], strides = [1, 1]} : vector<1x64xf32> to vector<1x16xf32>
    %cst_393 = arith.constant 0.000000e+00 : f32
    %1074 = vector.broadcast %cst_393 : f32 to vector<1x16xf32>
    %1075 = arith.subf %1074, %1073 : vector<1x16xf32>
    %1076 = math.exp %1075 : vector<1x16xf32>
    %cst_394 = arith.constant 1.000000e+00 : f32
    %1077 = vector.broadcast %cst_394 : f32 to vector<1x16xf32>
    %1078 = arith.addf %1077, %1076 : vector<1x16xf32>
    %cst_395 = arith.constant 1.000000e+00 : f32
    %1079 = vector.broadcast %cst_395 : f32 to vector<1x16xf32>
    %1080 = arith.divf %1079, %1078 : vector<1x16xf32>
    %1081 = arith.mulf %1070, %1049 : vector<1x16xf32>
    %1082 = arith.mulf %1062, %1072 : vector<1x16xf32>
    %1083 = arith.addf %1081, %1082 : vector<1x16xf32>
    %1084 = math.tanh %1083 : vector<1x16xf32>
    %1085 = arith.mulf %1080, %1084 : vector<1x16xf32>
    %1086 = vector.extract_strided_slice %879 {offsets = [1, 0], sizes = [1, 64], strides = [1, 1]} : vector<8x64xf32> to vector<1x64xf32>
    %cst_396 = arith.constant dense<0.000000e+00> : vector<1x64xf32>
    %1087 = tpu.matmul %1085, %13, %cst_396 {dimension_numbers = #tpu.dot_dimension_numbers<[1], [0], [0], [1], [0, 0, 1, 1], [], []>} : vector<1x16xf32>, vector<16x64xf32>, vector<1x64xf32> -> vector<1x64xf32>
    %1088 = arith.addf %1086, %1087 : vector<1x64xf32>
    %1089 = vector.extract_strided_slice %1088 {offsets = [0, 0], sizes = [1, 16], strides = [1, 1]} : vector<1x64xf32> to vector<1x16xf32>
    %cst_397 = arith.constant 0.000000e+00 : f32
    %1090 = vector.broadcast %cst_397 : f32 to vector<1x16xf32>
    %1091 = arith.subf %1090, %1089 : vector<1x16xf32>
    %1092 = math.exp %1091 : vector<1x16xf32>
    %cst_398 = arith.constant 1.000000e+00 : f32
    %1093 = vector.broadcast %cst_398 : f32 to vector<1x16xf32>
    %1094 = arith.addf %1093, %1092 : vector<1x16xf32>
    %cst_399 = arith.constant 1.000000e+00 : f32
    %1095 = vector.broadcast %cst_399 : f32 to vector<1x16xf32>
    %1096 = arith.divf %1095, %1094 : vector<1x16xf32>
    %1097 = vector.extract_strided_slice %1088 {offsets = [0, 16], sizes = [1, 16], strides = [1, 1]} : vector<1x64xf32> to vector<1x16xf32>
    %cst_400 = arith.constant 0.000000e+00 : f32
    %1098 = vector.broadcast %cst_400 : f32 to vector<1x16xf32>
    %1099 = arith.subf %1098, %1097 : vector<1x16xf32>
    %1100 = math.exp %1099 : vector<1x16xf32>
    %cst_401 = arith.constant 1.000000e+00 : f32
    %1101 = vector.broadcast %cst_401 : f32 to vector<1x16xf32>
    %1102 = arith.addf %1101, %1100 : vector<1x16xf32>
    %cst_402 = arith.constant 1.000000e+00 : f32
    %1103 = vector.broadcast %cst_402 : f32 to vector<1x16xf32>
    %1104 = arith.divf %1103, %1102 : vector<1x16xf32>
    %1105 = vector.extract_strided_slice %1088 {offsets = [0, 32], sizes = [1, 16], strides = [1, 1]} : vector<1x64xf32> to vector<1x16xf32>
    %1106 = math.tanh %1105 : vector<1x16xf32>
    %1107 = vector.extract_strided_slice %1088 {offsets = [0, 48], sizes = [1, 16], strides = [1, 1]} : vector<1x64xf32> to vector<1x16xf32>
    %cst_403 = arith.constant 0.000000e+00 : f32
    %1108 = vector.broadcast %cst_403 : f32 to vector<1x16xf32>
    %1109 = arith.subf %1108, %1107 : vector<1x16xf32>
    %1110 = math.exp %1109 : vector<1x16xf32>
    %cst_404 = arith.constant 1.000000e+00 : f32
    %1111 = vector.broadcast %cst_404 : f32 to vector<1x16xf32>
    %1112 = arith.addf %1111, %1110 : vector<1x16xf32>
    %cst_405 = arith.constant 1.000000e+00 : f32
    %1113 = vector.broadcast %cst_405 : f32 to vector<1x16xf32>
    %1114 = arith.divf %1113, %1112 : vector<1x16xf32>
    %1115 = arith.mulf %1104, %1083 : vector<1x16xf32>
    %1116 = arith.mulf %1096, %1106 : vector<1x16xf32>
    %1117 = arith.addf %1115, %1116 : vector<1x16xf32>
    %1118 = math.tanh %1117 : vector<1x16xf32>
    %1119 = arith.mulf %1114, %1118 : vector<1x16xf32>
    %1120 = vector.extract_strided_slice %879 {offsets = [0, 0], sizes = [1, 64], strides = [1, 1]} : vector<8x64xf32> to vector<1x64xf32>
    %cst_406 = arith.constant dense<0.000000e+00> : vector<1x64xf32>
    %1121 = tpu.matmul %1119, %13, %cst_406 {dimension_numbers = #tpu.dot_dimension_numbers<[1], [0], [0], [1], [0, 0, 1, 1], [], []>} : vector<1x16xf32>, vector<16x64xf32>, vector<1x64xf32> -> vector<1x64xf32>
    %1122 = arith.addf %1120, %1121 : vector<1x64xf32>
    %1123 = vector.extract_strided_slice %1122 {offsets = [0, 0], sizes = [1, 16], strides = [1, 1]} : vector<1x64xf32> to vector<1x16xf32>
    %cst_407 = arith.constant 0.000000e+00 : f32
    %1124 = vector.broadcast %cst_407 : f32 to vector<1x16xf32>
    %1125 = arith.subf %1124, %1123 : vector<1x16xf32>
    %1126 = math.exp %1125 : vector<1x16xf32>
    %cst_408 = arith.constant 1.000000e+00 : f32
    %1127 = vector.broadcast %cst_408 : f32 to vector<1x16xf32>
    %1128 = arith.addf %1127, %1126 : vector<1x16xf32>
    %cst_409 = arith.constant 1.000000e+00 : f32
    %1129 = vector.broadcast %cst_409 : f32 to vector<1x16xf32>
    %1130 = arith.divf %1129, %1128 : vector<1x16xf32>
    %1131 = vector.extract_strided_slice %1122 {offsets = [0, 16], sizes = [1, 16], strides = [1, 1]} : vector<1x64xf32> to vector<1x16xf32>
    %cst_410 = arith.constant 0.000000e+00 : f32
    %1132 = vector.broadcast %cst_410 : f32 to vector<1x16xf32>
    %1133 = arith.subf %1132, %1131 : vector<1x16xf32>
    %1134 = math.exp %1133 : vector<1x16xf32>
    %cst_411 = arith.constant 1.000000e+00 : f32
    %1135 = vector.broadcast %cst_411 : f32 to vector<1x16xf32>
    %1136 = arith.addf %1135, %1134 : vector<1x16xf32>
    %cst_412 = arith.constant 1.000000e+00 : f32
    %1137 = vector.broadcast %cst_412 : f32 to vector<1x16xf32>
    %1138 = arith.divf %1137, %1136 : vector<1x16xf32>
    %1139 = vector.extract_strided_slice %1122 {offsets = [0, 32], sizes = [1, 16], strides = [1, 1]} : vector<1x64xf32> to vector<1x16xf32>
    %1140 = math.tanh %1139 : vector<1x16xf32>
    %1141 = vector.extract_strided_slice %1122 {offsets = [0, 48], sizes = [1, 16], strides = [1, 1]} : vector<1x64xf32> to vector<1x16xf32>
    %cst_413 = arith.constant 0.000000e+00 : f32
    %1142 = vector.broadcast %cst_413 : f32 to vector<1x16xf32>
    %1143 = arith.subf %1142, %1141 : vector<1x16xf32>
    %1144 = math.exp %1143 : vector<1x16xf32>
    %cst_414 = arith.constant 1.000000e+00 : f32
    %1145 = vector.broadcast %cst_414 : f32 to vector<1x16xf32>
    %1146 = arith.addf %1145, %1144 : vector<1x16xf32>
    %cst_415 = arith.constant 1.000000e+00 : f32
    %1147 = vector.broadcast %cst_415 : f32 to vector<1x16xf32>
    %1148 = arith.divf %1147, %1146 : vector<1x16xf32>
    %1149 = arith.mulf %1138, %1117 : vector<1x16xf32>
    %1150 = arith.mulf %1130, %1140 : vector<1x16xf32>
    %1151 = arith.addf %1149, %1150 : vector<1x16xf32>
    %1152 = math.tanh %1151 : vector<1x16xf32>
    %1153 = arith.mulf %1148, %1152 : vector<1x16xf32>
    %1154 = tpu.concatenate %1153, %1119, %1085, %1051, %1017, %983, %949, %915 in 0 : vector<1x16xf32>, vector<1x16xf32>, vector<1x16xf32>, vector<1x16xf32>, vector<1x16xf32>, vector<1x16xf32>, vector<1x16xf32>, vector<1x16xf32> -> vector<8x16xf32>
    %1155 = tpu.concatenate %876, %1154 in 1 : vector<8x16xf32>, vector<8x16xf32> -> vector<8x32xf32>
    %cst_416 = arith.constant dense<0.000000e+00> : vector<8x32xf32>
    %1156 = tpu.matmul %1, %15, %cst_416 {dimension_numbers = #tpu.dot_dimension_numbers<[1], [0], [0], [1], [0, 0, 1, 1], [], []>} : vector<8x48xf32>, vector<48x32xf32>, vector<8x32xf32> -> vector<8x32xf32>
    %cst_417 = arith.constant dense<0.000000e+00> : vector<8x32xf32>
    %1157 = tpu.matmul %1155, %16, %cst_417 {dimension_numbers = #tpu.dot_dimension_numbers<[1], [0], [0], [1], [0, 0, 1, 1], [], []>} : vector<8x32xf32>, vector<32x32xf32>, vector<8x32xf32> -> vector<8x32xf32>
    %1158 = arith.addf %1156, %1157 : vector<8x32xf32>
    %1159 = vector.broadcast %17 : vector<1x32xf32> to vector<8x32xf32>
    %1160 = arith.addf %1158, %1159 : vector<8x32xf32>
    %cst_418 = arith.constant dense<0.000000e+00> : vector<24x32xf32>
    %1161 = tpu.matmul %0, %18, %cst_418 {dimension_numbers = #tpu.dot_dimension_numbers<[1], [0], [0], [1], [0, 0, 1, 1], [], []>} : vector<24x48xf32>, vector<48x32xf32>, vector<24x32xf32> -> vector<24x32xf32>
    %cst_419 = arith.constant dense<0.000000e+00> : vector<24x4xf32>
    %1162 = tpu.matmul %1161, %19, %cst_419 {dimension_numbers = #tpu.dot_dimension_numbers<[1], [0], [0], [1], [0, 0, 1, 1], [], []>} : vector<24x32xf32>, vector<32x4xf32>, vector<24x4xf32> -> vector<24x4xf32>
    %1163 = tpu.transpose %1162, [1, 0] : vector<24x4xf32> -> vector<4x24xf32>
    %1164 = vector.shape_cast %1163 : vector<4x24xf32> to vector<4x1x24xf32>
    %1165 = vector.broadcast %1164 : vector<4x1x24xf32> to vector<4x8x24xf32>
    %1166 = arith.addf %1165, %20 : vector<4x8x24xf32>
    %cst_420 = arith.constant 0.000000e+00 : f32
    %1167 = vector.broadcast %cst_420 : f32 to vector<4x8x24xf32>
    %1168 = arith.cmpf oge, %1166, %1167 : vector<4x8x24xf32>
    %cst_421 = arith.constant 0.00999999977 : f32
    %1169 = vector.broadcast %cst_421 : f32 to vector<4x8x24xf32>
    %1170 = arith.mulf %1169, %1166 : vector<4x8x24xf32>
    %1171 = arith.select %1168, %1166, %1170 : vector<4x8x24xi1>, vector<4x8x24xf32>
    %1172 = vector.shape_cast %21 : vector<8x24xf32> to vector<1x8x24xf32>
    %cst_422 = arith.constant 0.000000e+00 : f32
    %1173 = vector.broadcast %cst_422 : f32 to vector<1x8x24xf32>
    %1174 = arith.cmpf ogt, %1172, %1173 : vector<1x8x24xf32>
    %cst_423 = arith.constant -1.000000e+30 : f32
    %1175 = vector.shape_cast %1174 : vector<1x8x24xi1> to vector<1x8x24xi1>
    %1176 = vector.broadcast %1175 : vector<1x8x24xi1> to vector<4x8x24xi1>
    %1177 = vector.broadcast %cst_423 : f32 to vector<4x8x24xf32>
    %1178 = arith.select %1176, %1171, %1177 : vector<4x8x24xi1>, vector<4x8x24xf32>
    %cst_424 = arith.constant dense<0xFF800000> : vector<4x8xf32>
    %1179 = vector.multi_reduction <maximumf>, %1178, %cst_424 [2] : vector<4x8x24xf32> to vector<4x8xf32>
    %1180 = vector.shape_cast %1179 : vector<4x8xf32> to vector<4x8x1xf32>
    %1181 = vector.broadcast %1180 : vector<4x8x1xf32> to vector<4x8x24xf32>
    %1182 = arith.subf %1178, %1181 : vector<4x8x24xf32>
    %1183 = math.exp %1182 : vector<4x8x24xf32>
    %1184 = vector.broadcast %1172 : vector<1x8x24xf32> to vector<4x8x24xf32>
    %1185 = arith.mulf %1183, %1184 : vector<4x8x24xf32>
    %cst_425 = arith.constant dense<0.000000e+00> : vector<4x8xf32>
    %1186 = vector.multi_reduction <add>, %1185, %cst_425 [2] : vector<4x8x24xf32> to vector<4x8xf32>
    %1187 = vector.shape_cast %1186 : vector<4x8xf32> to vector<4x8x1xf32>
    %cst_426 = arith.constant 9.99999971E-10 : f32
    %1188 = vector.broadcast %cst_426 : f32 to vector<4x8x1xf32>
    %1189 = arith.maximumf %1187, %1188 : vector<4x8x1xf32>
    %1190 = vector.broadcast %1189 : vector<4x8x1xf32> to vector<4x8x24xf32>
    %1191 = arith.divf %1185, %1190 : vector<4x8x24xf32>
    %1192 = vector.extract_strided_slice %1191 {offsets = [0, 0, 0], sizes = [1, 8, 24], strides = [1, 1, 1]} : vector<4x8x24xf32> to vector<1x8x24xf32>
    %1193 = vector.shape_cast %1192 : vector<1x8x24xf32> to vector<8x24xf32>
    %1194 = vector.extract_strided_slice %1191 {offsets = [1, 0, 0], sizes = [1, 8, 24], strides = [1, 1, 1]} : vector<4x8x24xf32> to vector<1x8x24xf32>
    %1195 = vector.shape_cast %1194 : vector<1x8x24xf32> to vector<8x24xf32>
    %1196 = vector.extract_strided_slice %1191 {offsets = [2, 0, 0], sizes = [1, 8, 24], strides = [1, 1, 1]} : vector<4x8x24xf32> to vector<1x8x24xf32>
    %1197 = vector.shape_cast %1196 : vector<1x8x24xf32> to vector<8x24xf32>
    %1198 = vector.extract_strided_slice %1191 {offsets = [3, 0, 0], sizes = [1, 8, 24], strides = [1, 1, 1]} : vector<4x8x24xf32> to vector<1x8x24xf32>
    %1199 = vector.shape_cast %1198 : vector<1x8x24xf32> to vector<8x24xf32>
    %1200 = tpu.concatenate %1193, %1195, %1197, %1199 in 1 : vector<8x24xf32>, vector<8x24xf32>, vector<8x24xf32>, vector<8x24xf32> -> vector<8x96xf32>
    %1201 = tpu.concatenate %1161, %1161, %1161, %1161 in 0 : vector<24x32xf32>, vector<24x32xf32>, vector<24x32xf32>, vector<24x32xf32> -> vector<96x32xf32>
    %1202 = arith.mulf %1201, %22 : vector<96x32xf32>
    %cst_427 = arith.constant dense<0.000000e+00> : vector<8x32xf32>
    %1203 = tpu.matmul %1200, %1202, %cst_427 {dimension_numbers = #tpu.dot_dimension_numbers<[1], [0], [0], [1], [0, 0, 1, 1], [], []>} : vector<8x96xf32>, vector<96x32xf32>, vector<8x32xf32> -> vector<8x32xf32>
    %cst_428 = arith.constant 0.000000e+00 : f32
    %1204 = vector.broadcast %cst_428 : f32 to vector<8x32xf32>
    %1205 = arith.cmpf ogt, %1203, %1204 : vector<8x32xf32>
    %cst_429 = arith.constant 0.000000e+00 : f32
    %1206 = vector.broadcast %cst_429 : f32 to vector<8x32xf32>
    %1207 = arith.minimumf %1203, %1206 : vector<8x32xf32>
    %1208 = math.exp %1207 : vector<8x32xf32>
    %cst_430 = arith.constant 1.000000e+00 : f32
    %1209 = vector.broadcast %cst_430 : f32 to vector<8x32xf32>
    %1210 = arith.subf %1208, %1209 : vector<8x32xf32>
    %1211 = arith.select %1205, %1203, %1210 : vector<8x32xi1>, vector<8x32xf32>
    %1212 = arith.addf %1211, %1160 : vector<8x32xf32>
    %cst_431 = arith.constant dense<0.000000e+00> : vector<8x64xf32>
    %1213 = tpu.matmul %1212, %23, %cst_431 {dimension_numbers = #tpu.dot_dimension_numbers<[1], [0], [0], [1], [0, 0, 1, 1], [], []>} : vector<8x32xf32>, vector<32x64xf32>, vector<8x64xf32> -> vector<8x64xf32>
    %1214 = vector.broadcast %24 : vector<1x64xf32> to vector<8x64xf32>
    %1215 = arith.addf %1213, %1214 : vector<8x64xf32>
    %cst_432 = arith.constant 0.000000e+00 : f32
    %1216 = vector.broadcast %cst_432 : f32 to vector<8x64xf32>
    %1217 = arith.maximumf %1215, %1216 : vector<8x64xf32>
    %cst_433 = arith.constant dense<0.000000e+00> : vector<8x32xf32>
    %1218 = tpu.matmul %1217, %25, %cst_433 {dimension_numbers = #tpu.dot_dimension_numbers<[1], [0], [0], [1], [0, 0, 1, 1], [], []>} : vector<8x64xf32>, vector<64x32xf32>, vector<8x32xf32> -> vector<8x32xf32>
    %1219 = vector.broadcast %26 : vector<1x32xf32> to vector<8x32xf32>
    %1220 = arith.addf %1218, %1219 : vector<8x32xf32>
    %1221 = arith.addf %1220, %1212 : vector<8x32xf32>
    %cst_434 = arith.constant dense<0.000000e+00> : vector<8xf32>
    %1222 = vector.multi_reduction <add>, %1221, %cst_434 [1] : vector<8x32xf32> to vector<8xf32>
    %1223 = vector.shape_cast %1222 : vector<8xf32> to vector<8x1xf32>
    %cst_435 = arith.constant 3.200000e+01 : f32
    %1224 = vector.broadcast %cst_435 : f32 to vector<8x1xf32>
    %1225 = arith.divf %1223, %1224 : vector<8x1xf32>
    %1226 = vector.broadcast %1225 : vector<8x1xf32> to vector<8x32xf32>
    %1227 = arith.subf %1221, %1226 : vector<8x32xf32>
    %1228 = arith.mulf %1227, %1227 : vector<8x32xf32>
    %cst_436 = arith.constant dense<0.000000e+00> : vector<8xf32>
    %1229 = vector.multi_reduction <add>, %1228, %cst_436 [1] : vector<8x32xf32> to vector<8xf32>
    %1230 = vector.shape_cast %1229 : vector<8xf32> to vector<8x1xf32>
    %cst_437 = arith.constant 3.200000e+01 : f32
    %1231 = vector.broadcast %cst_437 : f32 to vector<8x1xf32>
    %1232 = arith.divf %1230, %1231 : vector<8x1xf32>
    %1233 = vector.broadcast %1225 : vector<8x1xf32> to vector<8x32xf32>
    %1234 = arith.subf %1221, %1233 : vector<8x32xf32>
    %cst_438 = arith.constant 9.99999974E-6 : f32
    %1235 = vector.broadcast %cst_438 : f32 to vector<8x1xf32>
    %1236 = arith.addf %1232, %1235 : vector<8x1xf32>
    %1237 = math.rsqrt %1236 : vector<8x1xf32>
    %1238 = vector.broadcast %1237 : vector<8x1xf32> to vector<8x32xf32>
    %1239 = arith.mulf %1234, %1238 : vector<8x32xf32>
    %1240 = vector.broadcast %27 : vector<1x32xf32> to vector<8x32xf32>
    %1241 = arith.mulf %1239, %1240 : vector<8x32xf32>
    %1242 = vector.broadcast %28 : vector<1x32xf32> to vector<8x32xf32>
    %1243 = arith.addf %1241, %1242 : vector<8x32xf32>
    %cst_439 = arith.constant dense<0.000000e+00> : vector<8x48xf32>
    %1244 = tpu.matmul %1243, %29, %cst_439 {dimension_numbers = #tpu.dot_dimension_numbers<[1], [0], [0], [1], [0, 0, 1, 1], [], []>} : vector<8x32xf32>, vector<32x48xf32>, vector<8x48xf32> -> vector<8x48xf32>
    %cst_440 = arith.constant dense<0.000000e+00> : vector<8x6xf32>
    %1245 = tpu.matmul %1244, %30, %cst_440 {dimension_numbers = #tpu.dot_dimension_numbers<[1], [0], [0], [1], [0, 0, 1, 1], [], []>} : vector<8x48xf32>, vector<48x6xf32>, vector<8x6xf32> -> vector<8x6xf32>
    %1246 = tpu.transpose %1245, [1, 0] : vector<8x6xf32> -> vector<6x8xf32>
    %1247 = vector.shape_cast %1246 : vector<6x8xf32> to vector<6x1x8xf32>
    %1248 = vector.broadcast %1247 : vector<6x1x8xf32> to vector<6x24x8xf32>
    %1249 = arith.addf %1248, %31 : vector<6x24x8xf32>
    %cst_441 = arith.constant 0.000000e+00 : f32
    %1250 = vector.broadcast %cst_441 : f32 to vector<6x24x8xf32>
    %1251 = arith.cmpf oge, %1249, %1250 : vector<6x24x8xf32>
    %cst_442 = arith.constant 0.00999999977 : f32
    %1252 = vector.broadcast %cst_442 : f32 to vector<6x24x8xf32>
    %1253 = arith.mulf %1252, %1249 : vector<6x24x8xf32>
    %1254 = arith.select %1251, %1249, %1253 : vector<6x24x8xi1>, vector<6x24x8xf32>
    %1255 = vector.shape_cast %32 : vector<24x8xf32> to vector<1x24x8xf32>
    %cst_443 = arith.constant 0.000000e+00 : f32
    %1256 = vector.broadcast %cst_443 : f32 to vector<1x24x8xf32>
    %1257 = arith.cmpf ogt, %1255, %1256 : vector<1x24x8xf32>
    %cst_444 = arith.constant -1.000000e+30 : f32
    %1258 = vector.shape_cast %1257 : vector<1x24x8xi1> to vector<1x24x8xi1>
    %1259 = vector.broadcast %1258 : vector<1x24x8xi1> to vector<6x24x8xi1>
    %1260 = vector.broadcast %cst_444 : f32 to vector<6x24x8xf32>
    %1261 = arith.select %1259, %1254, %1260 : vector<6x24x8xi1>, vector<6x24x8xf32>
    %cst_445 = arith.constant dense<0xFF800000> : vector<6x24xf32>
    %1262 = vector.multi_reduction <maximumf>, %1261, %cst_445 [2] : vector<6x24x8xf32> to vector<6x24xf32>
    %1263 = vector.shape_cast %1262 : vector<6x24xf32> to vector<6x24x1xf32>
    %1264 = vector.broadcast %1263 : vector<6x24x1xf32> to vector<6x24x8xf32>
    %1265 = arith.subf %1261, %1264 : vector<6x24x8xf32>
    %1266 = math.exp %1265 : vector<6x24x8xf32>
    %1267 = vector.broadcast %1255 : vector<1x24x8xf32> to vector<6x24x8xf32>
    %1268 = arith.mulf %1266, %1267 : vector<6x24x8xf32>
    %cst_446 = arith.constant dense<0.000000e+00> : vector<6x24xf32>
    %1269 = vector.multi_reduction <add>, %1268, %cst_446 [2] : vector<6x24x8xf32> to vector<6x24xf32>
    %1270 = vector.shape_cast %1269 : vector<6x24xf32> to vector<6x24x1xf32>
    %cst_447 = arith.constant 9.99999971E-10 : f32
    %1271 = vector.broadcast %cst_447 : f32 to vector<6x24x1xf32>
    %1272 = arith.maximumf %1270, %1271 : vector<6x24x1xf32>
    %1273 = vector.broadcast %1272 : vector<6x24x1xf32> to vector<6x24x8xf32>
    %1274 = arith.divf %1268, %1273 : vector<6x24x8xf32>
    %1275 = vector.extract_strided_slice %1274 {offsets = [0, 0, 0], sizes = [1, 24, 8], strides = [1, 1, 1]} : vector<6x24x8xf32> to vector<1x24x8xf32>
    %1276 = vector.shape_cast %1275 : vector<1x24x8xf32> to vector<24x8xf32>
    %1277 = vector.extract_strided_slice %1274 {offsets = [1, 0, 0], sizes = [1, 24, 8], strides = [1, 1, 1]} : vector<6x24x8xf32> to vector<1x24x8xf32>
    %1278 = vector.shape_cast %1277 : vector<1x24x8xf32> to vector<24x8xf32>
    %1279 = vector.extract_strided_slice %1274 {offsets = [2, 0, 0], sizes = [1, 24, 8], strides = [1, 1, 1]} : vector<6x24x8xf32> to vector<1x24x8xf32>
    %1280 = vector.shape_cast %1279 : vector<1x24x8xf32> to vector<24x8xf32>
    %1281 = vector.extract_strided_slice %1274 {offsets = [3, 0, 0], sizes = [1, 24, 8], strides = [1, 1, 1]} : vector<6x24x8xf32> to vector<1x24x8xf32>
    %1282 = vector.shape_cast %1281 : vector<1x24x8xf32> to vector<24x8xf32>
    %1283 = vector.extract_strided_slice %1274 {offsets = [4, 0, 0], sizes = [1, 24, 8], strides = [1, 1, 1]} : vector<6x24x8xf32> to vector<1x24x8xf32>
    %1284 = vector.shape_cast %1283 : vector<1x24x8xf32> to vector<24x8xf32>
    %1285 = vector.extract_strided_slice %1274 {offsets = [5, 0, 0], sizes = [1, 24, 8], strides = [1, 1, 1]} : vector<6x24x8xf32> to vector<1x24x8xf32>
    %1286 = vector.shape_cast %1285 : vector<1x24x8xf32> to vector<24x8xf32>
    %1287 = tpu.concatenate %1276, %1278, %1280, %1282, %1284, %1286 in 1 : vector<24x8xf32>, vector<24x8xf32>, vector<24x8xf32>, vector<24x8xf32>, vector<24x8xf32>, vector<24x8xf32> -> vector<24x48xf32>
    %1288 = tpu.concatenate %1244, %1244, %1244, %1244, %1244, %1244 in 0 : vector<8x48xf32>, vector<8x48xf32>, vector<8x48xf32>, vector<8x48xf32>, vector<8x48xf32>, vector<8x48xf32> -> vector<48x48xf32>
    %1289 = arith.mulf %1288, %33 : vector<48x48xf32>
    %cst_448 = arith.constant dense<0.000000e+00> : vector<24x48xf32>
    %1290 = tpu.matmul %1287, %1289, %cst_448 {dimension_numbers = #tpu.dot_dimension_numbers<[1], [0], [0], [1], [0, 0, 1, 1], [], []>} : vector<24x48xf32>, vector<48x48xf32>, vector<24x48xf32> -> vector<24x48xf32>
    %cst_449 = arith.constant 0.000000e+00 : f32
    %1291 = vector.broadcast %cst_449 : f32 to vector<24x48xf32>
    %1292 = arith.cmpf ogt, %1290, %1291 : vector<24x48xf32>
    %cst_450 = arith.constant 0.000000e+00 : f32
    %1293 = vector.broadcast %cst_450 : f32 to vector<24x48xf32>
    %1294 = arith.minimumf %1290, %1293 : vector<24x48xf32>
    %1295 = math.exp %1294 : vector<24x48xf32>
    %cst_451 = arith.constant 1.000000e+00 : f32
    %1296 = vector.broadcast %cst_451 : f32 to vector<24x48xf32>
    %1297 = arith.subf %1295, %1296 : vector<24x48xf32>
    %1298 = arith.select %1292, %1290, %1297 : vector<24x48xi1>, vector<24x48xf32>
    %1299 = arith.addf %1298, %0 : vector<24x48xf32>
    %cst_452 = arith.constant dense<0.000000e+00> : vector<24x64xf32>
    %1300 = tpu.matmul %1299, %34, %cst_452 {dimension_numbers = #tpu.dot_dimension_numbers<[1], [0], [0], [1], [0, 0, 1, 1], [], []>} : vector<24x48xf32>, vector<48x64xf32>, vector<24x64xf32> -> vector<24x64xf32>
    %1301 = vector.broadcast %35 : vector<1x64xf32> to vector<24x64xf32>
    %1302 = arith.addf %1300, %1301 : vector<24x64xf32>
    %cst_453 = arith.constant 0.000000e+00 : f32
    %1303 = vector.broadcast %cst_453 : f32 to vector<24x64xf32>
    %1304 = arith.maximumf %1302, %1303 : vector<24x64xf32>
    %cst_454 = arith.constant dense<0.000000e+00> : vector<24x48xf32>
    %1305 = tpu.matmul %1304, %36, %cst_454 {dimension_numbers = #tpu.dot_dimension_numbers<[1], [0], [0], [1], [0, 0, 1, 1], [], []>} : vector<24x64xf32>, vector<64x48xf32>, vector<24x48xf32> -> vector<24x48xf32>
    %1306 = vector.broadcast %37 : vector<1x48xf32> to vector<24x48xf32>
    %1307 = arith.addf %1305, %1306 : vector<24x48xf32>
    %1308 = arith.addf %1307, %1299 : vector<24x48xf32>
    %cst_455 = arith.constant dense<0.000000e+00> : vector<24xf32>
    %1309 = vector.multi_reduction <add>, %1308, %cst_455 [1] : vector<24x48xf32> to vector<24xf32>
    %1310 = vector.shape_cast %1309 : vector<24xf32> to vector<24x1xf32>
    %cst_456 = arith.constant 4.800000e+01 : f32
    %1311 = vector.broadcast %cst_456 : f32 to vector<24x1xf32>
    %1312 = arith.divf %1310, %1311 : vector<24x1xf32>
    %1313 = vector.broadcast %1312 : vector<24x1xf32> to vector<24x48xf32>
    %1314 = arith.subf %1308, %1313 : vector<24x48xf32>
    %1315 = arith.mulf %1314, %1314 : vector<24x48xf32>
    %cst_457 = arith.constant dense<0.000000e+00> : vector<24xf32>
    %1316 = vector.multi_reduction <add>, %1315, %cst_457 [1] : vector<24x48xf32> to vector<24xf32>
    %1317 = vector.shape_cast %1316 : vector<24xf32> to vector<24x1xf32>
    %cst_458 = arith.constant 4.800000e+01 : f32
    %1318 = vector.broadcast %cst_458 : f32 to vector<24x1xf32>
    %1319 = arith.divf %1317, %1318 : vector<24x1xf32>
    %1320 = vector.broadcast %1312 : vector<24x1xf32> to vector<24x48xf32>
    %1321 = arith.subf %1308, %1320 : vector<24x48xf32>
    %cst_459 = arith.constant 9.99999974E-6 : f32
    %1322 = vector.broadcast %cst_459 : f32 to vector<24x1xf32>
    %1323 = arith.addf %1319, %1322 : vector<24x1xf32>
    %1324 = math.rsqrt %1323 : vector<24x1xf32>
    %1325 = vector.broadcast %1324 : vector<24x1xf32> to vector<24x48xf32>
    %1326 = arith.mulf %1321, %1325 : vector<24x48xf32>
    %1327 = vector.broadcast %38 : vector<1x48xf32> to vector<24x48xf32>
    %1328 = arith.mulf %1326, %1327 : vector<24x48xf32>
    %1329 = vector.broadcast %39 : vector<1x48xf32> to vector<24x48xf32>
    %1330 = arith.addf %1328, %1329 : vector<24x48xf32>
    %cst_460 = arith.constant dense<0.000000e+00> : vector<24x32xf32>
    %1331 = tpu.matmul %1330, %18, %cst_460 {dimension_numbers = #tpu.dot_dimension_numbers<[1], [0], [0], [1], [0, 0, 1, 1], [], []>} : vector<24x48xf32>, vector<48x32xf32>, vector<24x32xf32> -> vector<24x32xf32>
    %cst_461 = arith.constant dense<0.000000e+00> : vector<24x4xf32>
    %1332 = tpu.matmul %1331, %19, %cst_461 {dimension_numbers = #tpu.dot_dimension_numbers<[1], [0], [0], [1], [0, 0, 1, 1], [], []>} : vector<24x32xf32>, vector<32x4xf32>, vector<24x4xf32> -> vector<24x4xf32>
    %1333 = tpu.transpose %1332, [1, 0] : vector<24x4xf32> -> vector<4x24xf32>
    %1334 = vector.shape_cast %1333 : vector<4x24xf32> to vector<4x1x24xf32>
    %1335 = vector.broadcast %1334 : vector<4x1x24xf32> to vector<4x8x24xf32>
    %1336 = arith.addf %1335, %20 : vector<4x8x24xf32>
    %cst_462 = arith.constant 0.000000e+00 : f32
    %1337 = vector.broadcast %cst_462 : f32 to vector<4x8x24xf32>
    %1338 = arith.cmpf oge, %1336, %1337 : vector<4x8x24xf32>
    %cst_463 = arith.constant 0.00999999977 : f32
    %1339 = vector.broadcast %cst_463 : f32 to vector<4x8x24xf32>
    %1340 = arith.mulf %1339, %1336 : vector<4x8x24xf32>
    %1341 = arith.select %1338, %1336, %1340 : vector<4x8x24xi1>, vector<4x8x24xf32>
    %1342 = vector.shape_cast %21 : vector<8x24xf32> to vector<1x8x24xf32>
    %cst_464 = arith.constant 0.000000e+00 : f32
    %1343 = vector.broadcast %cst_464 : f32 to vector<1x8x24xf32>
    %1344 = arith.cmpf ogt, %1342, %1343 : vector<1x8x24xf32>
    %cst_465 = arith.constant -1.000000e+30 : f32
    %1345 = vector.shape_cast %1344 : vector<1x8x24xi1> to vector<1x8x24xi1>
    %1346 = vector.broadcast %1345 : vector<1x8x24xi1> to vector<4x8x24xi1>
    %1347 = vector.broadcast %cst_465 : f32 to vector<4x8x24xf32>
    %1348 = arith.select %1346, %1341, %1347 : vector<4x8x24xi1>, vector<4x8x24xf32>
    %cst_466 = arith.constant dense<0xFF800000> : vector<4x8xf32>
    %1349 = vector.multi_reduction <maximumf>, %1348, %cst_466 [2] : vector<4x8x24xf32> to vector<4x8xf32>
    %1350 = vector.shape_cast %1349 : vector<4x8xf32> to vector<4x8x1xf32>
    %1351 = vector.broadcast %1350 : vector<4x8x1xf32> to vector<4x8x24xf32>
    %1352 = arith.subf %1348, %1351 : vector<4x8x24xf32>
    %1353 = math.exp %1352 : vector<4x8x24xf32>
    %1354 = vector.broadcast %1342 : vector<1x8x24xf32> to vector<4x8x24xf32>
    %1355 = arith.mulf %1353, %1354 : vector<4x8x24xf32>
    %cst_467 = arith.constant dense<0.000000e+00> : vector<4x8xf32>
    %1356 = vector.multi_reduction <add>, %1355, %cst_467 [2] : vector<4x8x24xf32> to vector<4x8xf32>
    %1357 = vector.shape_cast %1356 : vector<4x8xf32> to vector<4x8x1xf32>
    %cst_468 = arith.constant 9.99999971E-10 : f32
    %1358 = vector.broadcast %cst_468 : f32 to vector<4x8x1xf32>
    %1359 = arith.maximumf %1357, %1358 : vector<4x8x1xf32>
    %1360 = vector.broadcast %1359 : vector<4x8x1xf32> to vector<4x8x24xf32>
    %1361 = arith.divf %1355, %1360 : vector<4x8x24xf32>
    %1362 = vector.extract_strided_slice %1361 {offsets = [0, 0, 0], sizes = [1, 8, 24], strides = [1, 1, 1]} : vector<4x8x24xf32> to vector<1x8x24xf32>
    %1363 = vector.shape_cast %1362 : vector<1x8x24xf32> to vector<8x24xf32>
    %1364 = vector.extract_strided_slice %1361 {offsets = [1, 0, 0], sizes = [1, 8, 24], strides = [1, 1, 1]} : vector<4x8x24xf32> to vector<1x8x24xf32>
    %1365 = vector.shape_cast %1364 : vector<1x8x24xf32> to vector<8x24xf32>
    %1366 = vector.extract_strided_slice %1361 {offsets = [2, 0, 0], sizes = [1, 8, 24], strides = [1, 1, 1]} : vector<4x8x24xf32> to vector<1x8x24xf32>
    %1367 = vector.shape_cast %1366 : vector<1x8x24xf32> to vector<8x24xf32>
    %1368 = vector.extract_strided_slice %1361 {offsets = [3, 0, 0], sizes = [1, 8, 24], strides = [1, 1, 1]} : vector<4x8x24xf32> to vector<1x8x24xf32>
    %1369 = vector.shape_cast %1368 : vector<1x8x24xf32> to vector<8x24xf32>
    %1370 = tpu.concatenate %1363, %1365, %1367, %1369 in 1 : vector<8x24xf32>, vector<8x24xf32>, vector<8x24xf32>, vector<8x24xf32> -> vector<8x96xf32>
    %1371 = tpu.concatenate %1331, %1331, %1331, %1331 in 0 : vector<24x32xf32>, vector<24x32xf32>, vector<24x32xf32>, vector<24x32xf32> -> vector<96x32xf32>
    %1372 = arith.mulf %1371, %22 : vector<96x32xf32>
    %cst_469 = arith.constant dense<0.000000e+00> : vector<8x32xf32>
    %1373 = tpu.matmul %1370, %1372, %cst_469 {dimension_numbers = #tpu.dot_dimension_numbers<[1], [0], [0], [1], [0, 0, 1, 1], [], []>} : vector<8x96xf32>, vector<96x32xf32>, vector<8x32xf32> -> vector<8x32xf32>
    %cst_470 = arith.constant 0.000000e+00 : f32
    %1374 = vector.broadcast %cst_470 : f32 to vector<8x32xf32>
    %1375 = arith.cmpf ogt, %1373, %1374 : vector<8x32xf32>
    %cst_471 = arith.constant 0.000000e+00 : f32
    %1376 = vector.broadcast %cst_471 : f32 to vector<8x32xf32>
    %1377 = arith.minimumf %1373, %1376 : vector<8x32xf32>
    %1378 = math.exp %1377 : vector<8x32xf32>
    %cst_472 = arith.constant 1.000000e+00 : f32
    %1379 = vector.broadcast %cst_472 : f32 to vector<8x32xf32>
    %1380 = arith.subf %1378, %1379 : vector<8x32xf32>
    %1381 = arith.select %1375, %1373, %1380 : vector<8x32xi1>, vector<8x32xf32>
    %1382 = arith.addf %1381, %1243 : vector<8x32xf32>
    %cst_473 = arith.constant dense<0.000000e+00> : vector<8x64xf32>
    %1383 = tpu.matmul %1382, %23, %cst_473 {dimension_numbers = #tpu.dot_dimension_numbers<[1], [0], [0], [1], [0, 0, 1, 1], [], []>} : vector<8x32xf32>, vector<32x64xf32>, vector<8x64xf32> -> vector<8x64xf32>
    %1384 = vector.broadcast %24 : vector<1x64xf32> to vector<8x64xf32>
    %1385 = arith.addf %1383, %1384 : vector<8x64xf32>
    %cst_474 = arith.constant 0.000000e+00 : f32
    %1386 = vector.broadcast %cst_474 : f32 to vector<8x64xf32>
    %1387 = arith.maximumf %1385, %1386 : vector<8x64xf32>
    %cst_475 = arith.constant dense<0.000000e+00> : vector<8x32xf32>
    %1388 = tpu.matmul %1387, %25, %cst_475 {dimension_numbers = #tpu.dot_dimension_numbers<[1], [0], [0], [1], [0, 0, 1, 1], [], []>} : vector<8x64xf32>, vector<64x32xf32>, vector<8x32xf32> -> vector<8x32xf32>
    %1389 = vector.broadcast %26 : vector<1x32xf32> to vector<8x32xf32>
    %1390 = arith.addf %1388, %1389 : vector<8x32xf32>
    %1391 = arith.addf %1390, %1382 : vector<8x32xf32>
    %cst_476 = arith.constant dense<0.000000e+00> : vector<8xf32>
    %1392 = vector.multi_reduction <add>, %1391, %cst_476 [1] : vector<8x32xf32> to vector<8xf32>
    %1393 = vector.shape_cast %1392 : vector<8xf32> to vector<8x1xf32>
    %cst_477 = arith.constant 3.200000e+01 : f32
    %1394 = vector.broadcast %cst_477 : f32 to vector<8x1xf32>
    %1395 = arith.divf %1393, %1394 : vector<8x1xf32>
    %1396 = vector.broadcast %1395 : vector<8x1xf32> to vector<8x32xf32>
    %1397 = arith.subf %1391, %1396 : vector<8x32xf32>
    %1398 = arith.mulf %1397, %1397 : vector<8x32xf32>
    %cst_478 = arith.constant dense<0.000000e+00> : vector<8xf32>
    %1399 = vector.multi_reduction <add>, %1398, %cst_478 [1] : vector<8x32xf32> to vector<8xf32>
    %1400 = vector.shape_cast %1399 : vector<8xf32> to vector<8x1xf32>
    %cst_479 = arith.constant 3.200000e+01 : f32
    %1401 = vector.broadcast %cst_479 : f32 to vector<8x1xf32>
    %1402 = arith.divf %1400, %1401 : vector<8x1xf32>
    %1403 = vector.broadcast %1395 : vector<8x1xf32> to vector<8x32xf32>
    %1404 = arith.subf %1391, %1403 : vector<8x32xf32>
    %cst_480 = arith.constant 9.99999974E-6 : f32
    %1405 = vector.broadcast %cst_480 : f32 to vector<8x1xf32>
    %1406 = arith.addf %1402, %1405 : vector<8x1xf32>
    %1407 = math.rsqrt %1406 : vector<8x1xf32>
    %1408 = vector.broadcast %1407 : vector<8x1xf32> to vector<8x32xf32>
    %1409 = arith.mulf %1404, %1408 : vector<8x32xf32>
    %1410 = vector.broadcast %27 : vector<1x32xf32> to vector<8x32xf32>
    %1411 = arith.mulf %1409, %1410 : vector<8x32xf32>
    %1412 = vector.broadcast %28 : vector<1x32xf32> to vector<8x32xf32>
    %1413 = arith.addf %1411, %1412 : vector<8x32xf32>
    %cst_481 = arith.constant dense<0.000000e+00> : vector<8x2xf32>
    %1414 = tpu.matmul %1413, %40, %cst_481 {dimension_numbers = #tpu.dot_dimension_numbers<[1], [0], [0], [1], [0, 0, 1, 1], [], []>} : vector<8x32xf32>, vector<32x2xf32>, vector<8x2xf32> -> vector<8x2xf32>
    %1415 = vector.broadcast %41 : vector<1x2xf32> to vector<8x2xf32>
    %1416 = arith.addf %1414, %1415 : vector<8x2xf32>
    %c0_482 = arith.constant 0 : index
    %c0_483 = arith.constant 0 : index
    %1417 = vector.load %arg42[%c0_482, %c0_483] : memref<8x2xf32, #tpu.memory_space<vmem>>, vector<8x2xf32>
    tpu.vector_store %arg42[%c0_482, %c0_483], %1416 {strides = array<i32>} : memref<8x2xf32, #tpu.memory_space<vmem>>, vector<8x2xf32>,
    return
  }
}

</mosaic_0001>

<llo_original>
// kernel: hsum_graph_forward.1
$region0: #{hsum_graph_forward.1}
  #allocation0 [shape = 'u32[]', space=smem, size = 0x4, offset = 0x4, fixed_abs, tag = 'smem constant byte address 0x4 - core index']
  #allocation1 [shape = 'u32[72,128]{1,0:T(1,128)}', space=vmem, size = 0x9000, scoped, tag = 'internal scratch']
  %s0 = inlined_call_operand.smem [shape: u32[43], index: -1, kind: input, shape index: {}]
  %s1 = sld [smem:[%s0]]
  %s2 = scalar_lea.smem %s0, 1
  %s3 = sld [smem:[%s2]]
  %s4 = scalar_lea.smem %s0, 2
  %s5 = sld [smem:[%s4]]
  %s6 = scalar_lea.smem %s0, 3
  %s7 = sld [smem:[%s6]]
  %s8 = scalar_lea.smem %s0, 4
  %s9 = sld [smem:[%s8]]
  %s10 = scalar_lea.smem %s0, 5
  %s11 = sld [smem:[%s10]]
  %s12 = scalar_lea.smem %s0, 6
  %s13 = sld [smem:[%s12]]
  %s14 = scalar_lea.smem %s0, 7
  %s15 = sld [smem:[%s14]]
  %s16 = scalar_lea.smem %s0, 8
  %s17 = sld [smem:[%s16]]
  %s18 = scalar_lea.smem %s0, 9
  %s19 = sld [smem:[%s18]]
  %s20 = scalar_lea.smem %s0, 10
  %s21 = sld [smem:[%s20]]
  %s22 = scalar_lea.smem %s0, 11
  %s23 = sld [smem:[%s22]]
  %s24 = scalar_lea.smem %s0, 12
  %s25 = sld [smem:[%s24]]
  %s26 = scalar_lea.smem %s0, 13
  %s27 = sld [smem:[%s26]]
  %s28 = scalar_lea.smem %s0, 14
  %s29 = sld [smem:[%s28]]
  %s30 = scalar_lea.smem %s0, 15
  %s31 = sld [smem:[%s30]]
  %s32 = scalar_lea.smem %s0, 16
  %s33 = sld [smem:[%s32]]
  %s34 = scalar_lea.smem %s0, 17
  %s35 = sld [smem:[%s34]]
  %s36 = scalar_lea.smem %s0, 18
  %s37 = sld [smem:[%s36]]
  %s38 = scalar_lea.smem %s0, 19
  %s39 = sld [smem:[%s38]]
  %s40 = scalar_lea.smem %s0, 20
  %s41 = sld [smem:[%s40]]
  %s42 = scalar_lea.smem %s0, 21
  %s43 = sld [smem:[%s42]]
  %s44 = scalar_lea.smem %s0, 22
  %s45 = sld [smem:[%s44]]
  %s46 = scalar_lea.smem %s0, 23
  %s47 = sld [smem:[%s46]]
  %s48 = scalar_lea.smem %s0, 24
  %s49 = sld [smem:[%s48]]
  %s50 = scalar_lea.smem %s0, 25
  %s51 = sld [smem:[%s50]]
  %s52 = scalar_lea.smem %s0, 26
  %s53 = sld [smem:[%s52]]
  %s54 = scalar_lea.smem %s0, 27
  %s55 = sld [smem:[%s54]]
  %s56 = scalar_lea.smem %s0, 28
  %s57 = sld [smem:[%s56]]
  %s58 = scalar_lea.smem %s0, 29
  %s59 = sld [smem:[%s58]]
  %s60 = scalar_lea.smem %s0, 30
  %s61 = sld [smem:[%s60]]
  %s62 = scalar_lea.smem %s0, 31
  %s63 = sld [smem:[%s62]]
  %s64 = scalar_lea.smem %s0, 32
  %s65 = sld [smem:[%s64]]
  %s66 = scalar_lea.smem %s0, 33
  %s67 = sld [smem:[%s66]]
  %s68 = scalar_lea.smem %s0, 34
  %s69 = sld [smem:[%s68]]
  %s70 = scalar_lea.smem %s0, 35
  %s71 = sld [smem:[%s70]]
  %s72 = scalar_lea.smem %s0, 36
  %s73 = sld [smem:[%s72]]
  %s74 = scalar_lea.smem %s0, 37
  %s75 = sld [smem:[%s74]]
  %s76 = scalar_lea.smem %s0, 38
  %s77 = sld [smem:[%s76]]
  %s78 = scalar_lea.smem %s0, 39
  %s79 = sld [smem:[%s78]]
  %s80 = scalar_lea.smem %s0, 40
  %s81 = sld [smem:[%s80]]
  %s82 = scalar_lea.smem %s0, 41
  %s83 = sld [smem:[%s82]]
  %s84 = scalar_lea.smem %s0, 42
  %s85 = sld [smem:[%s84]]
  %s86 = sld [smem:[#allocation0]]
  $region178: #{hsum_graph_forward.1} parent=0
    _
  %s88 = ssub.s32 1, %s86
  %s89 = scalar_select 0, %s88, %s86
  // Predicated region
  $region2: #{hsum_graph_forward.1} parent=0 // pred_check
    _
  $region3: #{hsum_graph_forward.1} parent=0 // pred_check_branch
    %91 = sbr.rel (0) target = $region5
  $region4: #{hsum_graph_forward.1} parent=0 // pred_region
    _
  $region5: #{hsum_graph_forward.1} parent=0 // pred_fallthru
    _
  // Predicated region
  $region6: #{hsum_graph_forward.1} parent=0 // pred_check
    _
  $region7: #{hsum_graph_forward.1} parent=0 // pred_check_branch
    %93 = sbr.rel (0) target = $region9
  $region8: #{hsum_graph_forward.1} parent=0 // pred_region
    _
  $region9: #{hsum_graph_forward.1} parent=0 // pred_fallthru
    _
  // Predicated region
  $region10: #{hsum_graph_forward.1} parent=0 // pred_check
    _
  $region11: #{hsum_graph_forward.1} parent=0 // pred_check_branch
    %95 = sbr.rel (0) target = $region13
  $region12: #{hsum_graph_forward.1} parent=0 // pred_region
    _
  $region13: #{hsum_graph_forward.1} parent=0 // pred_fallthru
    _
  // Predicated region
  $region14: #{hsum_graph_forward.1} parent=0 // pred_check
    _
  $region15: #{hsum_graph_forward.1} parent=0 // pred_check_branch
    %97 = sbr.rel (0) target = $region17
  $region16: #{hsum_graph_forward.1} parent=0 // pred_region
    _
  $region17: #{hsum_graph_forward.1} parent=0 // pred_fallthru
    _
  // Predicated region
  $region18: #{hsum_graph_forward.1} parent=0 // pred_check
    _
  $region19: #{hsum_graph_forward.1} parent=0 // pred_check_branch
    %99 = sbr.rel (0) target = $region21
  $region20: #{hsum_graph_forward.1} parent=0 // pred_region
    _
  $region21: #{hsum_graph_forward.1} parent=0 // pred_fallthru
    _
  // Predicated region
  $region22: #{hsum_graph_forward.1} parent=0 // pred_check
    _
  $region23: #{hsum_graph_forward.1} parent=0 // pred_check_branch
    %101 = sbr.rel (0) target = $region25
  $region24: #{hsum_graph_forward.1} parent=0 // pred_region
    _
  $region25: #{hsum_graph_forward.1} parent=0 // pred_fallthru
    _
  // Predicated region
  $region26: #{hsum_graph_forward.1} parent=0 // pred_check
    _
  $region27: #{hsum_graph_forward.1} parent=0 // pred_check_branch
    %103 = sbr.rel (0) target = $region29
  $region28: #{hsum_graph_forward.1} parent=0 // pred_region
    _
  $region29: #{hsum_graph_forward.1} parent=0 // pred_fallthru
    _
  // Predicated region
  $region30: #{hsum_graph_forward.1} parent=0 // pred_check
    _
  $region31: #{hsum_graph_forward.1} parent=0 // pred_check_branch
    %105 = sbr.rel (0) target = $region33
  $region32: #{hsum_graph_forward.1} parent=0 // pred_region
    _
  $region33: #{hsum_graph_forward.1} parent=0 // pred_fallthru
    _
  // Predicated region
  $region34: #{hsum_graph_forward.1} parent=0 // pred_check
    _
  $region35: #{hsum_graph_forward.1} parent=0 // pred_check_branch
    %107 = sbr.rel (0) target = $region37
  $region36: #{hsum_graph_forward.1} parent=0 // pred_region
    _
  $region37: #{hsum_graph_forward.1} parent=0 // pred_fallthru
    _
  // Predicated region
  $region38: #{hsum_graph_forward.1} parent=0 // pred_check
    _
  $region39: #{hsum_graph_forward.1} parent=0 // pred_check_branch
    %109 = sbr.rel (0) target = $region41
  $region40: #{hsum_graph_forward.1} parent=0 // pred_region
    _
  $region41: #{hsum_graph_forward.1} parent=0 // pred_fallthru
    _
  // Predicated region
  $region42: #{hsum_graph_forward.1} parent=0 // pred_check
    _
  $region43: #{hsum_graph_forward.1} parent=0 // pred_check_branch
    %111 = sbr.rel (0) target = $region45
  $region44: #{hsum_graph_forward.1} parent=0 // pred_region
    _
  $region45: #{hsum_graph_forward.1} parent=0 // pred_fallthru
    _
  // Predicated region
  $region46: #{hsum_graph_forward.1} parent=0 // pred_check
    _
  $region47: #{hsum_graph_forward.1} parent=0 // pred_check_branch
    %113 = sbr.rel (0) target = $region49
  $region48: #{hsum_graph_forward.1} parent=0 // pred_region
    _
  $region49: #{hsum_graph_forward.1} parent=0 // pred_fallthru
    _
  // Predicated region
  $region50: #{hsum_graph_forward.1} parent=0 // pred_check
    _
  $region51: #{hsum_graph_forward.1} parent=0 // pred_check_branch
    %115 = sbr.rel (0) target = $region53
  $region52: #{hsum_graph_forward.1} parent=0 // pred_region
    _
  $region53: #{hsum_graph_forward.1} parent=0 // pred_fallthru
    _
  // Predicated region
  $region54: #{hsum_graph_forward.1} parent=0 // pred_check
    _
  $region55: #{hsum_graph_forward.1} parent=0 // pred_check_branch
    %117 = sbr.rel (0) target = $region57
  $region56: #{hsum_graph_forward.1} parent=0 // pred_region
    _
  $region57: #{hsum_graph_forward.1} parent=0 // pred_fallthru
    _
  // Predicated region
  $region58: #{hsum_graph_forward.1} parent=0 // pred_check
    _
  $region59: #{hsum_graph_forward.1} parent=0 // pred_check_branch
    %119 = sbr.rel (0) target = $region61
  $region60: #{hsum_graph_forward.1} parent=0 // pred_region
    _
  $region61: #{hsum_graph_forward.1} parent=0 // pred_fallthru
    _
  // Predicated region
  $region62: #{hsum_graph_forward.1} parent=0 // pred_check
    _
  $region63: #{hsum_graph_forward.1} parent=0 // pred_check_branch
    %121 = sbr.rel (0) target = $region65
  $region64: #{hsum_graph_forward.1} parent=0 // pred_region
    _
  $region65: #{hsum_graph_forward.1} parent=0 // pred_fallthru
    _
  // Predicated region
  $region66: #{hsum_graph_forward.1} parent=0 // pred_check
    _
  $region67: #{hsum_graph_forward.1} parent=0 // pred_check_branch
    %123 = sbr.rel (0) target = $region69
  $region68: #{hsum_graph_forward.1} parent=0 // pred_region
    _
  $region69: #{hsum_graph_forward.1} parent=0 // pred_fallthru
    _
  // Predicated region
  $region70: #{hsum_graph_forward.1} parent=0 // pred_check
    _
  $region71: #{hsum_graph_forward.1} parent=0 // pred_check_branch
    %125 = sbr.rel (0) target = $region73
  $region72: #{hsum_graph_forward.1} parent=0 // pred_region
    _
  $region73: #{hsum_graph_forward.1} parent=0 // pred_fallthru
    _
  // Predicated region
  $region74: #{hsum_graph_forward.1} parent=0 // pred_check
    _
  $region75: #{hsum_graph_forward.1} parent=0 // pred_check_branch
    %127 = sbr.rel (0) target = $region77
  $region76: #{hsum_graph_forward.1} parent=0 // pred_region
    _
  $region77: #{hsum_graph_forward.1} parent=0 // pred_fallthru
    _
  // Predicated region
  $region78: #{hsum_graph_forward.1} parent=0 // pred_check
    _
  $region79: #{hsum_graph_forward.1} parent=0 // pred_check_branch
    %129 = sbr.rel (0) target = $region81
  $region80: #{hsum_graph_forward.1} parent=0 // pred_region
    _
  $region81: #{hsum_graph_forward.1} parent=0 // pred_fallthru
    _
  // Predicated region
  $region82: #{hsum_graph_forward.1} parent=0 // pred_check
    _
  $region83: #{hsum_graph_forward.1} parent=0 // pred_check_branch
    %131 = sbr.rel (0) target = $region85
  $region84: #{hsum_graph_forward.1} parent=0 // pred_region
    _
  $region85: #{hsum_graph_forward.1} parent=0 // pred_fallthru
    _
  // Predicated region
  $region86: #{hsum_graph_forward.1} parent=0 // pred_check
    _
  $region87: #{hsum_graph_forward.1} parent=0 // pred_check_branch
    %133 = sbr.rel (0) target = $region89
  $region88: #{hsum_graph_forward.1} parent=0 // pred_region
    _
  $region89: #{hsum_graph_forward.1} parent=0 // pred_fallthru
    _
  // Predicated region
  $region90: #{hsum_graph_forward.1} parent=0 // pred_check
    _
  $region91: #{hsum_graph_forward.1} parent=0 // pred_check_branch
    %135 = sbr.rel (0) target = $region93
  $region92: #{hsum_graph_forward.1} parent=0 // pred_region
    _
  $region93: #{hsum_graph_forward.1} parent=0 // pred_fallthru
    _
  // Predicated region
  $region94: #{hsum_graph_forward.1} parent=0 // pred_check
    _
  $region95: #{hsum_graph_forward.1} parent=0 // pred_check_branch
    %137 = sbr.rel (0) target = $region97
  $region96: #{hsum_graph_forward.1} parent=0 // pred_region
    _
  $region97: #{hsum_graph_forward.1} parent=0 // pred_fallthru
    _
  // Predicated region
  $region98: #{hsum_graph_forward.1} parent=0 // pred_check
    _
  $region99: #{hsum_graph_forward.1} parent=0 // pred_check_branch
    %139 = sbr.rel (0) target = $region101
  $region100: #{hsum_graph_forward.1} parent=0 // pred_region
    _
  $region101: #{hsum_graph_forward.1} parent=0 // pred_fallthru
    _
  // Predicated region
  $region102: #{hsum_graph_forward.1} parent=0 // pred_check
    _
  $region103: #{hsum_graph_forward.1} parent=0 // pred_check_branch
    %141 = sbr.rel (0) target = $region105
  $region104: #{hsum_graph_forward.1} parent=0 // pred_region
    _
  $region105: #{hsum_graph_forward.1} parent=0 // pred_fallthru
    _
  // Predicated region
  $region106: #{hsum_graph_forward.1} parent=0 // pred_check
    _
  $region107: #{hsum_graph_forward.1} parent=0 // pred_check_branch
    %143 = sbr.rel (0) target = $region109
  $region108: #{hsum_graph_forward.1} parent=0 // pred_region
    _
  $region109: #{hsum_graph_forward.1} parent=0 // pred_fallthru
    _
  // Predicated region
  $region110: #{hsum_graph_forward.1} parent=0 // pred_check
    _
  $region111: #{hsum_graph_forward.1} parent=0 // pred_check_branch
    %145 = sbr.rel (0) target = $region113
  $region112: #{hsum_graph_forward.1} parent=0 // pred_region
    _
  $region113: #{hsum_graph_forward.1} parent=0 // pred_fallthru
    _
  // Predicated region
  $region114: #{hsum_graph_forward.1} parent=0 // pred_check
    _
  $region115: #{hsum_graph_forward.1} parent=0 // pred_check_branch
    %147 = sbr.rel (0) target = $region117
  $region116: #{hsum_graph_forward.1} parent=0 // pred_region
    _
  $region117: #{hsum_graph_forward.1} parent=0 // pred_fallthru
    _
  // Predicated region
  $region118: #{hsum_graph_forward.1} parent=0 // pred_check
    _
  $region119: #{hsum_graph_forward.1} parent=0 // pred_check_branch
    %149 = sbr.rel (0) target = $region121
  $region120: #{hsum_graph_forward.1} parent=0 // pred_region
    _
  $region121: #{hsum_graph_forward.1} parent=0 // pred_fallthru
    _
  // Predicated region
  $region122: #{hsum_graph_forward.1} parent=0 // pred_check
    _
  $region123: #{hsum_graph_forward.1} parent=0 // pred_check_branch
    %151 = sbr.rel (0) target = $region125
  $region124: #{hsum_graph_forward.1} parent=0 // pred_region
    _
  $region125: #{hsum_graph_forward.1} parent=0 // pred_fallthru
    _
  // Predicated region
  $region126: #{hsum_graph_forward.1} parent=0 // pred_check
    _
  $region127: #{hsum_graph_forward.1} parent=0 // pred_check_branch
    %153 = sbr.rel (0) target = $region129
  $region128: #{hsum_graph_forward.1} parent=0 // pred_region
    _
  $region129: #{hsum_graph_forward.1} parent=0 // pred_fallthru
    _
  // Predicated region
  $region130: #{hsum_graph_forward.1} parent=0 // pred_check
    _
  $region131: #{hsum_graph_forward.1} parent=0 // pred_check_branch
    %155 = sbr.rel (0) target = $region133
  $region132: #{hsum_graph_forward.1} parent=0 // pred_region
    _
  $region133: #{hsum_graph_forward.1} parent=0 // pred_fallthru
    _
  // Predicated region
  $region134: #{hsum_graph_forward.1} parent=0 // pred_check
    _
  $region135: #{hsum_graph_forward.1} parent=0 // pred_check_branch
    %157 = sbr.rel (0) target = $region137
  $region136: #{hsum_graph_forward.1} parent=0 // pred_region
    _
  $region137: #{hsum_graph_forward.1} parent=0 // pred_fallthru
    _
  // Predicated region
  $region138: #{hsum_graph_forward.1} parent=0 // pred_check
    _
  $region139: #{hsum_graph_forward.1} parent=0 // pred_check_branch
    %159 = sbr.rel (0) target = $region141
  $region140: #{hsum_graph_forward.1} parent=0 // pred_region
    _
  $region141: #{hsum_graph_forward.1} parent=0 // pred_fallthru
    _
  // Predicated region
  $region142: #{hsum_graph_forward.1} parent=0 // pred_check
    _
  $region143: #{hsum_graph_forward.1} parent=0 // pred_check_branch
    %161 = sbr.rel (0) target = $region145
  $region144: #{hsum_graph_forward.1} parent=0 // pred_region
    _
  $region145: #{hsum_graph_forward.1} parent=0 // pred_fallthru
    _
  // Predicated region
  $region146: #{hsum_graph_forward.1} parent=0 // pred_check
    _
  $region147: #{hsum_graph_forward.1} parent=0 // pred_check_branch
    %163 = sbr.rel (0) target = $region149
  $region148: #{hsum_graph_forward.1} parent=0 // pred_region
    _
  $region149: #{hsum_graph_forward.1} parent=0 // pred_fallthru
    _
  // Predicated region
  $region150: #{hsum_graph_forward.1} parent=0 // pred_check
    _
  $region151: #{hsum_graph_forward.1} parent=0 // pred_check_branch
    %165 = sbr.rel (0) target = $region153
  $region152: #{hsum_graph_forward.1} parent=0 // pred_region
    _
  $region153: #{hsum_graph_forward.1} parent=0 // pred_fallthru
    _
  // Predicated region
  $region154: #{hsum_graph_forward.1} parent=0 // pred_check
    _
  $region155: #{hsum_graph_forward.1} parent=0 // pred_check_branch
    %167 = sbr.rel (0) target = $region157
  $region156: #{hsum_graph_forward.1} parent=0 // pred_region
    _
  $region157: #{hsum_graph_forward.1} parent=0 // pred_fallthru
    _
  // Predicated region
  $region158: #{hsum_graph_forward.1} parent=0 // pred_check
    _
  $region159: #{hsum_graph_forward.1} parent=0 // pred_check_branch
    %169 = sbr.rel (0) target = $region161
  $region160: #{hsum_graph_forward.1} parent=0 // pred_region
    _
  $region161: #{hsum_graph_forward.1} parent=0 // pred_fallthru
    _
  // Predicated region
  $region162: #{hsum_graph_forward.1} parent=0 // pred_check
    _
  $region163: #{hsum_graph_forward.1} parent=0 // pred_check_branch
    %171 = sbr.rel (0) target = $region165
  $region164: #{hsum_graph_forward.1} parent=0 // pred_region
    _
  $region165: #{hsum_graph_forward.1} parent=0 // pred_fallthru
    _
  // Predicated region
  $region166: #{hsum_graph_forward.1} parent=0 // pred_check
    _
  $region167: #{hsum_graph_forward.1} parent=0 // pred_check_branch
    %173 = sbr.rel (0) target = $region169
  $region168: #{hsum_graph_forward.1} parent=0 // pred_region
    _
  $region169: #{hsum_graph_forward.1} parent=0 // pred_fallthru
    _
  %v174 = vld [vmem:[%s1] sm:$0xff]
  %v175 = vld [vmem:[%s1 + $0x8] sm:$0xff]
  %v176 = vld [vmem:[%s1 + $0x10] sm:$0xff]
  %v177 = vld [vmem:[%s3] sm:$0xff]
  %v178 = vld [vmem:[%s5] sm:$0xff]
  %v179 = vld [vmem:[%s7] sm:$0xff]
  %v180 = vld [vmem:[%s7 + $0x8] sm:$0xff]
  %v181 = vld [vmem:[%s7 + $0x10] sm:$0xff]
  %v182 = vld [vmem:[%s7 + $0x18] sm:$0xff]
  %v183 = vld [vmem:[%s7 + $0x20] sm:$0xff]
  %v184 = vld [vmem:[%s7 + $0x28] sm:$0xff]
  %v185 = vld [vmem:[%s9] sm:$0xff]
  %v186 = vld [vmem:[%s9 + $0x8] sm:$0xff]
  %v187 = vld [vmem:[%s11] sm:$0x1]
  %v188 = vld [vmem:[%s13] sm:$0xff]
  %v189 = vld [vmem:[%s13 + $0x8] sm:$0xff]
  %v190 = vld [vmem:[%s13 + $0x10] sm:$0xff]
  %v191 = vld [vmem:[%s13 + $0x18] sm:$0xff]
  %v192 = vld [vmem:[%s13 + $0x20] sm:$0xff]
  %v193 = vld [vmem:[%s13 + $0x28] sm:$0xff]
  %v194 = vld [vmem:[%s15] sm:$0xff]
  %v195 = vld [vmem:[%s15 + $0x8] sm:$0xff]
  %v196 = vld [vmem:[%s17] sm:$0x1]
  %v197 = vld [vmem:[%s19] sm:$0xff]
  %v198 = vld [vmem:[%s19 + $0x8] sm:$0xff]
  %v199 = vld [vmem:[%s19 + $0x10] sm:$0xff]
  %v200 = vld [vmem:[%s19 + $0x18] sm:$0xff]
  %v201 = vld [vmem:[%s21] sm:$0xff]
  %v202 = vld [vmem:[%s21 + $0x8] sm:$0xff]
  %v203 = vld [vmem:[%s23] sm:$0x1]
  %v204 = vld [vmem:[%s25] sm:$0xff]
  %v205 = vld [vmem:[%s25 + $0x8] sm:$0xff]
  %v206 = vld [vmem:[%s25 + $0x10] sm:$0xff]
  %v207 = vld [vmem:[%s25 + $0x18] sm:$0xff]
  %v208 = vld [vmem:[%s27] sm:$0xff]
  %v209 = vld [vmem:[%s27 + $0x8] sm:$0xff]
  %v210 = vld [vmem:[%s29] sm:$0x1]
  %v211 = vld [vmem:[%s31] sm:$0xff]
  %v212 = vld [vmem:[%s31 + $0x8] sm:$0xff]
  %v213 = vld [vmem:[%s31 + $0x10] sm:$0xff]
  %v214 = vld [vmem:[%s31 + $0x18] sm:$0xff]
  %v215 = vld [vmem:[%s31 + $0x20] sm:$0xff]
  %v216 = vld [vmem:[%s31 + $0x28] sm:$0xff]
  %v217 = vld [vmem:[%s33] sm:$0xff]
  %v218 = vld [vmem:[%s33 + $0x8] sm:$0xff]
  %v219 = vld [vmem:[%s33 + $0x10] sm:$0xff]
  %v220 = vld [vmem:[%s33 + $0x18] sm:$0xff]
  %v221 = vld [vmem:[%s35] sm:$0x1]
  %v222 = vld [vmem:[%s37] sm:$0xff]
  %v223 = vld [vmem:[%s37 + $0x8] sm:$0xff]
  %v224 = vld [vmem:[%s37 + $0x10] sm:$0xff]
  %v225 = vld [vmem:[%s37 + $0x18] sm:$0xff]
  %v226 = vld [vmem:[%s37 + $0x20] sm:$0xff]
  %v227 = vld [vmem:[%s37 + $0x28] sm:$0xff]
  %v228 = vld [vmem:[%s39] sm:$0xff]
  %v229 = vld [vmem:[%s39 + $0x8] sm:$0xff]
  %v230 = vld [vmem:[%s39 + $0x10] sm:$0xff]
  %v231 = vld [vmem:[%s39 + $0x18] sm:$0xff]
  %v232 = vld [vmem:[%s41] sm:$0xff]
  %v233 = vld [vmem:[%s41 + $0x8] sm:$0xff]
  %v234 = vld [vmem:[%s41 + $0x10] sm:$0xff]
  %v235 = vld [vmem:[%s41 + $0x18] sm:$0xff]
  %v236 = vld [vmem:[%s43] sm:$0xff]
  %v237 = vld [vmem:[%s45] sm:$0xff]
  %v238 = vld [vmem:[%s45 + $0x8] sm:$0xff]
  %v239 = vld [vmem:[%s45 + $0x10] sm:$0xff]
  %v240 = vld [vmem:[%s45 + $0x18] sm:$0xff]
  %v241 = vld [vmem:[%s45 + $0x20] sm:$0xff]
  %v242 = vld [vmem:[%s45 + $0x28] sm:$0xff]
  %v243 = vld [vmem:[%s45 + $0x30] sm:$0xff]
  %v244 = vld [vmem:[%s45 + $0x38] sm:$0xff]
  %v245 = vld [vmem:[%s45 + $0x40] sm:$0xff]
  %v246 = vld [vmem:[%s45 + $0x48] sm:$0xff]
  %v247 = vld [vmem:[%s45 + $0x50] sm:$0xff]
  %v248 = vld [vmem:[%s45 + $0x58] sm:$0xff]
  %v249 = vld [vmem:[%s47] sm:$0xff]
  %v250 = vld [vmem:[%s47 + $0x8] sm:$0xff]
  %v251 = vld [vmem:[%s47 + $0x10] sm:$0xff]
  %v252 = vld [vmem:[%s47 + $0x18] sm:$0xff]
  %v253 = vld [vmem:[%s49] sm:$0x1]
  %v254 = vld [vmem:[%s51] sm:$0xff]
  %v255 = vld [vmem:[%s51 + $0x8] sm:$0xff]
  %v256 = vld [vmem:[%s51 + $0x10] sm:$0xff]
  %v257 = vld [vmem:[%s51 + $0x18] sm:$0xff]
  %v258 = vld [vmem:[%s51 + $0x20] sm:$0xff]
  %v259 = vld [vmem:[%s51 + $0x28] sm:$0xff]
  %v260 = vld [vmem:[%s51 + $0x30] sm:$0xff]
  %v261 = vld [vmem:[%s51 + $0x38] sm:$0xff]
  %v262 = vld [vmem:[%s53] sm:$0x1]
  %v263 = vld [vmem:[%s55] sm:$0x1]
  %v264 = vld [vmem:[%s57] sm:$0x1]
  %v265 = vld [vmem:[%s59] sm:$0xff]
  %v266 = vld [vmem:[%s59 + $0x8] sm:$0xff]
  %v267 = vld [vmem:[%s59 + $0x10] sm:$0xff]
  %v268 = vld [vmem:[%s59 + $0x18] sm:$0xff]
  %v269 = vld [vmem:[%s61] sm:$0xff]
  %v270 = vld [vmem:[%s61 + $0x8] sm:$0xff]
  %v271 = vld [vmem:[%s61 + $0x10] sm:$0xff]
  %v272 = vld [vmem:[%s61 + $0x18] sm:$0xff]
  %v273 = vld [vmem:[%s61 + $0x20] sm:$0xff]
  %v274 = vld [vmem:[%s61 + $0x28] sm:$0xff]
  %v275 = vld [vmem:[%s63] sm:$0xff]
  %v276 = vld [vmem:[%s63 + $0x8] sm:$0xff]
  %v277 = vld [vmem:[%s63 + $0x10] sm:$0xff]
  %v278 = vld [vmem:[%s63 + $0x18] sm:$0xff]
  %v279 = vld [vmem:[%s63 + $0x20] sm:$0xff]
  %v280 = vld [vmem:[%s63 + $0x28] sm:$0xff]
  %v281 = vld [vmem:[%s63 + $0x30] sm:$0xff]
  %v282 = vld [vmem:[%s63 + $0x38] sm:$0xff]
  %v283 = vld [vmem:[%s63 + $0x40] sm:$0xff]
  %v284 = vld [vmem:[%s63 + $0x48] sm:$0xff]
  %v285 = vld [vmem:[%s63 + $0x50] sm:$0xff]
  %v286 = vld [vmem:[%s63 + $0x58] sm:$0xff]
  %v287 = vld [vmem:[%s63 + $0x60] sm:$0xff]
  %v288 = vld [vmem:[%s63 + $0x68] sm:$0xff]
  %v289 = vld [vmem:[%s63 + $0x70] sm:$0xff]
  %v290 = vld [vmem:[%s63 + $0x78] sm:$0xff]
  %v291 = vld [vmem:[%s63 + $0x80] sm:$0xff]
  %v292 = vld [vmem:[%s63 + $0x88] sm:$0xff]
  %v293 = vld [vmem:[%s65] sm:$0xff]
  %v294 = vld [vmem:[%s65 + $0x8] sm:$0xff]
  %v295 = vld [vmem:[%s65 + $0x10] sm:$0xff]
  %v296 = vld [vmem:[%s67] sm:$0xff]
  %v297 = vld [vmem:[%s67 + $0x8] sm:$0xff]
  %v298 = vld [vmem:[%s67 + $0x10] sm:$0xff]
  %v299 = vld [vmem:[%s67 + $0x18] sm:$0xff]
  %v300 = vld [vmem:[%s67 + $0x20] sm:$0xff]
  %v301 = vld [vmem:[%s67 + $0x28] sm:$0xff]
  %v302 = vld [vmem:[%s69] sm:$0xff]
  %v303 = vld [vmem:[%s69 + $0x8] sm:$0xff]
  %v304 = vld [vmem:[%s69 + $0x10] sm:$0xff]
  %v305 = vld [vmem:[%s69 + $0x18] sm:$0xff]
  %v306 = vld [vmem:[%s69 + $0x20] sm:$0xff]
  %v307 = vld [vmem:[%s69 + $0x28] sm:$0xff]
  %v308 = vld [vmem:[%s71] sm:$0x1]
  %v309 = vld [vmem:[%s73] sm:$0xff]
  %v310 = vld [vmem:[%s73 + $0x8] sm:$0xff]
  %v311 = vld [vmem:[%s73 + $0x10] sm:$0xff]
  %v312 = vld [vmem:[%s73 + $0x18] sm:$0xff]
  %v313 = vld [vmem:[%s73 + $0x20] sm:$0xff]
  %v314 = vld [vmem:[%s73 + $0x28] sm:$0xff]
  %v315 = vld [vmem:[%s73 + $0x30] sm:$0xff]
  %v316 = vld [vmem:[%s73 + $0x38] sm:$0xff]
  %v317 = vld [vmem:[%s75] sm:$0x1]
  %v318 = vld [vmem:[%s77] sm:$0x1]
  %v319 = vld [vmem:[%s79] sm:$0x1]
  %v320 = vld [vmem:[%s81] sm:$0xff]
  %v321 = vld [vmem:[%s81 + $0x8] sm:$0xff]
  %v322 = vld [vmem:[%s81 + $0x10] sm:$0xff]
  %v323 = vld [vmem:[%s81 + $0x18] sm:$0xff]
  %v324 = vld [vmem:[%s83] sm:$0x1]
  %v326 = vperm.slane %v187, 0
  %vm328 = vcmask 392192
  %v330 = vsel %vm328, %v178, 0
  %332 = vmatpush.msra.mxu0 0.0
  %333 = vmatpush.msra.mxu0 0.0
  %334 = vmatpush.msra.mxu0 0.0
  %335 = vmatpush.msra.mxu0 0.0
  %336 = vmatpush.msra.mxu0 0.0
  %337 = vmatpush.msra.mxu0 0.0
  %338 = vmatpush.msra.mxu0 0.0
  %339 = vmatpush.msra.mxu0 0.0
  %340 = vmatpush.msra.mxu0 0.0
  %341 = vmatpush.msra.mxu0 0.0
  %342 = vmatpush.msra.mxu0 %v184
  %343 = vmatpush.msra.mxu0 %v183
  %344 = vmatpush.msra.mxu0 %v182
  %345 = vmatpush.msra.mxu0 %v181
  %346 = vmatpush.msra.mxu0 %v180
  %347 = vmatpush.msra.mxu0 %v179
  %348 = vmatmul.f32.gmra.mxu0 %v330
  %v349 = vpop.f32.mrf.mxu0
  %v350 = vadd.f32 %v326, %v349
  %351 = vdwg.mxu0
  %vm352 = vcmask 130048
  %v354 = vsel %vm352, 0.0, 0
  %356 = vmatpush.msra.mxu0 0.0
  %357 = vmatpush.msra.mxu0 0.0
  %358 = vmatpush.msra.mxu0 0.0
  %359 = vmatpush.msra.mxu0 0.0
  %360 = vmatpush.msra.mxu0 0.0
  %361 = vmatpush.msra.mxu0 0.0
  %362 = vmatpush.msra.mxu0 0.0
  %363 = vmatpush.msra.mxu0 0.0
  %364 = vmatpush.msra.mxu0 0.0
  %365 = vmatpush.msra.mxu0 0.0
  %366 = vmatpush.msra.mxu0 0.0
  %367 = vmatpush.msra.mxu0 0.0
  %368 = vmatpush.msra.mxu0 0.0
  %369 = vmatpush.msra.mxu0 0.0
  %370 = vmatpush.msra.mxu0 %v186
  %371 = vmatpush.msra.mxu0 %v185
  %372 = vmatmul.f32.gmra.mxu0 %v354
  %v373 = vpop.f32.mrf.mxu0
  %v374 = vadd.f32 0.0, %v373
  %375 = vdwg.mxu0
  %v376 = vadd.f32 %v350, %v374
  %v377 = vsub.f32 0.0, %v376
  %v378 = vmul.f32 %v377, 1.442695
  %v379 = vpow.pop %v378
  %v380 = vadd.f32 %v379, 1.0
  %v381 = vrcp.pop %v380
  %v382 = vmul.f32 %v380, %v381
  %v383 = vsub.f32 1.0, %v382
  %v384 = vmul.f32 %v381, %v383
  %v385 = vadd.f32 %v381, %v384
  %vm386 = vweird.f32 %v380
  %vm387 = vweird.f32 %v381
  %vm388 = vmor %vm386, %vm387
  %v389 = vsel %vm388, %v381, %v385
  %v390 = vand.u32 2147483647, %v380
  %vm391 = vcmp.eq.f32.partialorder %v390, 8.507059e+37
  %v392 = vand.u32 %v380, 2147483648
  %v393 = vor.u32 1.1754944e-38, %v392
  %v394 = vsel %vm391, %v393, %v389
  %v395 = vmul.f32 1.0, %v394
  %v396 = vtanh.pop %v376
  %v397 = vmul.f32 %v395, 0.0
  %399 = vrot.lane.b32.xlu0 %v396, 96
  %v400 = vpop.permute.xlu0 %399
  %v402 = vmul.f32 %v395, %v400
  %404 = vrot.lane.b32.xlu0 %v402, 16
  %v405 = vpop.permute.xlu0 %404
  %v407 = vadd.f32 %v397, %v405
  %v408 = vtanh.pop %v407
  %410 = vrot.lane.b32.xlu0 %v408, 32
  %v411 = vpop.permute.xlu0 %410
  %v413 = vmul.f32 %v395, %v411
  %415 = vrot.lane.b32.xlu0 %v413, 80
  %v416 = vpop.permute.xlu0 %415
  %v417 = vsel %vm352, %v416, 0
  %419 = vmatpush.msra.mxu0 0.0
  %420 = vmatpush.msra.mxu0 0.0
  %421 = vmatpush.msra.mxu0 0.0
  %422 = vmatpush.msra.mxu0 0.0
  %423 = vmatpush.msra.mxu0 0.0
  %424 = vmatpush.msra.mxu0 0.0
  %425 = vmatpush.msra.mxu0 0.0
  %426 = vmatpush.msra.mxu0 0.0
  %427 = vmatpush.msra.mxu0 0.0
  %428 = vmatpush.msra.mxu0 0.0
  %429 = vmatpush.msra.mxu0 0.0
  %430 = vmatpush.msra.mxu0 0.0
  %431 = vmatpush.msra.mxu0 0.0
  %432 = vmatpush.msra.mxu0 0.0
  %433 = vmatpush.msra.mxu0 %v186
  %434 = vmatpush.msra.mxu0 %v185
  %435 = vmatmul.f32.gmra.mxu0 %v417
  %v436 = vpop.f32.mrf.mxu0
  %v437 = vadd.f32 0.0, %v436
  %438 = vdwg.mxu0
  %v440 = vrot.slane %v437, 7
  %v442 = vadd.f32 %v350, %v440
  %v443 = vsub.f32 0.0, %v442
  %v444 = vmul.f32 %v443, 1.442695
  %v445 = vpow.pop %v444
  %v446 = vadd.f32 %v445, 1.0
  %v447 = vrcp.pop %v446
  %v448 = vmul.f32 %v446, %v447
  %v449 = vsub.f32 1.0, %v448
  %v450 = vmul.f32 %v447, %v449
  %v451 = vadd.f32 %v447, %v450
  %vm452 = vweird.f32 %v446
  %vm453 = vweird.f32 %v447
  %vm454 = vmor %vm452, %vm453
  %v455 = vsel %vm454, %v447, %v451
  %v456 = vand.u32 2147483647, %v446
  %vm457 = vcmp.eq.f32.partialorder %v456, 8.507059e+37
  %v458 = vand.u32 %v446, 2147483648
  %v459 = vor.u32 1.1754944e-38, %v458
  %v460 = vsel %vm457, %v459, %v455
  %v461 = vmul.f32 1.0, %v460
  %v462 = vtanh.pop %v442
  %v464 = vrot.slane %v407, 7
  %v466 = vmul.f32 %v461, %v464
  %468 = vrot.lane.b32.xlu0 %v462, 96
  %v469 = vpop.permute.xlu0 %468
  %v471 = vmul.f32 %v461, %v469
  %473 = vrot.lane.b32.xlu0 %v471, 16
  %v474 = vpop.permute.xlu0 %473
  %v476 = vadd.f32 %v466, %v474
  %v477 = vtanh.pop %v476
  %479 = vrot.lane.b32.xlu0 %v477, 32
  %v480 = vpop.permute.xlu0 %479
  %v482 = vmul.f32 %v461, %v480
  %v484 = vrot.slane %v482, 1
  %485 = vrot.lane.b32.xlu0 %v484, 80
  %v486 = vpop.permute.xlu0 %485
  %v487 = vsel %vm352, %v486, 0
  %489 = vmatpush.msra.mxu0 0.0
  %490 = vmatpush.msra.mxu0 0.0
  %491 = vmatpush.msra.mxu0 0.0
  %492 = vmatpush.msra.mxu0 0.0
  %493 = vmatpush.msra.mxu0 0.0
  %494 = vmatpush.msra.mxu0 0.0
  %495 = vmatpush.msra.mxu0 0.0
  %496 = vmatpush.msra.mxu0 0.0
  %497 = vmatpush.msra.mxu0 0.0
  %498 = vmatpush.msra.mxu0 0.0
  %499 = vmatpush.msra.mxu0 0.0
  %500 = vmatpush.msra.mxu0 0.0
  %501 = vmatpush.msra.mxu0 0.0
  %502 = vmatpush.msra.mxu0 0.0
  %503 = vmatpush.msra.mxu0 %v186
  %504 = vmatpush.msra.mxu0 %v185
  %505 = vmatmul.f32.gmra.mxu0 %v487
  %v506 = vpop.f32.mrf.mxu0
  %v507 = vadd.f32 0.0, %v506
  %508 = vdwg.mxu0
  %v510 = vrot.slane %v507, 6
  %v512 = vadd.f32 %v350, %v510
  %v513 = vsub.f32 0.0, %v512
  %v514 = vmul.f32 %v513, 1.442695
  %v515 = vpow.pop %v514
  %v516 = vadd.f32 %v515, 1.0
  %v517 = vrcp.pop %v516
  %v518 = vmul.f32 %v516, %v517
  %v519 = vsub.f32 1.0, %v518
  %v520 = vmul.f32 %v517, %v519
  %v521 = vadd.f32 %v517, %v520
  %vm522 = vweird.f32 %v516
  %vm523 = vweird.f32 %v517
  %vm524 = vmor %vm522, %vm523
  %v525 = vsel %vm524, %v517, %v521
  %v526 = vand.u32 2147483647, %v516
  %vm527 = vcmp.eq.f32.partialorder %v526, 8.507059e+37
  %v528 = vand.u32 %v516, 2147483648
  %v529 = vor.u32 1.1754944e-38, %v528
  %v530 = vsel %vm527, %v529, %v525
  %v531 = vmul.f32 1.0, %v530
  %v532 = vtanh.pop %v512
  %v534 = vrot.slane %v476, 7
  %v536 = vmul.f32 %v531, %v534
  %538 = vrot.lane.b32.xlu0 %v532, 96
  %v539 = vpop.permute.xlu0 %538
  %v541 = vmul.f32 %v531, %v539
  %543 = vrot.lane.b32.xlu0 %v541, 16
  %v544 = vpop.permute.xlu0 %543
  %v546 = vadd.f32 %v536, %v544
  %v547 = vtanh.pop %v546
  %549 = vrot.lane.b32.xlu0 %v547, 32
  %v550 = vpop.permute.xlu0 %549
  %v552 = vmul.f32 %v531, %v550
  %v554 = vrot.slane %v552, 2
  %555 = vrot.lane.b32.xlu0 %v554, 80
  %v556 = vpop.permute.xlu0 %555
  %v557 = vsel %vm352, %v556, 0
  %559 = vmatpush.msra.mxu0 0.0
  %560 = vmatpush.msra.mxu0 0.0
  %561 = vmatpush.msra.mxu0 0.0
  %562 = vmatpush.msra.mxu0 0.0
  %563 = vmatpush.msra.mxu0 0.0
  %564 = vmatpush.msra.mxu0 0.0
  %565 = vmatpush.msra.mxu0 0.0
  %566 = vmatpush.msra.mxu0 0.0
  %567 = vmatpush.msra.mxu0 0.0
  %568 = vmatpush.msra.mxu0 0.0
  %569 = vmatpush.msra.mxu0 0.0
  %570 = vmatpush.msra.mxu0 0.0
  %571 = vmatpush.msra.mxu0 0.0
  %572 = vmatpush.msra.mxu0 0.0
  %573 = vmatpush.msra.mxu0 %v186
  %574 = vmatpush.msra.mxu0 %v185
  %575 = vmatmul.f32.gmra.mxu0 %v557
  %v576 = vpop.f32.mrf.mxu0
  %v577 = vadd.f32 0.0, %v576
  %578 = vdwg.mxu0
  %v580 = vrot.slane %v577, 5
  %v582 = vadd.f32 %v350, %v580
  %v583 = vsub.f32 0.0, %v582
  %v584 = vmul.f32 %v583, 1.442695
  %v585 = vpow.pop %v584
  %v586 = vadd.f32 %v585, 1.0
  %v587 = vrcp.pop %v586
  %v588 = vmul.f32 %v586, %v587
  %v589 = vsub.f32 1.0, %v588
  %v590 = vmul.f32 %v587, %v589
  %v591 = vadd.f32 %v587, %v590
  %vm592 = vweird.f32 %v586
  %vm593 = vweird.f32 %v587
  %vm594 = vmor %vm592, %vm593
  %v595 = vsel %vm594, %v587, %v591
  %v596 = vand.u32 2147483647, %v586
  %vm597 = vcmp.eq.f32.partialorder %v596, 8.507059e+37
  %v598 = vand.u32 %v586, 2147483648
  %v599 = vor.u32 1.1754944e-38, %v598
  %v600 = vsel %vm597, %v599, %v595
  %v601 = vmul.f32 1.0, %v600
  %v602 = vtanh.pop %v582
  %v604 = vrot.slane %v546, 7
  %v606 = vmul.f32 %v601, %v604
  %608 = vrot.lane.b32.xlu0 %v602, 96
  %v609 = vpop.permute.xlu0 %608
  %v611 = vmul.f32 %v601, %v609
  %613 = vrot.lane.b32.xlu0 %v611, 16
  %v614 = vpop.permute.xlu0 %613
  %v616 = vadd.f32 %v606, %v614
  %v617 = vtanh.pop %v616
  %619 = vrot.lane.b32.xlu0 %v617, 32
  %v620 = vpop.permute.xlu0 %619
  %v622 = vmul.f32 %v601, %v620
  %v624 = vrot.slane %v622, 3
  %625 = vrot.lane.b32.xlu0 %v624, 80
  %v626 = vpop.permute.xlu0 %625
  %v627 = vsel %vm352, %v626, 0
  %629 = vmatpush.msra.mxu0 0.0
  %630 = vmatpush.msra.mxu0 0.0
  %631 = vmatpush.msra.mxu0 0.0
  %632 = vmatpush.msra.mxu0 0.0
  %633 = vmatpush.msra.mxu0 0.0
  %634 = vmatpush.msra.mxu0 0.0
  %635 = vmatpush.msra.mxu0 0.0
  %636 = vmatpush.msra.mxu0 0.0
  %637 = vmatpush.msra.mxu0 0.0
  %638 = vmatpush.msra.mxu0 0.0
  %639 = vmatpush.msra.mxu0 0.0
  %640 = vmatpush.msra.mxu0 0.0
  %641 = vmatpush.msra.mxu0 0.0
  %642 = vmatpush.msra.mxu0 0.0
  %643 = vmatpush.msra.mxu0 %v186
  %644 = vmatpush.msra.mxu0 %v185
  %645 = vmatmul.f32.gmra.mxu0 %v627
  %v646 = vpop.f32.mrf.mxu0
  %v647 = vadd.f32 0.0, %v646
  %648 = vdwg.mxu0
  %v650 = vrot.slane %v647, 4
  %v652 = vadd.f32 %v350, %v650
  %v653 = vsub.f32 0.0, %v652
  %v654 = vmul.f32 %v653, 1.442695
  %v655 = vpow.pop %v654
  %v656 = vadd.f32 %v655, 1.0
  %v657 = vrcp.pop %v656
  %v658 = vmul.f32 %v656, %v657
  %v659 = vsub.f32 1.0, %v658
  %v660 = vmul.f32 %v657, %v659
  %v661 = vadd.f32 %v657, %v660
  %vm662 = vweird.f32 %v656
  %vm663 = vweird.f32 %v657
  %vm664 = vmor %vm662, %vm663
  %v665 = vsel %vm664, %v657, %v661
  %v666 = vand.u32 2147483647, %v656
  %vm667 = vcmp.eq.f32.partialorder %v666, 8.507059e+37
  %v668 = vand.u32 %v656, 2147483648
  %v669 = vor.u32 1.1754944e-38, %v668
  %v670 = vsel %vm667, %v669, %v665
  %v671 = vmul.f32 1.0, %v670
  %v672 = vtanh.pop %v652
  %v674 = vrot.slane %v616, 7
  %v676 = vmul.f32 %v671, %v674
  %678 = vrot.lane.b32.xlu0 %v672, 96
  %v679 = vpop.permute.xlu0 %678
  %v681 = vmul.f32 %v671, %v679
  %683 = vrot.lane.b32.xlu0 %v681, 16
  %v684 = vpop.permute.xlu0 %683
  %v686 = vadd.f32 %v676, %v684
  %v687 = vtanh.pop %v686
  %689 = vrot.lane.b32.xlu0 %v687, 32
  %v690 = vpop.permute.xlu0 %689
  %v692 = vmul.f32 %v671, %v690
  %v694 = vrot.slane %v692, 4
  %695 = vrot.lane.b32.xlu0 %v694, 80
  %v696 = vpop.permute.xlu0 %695
  %v697 = vsel %vm352, %v696, 0
  %699 = vmatpush.msra.mxu0 0.0
  %700 = vmatpush.msra.mxu0 0.0
  %701 = vmatpush.msra.mxu0 0.0
  %702 = vmatpush.msra.mxu0 0.0
  %703 = vmatpush.msra.mxu0 0.0
  %704 = vmatpush.msra.mxu0 0.0
  %705 = vmatpush.msra.mxu0 0.0
  %706 = vmatpush.msra.mxu0 0.0
  %707 = vmatpush.msra.mxu0 0.0
  %708 = vmatpush.msra.mxu0 0.0
  %709 = vmatpush.msra.mxu0 0.0
  %710 = vmatpush.msra.mxu0 0.0
  %711 = vmatpush.msra.mxu0 0.0
  %712 = vmatpush.msra.mxu0 0.0
  %713 = vmatpush.msra.mxu0 %v186
  %714 = vmatpush.msra.mxu0 %v185
  %715 = vmatmul.f32.gmra.mxu0 %v697
  %v716 = vpop.f32.mrf.mxu0
  %v717 = vadd.f32 0.0, %v716
  %718 = vdwg.mxu0
  %v720 = vrot.slane %v717, 3
  %v722 = vadd.f32 %v350, %v720
  %v723 = vsub.f32 0.0, %v722
  %v724 = vmul.f32 %v723, 1.442695
  %v725 = vpow.pop %v724
  %v726 = vadd.f32 %v725, 1.0
  %v727 = vrcp.pop %v726
  %v728 = vmul.f32 %v726, %v727
  %v729 = vsub.f32 1.0, %v728
  %v730 = vmul.f32 %v727, %v729
  %v731 = vadd.f32 %v727, %v730
  %vm732 = vweird.f32 %v726
  %vm733 = vweird.f32 %v727
  %vm734 = vmor %vm732, %vm733
  %v735 = vsel %vm734, %v727, %v731
  %v736 = vand.u32 2147483647, %v726
  %vm737 = vcmp.eq.f32.partialorder %v736, 8.507059e+37
  %v738 = vand.u32 %v726, 2147483648
  %v739 = vor.u32 1.1754944e-38, %v738
  %v740 = vsel %vm737, %v739, %v735
  %v741 = vmul.f32 1.0, %v740
  %v742 = vtanh.pop %v722
  %v744 = vrot.slane %v686, 7
  %v746 = vmul.f32 %v741, %v744
  %748 = vrot.lane.b32.xlu0 %v742, 96
  %v749 = vpop.permute.xlu0 %748
  %v751 = vmul.f32 %v741, %v749
  %753 = vrot.lane.b32.xlu0 %v751, 16
  %v754 = vpop.permute.xlu0 %753
  %v756 = vadd.f32 %v746, %v754
  %v757 = vtanh.pop %v756
  %759 = vrot.lane.b32.xlu0 %v757, 32
  %v760 = vpop.permute.xlu0 %759
  %v762 = vmul.f32 %v741, %v760
  %v764 = vrot.slane %v762, 5
  %765 = vrot.lane.b32.xlu0 %v764, 80
  %v766 = vpop.permute.xlu0 %765
  %v767 = vsel %vm352, %v766, 0
  %769 = vmatpush.msra.mxu0 0.0
  %770 = vmatpush.msra.mxu0 0.0
  %771 = vmatpush.msra.mxu0 0.0
  %772 = vmatpush.msra.mxu0 0.0
  %773 = vmatpush.msra.mxu0 0.0
  %774 = vmatpush.msra.mxu0 0.0
  %775 = vmatpush.msra.mxu0 0.0
  %776 = vmatpush.msra.mxu0 0.0
  %777 = vmatpush.msra.mxu0 0.0
  %778 = vmatpush.msra.mxu0 0.0
  %779 = vmatpush.msra.mxu0 0.0
  %780 = vmatpush.msra.mxu0 0.0
  %781 = vmatpush.msra.mxu0 0.0
  %782 = vmatpush.msra.mxu0 0.0
  %783 = vmatpush.msra.mxu0 %v186
  %784 = vmatpush.msra.mxu0 %v185
  %785 = vmatmul.f32.gmra.mxu0 %v767
  %v786 = vpop.f32.mrf.mxu0
  %v787 = vadd.f32 0.0, %v786
  %788 = vdwg.mxu0
  %v790 = vrot.slane %v787, 2
  %v792 = vadd.f32 %v350, %v790
  %v793 = vsub.f32 0.0, %v792
  %v794 = vmul.f32 %v793, 1.442695
  %v795 = vpow.pop %v794
  %v796 = vadd.f32 %v795, 1.0
  %v797 = vrcp.pop %v796
  %v798 = vmul.f32 %v796, %v797
  %v799 = vsub.f32 1.0, %v798
  %v800 = vmul.f32 %v797, %v799
  %v801 = vadd.f32 %v797, %v800
  %vm802 = vweird.f32 %v796
  %vm803 = vweird.f32 %v797
  %vm804 = vmor %vm802, %vm803
  %v805 = vsel %vm804, %v797, %v801
  %v806 = vand.u32 2147483647, %v796
  %vm807 = vcmp.eq.f32.partialorder %v806, 8.507059e+37
  %v808 = vand.u32 %v796, 2147483648
  %v809 = vor.u32 1.1754944e-38, %v808
  %v810 = vsel %vm807, %v809, %v805
  %v811 = vmul.f32 1.0, %v810
  %v812 = vtanh.pop %v792
  %v814 = vrot.slane %v756, 7
  %v816 = vmul.f32 %v811, %v814
  %818 = vrot.lane.b32.xlu0 %v812, 96
  %v819 = vpop.permute.xlu0 %818
  %v821 = vmul.f32 %v811, %v819
  %823 = vrot.lane.b32.xlu0 %v821, 16
  %v824 = vpop.permute.xlu0 %823
  %v826 = vadd.f32 %v816, %v824
  %v827 = vtanh.pop %v826
  %829 = vrot.lane.b32.xlu0 %v827, 32
  %v830 = vpop.permute.xlu0 %829
  %v832 = vmul.f32 %v811, %v830
  %v834 = vrot.slane %v832, 6
  %835 = vrot.lane.b32.xlu0 %v834, 80
  %v836 = vpop.permute.xlu0 %835
  %v837 = vsel %vm352, %v836, 0
  %839 = vmatpush.msra.mxu0 0.0
  %840 = vmatpush.msra.mxu0 0.0
  %841 = vmatpush.msra.mxu0 0.0
  %842 = vmatpush.msra.mxu0 0.0
  %843 = vmatpush.msra.mxu0 0.0
  %844 = vmatpush.msra.mxu0 0.0
  %845 = vmatpush.msra.mxu0 0.0
  %846 = vmatpush.msra.mxu0 0.0
  %847 = vmatpush.msra.mxu0 0.0
  %848 = vmatpush.msra.mxu0 0.0
  %849 = vmatpush.msra.mxu0 0.0
  %850 = vmatpush.msra.mxu0 0.0
  %851 = vmatpush.msra.mxu0 0.0
  %852 = vmatpush.msra.mxu0 0.0
  %853 = vmatpush.msra.mxu0 %v186
  %854 = vmatpush.msra.mxu0 %v185
  %855 = vmatmul.f32.gmra.mxu0 %v837
  %v856 = vpop.f32.mrf.mxu0
  %v857 = vadd.f32 0.0, %v856
  %858 = vdwg.mxu0
  %v860 = vrot.slane %v857, 1
  %v862 = vadd.f32 %v350, %v860
  %v863 = vsub.f32 0.0, %v862
  %v864 = vmul.f32 %v863, 1.442695
  %v865 = vpow.pop %v864
  %v866 = vadd.f32 %v865, 1.0
  %v867 = vrcp.pop %v866
  %v868 = vmul.f32 %v866, %v867
  %v869 = vsub.f32 1.0, %v868
  %v870 = vmul.f32 %v867, %v869
  %v871 = vadd.f32 %v867, %v870
  %vm872 = vweird.f32 %v866
  %vm873 = vweird.f32 %v867
  %vm874 = vmor %vm872, %vm873
  %v875 = vsel %vm874, %v867, %v871
  %v876 = vand.u32 2147483647, %v866
  %vm877 = vcmp.eq.f32.partialorder %v876, 8.507059e+37
  %v878 = vand.u32 %v866, 2147483648
  %v879 = vor.u32 1.1754944e-38, %v878
  %v880 = vsel %vm877, %v879, %v875
  %v881 = vmul.f32 1.0, %v880
  %v882 = vtanh.pop %v862
  %v884 = vrot.slane %v826, 7
  %v886 = vmul.f32 %v881, %v884
  %888 = vrot.lane.b32.xlu0 %v882, 96
  %v889 = vpop.permute.xlu0 %888
  %v891 = vmul.f32 %v881, %v889
  %893 = vrot.lane.b32.xlu0 %v891, 16
  %v894 = vpop.permute.xlu0 %893
  %v896 = vadd.f32 %v886, %v894
  %v897 = vtanh.pop %v896
  %899 = vrot.lane.b32.xlu0 %v897, 32
  %v900 = vpop.permute.xlu0 %899
  %v902 = vmul.f32 %v881, %v900
  %vm903 = vcmask 1040384
  %v904 = vsel %vm903, %v413, %v482
  %vm905 = vcmask 1041408
  %v906 = vsel %vm905, %v904, %v552
  %vm907 = vcmask 1042432
  %v908 = vsel %vm907, %v906, %v622
  %vm909 = vcmask 1043456
  %v910 = vsel %vm909, %v908, %v692
  %vm911 = vcmask 1044480
  %v912 = vsel %vm911, %v910, %v762
  %vm913 = vcmask 1045504
  %v914 = vsel %vm913, %v912, %v832
  %vm915 = vcmask 1046528
  %v916 = vsel %vm915, %v914, %v902
  %v918 = vperm.slane %v196, 0
  %920 = vmatpush.msra.mxu0 0.0
  %921 = vmatpush.msra.mxu0 0.0
  %922 = vmatpush.msra.mxu0 0.0
  %923 = vmatpush.msra.mxu0 0.0
  %924 = vmatpush.msra.mxu0 0.0
  %925 = vmatpush.msra.mxu0 0.0
  %926 = vmatpush.msra.mxu0 0.0
  %927 = vmatpush.msra.mxu0 0.0
  %928 = vmatpush.msra.mxu0 0.0
  %929 = vmatpush.msra.mxu0 0.0
  %930 = vmatpush.msra.mxu0 %v193
  %931 = vmatpush.msra.mxu0 %v192
  %932 = vmatpush.msra.mxu0 %v191
  %933 = vmatpush.msra.mxu0 %v190
  %934 = vmatpush.msra.mxu0 %v189
  %935 = vmatpush.msra.mxu0 %v188
  %936 = vmatmul.f32.gmra.mxu0 %v330
  %v937 = vpop.f32.mrf.mxu0
  %v938 = vadd.f32 %v918, %v937
  %939 = vdwg.mxu0
  %940 = vmatpush.msra.mxu0 0.0
  %941 = vmatpush.msra.mxu0 0.0
  %942 = vmatpush.msra.mxu0 0.0
  %943 = vmatpush.msra.mxu0 0.0
  %944 = vmatpush.msra.mxu0 0.0
  %945 = vmatpush.msra.mxu0 0.0
  %946 = vmatpush.msra.mxu0 0.0
  %947 = vmatpush.msra.mxu0 0.0
  %948 = vmatpush.msra.mxu0 0.0
  %949 = vmatpush.msra.mxu0 0.0
  %950 = vmatpush.msra.mxu0 0.0
  %951 = vmatpush.msra.mxu0 0.0
  %952 = vmatpush.msra.mxu0 0.0
  %953 = vmatpush.msra.mxu0 0.0
  %954 = vmatpush.msra.mxu0 %v195
  %955 = vmatpush.msra.mxu0 %v194
  %956 = vmatmul.f32.gmra.mxu0 %v354
  %v957 = vpop.f32.mrf.mxu0
  %v958 = vadd.f32 0.0, %v957
  %959 = vdwg.mxu0
  %v961 = vrot.slane %v958, 1
  %v963 = vadd.f32 %v938, %v961
  %v964 = vsub.f32 0.0, %v963
  %v965 = vmul.f32 %v964, 1.442695
  %v966 = vpow.pop %v965
  %v967 = vadd.f32 %v966, 1.0
  %v968 = vrcp.pop %v967
  %v969 = vmul.f32 %v967, %v968
  %v970 = vsub.f32 1.0, %v969
  %v971 = vmul.f32 %v968, %v970
  %v972 = vadd.f32 %v968, %v971
  %vm973 = vweird.f32 %v967
  %vm974 = vweird.f32 %v968
  %vm975 = vmor %vm973, %vm974
  %v976 = vsel %vm975, %v968, %v972
  %v977 = vand.u32 2147483647, %v967
  %vm978 = vcmp.eq.f32.partialorder %v977, 8.507059e+37
  %v979 = vand.u32 %v967, 2147483648
  %v980 = vor.u32 1.1754944e-38, %v979
  %v981 = vsel %vm978, %v980, %v976
  %v982 = vmul.f32 1.0, %v981
  %v983 = vtanh.pop %v963
  %v984 = vmul.f32 %v982, 0.0
  %986 = vrot.lane.b32.xlu0 %v983, 96
  %v987 = vpop.permute.xlu0 %986
  %v989 = vmul.f32 %v982, %v987
  %991 = vrot.lane.b32.xlu0 %v989, 16
  %v992 = vpop.permute.xlu0 %991
  %v994 = vadd.f32 %v984, %v992
  %v995 = vtanh.pop %v994
  %997 = vrot.lane.b32.xlu0 %v995, 32
  %v998 = vpop.permute.xlu0 %997
  %v1000 = vmul.f32 %v982, %v998
  %v1002 = vrot.slane %v1000, 7
  %1003 = vrot.lane.b32.xlu0 %v1002, 80
  %v1004 = vpop.permute.xlu0 %1003
  %v1005 = vsel %vm352, %v1004, 0
  %1007 = vmatpush.msra.mxu0 0.0
  %1008 = vmatpush.msra.mxu0 0.0
  %1009 = vmatpush.msra.mxu0 0.0
  %1010 = vmatpush.msra.mxu0 0.0
  %1011 = vmatpush.msra.mxu0 0.0
  %1012 = vmatpush.msra.mxu0 0.0
  %1013 = vmatpush.msra.mxu0 0.0
  %1014 = vmatpush.msra.mxu0 0.0
  %1015 = vmatpush.msra.mxu0 0.0
  %1016 = vmatpush.msra.mxu0 0.0
  %1017 = vmatpush.msra.mxu0 0.0
  %1018 = vmatpush.msra.mxu0 0.0
  %1019 = vmatpush.msra.mxu0 0.0
  %1020 = vmatpush.msra.mxu0 0.0
  %1021 = vmatpush.msra.mxu0 %v195
  %1022 = vmatpush.msra.mxu0 %v194
  %1023 = vmatmul.f32.gmra.mxu0 %v1005
  %v1024 = vpop.f32.mrf.mxu0
  %v1025 = vadd.f32 0.0, %v1024
  %1026 = vdwg.mxu0
  %v1028 = vrot.slane %v1025, 2
  %v1030 = vadd.f32 %v938, %v1028
  %v1031 = vsub.f32 0.0, %v1030
  %v1032 = vmul.f32 %v1031, 1.442695
  %v1033 = vpow.pop %v1032
  %v1034 = vadd.f32 %v1033, 1.0
  %v1035 = vrcp.pop %v1034
  %v1036 = vmul.f32 %v1034, %v1035
  %v1037 = vsub.f32 1.0, %v1036
  %v1038 = vmul.f32 %v1035, %v1037
  %v1039 = vadd.f32 %v1035, %v1038
  %vm1040 = vweird.f32 %v1034
  %vm1041 = vweird.f32 %v1035
  %vm1042 = vmor %vm1040, %vm1041
  %v1043 = vsel %vm1042, %v1035, %v1039
  %v1044 = vand.u32 2147483647, %v1034
  %vm1045 = vcmp.eq.f32.partialorder %v1044, 8.507059e+37
  %v1046 = vand.u32 %v1034, 2147483648
  %v1047 = vor.u32 1.1754944e-38, %v1046
  %v1048 = vsel %vm1045, %v1047, %v1043
  %v1049 = vmul.f32 1.0, %v1048
  %v1050 = vtanh.pop %v1030
  %v1052 = vrot.slane %v994, 1
  %v1054 = vmul.f32 %v1049, %v1052
  %1056 = vrot.lane.b32.xlu0 %v1050, 96
  %v1057 = vpop.permute.xlu0 %1056
  %v1059 = vmul.f32 %v1049, %v1057
  %1061 = vrot.lane.b32.xlu0 %v1059, 16
  %v1062 = vpop.permute.xlu0 %1061
  %v1064 = vadd.f32 %v1054, %v1062
  %v1065 = vtanh.pop %v1064
  %1067 = vrot.lane.b32.xlu0 %v1065, 32
  %v1068 = vpop.permute.xlu0 %1067
  %v1070 = vmul.f32 %v1049, %v1068
  %v1072 = vrot.slane %v1070, 6
  %1073 = vrot.lane.b32.xlu0 %v1072, 80
  %v1074 = vpop.permute.xlu0 %1073
  %v1075 = vsel %vm352, %v1074, 0
  %1077 = vmatpush.msra.mxu0 0.0
  %1078 = vmatpush.msra.mxu0 0.0
  %1079 = vmatpush.msra.mxu0 0.0
  %1080 = vmatpush.msra.mxu0 0.0
  %1081 = vmatpush.msra.mxu0 0.0
  %1082 = vmatpush.msra.mxu0 0.0
  %1083 = vmatpush.msra.mxu0 0.0
  %1084 = vmatpush.msra.mxu0 0.0
  %1085 = vmatpush.msra.mxu0 0.0
  %1086 = vmatpush.msra.mxu0 0.0
  %1087 = vmatpush.msra.mxu0 0.0
  %1088 = vmatpush.msra.mxu0 0.0
  %1089 = vmatpush.msra.mxu0 0.0
  %1090 = vmatpush.msra.mxu0 0.0
  %1091 = vmatpush.msra.mxu0 %v195
  %1092 = vmatpush.msra.mxu0 %v194
  %1093 = vmatmul.f32.gmra.mxu0 %v1075
  %v1094 = vpop.f32.mrf.mxu0
  %v1095 = vadd.f32 0.0, %v1094
  %1096 = vdwg.mxu0
  %v1098 = vrot.slane %v1095, 3
  %v1100 = vadd.f32 %v938, %v1098
  %v1101 = vsub.f32 0.0, %v1100
  %v1102 = vmul.f32 %v1101, 1.442695
  %v1103 = vpow.pop %v1102
  %v1104 = vadd.f32 %v1103, 1.0
  %v1105 = vrcp.pop %v1104
  %v1106 = vmul.f32 %v1104, %v1105
  %v1107 = vsub.f32 1.0, %v1106
  %v1108 = vmul.f32 %v1105, %v1107
  %v1109 = vadd.f32 %v1105, %v1108
  %vm1110 = vweird.f32 %v1104
  %vm1111 = vweird.f32 %v1105
  %vm1112 = vmor %vm1110, %vm1111
  %v1113 = vsel %vm1112, %v1105, %v1109
  %v1114 = vand.u32 2147483647, %v1104
  %vm1115 = vcmp.eq.f32.partialorder %v1114, 8.507059e+37
  %v1116 = vand.u32 %v1104, 2147483648
  %v1117 = vor.u32 1.1754944e-38, %v1116
  %v1118 = vsel %vm1115, %v1117, %v1113
  %v1119 = vmul.f32 1.0, %v1118
  %v1120 = vtanh.pop %v1100
  %v1122 = vrot.slane %v1064, 1
  %v1124 = vmul.f32 %v1119, %v1122
  %1126 = vrot.lane.b32.xlu0 %v1120, 96
  %v1127 = vpop.permute.xlu0 %1126
  %v1129 = vmul.f32 %v1119, %v1127
  %1131 = vrot.lane.b32.xlu0 %v1129, 16
  %v1132 = vpop.permute.xlu0 %1131
  %v1134 = vadd.f32 %v1124, %v1132
  %v1135 = vtanh.pop %v1134
  %1137 = vrot.lane.b32.xlu0 %v1135, 32
  %v1138 = vpop.permute.xlu0 %1137
  %v1140 = vmul.f32 %v1119, %v1138
  %v1142 = vrot.slane %v1140, 5
  %1143 = vrot.lane.b32.xlu0 %v1142, 80
  %v1144 = vpop.permute.xlu0 %1143
  %v1145 = vsel %vm352, %v1144, 0
  %1147 = vmatpush.msra.mxu0 0.0
  %1148 = vmatpush.msra.mxu0 0.0
  %1149 = vmatpush.msra.mxu0 0.0
  %1150 = vmatpush.msra.mxu0 0.0
  %1151 = vmatpush.msra.mxu0 0.0
  %1152 = vmatpush.msra.mxu0 0.0
  %1153 = vmatpush.msra.mxu0 0.0
  %1154 = vmatpush.msra.mxu0 0.0
  %1155 = vmatpush.msra.mxu0 0.0
  %1156 = vmatpush.msra.mxu0 0.0
  %1157 = vmatpush.msra.mxu0 0.0
  %1158 = vmatpush.msra.mxu0 0.0
  %1159 = vmatpush.msra.mxu0 0.0
  %1160 = vmatpush.msra.mxu0 0.0
  %1161 = vmatpush.msra.mxu0 %v195
  %1162 = vmatpush.msra.mxu0 %v194
  %1163 = vmatmul.f32.gmra.mxu0 %v1145
  %v1164 = vpop.f32.mrf.mxu0
  %v1165 = vadd.f32 0.0, %v1164
  %1166 = vdwg.mxu0
  %v1168 = vrot.slane %v1165, 4
  %v1170 = vadd.f32 %v938, %v1168
  %v1171 = vsub.f32 0.0, %v1170
  %v1172 = vmul.f32 %v1171, 1.442695
  %v1173 = vpow.pop %v1172
  %v1174 = vadd.f32 %v1173, 1.0
  %v1175 = vrcp.pop %v1174
  %v1176 = vmul.f32 %v1174, %v1175
  %v1177 = vsub.f32 1.0, %v1176
  %v1178 = vmul.f32 %v1175, %v1177
  %v1179 = vadd.f32 %v1175, %v1178
  %vm1180 = vweird.f32 %v1174
  %vm1181 = vweird.f32 %v1175
  %vm1182 = vmor %vm1180, %vm1181
  %v1183 = vsel %vm1182, %v1175, %v1179
  %v1184 = vand.u32 2147483647, %v1174
  %vm1185 = vcmp.eq.f32.partialorder %v1184, 8.507059e+37
  %v1186 = vand.u32 %v1174, 2147483648
  %v1187 = vor.u32 1.1754944e-38, %v1186
  %v1188 = vsel %vm1185, %v1187, %v1183
  %v1189 = vmul.f32 1.0, %v1188
  %v1190 = vtanh.pop %v1170
  %v1192 = vrot.slane %v1134, 1
  %v1194 = vmul.f32 %v1189, %v1192
  %1196 = vrot.lane.b32.xlu0 %v1190, 96
  %v1197 = vpop.permute.xlu0 %1196
  %v1199 = vmul.f32 %v1189, %v1197
  %1201 = vrot.lane.b32.xlu0 %v1199, 16
  %v1202 = vpop.permute.xlu0 %1201
  %v1204 = vadd.f32 %v1194, %v1202
  %v1205 = vtanh.pop %v1204
  %1207 = vrot.lane.b32.xlu0 %v1205, 32
  %v1208 = vpop.permute.xlu0 %1207
  %v1210 = vmul.f32 %v1189, %v1208
  %v1212 = vrot.slane %v1210, 4
  %1213 = vrot.lane.b32.xlu0 %v1212, 80
  %v1214 = vpop.permute.xlu0 %1213
  %v1215 = vsel %vm352, %v1214, 0
  %1217 = vmatpush.msra.mxu0 0.0
  %1218 = vmatpush.msra.mxu0 0.0
  %1219 = vmatpush.msra.mxu0 0.0
  %1220 = vmatpush.msra.mxu0 0.0
  %1221 = vmatpush.msra.mxu0 0.0
  %1222 = vmatpush.msra.mxu0 0.0
  %1223 = vmatpush.msra.mxu0 0.0
  %1224 = vmatpush.msra.mxu0 0.0
  %1225 = vmatpush.msra.mxu0 0.0
  %1226 = vmatpush.msra.mxu0 0.0
  %1227 = vmatpush.msra.mxu0 0.0
  %1228 = vmatpush.msra.mxu0 0.0
  %1229 = vmatpush.msra.mxu0 0.0
  %1230 = vmatpush.msra.mxu0 0.0
  %1231 = vmatpush.msra.mxu0 %v195
  %1232 = vmatpush.msra.mxu0 %v194
  %1233 = vmatmul.f32.gmra.mxu0 %v1215
  %v1234 = vpop.f32.mrf.mxu0
  %v1235 = vadd.f32 0.0, %v1234
  %1236 = vdwg.mxu0
  %v1238 = vrot.slane %v1235, 5
  %v1240 = vadd.f32 %v938, %v1238
  %v1241 = vsub.f32 0.0, %v1240
  %v1242 = vmul.f32 %v1241, 1.442695
  %v1243 = vpow.pop %v1242
  %v1244 = vadd.f32 %v1243, 1.0
  %v1245 = vrcp.pop %v1244
  %v1246 = vmul.f32 %v1244, %v1245
  %v1247 = vsub.f32 1.0, %v1246
  %v1248 = vmul.f32 %v1245, %v1247
  %v1249 = vadd.f32 %v1245, %v1248
  %vm1250 = vweird.f32 %v1244
  %vm1251 = vweird.f32 %v1245
  %vm1252 = vmor %vm1250, %vm1251
  %v1253 = vsel %vm1252, %v1245, %v1249
  %v1254 = vand.u32 2147483647, %v1244
  %vm1255 = vcmp.eq.f32.partialorder %v1254, 8.507059e+37
  %v1256 = vand.u32 %v1244, 2147483648
  %v1257 = vor.u32 1.1754944e-38, %v1256
  %v1258 = vsel %vm1255, %v1257, %v1253
  %v1259 = vmul.f32 1.0, %v1258
  %v1260 = vtanh.pop %v1240
  %v1262 = vrot.slane %v1204, 1
  %v1264 = vmul.f32 %v1259, %v1262
  %1266 = vrot.lane.b32.xlu0 %v1260, 96
  %v1267 = vpop.permute.xlu0 %1266
  %v1269 = vmul.f32 %v1259, %v1267
  %1271 = vrot.lane.b32.xlu0 %v1269, 16
  %v1272 = vpop.permute.xlu0 %1271
  %v1274 = vadd.f32 %v1264, %v1272
  %v1275 = vtanh.pop %v1274
  %1277 = vrot.lane.b32.xlu0 %v1275, 32
  %v1278 = vpop.permute.xlu0 %1277
  %v1280 = vmul.f32 %v1259, %v1278
  %v1282 = vrot.slane %v1280, 3
  %1283 = vrot.lane.b32.xlu0 %v1282, 80
  %v1284 = vpop.permute.xlu0 %1283
  %v1285 = vsel %vm352, %v1284, 0
  %1287 = vmatpush.msra.mxu0 0.0
  %1288 = vmatpush.msra.mxu0 0.0
  %1289 = vmatpush.msra.mxu0 0.0
  %1290 = vmatpush.msra.mxu0 0.0
  %1291 = vmatpush.msra.mxu0 0.0
  %1292 = vmatpush.msra.mxu0 0.0
  %1293 = vmatpush.msra.mxu0 0.0
  %1294 = vmatpush.msra.mxu0 0.0
  %1295 = vmatpush.msra.mxu0 0.0
  %1296 = vmatpush.msra.mxu0 0.0
  %1297 = vmatpush.msra.mxu0 0.0
  %1298 = vmatpush.msra.mxu0 0.0
  %1299 = vmatpush.msra.mxu0 0.0
  %1300 = vmatpush.msra.mxu0 0.0
  %1301 = vmatpush.msra.mxu0 %v195
  %1302 = vmatpush.msra.mxu0 %v194
  %1303 = vmatmul.f32.gmra.mxu0 %v1285
  %v1304 = vpop.f32.mrf.mxu0
  %v1305 = vadd.f32 0.0, %v1304
  %1306 = vdwg.mxu0
  %v1308 = vrot.slane %v1305, 6
  %v1310 = vadd.f32 %v938, %v1308
  %v1311 = vsub.f32 0.0, %v1310
  %v1312 = vmul.f32 %v1311, 1.442695
  %v1313 = vpow.pop %v1312
  %v1314 = vadd.f32 %v1313, 1.0
  %v1315 = vrcp.pop %v1314
  %v1316 = vmul.f32 %v1314, %v1315
  %v1317 = vsub.f32 1.0, %v1316
  %v1318 = vmul.f32 %v1315, %v1317
  %v1319 = vadd.f32 %v1315, %v1318
  %vm1320 = vweird.f32 %v1314
  %vm1321 = vweird.f32 %v1315
  %vm1322 = vmor %vm1320, %vm1321
  %v1323 = vsel %vm1322, %v1315, %v1319
  %v1324 = vand.u32 2147483647, %v1314
  %vm1325 = vcmp.eq.f32.partialorder %v1324, 8.507059e+37
  %v1326 = vand.u32 %v1314, 2147483648
  %v1327 = vor.u32 1.1754944e-38, %v1326
  %v1328 = vsel %vm1325, %v1327, %v1323
  %v1329 = vmul.f32 1.0, %v1328
  %v1330 = vtanh.pop %v1310
  %v1332 = vrot.slane %v1274, 1
  %v1334 = vmul.f32 %v1329, %v1332
  %1336 = vrot.lane.b32.xlu0 %v1330, 96
  %v1337 = vpop.permute.xlu0 %1336
  %v1339 = vmul.f32 %v1329, %v1337
  %1341 = vrot.lane.b32.xlu0 %v1339, 16
  %v1342 = vpop.permute.xlu0 %1341
  %v1344 = vadd.f32 %v1334, %v1342
  %v1345 = vtanh.pop %v1344
  %1347 = vrot.lane.b32.xlu0 %v1345, 32
  %v1348 = vpop.permute.xlu0 %1347
  %v1350 = vmul.f32 %v1329, %v1348
  %v1352 = vrot.slane %v1350, 2
  %1353 = vrot.lane.b32.xlu0 %v1352, 80
  %v1354 = vpop.permute.xlu0 %1353
  %v1355 = vsel %vm352, %v1354, 0
  %1357 = vmatpush.msra.mxu0 0.0
  %1358 = vmatpush.msra.mxu0 0.0
  %1359 = vmatpush.msra.mxu0 0.0
  %1360 = vmatpush.msra.mxu0 0.0
  %1361 = vmatpush.msra.mxu0 0.0
  %1362 = vmatpush.msra.mxu0 0.0
  %1363 = vmatpush.msra.mxu0 0.0
  %1364 = vmatpush.msra.mxu0 0.0
  %1365 = vmatpush.msra.mxu0 0.0
  %1366 = vmatpush.msra.mxu0 0.0
  %1367 = vmatpush.msra.mxu0 0.0
  %1368 = vmatpush.msra.mxu0 0.0
  %1369 = vmatpush.msra.mxu0 0.0
  %1370 = vmatpush.msra.mxu0 0.0
  %1371 = vmatpush.msra.mxu0 %v195
  %1372 = vmatpush.msra.mxu0 %v194
  %1373 = vmatmul.f32.gmra.mxu0 %v1355
  %v1374 = vpop.f32.mrf.mxu0
  %v1375 = vadd.f32 0.0, %v1374
  %1376 = vdwg.mxu0
  %v1378 = vrot.slane %v1375, 7
  %v1380 = vadd.f32 %v938, %v1378
  %v1381 = vsub.f32 0.0, %v1380
  %v1382 = vmul.f32 %v1381, 1.442695
  %v1383 = vpow.pop %v1382
  %v1384 = vadd.f32 %v1383, 1.0
  %v1385 = vrcp.pop %v1384
  %v1386 = vmul.f32 %v1384, %v1385
  %v1387 = vsub.f32 1.0, %v1386
  %v1388 = vmul.f32 %v1385, %v1387
  %v1389 = vadd.f32 %v1385, %v1388
  %vm1390 = vweird.f32 %v1384
  %vm1391 = vweird.f32 %v1385
  %vm1392 = vmor %vm1390, %vm1391
  %v1393 = vsel %vm1392, %v1385, %v1389
  %v1394 = vand.u32 2147483647, %v1384
  %vm1395 = vcmp.eq.f32.partialorder %v1394, 8.507059e+37
  %v1396 = vand.u32 %v1384, 2147483648
  %v1397 = vor.u32 1.1754944e-38, %v1396
  %v1398 = vsel %vm1395, %v1397, %v1393
  %v1399 = vmul.f32 1.0, %v1398
  %v1400 = vtanh.pop %v1380
  %v1402 = vrot.slane %v1344, 1
  %v1404 = vmul.f32 %v1399, %v1402
  %1406 = vrot.lane.b32.xlu0 %v1400, 96
  %v1407 = vpop.permute.xlu0 %1406
  %v1409 = vmul.f32 %v1399, %v1407
  %1411 = vrot.lane.b32.xlu0 %v1409, 16
  %v1412 = vpop.permute.xlu0 %1411
  %v1414 = vadd.f32 %v1404, %v1412
  %v1415 = vtanh.pop %v1414
  %1417 = vrot.lane.b32.xlu0 %v1415, 32
  %v1418 = vpop.permute.xlu0 %1417
  %v1420 = vmul.f32 %v1399, %v1418
  %v1422 = vrot.slane %v1420, 1
  %1423 = vrot.lane.b32.xlu0 %v1422, 80
  %v1424 = vpop.permute.xlu0 %1423
  %v1425 = vsel %vm352, %v1424, 0
  %1427 = vmatpush.msra.mxu0 0.0
  %1428 = vmatpush.msra.mxu0 0.0
  %1429 = vmatpush.msra.mxu0 0.0
  %1430 = vmatpush.msra.mxu0 0.0
  %1431 = vmatpush.msra.mxu0 0.0
  %1432 = vmatpush.msra.mxu0 0.0
  %1433 = vmatpush.msra.mxu0 0.0
  %1434 = vmatpush.msra.mxu0 0.0
  %1435 = vmatpush.msra.mxu0 0.0
  %1436 = vmatpush.msra.mxu0 0.0
  %1437 = vmatpush.msra.mxu0 0.0
  %1438 = vmatpush.msra.mxu0 0.0
  %1439 = vmatpush.msra.mxu0 0.0
  %1440 = vmatpush.msra.mxu0 0.0
  %1441 = vmatpush.msra.mxu0 %v195
  %1442 = vmatpush.msra.mxu0 %v194
  %1443 = vmatmul.f32.gmra.mxu0 %v1425
  %v1444 = vpop.f32.mrf.mxu0
  %v1445 = vadd.f32 0.0, %v1444
  %1446 = vdwg.mxu0
  %v1447 = vadd.f32 %v938, %v1445
  %v1448 = vsub.f32 0.0, %v1447
  %v1449 = vmul.f32 %v1448, 1.442695
  %v1450 = vpow.pop %v1449
  %v1451 = vadd.f32 %v1450, 1.0
  %v1452 = vrcp.pop %v1451
  %v1453 = vmul.f32 %v1451, %v1452
  %v1454 = vsub.f32 1.0, %v1453
  %v1455 = vmul.f32 %v1452, %v1454
  %v1456 = vadd.f32 %v1452, %v1455
  %vm1457 = vweird.f32 %v1451
  %vm1458 = vweird.f32 %v1452
  %vm1459 = vmor %vm1457, %vm1458
  %v1460 = vsel %vm1459, %v1452, %v1456
  %v1461 = vand.u32 2147483647, %v1451
  %vm1462 = vcmp.eq.f32.partialorder %v1461, 8.507059e+37
  %v1463 = vand.u32 %v1451, 2147483648
  %v1464 = vor.u32 1.1754944e-38, %v1463
  %v1465 = vsel %vm1462, %v1464, %v1460
  %v1466 = vmul.f32 1.0, %v1465
  %v1467 = vtanh.pop %v1447
  %v1469 = vrot.slane %v1414, 1
  %v1471 = vmul.f32 %v1466, %v1469
  %1473 = vrot.lane.b32.xlu0 %v1467, 96
  %v1474 = vpop.permute.xlu0 %1473
  %v1476 = vmul.f32 %v1466, %v1474
  %1478 = vrot.lane.b32.xlu0 %v1476, 16
  %v1479 = vpop.permute.xlu0 %1478
  %v1481 = vadd.f32 %v1471, %v1479
  %v1482 = vtanh.pop %v1481
  %1484 = vrot.lane.b32.xlu0 %v1482, 32
  %v1485 = vpop.permute.xlu0 %1484
  %v1487 = vmul.f32 %v1466, %v1485
  %v1488 = vsel %vm903, %v1487, %v1420
  %v1489 = vsel %vm905, %v1488, %v1350
  %v1490 = vsel %vm907, %v1489, %v1280
  %v1491 = vsel %vm909, %v1490, %v1210
  %v1492 = vsel %vm911, %v1491, %v1140
  %v1493 = vsel %vm913, %v1492, %v1070
  %v1494 = vsel %vm915, %v1493, %v1000
  %1496 = vrot.lane.b32.xlu0 %v916, 80
  %v1497 = vpop.permute.xlu0 %1496
  %1500 = vrot.lane.b32.xlu0 %v1494, 96
  %v1501 = vpop.permute.xlu0 %1500
  %v1503 = vsel %vm352, %v1497, %v1501
  %v1505 = vperm.slane %v203, 0
  %vm1507 = vcmask 261120
  %v1509 = vsel %vm1507, %v1503, 0
  %1511 = vmatpush.msra.mxu0 0.0
  %1512 = vmatpush.msra.mxu0 0.0
  %1513 = vmatpush.msra.mxu0 0.0
  %1514 = vmatpush.msra.mxu0 0.0
  %1515 = vmatpush.msra.mxu0 0.0
  %1516 = vmatpush.msra.mxu0 0.0
  %1517 = vmatpush.msra.mxu0 0.0
  %1518 = vmatpush.msra.mxu0 0.0
  %1519 = vmatpush.msra.mxu0 0.0
  %1520 = vmatpush.msra.mxu0 0.0
  %1521 = vmatpush.msra.mxu0 0.0
  %1522 = vmatpush.msra.mxu0 0.0
  %1523 = vmatpush.msra.mxu0 %v200
  %1524 = vmatpush.msra.mxu0 %v199
  %1525 = vmatpush.msra.mxu0 %v198
  %1526 = vmatpush.msra.mxu0 %v197
  %1527 = vmatmul.f32.gmra.mxu0 %v1509
  %v1528 = vpop.f32.mrf.mxu0
  %v1529 = vadd.f32 %v1505, %v1528
  %1530 = vdwg.mxu0
  %1531 = vmatpush.msra.mxu0 0.0
  %1532 = vmatpush.msra.mxu0 0.0
  %1533 = vmatpush.msra.mxu0 0.0
  %1534 = vmatpush.msra.mxu0 0.0
  %1535 = vmatpush.msra.mxu0 0.0
  %1536 = vmatpush.msra.mxu0 0.0
  %1537 = vmatpush.msra.mxu0 0.0
  %1538 = vmatpush.msra.mxu0 0.0
  %1539 = vmatpush.msra.mxu0 0.0
  %1540 = vmatpush.msra.mxu0 0.0
  %1541 = vmatpush.msra.mxu0 0.0
  %1542 = vmatpush.msra.mxu0 0.0
  %1543 = vmatpush.msra.mxu0 0.0
  %1544 = vmatpush.msra.mxu0 0.0
  %1545 = vmatpush.msra.mxu0 %v202
  %1546 = vmatpush.msra.mxu0 %v201
  %1547 = vmatmul.f32.gmra.mxu0 %v354
  %v1548 = vpop.f32.mrf.mxu0
  %v1549 = vadd.f32 0.0, %v1548
  %1550 = vdwg.mxu0
  %v1551 = vadd.f32 %v1529, %v1549
  %v1552 = vsub.f32 0.0, %v1551
  %v1553 = vmul.f32 %v1552, 1.442695
  %v1554 = vpow.pop %v1553
  %v1555 = vadd.f32 %v1554, 1.0
  %v1556 = vrcp.pop %v1555
  %v1557 = vmul.f32 %v1555, %v1556
  %v1558 = vsub.f32 1.0, %v1557
  %v1559 = vmul.f32 %v1556, %v1558
  %v1560 = vadd.f32 %v1556, %v1559
  %vm1561 = vweird.f32 %v1555
  %vm1562 = vweird.f32 %v1556
  %vm1563 = vmor %vm1561, %vm1562
  %v1564 = vsel %vm1563, %v1556, %v1560
  %v1565 = vand.u32 2147483647, %v1555
  %vm1566 = vcmp.eq.f32.partialorder %v1565, 8.507059e+37
  %v1567 = vand.u32 %v1555, 2147483648
  %v1568 = vor.u32 1.1754944e-38, %v1567
  %v1569 = vsel %vm1566, %v1568, %v1564
  %v1570 = vmul.f32 1.0, %v1569
  %v1571 = vtanh.pop %v1551
  %v1572 = vmul.f32 %v1570, 0.0
  %1574 = vrot.lane.b32.xlu0 %v1571, 96
  %v1575 = vpop.permute.xlu0 %1574
  %v1577 = vmul.f32 %v1570, %v1575
  %1579 = vrot.lane.b32.xlu0 %v1577, 16
  %v1580 = vpop.permute.xlu0 %1579
  %v1582 = vadd.f32 %v1572, %v1580
  %v1583 = vtanh.pop %v1582
  %1585 = vrot.lane.b32.xlu0 %v1583, 32
  %v1586 = vpop.permute.xlu0 %1585
  %v1588 = vmul.f32 %v1570, %v1586
  %1590 = vrot.lane.b32.xlu0 %v1588, 80
  %v1591 = vpop.permute.xlu0 %1590
  %v1592 = vsel %vm352, %v1591, 0
  %1594 = vmatpush.msra.mxu0 0.0
  %1595 = vmatpush.msra.mxu0 0.0
  %1596 = vmatpush.msra.mxu0 0.0
  %1597 = vmatpush.msra.mxu0 0.0
  %1598 = vmatpush.msra.mxu0 0.0
  %1599 = vmatpush.msra.mxu0 0.0
  %1600 = vmatpush.msra.mxu0 0.0
  %1601 = vmatpush.msra.mxu0 0.0
  %1602 = vmatpush.msra.mxu0 0.0
  %1603 = vmatpush.msra.mxu0 0.0
  %1604 = vmatpush.msra.mxu0 0.0
  %1605 = vmatpush.msra.mxu0 0.0
  %1606 = vmatpush.msra.mxu0 0.0
  %1607 = vmatpush.msra.mxu0 0.0
  %1608 = vmatpush.msra.mxu0 %v202
  %1609 = vmatpush.msra.mxu0 %v201
  %1610 = vmatmul.f32.gmra.mxu0 %v1592
  %v1611 = vpop.f32.mrf.mxu0
  %v1612 = vadd.f32 0.0, %v1611
  %1613 = vdwg.mxu0
  %v1615 = vrot.slane %v1612, 7
  %v1617 = vadd.f32 %v1529, %v1615
  %v1618 = vsub.f32 0.0, %v1617
  %v1619 = vmul.f32 %v1618, 1.442695
  %v1620 = vpow.pop %v1619
  %v1621 = vadd.f32 %v1620, 1.0
  %v1622 = vrcp.pop %v1621
  %v1623 = vmul.f32 %v1621, %v1622
  %v1624 = vsub.f32 1.0, %v1623
  %v1625 = vmul.f32 %v1622, %v1624
  %v1626 = vadd.f32 %v1622, %v1625
  %vm1627 = vweird.f32 %v1621
  %vm1628 = vweird.f32 %v1622
  %vm1629 = vmor %vm1627, %vm1628
  %v1630 = vsel %vm1629, %v1622, %v1626
  %v1631 = vand.u32 2147483647, %v1621
  %vm1632 = vcmp.eq.f32.partialorder %v1631, 8.507059e+37
  %v1633 = vand.u32 %v1621, 2147483648
  %v1634 = vor.u32 1.1754944e-38, %v1633
  %v1635 = vsel %vm1632, %v1634, %v1630
  %v1636 = vmul.f32 1.0, %v1635
  %v1637 = vtanh.pop %v1617
  %v1639 = vrot.slane %v1582, 7
  %v1641 = vmul.f32 %v1636, %v1639
  %1643 = vrot.lane.b32.xlu0 %v1637, 96
  %v1644 = vpop.permute.xlu0 %1643
  %v1646 = vmul.f32 %v1636, %v1644
  %1648 = vrot.lane.b32.xlu0 %v1646, 16
  %v1649 = vpop.permute.xlu0 %1648
  %v1651 = vadd.f32 %v1641, %v1649
  %v1652 = vtanh.pop %v1651
  %1654 = vrot.lane.b32.xlu0 %v1652, 32
  %v1655 = vpop.permute.xlu0 %1654
  %v1657 = vmul.f32 %v1636, %v1655
  %v1659 = vrot.slane %v1657, 1
  %1660 = vrot.lane.b32.xlu0 %v1659, 80
  %v1661 = vpop.permute.xlu0 %1660
  %v1662 = vsel %vm352, %v1661, 0
  %1664 = vmatpush.msra.mxu0 0.0
  %1665 = vmatpush.msra.mxu0 0.0
  %1666 = vmatpush.msra.mxu0 0.0
  %1667 = vmatpush.msra.mxu0 0.0
  %1668 = vmatpush.msra.mxu0 0.0
  %1669 = vmatpush.msra.mxu0 0.0
  %1670 = vmatpush.msra.mxu0 0.0
  %1671 = vmatpush.msra.mxu0 0.0
  %1672 = vmatpush.msra.mxu0 0.0
  %1673 = vmatpush.msra.mxu0 0.0
  %1674 = vmatpush.msra.mxu0 0.0
  %1675 = vmatpush.msra.mxu0 0.0
  %1676 = vmatpush.msra.mxu0 0.0
  %1677 = vmatpush.msra.mxu0 0.0
  %1678 = vmatpush.msra.mxu0 %v202
  %1679 = vmatpush.msra.mxu0 %v201
  %1680 = vmatmul.f32.gmra.mxu0 %v1662
  %v1681 = vpop.f32.mrf.mxu0
  %v1682 = vadd.f32 0.0, %v1681
  %1683 = vdwg.mxu0
  %v1685 = vrot.slane %v1682, 6
  %v1687 = vadd.f32 %v1529, %v1685
  %v1688 = vsub.f32 0.0, %v1687
  %v1689 = vmul.f32 %v1688, 1.442695
  %v1690 = vpow.pop %v1689
  %v1691 = vadd.f32 %v1690, 1.0
  %v1692 = vrcp.pop %v1691
  %v1693 = vmul.f32 %v1691, %v1692
  %v1694 = vsub.f32 1.0, %v1693
  %v1695 = vmul.f32 %v1692, %v1694
  %v1696 = vadd.f32 %v1692, %v1695
  %vm1697 = vweird.f32 %v1691
  %vm1698 = vweird.f32 %v1692
  %vm1699 = vmor %vm1697, %vm1698
  %v1700 = vsel %vm1699, %v1692, %v1696
  %v1701 = vand.u32 2147483647, %v1691
  %vm1702 = vcmp.eq.f32.partialorder %v1701, 8.507059e+37
  %v1703 = vand.u32 %v1691, 2147483648
  %v1704 = vor.u32 1.1754944e-38, %v1703
  %v1705 = vsel %vm1702, %v1704, %v1700
  %v1706 = vmul.f32 1.0, %v1705
  %v1707 = vtanh.pop %v1687
  %v1709 = vrot.slane %v1651, 7
  %v1711 = vmul.f32 %v1706, %v1709
  %1713 = vrot.lane.b32.xlu0 %v1707, 96
  %v1714 = vpop.permute.xlu0 %1713
  %v1716 = vmul.f32 %v1706, %v1714
  %1718 = vrot.lane.b32.xlu0 %v1716, 16
  %v1719 = vpop.permute.xlu0 %1718
  %v1721 = vadd.f32 %v1711, %v1719
  %v1722 = vtanh.pop %v1721
  %1724 = vrot.lane.b32.xlu0 %v1722, 32
  %v1725 = vpop.permute.xlu0 %1724
  %v1727 = vmul.f32 %v1706, %v1725
  %v1729 = vrot.slane %v1727, 2
  %1730 = vrot.lane.b32.xlu0 %v1729, 80
  %v1731 = vpop.permute.xlu0 %1730
  %v1732 = vsel %vm352, %v1731, 0
  %1734 = vmatpush.msra.mxu0 0.0
  %1735 = vmatpush.msra.mxu0 0.0
  %1736 = vmatpush.msra.mxu0 0.0
  %1737 = vmatpush.msra.mxu0 0.0
  %1738 = vmatpush.msra.mxu0 0.0
  %1739 = vmatpush.msra.mxu0 0.0
  %1740 = vmatpush.msra.mxu0 0.0
  %1741 = vmatpush.msra.mxu0 0.0
  %1742 = vmatpush.msra.mxu0 0.0
  %1743 = vmatpush.msra.mxu0 0.0
  %1744 = vmatpush.msra.mxu0 0.0
  %1745 = vmatpush.msra.mxu0 0.0
  %1746 = vmatpush.msra.mxu0 0.0
  %1747 = vmatpush.msra.mxu0 0.0
  %1748 = vmatpush.msra.mxu0 %v202
  %1749 = vmatpush.msra.mxu0 %v201
  %1750 = vmatmul.f32.gmra.mxu0 %v1732
  %v1751 = vpop.f32.mrf.mxu0
  %v1752 = vadd.f32 0.0, %v1751
  %1753 = vdwg.mxu0
  %v1755 = vrot.slane %v1752, 5
  %v1757 = vadd.f32 %v1529, %v1755
  %v1758 = vsub.f32 0.0, %v1757
  %v1759 = vmul.f32 %v1758, 1.442695
  %v1760 = vpow.pop %v1759
  %v1761 = vadd.f32 %v1760, 1.0
  %v1762 = vrcp.pop %v1761
  %v1763 = vmul.f32 %v1761, %v1762
  %v1764 = vsub.f32 1.0, %v1763
  %v1765 = vmul.f32 %v1762, %v1764
  %v1766 = vadd.f32 %v1762, %v1765
  %vm1767 = vweird.f32 %v1761
  %vm1768 = vweird.f32 %v1762
  %vm1769 = vmor %vm1767, %vm1768
  %v1770 = vsel %vm1769, %v1762, %v1766
  %v1771 = vand.u32 2147483647, %v1761
  %vm1772 = vcmp.eq.f32.partialorder %v1771, 8.507059e+37
  %v1773 = vand.u32 %v1761, 2147483648
  %v1774 = vor.u32 1.1754944e-38, %v1773
  %v1775 = vsel %vm1772, %v1774, %v1770
  %v1776 = vmul.f32 1.0, %v1775
  %v1777 = vtanh.pop %v1757
  %v1779 = vrot.slane %v1721, 7
  %v1781 = vmul.f32 %v1776, %v1779
  %1783 = vrot.lane.b32.xlu0 %v1777, 96
  %v1784 = vpop.permute.xlu0 %1783
  %v1786 = vmul.f32 %v1776, %v1784
  %1788 = vrot.lane.b32.xlu0 %v1786, 16
  %v1789 = vpop.permute.xlu0 %1788
  %v1791 = vadd.f32 %v1781, %v1789
  %v1792 = vtanh.pop %v1791
  %1794 = vrot.lane.b32.xlu0 %v1792, 32
  %v1795 = vpop.permute.xlu0 %1794
  %v1797 = vmul.f32 %v1776, %v1795
  %v1799 = vrot.slane %v1797, 3
  %1800 = vrot.lane.b32.xlu0 %v1799, 80
  %v1801 = vpop.permute.xlu0 %1800
  %v1802 = vsel %vm352, %v1801, 0
  %1804 = vmatpush.msra.mxu0 0.0
  %1805 = vmatpush.msra.mxu0 0.0
  %1806 = vmatpush.msra.mxu0 0.0
  %1807 = vmatpush.msra.mxu0 0.0
  %1808 = vmatpush.msra.mxu0 0.0
  %1809 = vmatpush.msra.mxu0 0.0
  %1810 = vmatpush.msra.mxu0 0.0
  %1811 = vmatpush.msra.mxu0 0.0
  %1812 = vmatpush.msra.mxu0 0.0
  %1813 = vmatpush.msra.mxu0 0.0
  %1814 = vmatpush.msra.mxu0 0.0
  %1815 = vmatpush.msra.mxu0 0.0
  %1816 = vmatpush.msra.mxu0 0.0
  %1817 = vmatpush.msra.mxu0 0.0
  %1818 = vmatpush.msra.mxu0 %v202
  %1819 = vmatpush.msra.mxu0 %v201
  %1820 = vmatmul.f32.gmra.mxu0 %v1802
  %v1821 = vpop.f32.mrf.mxu0
  %v1822 = vadd.f32 0.0, %v1821
  %1823 = vdwg.mxu0
  %v1825 = vrot.slane %v1822, 4
  %v1827 = vadd.f32 %v1529, %v1825
  %v1828 = vsub.f32 0.0, %v1827
  %v1829 = vmul.f32 %v1828, 1.442695
  %v1830 = vpow.pop %v1829
  %v1831 = vadd.f32 %v1830, 1.0
  %v1832 = vrcp.pop %v1831
  %v1833 = vmul.f32 %v1831, %v1832
  %v1834 = vsub.f32 1.0, %v1833
  %v1835 = vmul.f32 %v1832, %v1834
  %v1836 = vadd.f32 %v1832, %v1835
  %vm1837 = vweird.f32 %v1831
  %vm1838 = vweird.f32 %v1832
  %vm1839 = vmor %vm1837, %vm1838
  %v1840 = vsel %vm1839, %v1832, %v1836
  %v1841 = vand.u32 2147483647, %v1831
  %vm1842 = vcmp.eq.f32.partialorder %v1841, 8.507059e+37
  %v1843 = vand.u32 %v1831, 2147483648
  %v1844 = vor.u32 1.1754944e-38, %v1843
  %v1845 = vsel %vm1842, %v1844, %v1840
  %v1846 = vmul.f32 1.0, %v1845
  %v1847 = vtanh.pop %v1827
  %v1849 = vrot.slane %v1791, 7
  %v1851 = vmul.f32 %v1846, %v1849
  %1853 = vrot.lane.b32.xlu0 %v1847, 96
  %v1854 = vpop.permute.xlu0 %1853
  %v1856 = vmul.f32 %v1846, %v1854
  %1858 = vrot.lane.b32.xlu0 %v1856, 16
  %v1859 = vpop.permute.xlu0 %1858
  %v1861 = vadd.f32 %v1851, %v1859
  %v1862 = vtanh.pop %v1861
  %1864 = vrot.lane.b32.xlu0 %v1862, 32
  %v1865 = vpop.permute.xlu0 %1864
  %v1867 = vmul.f32 %v1846, %v1865
  %v1869 = vrot.slane %v1867, 4
  %1870 = vrot.lane.b32.xlu0 %v1869, 80
  %v1871 = vpop.permute.xlu0 %1870
  %v1872 = vsel %vm352, %v1871, 0
  %1874 = vmatpush.msra.mxu0 0.0
  %1875 = vmatpush.msra.mxu0 0.0
  %1876 = vmatpush.msra.mxu0 0.0
  %1877 = vmatpush.msra.mxu0 0.0
  %1878 = vmatpush.msra.mxu0 0.0
  %1879 = vmatpush.msra.mxu0 0.0
  %1880 = vmatpush.msra.mxu0 0.0
  %1881 = vmatpush.msra.mxu0 0.0
  %1882 = vmatpush.msra.mxu0 0.0
  %1883 = vmatpush.msra.mxu0 0.0
  %1884 = vmatpush.msra.mxu0 0.0
  %1885 = vmatpush.msra.mxu0 0.0
  %1886 = vmatpush.msra.mxu0 0.0
  %1887 = vmatpush.msra.mxu0 0.0
  %1888 = vmatpush.msra.mxu0 %v202
  %1889 = vmatpush.msra.mxu0 %v201
  %1890 = vmatmul.f32.gmra.mxu0 %v1872
  %v1891 = vpop.f32.mrf.mxu0
  %v1892 = vadd.f32 0.0, %v1891
  %1893 = vdwg.mxu0
  %v1895 = vrot.slane %v1892, 3
  %v1897 = vadd.f32 %v1529, %v1895
  %v1898 = vsub.f32 0.0, %v1897
  %v1899 = vmul.f32 %v1898, 1.442695
  %v1900 = vpow.pop %v1899
  %v1901 = vadd.f32 %v1900, 1.0
  %v1902 = vrcp.pop %v1901
  %v1903 = vmul.f32 %v1901, %v1902
  %v1904 = vsub.f32 1.0, %v1903
  %v1905 = vmul.f32 %v1902, %v1904
  %v1906 = vadd.f32 %v1902, %v1905
  %vm1907 = vweird.f32 %v1901
  %vm1908 = vweird.f32 %v1902
  %vm1909 = vmor %vm1907, %vm1908
  %v1910 = vsel %vm1909, %v1902, %v1906
  %v1911 = vand.u32 2147483647, %v1901
  %vm1912 = vcmp.eq.f32.partialorder %v1911, 8.507059e+37
  %v1913 = vand.u32 %v1901, 2147483648
  %v1914 = vor.u32 1.1754944e-38, %v1913
  %v1915 = vsel %vm1912, %v1914, %v1910
  %v1916 = vmul.f32 1.0, %v1915
  %v1917 = vtanh.pop %v1897
  %v1919 = vrot.slane %v1861, 7
  %v1921 = vmul.f32 %v1916, %v1919
  %1923 = vrot.lane.b32.xlu0 %v1917, 96
  %v1924 = vpop.permute.xlu0 %1923
  %v1926 = vmul.f32 %v1916, %v1924
  %1928 = vrot.lane.b32.xlu0 %v1926, 16
  %v1929 = vpop.permute.xlu0 %1928
  %v1931 = vadd.f32 %v1921, %v1929
  %v1932 = vtanh.pop %v1931
  %1934 = vrot.lane.b32.xlu0 %v1932, 32
  %v1935 = vpop.permute.xlu0 %1934
  %v1937 = vmul.f32 %v1916, %v1935
  %v1939 = vrot.slane %v1937, 5
  %1940 = vrot.lane.b32.xlu0 %v1939, 80
  %v1941 = vpop.permute.xlu0 %1940
  %v1942 = vsel %vm352, %v1941, 0
  %1944 = vmatpush.msra.mxu0 0.0
  %1945 = vmatpush.msra.mxu0 0.0
  %1946 = vmatpush.msra.mxu0 0.0
  %1947 = vmatpush.msra.mxu0 0.0
  %1948 = vmatpush.msra.mxu0 0.0
  %1949 = vmatpush.msra.mxu0 0.0
  %1950 = vmatpush.msra.mxu0 0.0
  %1951 = vmatpush.msra.mxu0 0.0
  %1952 = vmatpush.msra.mxu0 0.0
  %1953 = vmatpush.msra.mxu0 0.0
  %1954 = vmatpush.msra.mxu0 0.0
  %1955 = vmatpush.msra.mxu0 0.0
  %1956 = vmatpush.msra.mxu0 0.0
  %1957 = vmatpush.msra.mxu0 0.0
  %1958 = vmatpush.msra.mxu0 %v202
  %1959 = vmatpush.msra.mxu0 %v201
  %1960 = vmatmul.f32.gmra.mxu0 %v1942
  %v1961 = vpop.f32.mrf.mxu0
  %v1962 = vadd.f32 0.0, %v1961
  %1963 = vdwg.mxu0
  %v1965 = vrot.slane %v1962, 2
  %v1967 = vadd.f32 %v1529, %v1965
  %v1968 = vsub.f32 0.0, %v1967
  %v1969 = vmul.f32 %v1968, 1.442695
  %v1970 = vpow.pop %v1969
  %v1971 = vadd.f32 %v1970, 1.0
  %v1972 = vrcp.pop %v1971
  %v1973 = vmul.f32 %v1971, %v1972
  %v1974 = vsub.f32 1.0, %v1973
  %v1975 = vmul.f32 %v1972, %v1974
  %v1976 = vadd.f32 %v1972, %v1975
  %vm1977 = vweird.f32 %v1971
  %vm1978 = vweird.f32 %v1972
  %vm1979 = vmor %vm1977, %vm1978
  %v1980 = vsel %vm1979, %v1972, %v1976
  %v1981 = vand.u32 2147483647, %v1971
  %vm1982 = vcmp.eq.f32.partialorder %v1981, 8.507059e+37
  %v1983 = vand.u32 %v1971, 2147483648
  %v1984 = vor.u32 1.1754944e-38, %v1983
  %v1985 = vsel %vm1982, %v1984, %v1980
  %v1986 = vmul.f32 1.0, %v1985
  %v1987 = vtanh.pop %v1967
  %v1989 = vrot.slane %v1931, 7
  %v1991 = vmul.f32 %v1986, %v1989
  %1993 = vrot.lane.b32.xlu0 %v1987, 96
  %v1994 = vpop.permute.xlu0 %1993
  %v1996 = vmul.f32 %v1986, %v1994
  %1998 = vrot.lane.b32.xlu0 %v1996, 16
  %v1999 = vpop.permute.xlu0 %1998
  %v2001 = vadd.f32 %v1991, %v1999
  %v2002 = vtanh.pop %v2001
  %2004 = vrot.lane.b32.xlu0 %v2002, 32
  %v2005 = vpop.permute.xlu0 %2004
  %v2007 = vmul.f32 %v1986, %v2005
  %v2009 = vrot.slane %v2007, 6
  %2010 = vrot.lane.b32.xlu0 %v2009, 80
  %v2011 = vpop.permute.xlu0 %2010
  %v2012 = vsel %vm352, %v2011, 0
  %2014 = vmatpush.msra.mxu0 0.0
  %2015 = vmatpush.msra.mxu0 0.0
  %2016 = vmatpush.msra.mxu0 0.0
  %2017 = vmatpush.msra.mxu0 0.0
  %2018 = vmatpush.msra.mxu0 0.0
  %2019 = vmatpush.msra.mxu0 0.0
  %2020 = vmatpush.msra.mxu0 0.0
  %2021 = vmatpush.msra.mxu0 0.0
  %2022 = vmatpush.msra.mxu0 0.0
  %2023 = vmatpush.msra.mxu0 0.0
  %2024 = vmatpush.msra.mxu0 0.0
  %2025 = vmatpush.msra.mxu0 0.0
  %2026 = vmatpush.msra.mxu0 0.0
  %2027 = vmatpush.msra.mxu0 0.0
  %2028 = vmatpush.msra.mxu0 %v202
  %2029 = vmatpush.msra.mxu0 %v201
  %2030 = vmatmul.f32.gmra.mxu0 %v2012
  %v2031 = vpop.f32.mrf.mxu0
  %v2032 = vadd.f32 0.0, %v2031
  %2033 = vdwg.mxu0
  %v2035 = vrot.slane %v2032, 1
  %v2037 = vadd.f32 %v1529, %v2035
  %v2038 = vsub.f32 0.0, %v2037
  %v2039 = vmul.f32 %v2038, 1.442695
  %v2040 = vpow.pop %v2039
  %v2041 = vadd.f32 %v2040, 1.0
  %v2042 = vrcp.pop %v2041
  %v2043 = vmul.f32 %v2041, %v2042
  %v2044 = vsub.f32 1.0, %v2043
  %v2045 = vmul.f32 %v2042, %v2044
  %v2046 = vadd.f32 %v2042, %v2045
  %vm2047 = vweird.f32 %v2041
  %vm2048 = vweird.f32 %v2042
  %vm2049 = vmor %vm2047, %vm2048
  %v2050 = vsel %vm2049, %v2042, %v2046
  %v2051 = vand.u32 2147483647, %v2041
  %vm2052 = vcmp.eq.f32.partialorder %v2051, 8.507059e+37
  %v2053 = vand.u32 %v2041, 2147483648
  %v2054 = vor.u32 1.1754944e-38, %v2053
  %v2055 = vsel %vm2052, %v2054, %v2050
  %v2056 = vmul.f32 1.0, %v2055
  %v2057 = vtanh.pop %v2037
  %v2059 = vrot.slane %v2001, 7
  %v2061 = vmul.f32 %v2056, %v2059
  %2063 = vrot.lane.b32.xlu0 %v2057, 96
  %v2064 = vpop.permute.xlu0 %2063
  %v2066 = vmul.f32 %v2056, %v2064
  %2068 = vrot.lane.b32.xlu0 %v2066, 16
  %v2069 = vpop.permute.xlu0 %2068
  %v2071 = vadd.f32 %v2061, %v2069
  %v2072 = vtanh.pop %v2071
  %2074 = vrot.lane.b32.xlu0 %v2072, 32
  %v2075 = vpop.permute.xlu0 %2074
  %v2077 = vmul.f32 %v2056, %v2075
  %v2078 = vsel %vm903, %v1588, %v1657
  %v2079 = vsel %vm905, %v2078, %v1727
  %v2080 = vsel %vm907, %v2079, %v1797
  %v2081 = vsel %vm909, %v2080, %v1867
  %v2082 = vsel %vm911, %v2081, %v1937
  %v2083 = vsel %vm913, %v2082, %v2007
  %v2084 = vsel %vm915, %v2083, %v2077
  %v2086 = vperm.slane %v210, 0
  %2088 = vmatpush.msra.mxu0 0.0
  %2089 = vmatpush.msra.mxu0 0.0
  %2090 = vmatpush.msra.mxu0 0.0
  %2091 = vmatpush.msra.mxu0 0.0
  %2092 = vmatpush.msra.mxu0 0.0
  %2093 = vmatpush.msra.mxu0 0.0
  %2094 = vmatpush.msra.mxu0 0.0
  %2095 = vmatpush.msra.mxu0 0.0
  %2096 = vmatpush.msra.mxu0 0.0
  %2097 = vmatpush.msra.mxu0 0.0
  %2098 = vmatpush.msra.mxu0 0.0
  %2099 = vmatpush.msra.mxu0 0.0
  %2100 = vmatpush.msra.mxu0 %v207
  %2101 = vmatpush.msra.mxu0 %v206
  %2102 = vmatpush.msra.mxu0 %v205
  %2103 = vmatpush.msra.mxu0 %v204
  %2104 = vmatmul.f32.gmra.mxu0 %v1509
  %v2105 = vpop.f32.mrf.mxu0
  %v2106 = vadd.f32 %v2086, %v2105
  %2107 = vdwg.mxu0
  %2108 = vmatpush.msra.mxu0 0.0
  %2109 = vmatpush.msra.mxu0 0.0
  %2110 = vmatpush.msra.mxu0 0.0
  %2111 = vmatpush.msra.mxu0 0.0
  %2112 = vmatpush.msra.mxu0 0.0
  %2113 = vmatpush.msra.mxu0 0.0
  %2114 = vmatpush.msra.mxu0 0.0
  %2115 = vmatpush.msra.mxu0 0.0
  %2116 = vmatpush.msra.mxu0 0.0
  %2117 = vmatpush.msra.mxu0 0.0
  %2118 = vmatpush.msra.mxu0 0.0
  %2119 = vmatpush.msra.mxu0 0.0
  %2120 = vmatpush.msra.mxu0 0.0
  %2121 = vmatpush.msra.mxu0 0.0
  %2122 = vmatpush.msra.mxu0 %v209
  %2123 = vmatpush.msra.mxu0 %v208
  %2124 = vmatmul.f32.gmra.mxu0 %v354
  %v2125 = vpop.f32.mrf.mxu0
  %v2126 = vadd.f32 0.0, %v2125
  %2127 = vdwg.mxu0
  %v2129 = vrot.slane %v2126, 1
  %v2131 = vadd.f32 %v2106, %v2129
  %v2132 = vsub.f32 0.0, %v2131
  %v2133 = vmul.f32 %v2132, 1.442695
  %v2134 = vpow.pop %v2133
  %v2135 = vadd.f32 %v2134, 1.0
  %v2136 = vrcp.pop %v2135
  %v2137 = vmul.f32 %v2135, %v2136
  %v2138 = vsub.f32 1.0, %v2137
  %v2139 = vmul.f32 %v2136, %v2138
  %v2140 = vadd.f32 %v2136, %v2139
  %vm2141 = vweird.f32 %v2135
  %vm2142 = vweird.f32 %v2136
  %vm2143 = vmor %vm2141, %vm2142
  %v2144 = vsel %vm2143, %v2136, %v2140
  %v2145 = vand.u32 2147483647, %v2135
  %vm2146 = vcmp.eq.f32.partialorder %v2145, 8.507059e+37
  %v2147 = vand.u32 %v2135, 2147483648
  %v2148 = vor.u32 1.1754944e-38, %v2147
  %v2149 = vsel %vm2146, %v2148, %v2144
  %v2150 = vmul.f32 1.0, %v2149
  %v2151 = vtanh.pop %v2131
  %v2152 = vmul.f32 %v2150, 0.0
  %2154 = vrot.lane.b32.xlu0 %v2151, 96
  %v2155 = vpop.permute.xlu0 %2154
  %v2157 = vmul.f32 %v2150, %v2155
  %2159 = vrot.lane.b32.xlu0 %v2157, 16
  %v2160 = vpop.permute.xlu0 %2159
  %v2162 = vadd.f32 %v2152, %v2160
  %v2163 = vtanh.pop %v2162
  %2165 = vrot.lane.b32.xlu0 %v2163, 32
  %v2166 = vpop.permute.xlu0 %2165
  %v2168 = vmul.f32 %v2150, %v2166
  %v2170 = vrot.slane %v2168, 7
  %2171 = vrot.lane.b32.xlu0 %v2170, 80
  %v2172 = vpop.permute.xlu0 %2171
  %v2173 = vsel %vm352, %v2172, 0
  %2175 = vmatpush.msra.mxu0 0.0
  %2176 = vmatpush.msra.mxu0 0.0
  %2177 = vmatpush.msra.mxu0 0.0
  %2178 = vmatpush.msra.mxu0 0.0
  %2179 = vmatpush.msra.mxu0 0.0
  %2180 = vmatpush.msra.mxu0 0.0
  %2181 = vmatpush.msra.mxu0 0.0
  %2182 = vmatpush.msra.mxu0 0.0
  %2183 = vmatpush.msra.mxu0 0.0
  %2184 = vmatpush.msra.mxu0 0.0
  %2185 = vmatpush.msra.mxu0 0.0
  %2186 = vmatpush.msra.mxu0 0.0
  %2187 = vmatpush.msra.mxu0 0.0
  %2188 = vmatpush.msra.mxu0 0.0
  %2189 = vmatpush.msra.mxu0 %v209
  %2190 = vmatpush.msra.mxu0 %v208
  %2191 = vmatmul.f32.gmra.mxu0 %v2173
  %v2192 = vpop.f32.mrf.mxu0
  %v2193 = vadd.f32 0.0, %v2192
  %2194 = vdwg.mxu0
  %v2196 = vrot.slane %v2193, 2
  %v2198 = vadd.f32 %v2106, %v2196
  %v2199 = vsub.f32 0.0, %v2198
  %v2200 = vmul.f32 %v2199, 1.442695
  %v2201 = vpow.pop %v2200
  %v2202 = vadd.f32 %v2201, 1.0
  %v2203 = vrcp.pop %v2202
  %v2204 = vmul.f32 %v2202, %v2203
  %v2205 = vsub.f32 1.0, %v2204
  %v2206 = vmul.f32 %v2203, %v2205
  %v2207 = vadd.f32 %v2203, %v2206
  %vm2208 = vweird.f32 %v2202
  %vm2209 = vweird.f32 %v2203
  %vm2210 = vmor %vm2208, %vm2209
  %v2211 = vsel %vm2210, %v2203, %v2207
  %v2212 = vand.u32 2147483647, %v2202
  %vm2213 = vcmp.eq.f32.partialorder %v2212, 8.507059e+37
  %v2214 = vand.u32 %v2202, 2147483648
  %v2215 = vor.u32 1.1754944e-38, %v2214
  %v2216 = vsel %vm2213, %v2215, %v2211
  %v2217 = vmul.f32 1.0, %v2216
  %v2218 = vtanh.pop %v2198
  %v2220 = vrot.slane %v2162, 1
  %v2222 = vmul.f32 %v2217, %v2220
  %2224 = vrot.lane.b32.xlu0 %v2218, 96
  %v2225 = vpop.permute.xlu0 %2224
  %v2227 = vmul.f32 %v2217, %v2225
  %2229 = vrot.lane.b32.xlu0 %v2227, 16
  %v2230 = vpop.permute.xlu0 %2229
  %v2232 = vadd.f32 %v2222, %v2230
  %v2233 = vtanh.pop %v2232
  %2235 = vrot.lane.b32.xlu0 %v2233, 32
  %v2236 = vpop.permute.xlu0 %2235
  %v2238 = vmul.f32 %v2217, %v2236
  %v2240 = vrot.slane %v2238, 6
  %2241 = vrot.lane.b32.xlu0 %v2240, 80
  %v2242 = vpop.permute.xlu0 %2241
  %v2243 = vsel %vm352, %v2242, 0
  %2245 = vmatpush.msra.mxu0 0.0
  %2246 = vmatpush.msra.mxu0 0.0
  %2247 = vmatpush.msra.mxu0 0.0
  %2248 = vmatpush.msra.mxu0 0.0
  %2249 = vmatpush.msra.mxu0 0.0
  %2250 = vmatpush.msra.mxu0 0.0
  %2251 = vmatpush.msra.mxu0 0.0
  %2252 = vmatpush.msra.mxu0 0.0
  %2253 = vmatpush.msra.mxu0 0.0
  %2254 = vmatpush.msra.mxu0 0.0
  %2255 = vmatpush.msra.mxu0 0.0
  %2256 = vmatpush.msra.mxu0 0.0
  %2257 = vmatpush.msra.mxu0 0.0
  %2258 = vmatpush.msra.mxu0 0.0
  %2259 = vmatpush.msra.mxu0 %v209
  %2260 = vmatpush.msra.mxu0 %v208
  %2261 = vmatmul.f32.gmra.mxu0 %v2243
  %v2262 = vpop.f32.mrf.mxu0
  %v2263 = vadd.f32 0.0, %v2262
  %2264 = vdwg.mxu0
  %v2266 = vrot.slane %v2263, 3
  %v2268 = vadd.f32 %v2106, %v2266
  %v2269 = vsub.f32 0.0, %v2268
  %v2270 = vmul.f32 %v2269, 1.442695
  %v2271 = vpow.pop %v2270
  %v2272 = vadd.f32 %v2271, 1.0
  %v2273 = vrcp.pop %v2272
  %v2274 = vmul.f32 %v2272, %v2273
  %v2275 = vsub.f32 1.0, %v2274
  %v2276 = vmul.f32 %v2273, %v2275
  %v2277 = vadd.f32 %v2273, %v2276
  %vm2278 = vweird.f32 %v2272
  %vm2279 = vweird.f32 %v2273
  %vm2280 = vmor %vm2278, %vm2279
  %v2281 = vsel %vm2280, %v2273, %v2277
  %v2282 = vand.u32 2147483647, %v2272
  %vm2283 = vcmp.eq.f32.partialorder %v2282, 8.507059e+37
  %v2284 = vand.u32 %v2272, 2147483648
  %v2285 = vor.u32 1.1754944e-38, %v2284
  %v2286 = vsel %vm2283, %v2285, %v2281
  %v2287 = vmul.f32 1.0, %v2286
  %v2288 = vtanh.pop %v2268
  %v2290 = vrot.slane %v2232, 1
  %v2292 = vmul.f32 %v2287, %v2290
  %2294 = vrot.lane.b32.xlu0 %v2288, 96
  %v2295 = vpop.permute.xlu0 %2294
  %v2297 = vmul.f32 %v2287, %v2295
  %2299 = vrot.lane.b32.xlu0 %v2297, 16
  %v2300 = vpop.permute.xlu0 %2299
  %v2302 = vadd.f32 %v2292, %v2300
  %v2303 = vtanh.pop %v2302
  %2305 = vrot.lane.b32.xlu0 %v2303, 32
  %v2306 = vpop.permute.xlu0 %2305
  %v2308 = vmul.f32 %v2287, %v2306
  %v2310 = vrot.slane %v2308, 5
  %2311 = vrot.lane.b32.xlu0 %v2310, 80
  %v2312 = vpop.permute.xlu0 %2311
  %v2313 = vsel %vm352, %v2312, 0
  %2315 = vmatpush.msra.mxu0 0.0
  %2316 = vmatpush.msra.mxu0 0.0
  %2317 = vmatpush.msra.mxu0 0.0
  %2318 = vmatpush.msra.mxu0 0.0
  %2319 = vmatpush.msra.mxu0 0.0
  %2320 = vmatpush.msra.mxu0 0.0
  %2321 = vmatpush.msra.mxu0 0.0
  %2322 = vmatpush.msra.mxu0 0.0
  %2323 = vmatpush.msra.mxu0 0.0
  %2324 = vmatpush.msra.mxu0 0.0
  %2325 = vmatpush.msra.mxu0 0.0
  %2326 = vmatpush.msra.mxu0 0.0
  %2327 = vmatpush.msra.mxu0 0.0
  %2328 = vmatpush.msra.mxu0 0.0
  %2329 = vmatpush.msra.mxu0 %v209
  %2330 = vmatpush.msra.mxu0 %v208
  %2331 = vmatmul.f32.gmra.mxu0 %v2313
  %v2332 = vpop.f32.mrf.mxu0
  %v2333 = vadd.f32 0.0, %v2332
  %2334 = vdwg.mxu0
  %v2336 = vrot.slane %v2333, 4
  %v2338 = vadd.f32 %v2106, %v2336
  %v2339 = vsub.f32 0.0, %v2338
  %v2340 = vmul.f32 %v2339, 1.442695
  %v2341 = vpow.pop %v2340
  %v2342 = vadd.f32 %v2341, 1.0
  %v2343 = vrcp.pop %v2342
  %v2344 = vmul.f32 %v2342, %v2343
  %v2345 = vsub.f32 1.0, %v2344
  %v2346 = vmul.f32 %v2343, %v2345
  %v2347 = vadd.f32 %v2343, %v2346
  %vm2348 = vweird.f32 %v2342
  %vm2349 = vweird.f32 %v2343
  %vm2350 = vmor %vm2348, %vm2349
  %v2351 = vsel %vm2350, %v2343, %v2347
  %v2352 = vand.u32 2147483647, %v2342
  %vm2353 = vcmp.eq.f32.partialorder %v2352, 8.507059e+37
  %v2354 = vand.u32 %v2342, 2147483648
  %v2355 = vor.u32 1.1754944e-38, %v2354
  %v2356 = vsel %vm2353, %v2355, %v2351
  %v2357 = vmul.f32 1.0, %v2356
  %v2358 = vtanh.pop %v2338
  %v2360 = vrot.slane %v2302, 1
  %v2362 = vmul.f32 %v2357, %v2360
  %2364 = vrot.lane.b32.xlu0 %v2358, 96
  %v2365 = vpop.permute.xlu0 %2364
  %v2367 = vmul.f32 %v2357, %v2365
  %2369 = vrot.lane.b32.xlu0 %v2367, 16
  %v2370 = vpop.permute.xlu0 %2369
  %v2372 = vadd.f32 %v2362, %v2370
  %v2373 = vtanh.pop %v2372
  %2375 = vrot.lane.b32.xlu0 %v2373, 32
  %v2376 = vpop.permute.xlu0 %2375
  %v2378 = vmul.f32 %v2357, %v2376
  %v2380 = vrot.slane %v2378, 4
  %2381 = vrot.lane.b32.xlu0 %v2380, 80
  %v2382 = vpop.permute.xlu0 %2381
  %v2383 = vsel %vm352, %v2382, 0
  %2385 = vmatpush.msra.mxu0 0.0
  %2386 = vmatpush.msra.mxu0 0.0
  %2387 = vmatpush.msra.mxu0 0.0
  %2388 = vmatpush.msra.mxu0 0.0
  %2389 = vmatpush.msra.mxu0 0.0
  %2390 = vmatpush.msra.mxu0 0.0
  %2391 = vmatpush.msra.mxu0 0.0
  %2392 = vmatpush.msra.mxu0 0.0
  %2393 = vmatpush.msra.mxu0 0.0
  %2394 = vmatpush.msra.mxu0 0.0
  %2395 = vmatpush.msra.mxu0 0.0
  %2396 = vmatpush.msra.mxu0 0.0
  %2397 = vmatpush.msra.mxu0 0.0
  %2398 = vmatpush.msra.mxu0 0.0
  %2399 = vmatpush.msra.mxu0 %v209
  %2400 = vmatpush.msra.mxu0 %v208
  %2401 = vmatmul.f32.gmra.mxu0 %v2383
  %v2402 = vpop.f32.mrf.mxu0
  %v2403 = vadd.f32 0.0, %v2402
  %2404 = vdwg.mxu0
  %v2406 = vrot.slane %v2403, 5
  %v2408 = vadd.f32 %v2106, %v2406
  %v2409 = vsub.f32 0.0, %v2408
  %v2410 = vmul.f32 %v2409, 1.442695
  %v2411 = vpow.pop %v2410
  %v2412 = vadd.f32 %v2411, 1.0
  %v2413 = vrcp.pop %v2412
  %v2414 = vmul.f32 %v2412, %v2413
  %v2415 = vsub.f32 1.0, %v2414
  %v2416 = vmul.f32 %v2413, %v2415
  %v2417 = vadd.f32 %v2413, %v2416
  %vm2418 = vweird.f32 %v2412
  %vm2419 = vweird.f32 %v2413
  %vm2420 = vmor %vm2418, %vm2419
  %v2421 = vsel %vm2420, %v2413, %v2417
  %v2422 = vand.u32 2147483647, %v2412
  %vm2423 = vcmp.eq.f32.partialorder %v2422, 8.507059e+37
  %v2424 = vand.u32 %v2412, 2147483648
  %v2425 = vor.u32 1.1754944e-38, %v2424
  %v2426 = vsel %vm2423, %v2425, %v2421
  %v2427 = vmul.f32 1.0, %v2426
  %v2428 = vtanh.pop %v2408
  %v2430 = vrot.slane %v2372, 1
  %v2432 = vmul.f32 %v2427, %v2430
  %2434 = vrot.lane.b32.xlu0 %v2428, 96
  %v2435 = vpop.permute.xlu0 %2434
  %v2437 = vmul.f32 %v2427, %v2435
  %2439 = vrot.lane.b32.xlu0 %v2437, 16
  %v2440 = vpop.permute.xlu0 %2439
  %v2442 = vadd.f32 %v2432, %v2440
  %v2443 = vtanh.pop %v2442
  %2445 = vrot.lane.b32.xlu0 %v2443, 32
  %v2446 = vpop.permute.xlu0 %2445
  %v2448 = vmul.f32 %v2427, %v2446
  %v2450 = vrot.slane %v2448, 3
  %2451 = vrot.lane.b32.xlu0 %v2450, 80
  %v2452 = vpop.permute.xlu0 %2451
  %v2453 = vsel %vm352, %v2452, 0
  %2455 = vmatpush.msra.mxu0 0.0
  %2456 = vmatpush.msra.mxu0 0.0
  %2457 = vmatpush.msra.mxu0 0.0
  %2458 = vmatpush.msra.mxu0 0.0
  %2459 = vmatpush.msra.mxu0 0.0
  %2460 = vmatpush.msra.mxu0 0.0
  %2461 = vmatpush.msra.mxu0 0.0
  %2462 = vmatpush.msra.mxu0 0.0
  %2463 = vmatpush.msra.mxu0 0.0
  %2464 = vmatpush.msra.mxu0 0.0
  %2465 = vmatpush.msra.mxu0 0.0
  %2466 = vmatpush.msra.mxu0 0.0
  %2467 = vmatpush.msra.mxu0 0.0
  %2468 = vmatpush.msra.mxu0 0.0
  %2469 = vmatpush.msra.mxu0 %v209
  %2470 = vmatpush.msra.mxu0 %v208
  %2471 = vmatmul.f32.gmra.mxu0 %v2453
  %v2472 = vpop.f32.mrf.mxu0
  %v2473 = vadd.f32 0.0, %v2472
  %2474 = vdwg.mxu0
  %v2476 = vrot.slane %v2473, 6
  %v2478 = vadd.f32 %v2106, %v2476
  %v2479 = vsub.f32 0.0, %v2478
  %v2480 = vmul.f32 %v2479, 1.442695
  %v2481 = vpow.pop %v2480
  %v2482 = vadd.f32 %v2481, 1.0
  %v2483 = vrcp.pop %v2482
  %v2484 = vmul.f32 %v2482, %v2483
  %v2485 = vsub.f32 1.0, %v2484
  %v2486 = vmul.f32 %v2483, %v2485
  %v2487 = vadd.f32 %v2483, %v2486
  %vm2488 = vweird.f32 %v2482
  %vm2489 = vweird.f32 %v2483
  %vm2490 = vmor %vm2488, %vm2489
  %v2491 = vsel %vm2490, %v2483, %v2487
  %v2492 = vand.u32 2147483647, %v2482
  %vm2493 = vcmp.eq.f32.partialorder %v2492, 8.507059e+37
  %v2494 = vand.u32 %v2482, 2147483648
  %v2495 = vor.u32 1.1754944e-38, %v2494
  %v2496 = vsel %vm2493, %v2495, %v2491
  %v2497 = vmul.f32 1.0, %v2496
  %v2498 = vtanh.pop %v2478
  %v2500 = vrot.slane %v2442, 1
  %v2502 = vmul.f32 %v2497, %v2500
  %2504 = vrot.lane.b32.xlu0 %v2498, 96
  %v2505 = vpop.permute.xlu0 %2504
  %v2507 = vmul.f32 %v2497, %v2505
  %2509 = vrot.lane.b32.xlu0 %v2507, 16
  %v2510 = vpop.permute.xlu0 %2509
  %v2512 = vadd.f32 %v2502, %v2510
  %v2513 = vtanh.pop %v2512
  %2515 = vrot.lane.b32.xlu0 %v2513, 32
  %v2516 = vpop.permute.xlu0 %2515
  %v2518 = vmul.f32 %v2497, %v2516
  %v2520 = vrot.slane %v2518, 2
  %2521 = vrot.lane.b32.xlu0 %v2520, 80
  %v2522 = vpop.permute.xlu0 %2521
  %v2523 = vsel %vm352, %v2522, 0
  %2525 = vmatpush.msra.mxu0 0.0
  %2526 = vmatpush.msra.mxu0 0.0
  %2527 = vmatpush.msra.mxu0 0.0
  %2528 = vmatpush.msra.mxu0 0.0
  %2529 = vmatpush.msra.mxu0 0.0
  %2530 = vmatpush.msra.mxu0 0.0
  %2531 = vmatpush.msra.mxu0 0.0
  %2532 = vmatpush.msra.mxu0 0.0
  %2533 = vmatpush.msra.mxu0 0.0
  %2534 = vmatpush.msra.mxu0 0.0
  %2535 = vmatpush.msra.mxu0 0.0
  %2536 = vmatpush.msra.mxu0 0.0
  %2537 = vmatpush.msra.mxu0 0.0
  %2538 = vmatpush.msra.mxu0 0.0
  %2539 = vmatpush.msra.mxu0 %v209
  %2540 = vmatpush.msra.mxu0 %v208
  %2541 = vmatmul.f32.gmra.mxu0 %v2523
  %v2542 = vpop.f32.mrf.mxu0
  %v2543 = vadd.f32 0.0, %v2542
  %2544 = vdwg.mxu0
  %v2546 = vrot.slane %v2543, 7
  %v2548 = vadd.f32 %v2106, %v2546
  %v2549 = vsub.f32 0.0, %v2548
  %v2550 = vmul.f32 %v2549, 1.442695
  %v2551 = vpow.pop %v2550
  %v2552 = vadd.f32 %v2551, 1.0
  %v2553 = vrcp.pop %v2552
  %v2554 = vmul.f32 %v2552, %v2553
  %v2555 = vsub.f32 1.0, %v2554
  %v2556 = vmul.f32 %v2553, %v2555
  %v2557 = vadd.f32 %v2553, %v2556
  %vm2558 = vweird.f32 %v2552
  %vm2559 = vweird.f32 %v2553
  %vm2560 = vmor %vm2558, %vm2559
  %v2561 = vsel %vm2560, %v2553, %v2557
  %v2562 = vand.u32 2147483647, %v2552
  %vm2563 = vcmp.eq.f32.partialorder %v2562, 8.507059e+37
  %v2564 = vand.u32 %v2552, 2147483648
  %v2565 = vor.u32 1.1754944e-38, %v2564
  %v2566 = vsel %vm2563, %v2565, %v2561
  %v2567 = vmul.f32 1.0, %v2566
  %v2568 = vtanh.pop %v2548
  %v2570 = vrot.slane %v2512, 1
  %v2572 = vmul.f32 %v2567, %v2570
  %2574 = vrot.lane.b32.xlu0 %v2568, 96
  %v2575 = vpop.permute.xlu0 %2574
  %v2577 = vmul.f32 %v2567, %v2575
  %2579 = vrot.lane.b32.xlu0 %v2577, 16
  %v2580 = vpop.permute.xlu0 %2579
  %v2582 = vadd.f32 %v2572, %v2580
  %v2583 = vtanh.pop %v2582
  %2585 = vrot.lane.b32.xlu0 %v2583, 32
  %v2586 = vpop.permute.xlu0 %2585
  %v2588 = vmul.f32 %v2567, %v2586
  %v2590 = vrot.slane %v2588, 1
  %2591 = vrot.lane.b32.xlu0 %v2590, 80
  %v2592 = vpop.permute.xlu0 %2591
  %v2593 = vsel %vm352, %v2592, 0
  %2595 = vmatpush.msra.mxu0 0.0
  %2596 = vmatpush.msra.mxu0 0.0
  %2597 = vmatpush.msra.mxu0 0.0
  %2598 = vmatpush.msra.mxu0 0.0
  %2599 = vmatpush.msra.mxu0 0.0
  %2600 = vmatpush.msra.mxu0 0.0
  %2601 = vmatpush.msra.mxu0 0.0
  %2602 = vmatpush.msra.mxu0 0.0
  %2603 = vmatpush.msra.mxu0 0.0
  %2604 = vmatpush.msra.mxu0 0.0
  %2605 = vmatpush.msra.mxu0 0.0
  %2606 = vmatpush.msra.mxu0 0.0
  %2607 = vmatpush.msra.mxu0 0.0
  %2608 = vmatpush.msra.mxu0 0.0
  %2609 = vmatpush.msra.mxu0 %v209
  %2610 = vmatpush.msra.mxu0 %v208
  %2611 = vmatmul.f32.gmra.mxu0 %v2593
  %v2612 = vpop.f32.mrf.mxu0
  %v2613 = vadd.f32 0.0, %v2612
  %2614 = vdwg.mxu0
  %v2615 = vadd.f32 %v2106, %v2613
  %v2616 = vsub.f32 0.0, %v2615
  %v2617 = vmul.f32 %v2616, 1.442695
  %v2618 = vpow.pop %v2617
  %v2619 = vadd.f32 %v2618, 1.0
  %v2620 = vrcp.pop %v2619
  %v2621 = vmul.f32 %v2619, %v2620
  %v2622 = vsub.f32 1.0, %v2621
  %v2623 = vmul.f32 %v2620, %v2622
  %v2624 = vadd.f32 %v2620, %v2623
  %vm2625 = vweird.f32 %v2619
  %vm2626 = vweird.f32 %v2620
  %vm2627 = vmor %vm2625, %vm2626
  %v2628 = vsel %vm2627, %v2620, %v2624
  %v2629 = vand.u32 2147483647, %v2619
  %vm2630 = vcmp.eq.f32.partialorder %v2629, 8.507059e+37
  %v2631 = vand.u32 %v2619, 2147483648
  %v2632 = vor.u32 1.1754944e-38, %v2631
  %v2633 = vsel %vm2630, %v2632, %v2628
  %v2634 = vmul.f32 1.0, %v2633
  %v2635 = vtanh.pop %v2615
  %v2637 = vrot.slane %v2582, 1
  %v2639 = vmul.f32 %v2634, %v2637
  %2641 = vrot.lane.b32.xlu0 %v2635, 96
  %v2642 = vpop.permute.xlu0 %2641
  %v2644 = vmul.f32 %v2634, %v2642
  %2646 = vrot.lane.b32.xlu0 %v2644, 16
  %v2647 = vpop.permute.xlu0 %2646
  %v2649 = vadd.f32 %v2639, %v2647
  %v2650 = vtanh.pop %v2649
  %2652 = vrot.lane.b32.xlu0 %v2650, 32
  %v2653 = vpop.permute.xlu0 %2652
  %v2655 = vmul.f32 %v2634, %v2653
  %v2656 = vsel %vm903, %v2655, %v2588
  %v2657 = vsel %vm905, %v2656, %v2518
  %v2658 = vsel %vm907, %v2657, %v2448
  %v2659 = vsel %vm909, %v2658, %v2378
  %v2660 = vsel %vm911, %v2659, %v2308
  %v2661 = vsel %vm913, %v2660, %v2238
  %v2662 = vsel %vm915, %v2661, %v2168
  %2664 = vrot.lane.b32.xlu0 %v2084, 80
  %v2665 = vpop.permute.xlu0 %2664
  %2668 = vrot.lane.b32.xlu0 %v2662, 96
  %v2669 = vpop.permute.xlu0 %2668
  %v2671 = vsel %vm352, %v2665, %v2669
  %v2673 = vsel %vm1507, %v2671, 0
  %2675 = vmatpush.msra.mxu0 0.0
  %2676 = vmatpush.msra.mxu0 0.0
  %2677 = vmatpush.msra.mxu0 0.0
  %2678 = vmatpush.msra.mxu0 0.0
  %2679 = vmatpush.msra.mxu0 0.0
  %2680 = vmatpush.msra.mxu0 0.0
  %2681 = vmatpush.msra.mxu0 0.0
  %2682 = vmatpush.msra.mxu0 0.0
  %2683 = vmatpush.msra.mxu0 0.0
  %2684 = vmatpush.msra.mxu0 0.0
  %2685 = vmatpush.msra.mxu0 0.0
  %2686 = vmatpush.msra.mxu0 0.0
  %2687 = vmatpush.msra.mxu0 %v220
  %2688 = vmatpush.msra.mxu0 %v219
  %2689 = vmatpush.msra.mxu0 %v218
  %2690 = vmatpush.msra.mxu0 %v217
  %2691 = vmatmul.f32.gmra.mxu0 %v2673
  %v2692 = vpop.f32.mrf.mxu0
  %v2693 = vadd.f32 0.0, %v2692
  %2694 = vdwg.mxu0
  %v2696 = vsel %vm328, %v177, 0
  %2698 = vmatpush.msra.mxu0 0.0
  %2699 = vmatpush.msra.mxu0 0.0
  %2700 = vmatpush.msra.mxu0 0.0
  %2701 = vmatpush.msra.mxu0 0.0
  %2702 = vmatpush.msra.mxu0 0.0
  %2703 = vmatpush.msra.mxu0 0.0
  %2704 = vmatpush.msra.mxu0 0.0
  %2705 = vmatpush.msra.mxu0 0.0
  %2706 = vmatpush.msra.mxu0 0.0
  %2707 = vmatpush.msra.mxu0 0.0
  %2708 = vmatpush.msra.mxu0 %v216
  %2709 = vmatpush.msra.mxu0 %v215
  %2710 = vmatpush.msra.mxu0 %v214
  %2711 = vmatpush.msra.mxu0 %v213
  %2712 = vmatpush.msra.mxu0 %v212
  %2713 = vmatpush.msra.mxu0 %v211
  %2714 = vmatmul.f32.gmra.mxu0 %v2696
  %v2715 = vpop.f32.mrf.mxu0
  %v2716 = vadd.f32 %v2693, %v2715
  %2717 = vdwg.mxu0
  %v2719 = vperm.slane %v221, 0
  %v2721 = vadd.f32 %v2716, %v2719
  %v2723 = vsel %vm328, %v174, 0
  %v2726 = vsel %vm328, %v175, 0
  %v2729 = vsel %vm328, %v176, 0
  %2731 = vmatpush.msra.mxu0 0.0
  %2732 = vmatpush.msra.mxu0 0.0
  %2733 = vmatpush.msra.mxu0 0.0
  %2734 = vmatpush.msra.mxu0 0.0
  %2735 = vmatpush.msra.mxu0 0.0
  %2736 = vmatpush.msra.mxu0 0.0
  %2737 = vmatpush.msra.mxu0 0.0
  %2738 = vmatpush.msra.mxu0 0.0
  %2739 = vmatpush.msra.mxu0 0.0
  %2740 = vmatpush.msra.mxu0 0.0
  %2741 = vmatpush.msra.mxu0 %v227
  %2742 = vmatpush.msra.mxu0 %v226
  %2743 = vmatpush.msra.mxu0 %v225
  %2744 = vmatpush.msra.mxu0 %v224
  %2745 = vmatpush.msra.mxu0 %v223
  %2746 = vmatpush.msra.mxu0 %v222
  %2747 = vmatmul.f32.gmra.mxu0 %v2723
  %v2748 = vpop.f32.mrf.mxu0
  %v2749 = vadd.f32 0.0, %v2748
  %2750 = vmatmul.f32.gmra.mxu0 %v2726
  %v2751 = vpop.f32.mrf.mxu0
  %v2752 = vadd.f32 0.0, %v2751
  %2753 = vmatmul.f32.gmra.mxu0 %v2729
  %v2754 = vpop.f32.mrf.mxu0
  %v2755 = vadd.f32 0.0, %v2754
  %2756 = vdwg.mxu0
  %v2758 = vsel %vm1507, %v2749, 0
  %v2761 = vsel %vm1507, %v2752, 0
  %v2764 = vsel %vm1507, %v2755, 0
  %2766 = vmatpush.msra.mxu0 0.0
  %2767 = vmatpush.msra.mxu0 0.0
  %2768 = vmatpush.msra.mxu0 0.0
  %2769 = vmatpush.msra.mxu0 0.0
  %2770 = vmatpush.msra.mxu0 0.0
  %2771 = vmatpush.msra.mxu0 0.0
  %2772 = vmatpush.msra.mxu0 0.0
  %2773 = vmatpush.msra.mxu0 0.0
  %2774 = vmatpush.msra.mxu0 0.0
  %2775 = vmatpush.msra.mxu0 0.0
  %2776 = vmatpush.msra.mxu0 0.0
  %2777 = vmatpush.msra.mxu0 0.0
  %2778 = vmatpush.msra.mxu0 %v231
  %2779 = vmatpush.msra.mxu0 %v230
  %2780 = vmatpush.msra.mxu0 %v229
  %2781 = vmatpush.msra.mxu0 %v228
  %2782 = vmatmul.f32.gmra.mxu0 %v2758
  %v2783 = vpop.f32.mrf.mxu0
  %v2784 = vadd.f32 0.0, %v2783
  %2785 = vmatmul.f32.gmra.mxu0 %v2761
  %v2786 = vpop.f32.mrf.mxu0
  %v2787 = vadd.f32 0.0, %v2786
  %2788 = vmatmul.f32.gmra.mxu0 %v2764
  %v2789 = vpop.f32.mrf.mxu0
  %v2790 = vadd.f32 0.0, %v2789
  %2791 = vdwg.mxu0
  %2792 = vxpose.xlu0.b32.start [1/16] %v2784, 128
  %2793 = vxpose.xlu0.b32.cont [2/16] %v2787, 128
  %2794 = vxpose.xlu0.b32.cont [3/16] %v2790, 128
  %2795 = vxpose.xlu0.b32.cont [4/16] 0.0, 128
  %2796 = vxpose.xlu0.b32.cont [5/16] 0.0, 128
  %2797 = vxpose.xlu0.b32.cont [6/16] 0.0, 128
  %2798 = vxpose.xlu0.b32.cont [7/16] 0.0, 128
  %2799 = vxpose.xlu0.b32.cont [8/16] 0.0, 128
  %2800 = vxpose.xlu0.b32.cont [9/16] 0.0, 128
  %2801 = vxpose.xlu0.b32.cont [10/16] 0.0, 128
  %2802 = vxpose.xlu0.b32.cont [11/16] 0.0, 128
  %2803 = vxpose.xlu0.b32.cont [12/16] 0.0, 128
  %2804 = vxpose.xlu0.b32.cont [13/16] 0.0, 128
  %2805 = vxpose.xlu0.b32.cont [14/16] 0.0, 128
  %2806 = vxpose.xlu0.b32.cont [15/16] 0.0, 128
  %2807 = vxpose.xlu0.b32.end [16/16] 0.0, 128
  %v2808 = vpop.trf.xlu0
  %v2809 = vpop.trf.xlu0
  %v2810 = vpop.trf.xlu0
  %v2811 = vpop.trf.xlu0
  %v2812 = vpop.trf.xlu0
  %v2813 = vpop.trf.xlu0
  %v2814 = vpop.trf.xlu0
  %v2815 = vpop.trf.xlu0
  %v2816 = vpop.trf.xlu0
  %v2817 = vpop.trf.xlu0
  %v2818 = vpop.trf.xlu0
  %v2819 = vpop.trf.xlu0
  %v2820 = vpop.trf.xlu0
  %v2821 = vpop.trf.xlu0
  %v2822 = vpop.trf.xlu0
  %v2823 = vpop.trf.xlu0
  %v2825 = vrot.slane %v2808, 1
  %v2826 = vrot.slane %v2808, 2
  %v2827 = vrot.slane %v2808, 3
  %v2828 = vperm.slane %v2808, 0
  %v2829 = vperm.slane %v2825, 0
  %v2830 = vperm.slane %v2826, 0
  %v2831 = vperm.slane %v2827, 0
  %v2836 = vadd.f32 %v2828, %v232
  %v2837 = vadd.f32 %v2829, %v233
  %v2838 = vadd.f32 %v2830, %v234
  %v2839 = vadd.f32 %v2831, %v235
  %vm2840 = vcmp.ge.f32.partialorder %v2836, 0.0
  %vm2841 = vcmp.ge.f32.partialorder %v2837, 0.0
  %vm2842 = vcmp.ge.f32.partialorder %v2838, 0.0
  %vm2843 = vcmp.ge.f32.partialorder %v2839, 0.0
  %v2844 = vmul.f32 %v2836, 0.01
  %v2845 = vmul.f32 %v2837, 0.01
  %v2846 = vmul.f32 %v2838, 0.01
  %v2847 = vmul.f32 %v2839, 0.01
  %v2848 = vsel %vm2840, %v2836, %v2844
  %v2849 = vsel %vm2841, %v2837, %v2845
  %v2850 = vsel %vm2842, %v2838, %v2846
  %v2851 = vsel %vm2843, %v2839, %v2847
  %vm2852 = vcmp.gt.f32.partialorder %v236, 0.0
  %v2853 = vsel %vm2852, 1, 0
  %vm2854 = vcmp.eq.s32.totalorder %v2853, 1
  %v2855 = vsel %vm2854, %v2848, -1e+30
  %v2856 = vsel %vm2854, %v2849, -1e+30
  %v2857 = vsel %vm2854, %v2850, -1e+30
  %v2858 = vsel %vm2854, %v2851, -1e+30
  %vm2859 = vcmask 195584
  %v2860 = vsel %vm2859, %v2855, -inf
  %2861 = vmax.xlane.f32.xlu0 %v2860
  %v2862 = vpop.xlane.xlu0 %2861
  %v2863 = vsel %vm2859, %v2856, -inf
  %2864 = vmax.xlane.f32.xlu0 %v2863
  %v2865 = vpop.xlane.xlu0 %2864
  %v2866 = vsel %vm2859, %v2857, -inf
  %2867 = vmax.xlane.f32.xlu0 %v2866
  %v2868 = vpop.xlane.xlu0 %2867
  %v2869 = vsel %vm2859, %v2858, -inf
  %2870 = vmax.xlane.f32.xlu0 %v2869
  %v2871 = vpop.xlane.xlu0 %2870
  %v2872 = vsub.f32 %v2855, %v2862
  %v2873 = vsub.f32 %v2856, %v2865
  %v2874 = vsub.f32 %v2857, %v2868
  %v2875 = vsub.f32 %v2858, %v2871
  %v2876 = vmul.f32 %v2872, 1.442695
  %v2877 = vpow.pop %v2876
  %v2878 = vmul.f32 %v2873, 1.442695
  %v2879 = vpow.pop %v2878
  %v2880 = vmul.f32 %v2874, 1.442695
  %v2881 = vpow.pop %v2880
  %v2882 = vmul.f32 %v2875, 1.442695
  %v2883 = vpow.pop %v2882
  %v2884 = vmul.f32 %v2877, %v236
  %v2885 = vmul.f32 %v2879, %v236
  %v2886 = vmul.f32 %v2881, %v236
  %v2887 = vmul.f32 %v2883, %v236
  %v2888 = vsel %vm2859, %v2884, 0.0
  %2889 = vadd.xlane.f32.xlu0 %v2888
  %v2890 = vpop.xlane.xlu0 %2889
  %v2891 = vsel %vm2859, %v2885, 0.0
  %2892 = vadd.xlane.f32.xlu0 %v2891
  %v2893 = vpop.xlane.xlu0 %2892
  %v2894 = vsel %vm2859, %v2886, 0.0
  %2895 = vadd.xlane.f32.xlu0 %v2894
  %v2896 = vpop.xlane.xlu0 %2895
  %v2897 = vsel %vm2859, %v2887, 0.0
  %2898 = vadd.xlane.f32.xlu0 %v2897
  %v2899 = vpop.xlane.xlu0 %2898
  %v2900 = vmax.f32 %v2890, 1e-09
  %v2901 = vmax.f32 %v2893, 1e-09
  %v2902 = vmax.f32 %v2896, 1e-09
  %v2903 = vmax.f32 %v2899, 1e-09
  %v2904 = vrcp.pop %v2900
  %v2905 = vmul.f32 %v2900, %v2904
  %v2906 = vsub.f32 1.0, %v2905
  %v2907 = vmul.f32 %v2904, %v2906
  %v2908 = vadd.f32 %v2904, %v2907
  %vm2909 = vweird.f32 %v2900
  %vm2910 = vweird.f32 %v2904
  %vm2911 = vmor %vm2909, %vm2910
  %v2912 = vsel %vm2911, %v2904, %v2908
  %v2913 = vand.u32 2147483647, %v2900
  %vm2914 = vcmp.eq.f32.partialorder %v2913, 8.507059e+37
  %v2915 = vand.u32 %v2900, 2147483648
  %v2916 = vor.u32 1.1754944e-38, %v2915
  %v2917 = vsel %vm2914, %v2916, %v2912
  %v2918 = vmul.f32 %v2884, %v2917
  %v2919 = vrcp.pop %v2901
  %v2920 = vmul.f32 %v2901, %v2919
  %v2921 = vsub.f32 1.0, %v2920
  %v2922 = vmul.f32 %v2919, %v2921
  %v2923 = vadd.f32 %v2919, %v2922
  %vm2924 = vweird.f32 %v2901
  %vm2925 = vweird.f32 %v2919
  %vm2926 = vmor %vm2924, %vm2925
  %v2927 = vsel %vm2926, %v2919, %v2923
  %v2928 = vand.u32 2147483647, %v2901
  %vm2929 = vcmp.eq.f32.partialorder %v2928, 8.507059e+37
  %v2930 = vand.u32 %v2901, 2147483648
  %v2931 = vor.u32 1.1754944e-38, %v2930
  %v2932 = vsel %vm2929, %v2931, %v2927
  %v2933 = vmul.f32 %v2885, %v2932
  %v2934 = vrcp.pop %v2902
  %v2935 = vmul.f32 %v2902, %v2934
  %v2936 = vsub.f32 1.0, %v2935
  %v2937 = vmul.f32 %v2934, %v2936
  %v2938 = vadd.f32 %v2934, %v2937
  %vm2939 = vweird.f32 %v2902
  %vm2940 = vweird.f32 %v2934
  %vm2941 = vmor %vm2939, %vm2940
  %v2942 = vsel %vm2941, %v2934, %v2938
  %v2943 = vand.u32 2147483647, %v2902
  %vm2944 = vcmp.eq.f32.partialorder %v2943, 8.507059e+37
  %v2945 = vand.u32 %v2902, 2147483648
  %v2946 = vor.u32 1.1754944e-38, %v2945
  %v2947 = vsel %vm2944, %v2946, %v2942
  %v2948 = vmul.f32 %v2886, %v2947
  %v2949 = vrcp.pop %v2903
  %v2950 = vmul.f32 %v2903, %v2949
  %v2951 = vsub.f32 1.0, %v2950
  %v2952 = vmul.f32 %v2949, %v2951
  %v2953 = vadd.f32 %v2949, %v2952
  %vm2954 = vweird.f32 %v2903
  %vm2955 = vweird.f32 %v2949
  %vm2956 = vmor %vm2954, %vm2955
  %v2957 = vsel %vm2956, %v2949, %v2953
  %v2958 = vand.u32 2147483647, %v2903
  %vm2959 = vcmp.eq.f32.partialorder %v2958, 8.507059e+37
  %v2960 = vand.u32 %v2903, 2147483648
  %v2961 = vor.u32 1.1754944e-38, %v2960
  %v2962 = vsel %vm2959, %v2961, %v2957
  %v2963 = vmul.f32 %v2887, %v2962
  %2965 = vrot.lane.b32.xlu0 %v2933, 24
  %v2966 = vpop.permute.xlu0 %2965
  %2969 = vrot.lane.b32.xlu0 %v2948, 48
  %v2970 = vpop.permute.xlu0 %2969
  %2973 = vrot.lane.b32.xlu0 %v2963, 72
  %v2974 = vpop.permute.xlu0 %2973
  %v2976 = vsel %vm2859, %v2918, %v2966
  %v2977 = vsel %vm328, %v2976, %v2970
  %vm2978 = vcmask 588800
  %v2979 = vsel %vm2978, %v2977, %v2974
  %v2980 = vmul.f32 %v2749, %v237
  %v2981 = vmul.f32 %v2752, %v238
  %v2982 = vmul.f32 %v2755, %v239
  %v2983 = vmul.f32 %v2749, %v240
  %v2984 = vmul.f32 %v2752, %v241
  %v2985 = vmul.f32 %v2755, %v242
  %v2986 = vmul.f32 %v2749, %v243
  %v2987 = vmul.f32 %v2752, %v244
  %v2988 = vmul.f32 %v2755, %v245
  %v2989 = vmul.f32 %v2749, %v246
  %v2990 = vmul.f32 %v2752, %v247
  %v2991 = vmul.f32 %v2755, %v248
  %vm2992 = vcmask 785408
  %v2994 = vsel %vm2992, %v2979, 0
  %2996 = vmatpush.msra.mxu0 0.0
  %2997 = vmatpush.msra.mxu0 0.0
  %2998 = vmatpush.msra.mxu0 0.0
  %2999 = vmatpush.msra.mxu0 0.0
  %3000 = vmatpush.msra.mxu0 %v2991
  %3001 = vmatpush.msra.mxu0 %v2990
  %3002 = vmatpush.msra.mxu0 %v2989
  %3003 = vmatpush.msra.mxu0 %v2988
  %3004 = vmatpush.msra.mxu0 %v2987
  %3005 = vmatpush.msra.mxu0 %v2986
  %3006 = vmatpush.msra.mxu0 %v2985
  %3007 = vmatpush.msra.mxu0 %v2984
  %3008 = vmatpush.msra.mxu0 %v2983
  %3009 = vmatpush.msra.mxu0 %v2982
  %3010 = vmatpush.msra.mxu0 %v2981
  %3011 = vmatpush.msra.mxu0 %v2980
  %3012 = vmatmul.f32.gmra.mxu0 %v2994
  %v3013 = vpop.f32.mrf.mxu0
  %v3014 = vadd.f32 0.0, %v3013
  %3015 = vdwg.mxu0
  %vm3016 = vcmp.gt.f32.partialorder %v3014, 0.0
  %v3017 = vmin.f32 %v3014, 0.0
  %v3018 = vmul.f32 %v3017, 1.442695
  %v3019 = vpow.pop %v3018
  %v3020 = vsub.f32 %v3019, 1.0
  %v3021 = vsel %vm3016, %v3014, %v3020
  %v3022 = vadd.f32 %v3021, %v2721
  %v3024 = vperm.slane %v253, 0
  %v3027 = vsel %vm1507, %v3022, 0
  %3029 = vmatpush.msra.mxu0 0.0
  %3030 = vmatpush.msra.mxu0 0.0
  %3031 = vmatpush.msra.mxu0 0.0
  %3032 = vmatpush.msra.mxu0 0.0
  %3033 = vmatpush.msra.mxu0 0.0
  %3034 = vmatpush.msra.mxu0 0.0
  %3035 = vmatpush.msra.mxu0 0.0
  %3036 = vmatpush.msra.mxu0 0.0
  %3037 = vmatpush.msra.mxu0 0.0
  %3038 = vmatpush.msra.mxu0 0.0
  %3039 = vmatpush.msra.mxu0 0.0
  %3040 = vmatpush.msra.mxu0 0.0
  %3041 = vmatpush.msra.mxu0 %v252
  %3042 = vmatpush.msra.mxu0 %v251
  %3043 = vmatpush.msra.mxu0 %v250
  %3044 = vmatpush.msra.mxu0 %v249
  %3045 = vmatmul.f32.gmra.mxu0 %v3027
  %v3046 = vpop.f32.mrf.mxu0
  %v3047 = vadd.f32 %v3024, %v3046
  %3048 = vdwg.mxu0
  %v3049 = vmax.f32 %v3047, 0.0
  %v3051 = vperm.slane %v262, 0
  %vm3053 = vcmask 523264
  %v3055 = vsel %vm3053, %v3049, 0
  %3057 = vmatpush.msra.mxu0 0.0
  %3058 = vmatpush.msra.mxu0 0.0
  %3059 = vmatpush.msra.mxu0 0.0
  %3060 = vmatpush.msra.mxu0 0.0
  %3061 = vmatpush.msra.mxu0 0.0
  %3062 = vmatpush.msra.mxu0 0.0
  %3063 = vmatpush.msra.mxu0 0.0
  %3064 = vmatpush.msra.mxu0 0.0
  %3065 = vmatpush.msra.mxu0 %v261
  %3066 = vmatpush.msra.mxu0 %v260
  %3067 = vmatpush.msra.mxu0 %v259
  %3068 = vmatpush.msra.mxu0 %v258
  %3069 = vmatpush.msra.mxu0 %v257
  %3070 = vmatpush.msra.mxu0 %v256
  %3071 = vmatpush.msra.mxu0 %v255
  %3072 = vmatpush.msra.mxu0 %v254
  %3073 = vmatmul.f32.gmra.mxu0 %v3055
  %v3074 = vpop.f32.mrf.mxu0
  %v3075 = vadd.f32 %v3051, %v3074
  %3076 = vdwg.mxu0
  %v3077 = vadd.f32 %v3075, %v3022
  %v3078 = vsel %vm1507, %v3077, 0.0
  %3079 = vadd.xlane.f32.xlu0 %v3078
  %v3080 = vpop.xlane.xlu0 %3079
  %v3081 = vrcp.pop 32.0
  %v3082 = vmul.f32 32.0, %v3081
  %v3083 = vsub.f32 1.0, %v3082
  %v3084 = vmul.f32 %v3081, %v3083
  %v3085 = vadd.f32 %v3081, %v3084
  %vm3086 = vweird.f32 %v3081
  %v3087 = vsel %vm3086, %v3081, %v3085
  %v3088 = vmul.f32 %v3080, %v3087
  %v3089 = vsub.f32 %v3077, %v3088
  %v3090 = vmul.f32 %v3089, %v3089
  %v3091 = vsel %vm1507, %v3090, 0.0
  %3092 = vadd.xlane.f32.xlu0 %v3091
  %v3093 = vpop.xlane.xlu0 %3092
  %v3094 = vmul.f32 %v3093, %v3087
  %v3095 = vadd.f32 %v3094, 1e-05
  %v3096 = vrsqrt.pop %v3095
  %v3097 = vmul.f32 %v3096, %v3095
  %v3098 = vmul.f32 %v3097, %v3096
  %v3099 = vmul.f32 0.5, %v3098
  %v3100 = vsub.f32 1.5, %v3099
  %v3101 = vmul.f32 %v3096, %v3100
  %vm3102 = vweird.f32 %v3095
  %vm3103 = vweird.f32 %v3096
  %vm3104 = vmor %vm3102, %vm3103
  %v3105 = vsel %vm3104, %v3096, %v3101
  %v3106 = vmul.f32 %v3089, %v3105
  %v3108 = vperm.slane %v263, 0
  %v3110 = vmul.f32 %v3106, %v3108
  %v3112 = vperm.slane %v264, 0
  %v3114 = vadd.f32 %v3110, %v3112
  %v3116 = vsel %vm1507, %v3114, 0
  %3118 = vmatpush.msra.mxu0 0.0
  %3119 = vmatpush.msra.mxu0 0.0
  %3120 = vmatpush.msra.mxu0 0.0
  %3121 = vmatpush.msra.mxu0 0.0
  %3122 = vmatpush.msra.mxu0 0.0
  %3123 = vmatpush.msra.mxu0 0.0
  %3124 = vmatpush.msra.mxu0 0.0
  %3125 = vmatpush.msra.mxu0 0.0
  %3126 = vmatpush.msra.mxu0 0.0
  %3127 = vmatpush.msra.mxu0 0.0
  %3128 = vmatpush.msra.mxu0 0.0
  %3129 = vmatpush.msra.mxu0 0.0
  %3130 = vmatpush.msra.mxu0 %v268
  %3131 = vmatpush.msra.mxu0 %v267
  %3132 = vmatpush.msra.mxu0 %v266
  %3133 = vmatpush.msra.mxu0 %v265
  %3134 = vmatmul.f32.gmra.mxu0 %v3116
  %v3135 = vpop.f32.mrf.mxu0
  %v3136 = vadd.f32 0.0, %v3135
  %3137 = vdwg.mxu0
  %v3139 = vsel %vm328, %v3136, 0
  %3141 = vmatpush.msra.mxu0 0.0
  %3142 = vmatpush.msra.mxu0 0.0
  %3143 = vmatpush.msra.mxu0 0.0
  %3144 = vmatpush.msra.mxu0 0.0
  %3145 = vmatpush.msra.mxu0 0.0
  %3146 = vmatpush.msra.mxu0 0.0
  %3147 = vmatpush.msra.mxu0 0.0
  %3148 = vmatpush.msra.mxu0 0.0
  %3149 = vmatpush.msra.mxu0 0.0
  %3150 = vmatpush.msra.mxu0 0.0
  %3151 = vmatpush.msra.mxu0 %v274
  %3152 = vmatpush.msra.mxu0 %v273
  %3153 = vmatpush.msra.mxu0 %v272
  %3154 = vmatpush.msra.mxu0 %v271
  %3155 = vmatpush.msra.mxu0 %v270
  %3156 = vmatpush.msra.mxu0 %v269
  %3157 = vmatmul.f32.gmra.mxu0 %v3139
  %v3158 = vpop.f32.mrf.mxu0
  %v3159 = vadd.f32 0.0, %v3158
  %3160 = vdwg.mxu0
  %3161 = vxpose.xlu0.b32.start [1/16] %v3159, 128
  %3162 = vxpose.xlu0.b32.cont [2/16] 0.0, 128
  %3163 = vxpose.xlu0.b32.cont [3/16] 0.0, 128
  %3164 = vxpose.xlu0.b32.cont [4/16] 0.0, 128
  %3165 = vxpose.xlu0.b32.cont [5/16] 0.0, 128
  %3166 = vxpose.xlu0.b32.cont [6/16] 0.0, 128
  %3167 = vxpose.xlu0.b32.cont [7/16] 0.0, 128
  %3168 = vxpose.xlu0.b32.cont [8/16] 0.0, 128
  %3169 = vxpose.xlu0.b32.cont [9/16] 0.0, 128
  %3170 = vxpose.xlu0.b32.cont [10/16] 0.0, 128
  %3171 = vxpose.xlu0.b32.cont [11/16] 0.0, 128
  %3172 = vxpose.xlu0.b32.cont [12/16] 0.0, 128
  %3173 = vxpose.xlu0.b32.cont [13/16] 0.0, 128
  %3174 = vxpose.xlu0.b32.cont [14/16] 0.0, 128
  %3175 = vxpose.xlu0.b32.cont [15/16] 0.0, 128
  %3176 = vxpose.xlu0.b32.end [16/16] 0.0, 128
  %v3177 = vpop.trf.xlu0
  %v3178 = vpop.trf.xlu0
  %v3179 = vpop.trf.xlu0
  %v3180 = vpop.trf.xlu0
  %v3181 = vpop.trf.xlu0
  %v3182 = vpop.trf.xlu0
  %v3183 = vpop.trf.xlu0
  %v3184 = vpop.trf.xlu0
  %v3185 = vpop.trf.xlu0
  %v3186 = vpop.trf.xlu0
  %v3187 = vpop.trf.xlu0
  %v3188 = vpop.trf.xlu0
  %v3189 = vpop.trf.xlu0
  %v3190 = vpop.trf.xlu0
  %v3191 = vpop.trf.xlu0
  %v3192 = vpop.trf.xlu0
  %v3194 = vrot.slane %v3177, 1
  %v3195 = vrot.slane %v3177, 2
  %v3196 = vrot.slane %v3177, 3
  %v3197 = vrot.slane %v3177, 4
  %v3198 = vrot.slane %v3177, 5
  %v3199 = vperm.slane %v3177, 0
  %v3200 = vperm.slane %v3194, 0
  %v3201 = vperm.slane %v3195, 0
  %v3202 = vperm.slane %v3196, 0
  %v3203 = vperm.slane %v3197, 0
  %v3204 = vperm.slane %v3198, 0
  %v3211 = vadd.f32 %v3199, %v275
  %v3212 = vadd.f32 %v3199, %v276
  %v3213 = vadd.f32 %v3199, %v277
  %v3214 = vadd.f32 %v3200, %v278
  %v3215 = vadd.f32 %v3200, %v279
  %v3216 = vadd.f32 %v3200, %v280
  %v3217 = vadd.f32 %v3201, %v281
  %v3218 = vadd.f32 %v3201, %v282
  %v3219 = vadd.f32 %v3201, %v283
  %v3220 = vadd.f32 %v3202, %v284
  %v3221 = vadd.f32 %v3202, %v285
  %v3222 = vadd.f32 %v3202, %v286
  %v3223 = vadd.f32 %v3203, %v287
  %v3224 = vadd.f32 %v3203, %v288
  %v3225 = vadd.f32 %v3203, %v289
  %v3226 = vadd.f32 %v3204, %v290
  %v3227 = vadd.f32 %v3204, %v291
  %v3228 = vadd.f32 %v3204, %v292
  %vm3229 = vcmp.ge.f32.partialorder %v3211, 0.0
  %vm3230 = vcmp.ge.f32.partialorder %v3212, 0.0
  %vm3231 = vcmp.ge.f32.partialorder %v3213, 0.0
  %vm3232 = vcmp.ge.f32.partialorder %v3214, 0.0
  %vm3233 = vcmp.ge.f32.partialorder %v3215, 0.0
  %vm3234 = vcmp.ge.f32.partialorder %v3216, 0.0
  %vm3235 = vcmp.ge.f32.partialorder %v3217, 0.0
  %vm3236 = vcmp.ge.f32.partialorder %v3218, 0.0
  %vm3237 = vcmp.ge.f32.partialorder %v3219, 0.0
  %vm3238 = vcmp.ge.f32.partialorder %v3220, 0.0
  %vm3239 = vcmp.ge.f32.partialorder %v3221, 0.0
  %vm3240 = vcmp.ge.f32.partialorder %v3222, 0.0
  %vm3241 = vcmp.ge.f32.partialorder %v3223, 0.0
  %vm3242 = vcmp.ge.f32.partialorder %v3224, 0.0
  %vm3243 = vcmp.ge.f32.partialorder %v3225, 0.0
  %vm3244 = vcmp.ge.f32.partialorder %v3226, 0.0
  %vm3245 = vcmp.ge.f32.partialorder %v3227, 0.0
  %vm3246 = vcmp.ge.f32.partialorder %v3228, 0.0
  %v3247 = vmul.f32 %v3211, 0.01
  %v3248 = vmul.f32 %v3212, 0.01
  %v3249 = vmul.f32 %v3213, 0.01
  %v3250 = vmul.f32 %v3214, 0.01
  %v3251 = vmul.f32 %v3215, 0.01
  %v3252 = vmul.f32 %v3216, 0.01
  %v3253 = vmul.f32 %v3217, 0.01
  %v3254 = vmul.f32 %v3218, 0.01
  %v3255 = vmul.f32 %v3219, 0.01
  %v3256 = vmul.f32 %v3220, 0.01
  %v3257 = vmul.f32 %v3221, 0.01
  %v3258 = vmul.f32 %v3222, 0.01
  %v3259 = vmul.f32 %v3223, 0.01
  %v3260 = vmul.f32 %v3224, 0.01
  %v3261 = vmul.f32 %v3225, 0.01
  %v3262 = vmul.f32 %v3226, 0.01
  %v3263 = vmul.f32 %v3227, 0.01
  %v3264 = vmul.f32 %v3228, 0.01
  %v3265 = vsel %vm3229, %v3211, %v3247
  %v3266 = vsel %vm3230, %v3212, %v3248
  %v3267 = vsel %vm3231, %v3213, %v3249
  %v3268 = vsel %vm3232, %v3214, %v3250
  %v3269 = vsel %vm3233, %v3215, %v3251
  %v3270 = vsel %vm3234, %v3216, %v3252
  %v3271 = vsel %vm3235, %v3217, %v3253
  %v3272 = vsel %vm3236, %v3218, %v3254
  %v3273 = vsel %vm3237, %v3219, %v3255
  %v3274 = vsel %vm3238, %v3220, %v3256
  %v3275 = vsel %vm3239, %v3221, %v3257
  %v3276 = vsel %vm3240, %v3222, %v3258
  %v3277 = vsel %vm3241, %v3223, %v3259
  %v3278 = vsel %vm3242, %v3224, %v3260
  %v3279 = vsel %vm3243, %v3225, %v3261
  %v3280 = vsel %vm3244, %v3226, %v3262
  %v3281 = vsel %vm3245, %v3227, %v3263
  %v3282 = vsel %vm3246, %v3228, %v3264
  %vm3283 = vcmp.gt.f32.partialorder %v293, 0.0
  %vm3284 = vcmp.gt.f32.partialorder %v294, 0.0
  %vm3285 = vcmp.gt.f32.partialorder %v295, 0.0
  %v3286 = vsel %vm3283, 1, 0
  %v3287 = vsel %vm3284, 1, 0
  %v3288 = vsel %vm3285, 1, 0
  %vm3289 = vcmp.eq.s32.totalorder %v3286, 1
  %vm3290 = vcmp.eq.s32.totalorder %v3287, 1
  %vm3291 = vcmp.eq.s32.totalorder %v3288, 1
  %v3292 = vsel %vm3289, %v3265, -1e+30
  %v3293 = vsel %vm3290, %v3266, -1e+30
  %v3294 = vsel %vm3291, %v3267, -1e+30
  %v3295 = vsel %vm3289, %v3268, -1e+30
  %v3296 = vsel %vm3290, %v3269, -1e+30
  %v3297 = vsel %vm3291, %v3270, -1e+30
  %v3298 = vsel %vm3289, %v3271, -1e+30
  %v3299 = vsel %vm3290, %v3272, -1e+30
  %v3300 = vsel %vm3291, %v3273, -1e+30
  %v3301 = vsel %vm3289, %v3274, -1e+30
  %v3302 = vsel %vm3290, %v3275, -1e+30
  %v3303 = vsel %vm3291, %v3276, -1e+30
  %v3304 = vsel %vm3289, %v3277, -1e+30
  %v3305 = vsel %vm3290, %v3278, -1e+30
  %v3306 = vsel %vm3291, %v3279, -1e+30
  %v3307 = vsel %vm3289, %v3280, -1e+30
  %v3308 = vsel %vm3290, %v3281, -1e+30
  %v3309 = vsel %vm3291, %v3282, -1e+30
  %vm3310 = vcmask 64512
  %v3311 = vsel %vm3310, %v3292, -inf
  %3312 = vmax.xlane.f32.xlu0 %v3311
  %v3313 = vpop.xlane.xlu0 %3312
  %v3314 = vsel %vm3310, %v3293, -inf
  %3315 = vmax.xlane.f32.xlu0 %v3314
  %v3316 = vpop.xlane.xlu0 %3315
  %v3317 = vsel %vm3310, %v3294, -inf
  %3318 = vmax.xlane.f32.xlu0 %v3317
  %v3319 = vpop.xlane.xlu0 %3318
  %v3320 = vsel %vm3310, %v3295, -inf
  %3321 = vmax.xlane.f32.xlu0 %v3320
  %v3322 = vpop.xlane.xlu0 %3321
  %v3323 = vsel %vm3310, %v3296, -inf
  %3324 = vmax.xlane.f32.xlu0 %v3323
  %v3325 = vpop.xlane.xlu0 %3324
  %v3326 = vsel %vm3310, %v3297, -inf
  %3327 = vmax.xlane.f32.xlu0 %v3326
  %v3328 = vpop.xlane.xlu0 %3327
  %v3329 = vsel %vm3310, %v3298, -inf
  %3330 = vmax.xlane.f32.xlu0 %v3329
  %v3331 = vpop.xlane.xlu0 %3330
  %v3332 = vsel %vm3310, %v3299, -inf
  %3333 = vmax.xlane.f32.xlu0 %v3332
  %v3334 = vpop.xlane.xlu0 %3333
  %v3335 = vsel %vm3310, %v3300, -inf
  %3336 = vmax.xlane.f32.xlu0 %v3335
  %v3337 = vpop.xlane.xlu0 %3336
  %v3338 = vsel %vm3310, %v3301, -inf
  %3339 = vmax.xlane.f32.xlu0 %v3338
  %v3340 = vpop.xlane.xlu0 %3339
  %v3341 = vsel %vm3310, %v3302, -inf
  %3342 = vmax.xlane.f32.xlu0 %v3341
  %v3343 = vpop.xlane.xlu0 %3342
  %v3344 = vsel %vm3310, %v3303, -inf
  %3345 = vmax.xlane.f32.xlu0 %v3344
  %v3346 = vpop.xlane.xlu0 %3345
  %v3347 = vsel %vm3310, %v3304, -inf
  %3348 = vmax.xlane.f32.xlu0 %v3347
  %v3349 = vpop.xlane.xlu0 %3348
  %v3350 = vsel %vm3310, %v3305, -inf
  %3351 = vmax.xlane.f32.xlu0 %v3350
  %v3352 = vpop.xlane.xlu0 %3351
  %v3353 = vsel %vm3310, %v3306, -inf
  %3354 = vmax.xlane.f32.xlu0 %v3353
  %v3355 = vpop.xlane.xlu0 %3354
  %v3356 = vsel %vm3310, %v3307, -inf
  %3357 = vmax.xlane.f32.xlu0 %v3356
  %v3358 = vpop.xlane.xlu0 %3357
  %v3359 = vsel %vm3310, %v3308, -inf
  %3360 = vmax.xlane.f32.xlu0 %v3359
  %v3361 = vpop.xlane.xlu0 %3360
  %v3362 = vsel %vm3310, %v3309, -inf
  %3363 = vmax.xlane.f32.xlu0 %v3362
  %v3364 = vpop.xlane.xlu0 %3363
  %v3365 = vsub.f32 %v3292, %v3313
  %v3366 = vsub.f32 %v3293, %v3316
  %v3367 = vsub.f32 %v3294, %v3319
  %v3368 = vsub.f32 %v3295, %v3322
  %v3369 = vsub.f32 %v3296, %v3325
  %v3370 = vsub.f32 %v3297, %v3328
  %v3371 = vsub.f32 %v3298, %v3331
  %v3372 = vsub.f32 %v3299, %v3334
  %v3373 = vsub.f32 %v3300, %v3337
  %v3374 = vsub.f32 %v3301, %v3340
  %v3375 = vsub.f32 %v3302, %v3343
  %v3376 = vsub.f32 %v3303, %v3346
  %v3377 = vsub.f32 %v3304, %v3349
  %v3378 = vsub.f32 %v3305, %v3352
  %v3379 = vsub.f32 %v3306, %v3355
  %v3380 = vsub.f32 %v3307, %v3358
  %v3381 = vsub.f32 %v3308, %v3361
  %v3382 = vsub.f32 %v3309, %v3364
  %v3383 = vmul.f32 %v3365, 1.442695
  %v3384 = vpow.pop %v3383
  %v3385 = vmul.f32 %v3366, 1.442695
  %v3386 = vpow.pop %v3385
  %v3387 = vmul.f32 %v3367, 1.442695
  %v3388 = vpow.pop %v3387
  %v3389 = vmul.f32 %v3368, 1.442695
  %v3390 = vpow.pop %v3389
  %v3391 = vmul.f32 %v3369, 1.442695
  %v3392 = vpow.pop %v3391
  %v3393 = vmul.f32 %v3370, 1.442695
  %v3394 = vpow.pop %v3393
  %v3395 = vmul.f32 %v3371, 1.442695
  %v3396 = vpow.pop %v3395
  %v3397 = vmul.f32 %v3372, 1.442695
  %v3398 = vpow.pop %v3397
  %v3399 = vmul.f32 %v3373, 1.442695
  %v3400 = vpow.pop %v3399
  %v3401 = vmul.f32 %v3374, 1.442695
  %v3402 = vpow.pop %v3401
  %v3403 = vmul.f32 %v3375, 1.442695
  %v3404 = vpow.pop %v3403
  %v3405 = vmul.f32 %v3376, 1.442695
  %v3406 = vpow.pop %v3405
  %v3407 = vmul.f32 %v3377, 1.442695
  %v3408 = vpow.pop %v3407
  %v3409 = vmul.f32 %v3378, 1.442695
  %v3410 = vpow.pop %v3409
  %v3411 = vmul.f32 %v3379, 1.442695
  %v3412 = vpow.pop %v3411
  %v3413 = vmul.f32 %v3380, 1.442695
  %v3414 = vpow.pop %v3413
  %v3415 = vmul.f32 %v3381, 1.442695
  %v3416 = vpow.pop %v3415
  %v3417 = vmul.f32 %v3382, 1.442695
  %v3418 = vpow.pop %v3417
  %v3419 = vmul.f32 %v3384, %v293
  %v3420 = vmul.f32 %v3386, %v294
  %v3421 = vmul.f32 %v3388, %v295
  %v3422 = vmul.f32 %v3390, %v293
  %v3423 = vmul.f32 %v3392, %v294
  %v3424 = vmul.f32 %v3394, %v295
  %v3425 = vmul.f32 %v3396, %v293
  %v3426 = vmul.f32 %v3398, %v294
  %v3427 = vmul.f32 %v3400, %v295
  %v3428 = vmul.f32 %v3402, %v293
  %v3429 = vmul.f32 %v3404, %v294
  %v3430 = vmul.f32 %v3406, %v295
  %v3431 = vmul.f32 %v3408, %v293
  %v3432 = vmul.f32 %v3410, %v294
  %v3433 = vmul.f32 %v3412, %v295
  %v3434 = vmul.f32 %v3414, %v293
  %v3435 = vmul.f32 %v3416, %v294
  %v3436 = vmul.f32 %v3418, %v295
  %v3437 = vsel %vm3310, %v3419, 0.0
  %3438 = vadd.xlane.f32.xlu0 %v3437
  %v3439 = vpop.xlane.xlu0 %3438
  %v3440 = vsel %vm3310, %v3420, 0.0
  %3441 = vadd.xlane.f32.xlu0 %v3440
  %v3442 = vpop.xlane.xlu0 %3441
  %v3443 = vsel %vm3310, %v3421, 0.0
  %3444 = vadd.xlane.f32.xlu0 %v3443
  %v3445 = vpop.xlane.xlu0 %3444
  %v3446 = vsel %vm3310, %v3422, 0.0
  %3447 = vadd.xlane.f32.xlu0 %v3446
  %v3448 = vpop.xlane.xlu0 %3447
  %v3449 = vsel %vm3310, %v3423, 0.0
  %3450 = vadd.xlane.f32.xlu0 %v3449
  %v3451 = vpop.xlane.xlu0 %3450
  %v3452 = vsel %vm3310, %v3424, 0.0
  %3453 = vadd.xlane.f32.xlu0 %v3452
  %v3454 = vpop.xlane.xlu0 %3453
  %v3455 = vsel %vm3310, %v3425, 0.0
  %3456 = vadd.xlane.f32.xlu0 %v3455
  %v3457 = vpop.xlane.xlu0 %3456
  %v3458 = vsel %vm3310, %v3426, 0.0
  %3459 = vadd.xlane.f32.xlu0 %v3458
  %v3460 = vpop.xlane.xlu0 %3459
  %v3461 = vsel %vm3310, %v3427, 0.0
  %3462 = vadd.xlane.f32.xlu0 %v3461
  %v3463 = vpop.xlane.xlu0 %3462
  %v3464 = vsel %vm3310, %v3428, 0.0
  %3465 = vadd.xlane.f32.xlu0 %v3464
  %v3466 = vpop.xlane.xlu0 %3465
  %v3467 = vsel %vm3310, %v3429, 0.0
  %3468 = vadd.xlane.f32.xlu0 %v3467
  %v3469 = vpop.xlane.xlu0 %3468
  %v3470 = vsel %vm3310, %v3430, 0.0
  %3471 = vadd.xlane.f32.xlu0 %v3470
  %v3472 = vpop.xlane.xlu0 %3471
  %v3473 = vsel %vm3310, %v3431, 0.0
  %3474 = vadd.xlane.f32.xlu0 %v3473
  %v3475 = vpop.xlane.xlu0 %3474
  %v3476 = vsel %vm3310, %v3432, 0.0
  %3477 = vadd.xlane.f32.xlu0 %v3476
  %v3478 = vpop.xlane.xlu0 %3477
  %v3479 = vsel %vm3310, %v3433, 0.0
  %3480 = vadd.xlane.f32.xlu0 %v3479
  %v3481 = vpop.xlane.xlu0 %3480
  %v3482 = vsel %vm3310, %v3434, 0.0
  %3483 = vadd.xlane.f32.xlu0 %v3482
  %v3484 = vpop.xlane.xlu0 %3483
  %v3485 = vsel %vm3310, %v3435, 0.0
  %3486 = vadd.xlane.f32.xlu0 %v3485
  %v3487 = vpop.xlane.xlu0 %3486
  %v3488 = vsel %vm3310, %v3436, 0.0
  %3489 = vadd.xlane.f32.xlu0 %v3488
  %v3490 = vpop.xlane.xlu0 %3489
  %v3491 = vmax.f32 %v3439, 1e-09
  %v3492 = vmax.f32 %v3442, 1e-09
  %v3493 = vmax.f32 %v3445, 1e-09
  %v3494 = vmax.f32 %v3448, 1e-09
  %v3495 = vmax.f32 %v3451, 1e-09
  %v3496 = vmax.f32 %v3454, 1e-09
  %v3497 = vmax.f32 %v3457, 1e-09
  %v3498 = vmax.f32 %v3460, 1e-09
  %v3499 = vmax.f32 %v3463, 1e-09
  %v3500 = vmax.f32 %v3466, 1e-09
  %v3501 = vmax.f32 %v3469, 1e-09
  %v3502 = vmax.f32 %v3472, 1e-09
  %v3503 = vmax.f32 %v3475, 1e-09
  %v3504 = vmax.f32 %v3478, 1e-09
  %v3505 = vmax.f32 %v3481, 1e-09
  %v3506 = vmax.f32 %v3484, 1e-09
  %v3507 = vmax.f32 %v3487, 1e-09
  %v3508 = vmax.f32 %v3490, 1e-09
  %v3509 = vrcp.pop %v3491
  %v3510 = vmul.f32 %v3491, %v3509
  %v3511 = vsub.f32 1.0, %v3510
  %v3512 = vmul.f32 %v3509, %v3511
  %v3513 = vadd.f32 %v3509, %v3512
  %vm3514 = vweird.f32 %v3491
  %vm3515 = vweird.f32 %v3509
  %vm3516 = vmor %vm3514, %vm3515
  %v3517 = vsel %vm3516, %v3509, %v3513
  %v3518 = vand.u32 2147483647, %v3491
  %vm3519 = vcmp.eq.f32.partialorder %v3518, 8.507059e+37
  %v3520 = vand.u32 %v3491, 2147483648
  %v3521 = vor.u32 1.1754944e-38, %v3520
  %v3522 = vsel %vm3519, %v3521, %v3517
  %v3523 = vmul.f32 %v3419, %v3522
  %v3524 = vrcp.pop %v3492
  %v3525 = vmul.f32 %v3492, %v3524
  %v3526 = vsub.f32 1.0, %v3525
  %v3527 = vmul.f32 %v3524, %v3526
  %v3528 = vadd.f32 %v3524, %v3527
  %vm3529 = vweird.f32 %v3492
  %vm3530 = vweird.f32 %v3524
  %vm3531 = vmor %vm3529, %vm3530
  %v3532 = vsel %vm3531, %v3524, %v3528
  %v3533 = vand.u32 2147483647, %v3492
  %vm3534 = vcmp.eq.f32.partialorder %v3533, 8.507059e+37
  %v3535 = vand.u32 %v3492, 2147483648
  %v3536 = vor.u32 1.1754944e-38, %v3535
  %v3537 = vsel %vm3534, %v3536, %v3532
  %v3538 = vmul.f32 %v3420, %v3537
  %v3539 = vrcp.pop %v3493
  %v3540 = vmul.f32 %v3493, %v3539
  %v3541 = vsub.f32 1.0, %v3540
  %v3542 = vmul.f32 %v3539, %v3541
  %v3543 = vadd.f32 %v3539, %v3542
  %vm3544 = vweird.f32 %v3493
  %vm3545 = vweird.f32 %v3539
  %vm3546 = vmor %vm3544, %vm3545
  %v3547 = vsel %vm3546, %v3539, %v3543
  %v3548 = vand.u32 2147483647, %v3493
  %vm3549 = vcmp.eq.f32.partialorder %v3548, 8.507059e+37
  %v3550 = vand.u32 %v3493, 2147483648
  %v3551 = vor.u32 1.1754944e-38, %v3550
  %v3552 = vsel %vm3549, %v3551, %v3547
  %v3553 = vmul.f32 %v3421, %v3552
  %v3554 = vrcp.pop %v3494
  %v3555 = vmul.f32 %v3494, %v3554
  %v3556 = vsub.f32 1.0, %v3555
  %v3557 = vmul.f32 %v3554, %v3556
  %v3558 = vadd.f32 %v3554, %v3557
  %vm3559 = vweird.f32 %v3494
  %vm3560 = vweird.f32 %v3554
  %vm3561 = vmor %vm3559, %vm3560
  %v3562 = vsel %vm3561, %v3554, %v3558
  %v3563 = vand.u32 2147483647, %v3494
  %vm3564 = vcmp.eq.f32.partialorder %v3563, 8.507059e+37
  %v3565 = vand.u32 %v3494, 2147483648
  %v3566 = vor.u32 1.1754944e-38, %v3565
  %v3567 = vsel %vm3564, %v3566, %v3562
  %v3568 = vmul.f32 %v3422, %v3567
  %v3569 = vrcp.pop %v3495
  %v3570 = vmul.f32 %v3495, %v3569
  %v3571 = vsub.f32 1.0, %v3570
  %v3572 = vmul.f32 %v3569, %v3571
  %v3573 = vadd.f32 %v3569, %v3572
  %vm3574 = vweird.f32 %v3495
  %vm3575 = vweird.f32 %v3569
  %vm3576 = vmor %vm3574, %vm3575
  %v3577 = vsel %vm3576, %v3569, %v3573
  %v3578 = vand.u32 2147483647, %v3495
  %vm3579 = vcmp.eq.f32.partialorder %v3578, 8.507059e+37
  %v3580 = vand.u32 %v3495, 2147483648
  %v3581 = vor.u32 1.1754944e-38, %v3580
  %v3582 = vsel %vm3579, %v3581, %v3577
  %v3583 = vmul.f32 %v3423, %v3582
  %v3584 = vrcp.pop %v3496
  %v3585 = vmul.f32 %v3496, %v3584
  %v3586 = vsub.f32 1.0, %v3585
  %v3587 = vmul.f32 %v3584, %v3586
  %v3588 = vadd.f32 %v3584, %v3587
  %vm3589 = vweird.f32 %v3496
  %vm3590 = vweird.f32 %v3584
  %vm3591 = vmor %vm3589, %vm3590
  %v3592 = vsel %vm3591, %v3584, %v3588
  %v3593 = vand.u32 2147483647, %v3496
  %vm3594 = vcmp.eq.f32.partialorder %v3593, 8.507059e+37
  %v3595 = vand.u32 %v3496, 2147483648
  %v3596 = vor.u32 1.1754944e-38, %v3595
  %v3597 = vsel %vm3594, %v3596, %v3592
  %v3598 = vmul.f32 %v3424, %v3597
  %v3599 = vrcp.pop %v3497
  %v3600 = vmul.f32 %v3497, %v3599
  %v3601 = vsub.f32 1.0, %v3600
  %v3602 = vmul.f32 %v3599, %v3601
  %v3603 = vadd.f32 %v3599, %v3602
  %vm3604 = vweird.f32 %v3497
  %vm3605 = vweird.f32 %v3599
  %vm3606 = vmor %vm3604, %vm3605
  %v3607 = vsel %vm3606, %v3599, %v3603
  %v3608 = vand.u32 2147483647, %v3497
  %vm3609 = vcmp.eq.f32.partialorder %v3608, 8.507059e+37
  %v3610 = vand.u32 %v3497, 2147483648
  %v3611 = vor.u32 1.1754944e-38, %v3610
  %v3612 = vsel %vm3609, %v3611, %v3607
  %v3613 = vmul.f32 %v3425, %v3612
  %v3614 = vrcp.pop %v3498
  %v3615 = vmul.f32 %v3498, %v3614
  %v3616 = vsub.f32 1.0, %v3615
  %v3617 = vmul.f32 %v3614, %v3616
  %v3618 = vadd.f32 %v3614, %v3617
  %vm3619 = vweird.f32 %v3498
  %vm3620 = vweird.f32 %v3614
  %vm3621 = vmor %vm3619, %vm3620
  %v3622 = vsel %vm3621, %v3614, %v3618
  %v3623 = vand.u32 2147483647, %v3498
  %vm3624 = vcmp.eq.f32.partialorder %v3623, 8.507059e+37
  %v3625 = vand.u32 %v3498, 2147483648
  %v3626 = vor.u32 1.1754944e-38, %v3625
  %v3627 = vsel %vm3624, %v3626, %v3622
  %v3628 = vmul.f32 %v3426, %v3627
  %v3629 = vrcp.pop %v3499
  %v3630 = vmul.f32 %v3499, %v3629
  %v3631 = vsub.f32 1.0, %v3630
  %v3632 = vmul.f32 %v3629, %v3631
  %v3633 = vadd.f32 %v3629, %v3632
  %vm3634 = vweird.f32 %v3499
  %vm3635 = vweird.f32 %v3629
  %vm3636 = vmor %vm3634, %vm3635
  %v3637 = vsel %vm3636, %v3629, %v3633
  %v3638 = vand.u32 2147483647, %v3499
  %vm3639 = vcmp.eq.f32.partialorder %v3638, 8.507059e+37
  %v3640 = vand.u32 %v3499, 2147483648
  %v3641 = vor.u32 1.1754944e-38, %v3640
  %v3642 = vsel %vm3639, %v3641, %v3637
  %v3643 = vmul.f32 %v3427, %v3642
  %v3644 = vrcp.pop %v3500
  %v3645 = vmul.f32 %v3500, %v3644
  %v3646 = vsub.f32 1.0, %v3645
  %v3647 = vmul.f32 %v3644, %v3646
  %v3648 = vadd.f32 %v3644, %v3647
  %vm3649 = vweird.f32 %v3500
  %vm3650 = vweird.f32 %v3644
  %vm3651 = vmor %vm3649, %vm3650
  %v3652 = vsel %vm3651, %v3644, %v3648
  %v3653 = vand.u32 2147483647, %v3500
  %vm3654 = vcmp.eq.f32.partialorder %v3653, 8.507059e+37
  %v3655 = vand.u32 %v3500, 2147483648
  %v3656 = vor.u32 1.1754944e-38, %v3655
  %v3657 = vsel %vm3654, %v3656, %v3652
  %v3658 = vmul.f32 %v3428, %v3657
  %v3659 = vrcp.pop %v3501
  %v3660 = vmul.f32 %v3501, %v3659
  %v3661 = vsub.f32 1.0, %v3660
  %v3662 = vmul.f32 %v3659, %v3661
  %v3663 = vadd.f32 %v3659, %v3662
  %vm3664 = vweird.f32 %v3501
  %vm3665 = vweird.f32 %v3659
  %vm3666 = vmor %vm3664, %vm3665
  %v3667 = vsel %vm3666, %v3659, %v3663
  %v3668 = vand.u32 2147483647, %v3501
  %vm3669 = vcmp.eq.f32.partialorder %v3668, 8.507059e+37
  %v3670 = vand.u32 %v3501, 2147483648
  %v3671 = vor.u32 1.1754944e-38, %v3670
  %v3672 = vsel %vm3669, %v3671, %v3667
  %v3673 = vmul.f32 %v3429, %v3672
  %v3674 = vrcp.pop %v3502
  %v3675 = vmul.f32 %v3502, %v3674
  %v3676 = vsub.f32 1.0, %v3675
  %v3677 = vmul.f32 %v3674, %v3676
  %v3678 = vadd.f32 %v3674, %v3677
  %vm3679 = vweird.f32 %v3502
  %vm3680 = vweird.f32 %v3674
  %vm3681 = vmor %vm3679, %vm3680
  %v3682 = vsel %vm3681, %v3674, %v3678
  %v3683 = vand.u32 2147483647, %v3502
  %vm3684 = vcmp.eq.f32.partialorder %v3683, 8.507059e+37
  %v3685 = vand.u32 %v3502, 2147483648
  %v3686 = vor.u32 1.1754944e-38, %v3685
  %v3687 = vsel %vm3684, %v3686, %v3682
  %v3688 = vmul.f32 %v3430, %v3687
  %v3689 = vrcp.pop %v3503
  %v3690 = vmul.f32 %v3503, %v3689
  %v3691 = vsub.f32 1.0, %v3690
  %v3692 = vmul.f32 %v3689, %v3691
  %v3693 = vadd.f32 %v3689, %v3692
  %vm3694 = vweird.f32 %v3503
  %vm3695 = vweird.f32 %v3689
  %vm3696 = vmor %vm3694, %vm3695
  %v3697 = vsel %vm3696, %v3689, %v3693
  %v3698 = vand.u32 2147483647, %v3503
  %vm3699 = vcmp.eq.f32.partialorder %v3698, 8.507059e+37
  %v3700 = vand.u32 %v3503, 2147483648
  %v3701 = vor.u32 1.1754944e-38, %v3700
  %v3702 = vsel %vm3699, %v3701, %v3697
  %v3703 = vmul.f32 %v3431, %v3702
  %v3704 = vrcp.pop %v3504
  %v3705 = vmul.f32 %v3504, %v3704
  %v3706 = vsub.f32 1.0, %v3705
  %v3707 = vmul.f32 %v3704, %v3706
  %v3708 = vadd.f32 %v3704, %v3707
  %vm3709 = vweird.f32 %v3504
  %vm3710 = vweird.f32 %v3704
  %vm3711 = vmor %vm3709, %vm3710
  %v3712 = vsel %vm3711, %v3704, %v3708
  %v3713 = vand.u32 2147483647, %v3504
  %vm3714 = vcmp.eq.f32.partialorder %v3713, 8.507059e+37
  %v3715 = vand.u32 %v3504, 2147483648
  %v3716 = vor.u32 1.1754944e-38, %v3715
  %v3717 = vsel %vm3714, %v3716, %v3712
  %v3718 = vmul.f32 %v3432, %v3717
  %v3719 = vrcp.pop %v3505
  %v3720 = vmul.f32 %v3505, %v3719
  %v3721 = vsub.f32 1.0, %v3720
  %v3722 = vmul.f32 %v3719, %v3721
  %v3723 = vadd.f32 %v3719, %v3722
  %vm3724 = vweird.f32 %v3505
  %vm3725 = vweird.f32 %v3719
  %vm3726 = vmor %vm3724, %vm3725
  %v3727 = vsel %vm3726, %v3719, %v3723
  %v3728 = vand.u32 2147483647, %v3505
  %vm3729 = vcmp.eq.f32.partialorder %v3728, 8.507059e+37
  %v3730 = vand.u32 %v3505, 2147483648
  %v3731 = vor.u32 1.1754944e-38, %v3730
  %v3732 = vsel %vm3729, %v3731, %v3727
  %v3733 = vmul.f32 %v3433, %v3732
  %v3734 = vrcp.pop %v3506
  %v3735 = vmul.f32 %v3506, %v3734
  %v3736 = vsub.f32 1.0, %v3735
  %v3737 = vmul.f32 %v3734, %v3736
  %v3738 = vadd.f32 %v3734, %v3737
  %vm3739 = vweird.f32 %v3506
  %vm3740 = vweird.f32 %v3734
  %vm3741 = vmor %vm3739, %vm3740
  %v3742 = vsel %vm3741, %v3734, %v3738
  %v3743 = vand.u32 2147483647, %v3506
  %vm3744 = vcmp.eq.f32.partialorder %v3743, 8.507059e+37
  %v3745 = vand.u32 %v3506, 2147483648
  %v3746 = vor.u32 1.1754944e-38, %v3745
  %v3747 = vsel %vm3744, %v3746, %v3742
  %v3748 = vmul.f32 %v3434, %v3747
  %v3749 = vrcp.pop %v3507
  %v3750 = vmul.f32 %v3507, %v3749
  %v3751 = vsub.f32 1.0, %v3750
  %v3752 = vmul.f32 %v3749, %v3751
  %v3753 = vadd.f32 %v3749, %v3752
  %vm3754 = vweird.f32 %v3507
  %vm3755 = vweird.f32 %v3749
  %vm3756 = vmor %vm3754, %vm3755
  %v3757 = vsel %vm3756, %v3749, %v3753
  %v3758 = vand.u32 2147483647, %v3507
  %vm3759 = vcmp.eq.f32.partialorder %v3758, 8.507059e+37
  %v3760 = vand.u32 %v3507, 2147483648
  %v3761 = vor.u32 1.1754944e-38, %v3760
  %v3762 = vsel %vm3759, %v3761, %v3757
  %v3763 = vmul.f32 %v3435, %v3762
  %v3764 = vrcp.pop %v3508
  %v3765 = vmul.f32 %v3508, %v3764
  %v3766 = vsub.f32 1.0, %v3765
  %v3767 = vmul.f32 %v3764, %v3766
  %v3768 = vadd.f32 %v3764, %v3767
  %vm3769 = vweird.f32 %v3508
  %vm3770 = vweird.f32 %v3764
  %vm3771 = vmor %vm3769, %vm3770
  %v3772 = vsel %vm3771, %v3764, %v3768
  %v3773 = vand.u32 2147483647, %v3508
  %vm3774 = vcmp.eq.f32.partialorder %v3773, 8.507059e+37
  %v3775 = vand.u32 %v3508, 2147483648
  %v3776 = vor.u32 1.1754944e-38, %v3775
  %v3777 = vsel %vm3774, %v3776, %v3772
  %v3778 = vmul.f32 %v3436, %v3777
  %3782 = vrot.lane.b32.xlu0 %v3568, 8
  %v3783 = vpop.permute.xlu0 %3782
  %3784 = vrot.lane.b32.xlu0 %v3583, 8
  %v3785 = vpop.permute.xlu0 %3784
  %3786 = vrot.lane.b32.xlu0 %v3598, 8
  %v3787 = vpop.permute.xlu0 %3786
  %3794 = vrot.lane.b32.xlu0 %v3613, 16
  %v3795 = vpop.permute.xlu0 %3794
  %3796 = vrot.lane.b32.xlu0 %v3628, 16
  %v3797 = vpop.permute.xlu0 %3796
  %3798 = vrot.lane.b32.xlu0 %v3643, 16
  %v3799 = vpop.permute.xlu0 %3798
  %3806 = vrot.lane.b32.xlu0 %v3658, 24
  %v3807 = vpop.permute.xlu0 %3806
  %3808 = vrot.lane.b32.xlu0 %v3673, 24
  %v3809 = vpop.permute.xlu0 %3808
  %3810 = vrot.lane.b32.xlu0 %v3688, 24
  %v3811 = vpop.permute.xlu0 %3810
  %3818 = vrot.lane.b32.xlu0 %v3703, 32
  %v3819 = vpop.permute.xlu0 %3818
  %3820 = vrot.lane.b32.xlu0 %v3718, 32
  %v3821 = vpop.permute.xlu0 %3820
  %3822 = vrot.lane.b32.xlu0 %v3733, 32
  %v3823 = vpop.permute.xlu0 %3822
  %3830 = vrot.lane.b32.xlu0 %v3748, 40
  %v3831 = vpop.permute.xlu0 %3830
  %3832 = vrot.lane.b32.xlu0 %v3763, 40
  %v3833 = vpop.permute.xlu0 %3832
  %3834 = vrot.lane.b32.xlu0 %v3778, 40
  %v3835 = vpop.permute.xlu0 %3834
  %v3839 = vsel %vm3310, %v3523, %v3783
  %v3840 = vsel %vm3310, %v3538, %v3785
  %v3841 = vsel %vm3310, %v3553, %v3787
  %v3842 = vsel %vm352, %v3839, %v3795
  %v3843 = vsel %vm352, %v3840, %v3797
  %v3844 = vsel %vm352, %v3841, %v3799
  %v3845 = vsel %vm2859, %v3842, %v3807
  %v3846 = vsel %vm2859, %v3843, %v3809
  %v3847 = vsel %vm2859, %v3844, %v3811
  %v3848 = vsel %vm1507, %v3845, %v3819
  %v3849 = vsel %vm1507, %v3846, %v3821
  %v3850 = vsel %vm1507, %v3847, %v3823
  %vm3851 = vcmask 326656
  %v3852 = vsel %vm3851, %v3848, %v3831
  %v3853 = vsel %vm3851, %v3849, %v3833
  %v3854 = vsel %vm3851, %v3850, %v3835
  %v3855 = vmul.f32 %v3136, %v296
  %v3856 = vmul.f32 %v3136, %v297
  %v3857 = vmul.f32 %v3136, %v298
  %v3858 = vmul.f32 %v3136, %v299
  %v3859 = vmul.f32 %v3136, %v300
  %v3860 = vmul.f32 %v3136, %v301
  %v3862 = vsel %vm328, %v3852, 0
  %v3865 = vsel %vm328, %v3853, 0
  %v3868 = vsel %vm328, %v3854, 0
  %3870 = vmatpush.msra.mxu0 0.0
  %3871 = vmatpush.msra.mxu0 0.0
  %3872 = vmatpush.msra.mxu0 0.0
  %3873 = vmatpush.msra.mxu0 0.0
  %3874 = vmatpush.msra.mxu0 0.0
  %3875 = vmatpush.msra.mxu0 0.0
  %3876 = vmatpush.msra.mxu0 0.0
  %3877 = vmatpush.msra.mxu0 0.0
  %3878 = vmatpush.msra.mxu0 0.0
  %3879 = vmatpush.msra.mxu0 0.0
  %3880 = vmatpush.msra.mxu0 %v3860
  %3881 = vmatpush.msra.mxu0 %v3859
  %3882 = vmatpush.msra.mxu0 %v3858
  %3883 = vmatpush.msra.mxu0 %v3857
  %3884 = vmatpush.msra.mxu0 %v3856
  %3885 = vmatpush.msra.mxu0 %v3855
  %3886 = vmatmul.f32.gmra.mxu0 %v3862
  %v3887 = vpop.f32.mrf.mxu0
  %v3888 = vadd.f32 0.0, %v3887
  %3889 = vmatmul.f32.gmra.mxu0 %v3865
  %v3890 = vpop.f32.mrf.mxu0
  %v3891 = vadd.f32 0.0, %v3890
  %3892 = vmatmul.f32.gmra.mxu0 %v3868
  %v3893 = vpop.f32.mrf.mxu0
  %v3894 = vadd.f32 0.0, %v3893
  %3895 = vdwg.mxu0
  %vm3896 = vcmp.gt.f32.partialorder %v3888, 0.0
  %vm3897 = vcmp.gt.f32.partialorder %v3891, 0.0
  %vm3898 = vcmp.gt.f32.partialorder %v3894, 0.0
  %v3899 = vmin.f32 %v3888, 0.0
  %v3900 = vmin.f32 %v3891, 0.0
  %v3901 = vmin.f32 %v3894, 0.0
  %v3902 = vmul.f32 %v3899, 1.442695
  %v3903 = vpow.pop %v3902
  %v3904 = vmul.f32 %v3900, 1.442695
  %v3905 = vpow.pop %v3904
  %v3906 = vmul.f32 %v3901, 1.442695
  %v3907 = vpow.pop %v3906
  %v3908 = vsub.f32 %v3903, 1.0
  %v3909 = vsub.f32 %v3905, 1.0
  %v3910 = vsub.f32 %v3907, 1.0
  %v3911 = vsel %vm3896, %v3888, %v3908
  %v3912 = vsel %vm3897, %v3891, %v3909
  %v3913 = vsel %vm3898, %v3894, %v3910
  %v3914 = vadd.f32 %v3911, %v174
  %v3915 = vadd.f32 %v3912, %v175
  %v3916 = vadd.f32 %v3913, %v176
  %v3918 = vperm.slane %v308, 0
  %v3921 = vsel %vm328, %v3914, 0
  %v3924 = vsel %vm328, %v3915, 0
  %v3927 = vsel %vm328, %v3916, 0
  %3929 = vmatpush.msra.mxu0 0.0
  %3930 = vmatpush.msra.mxu0 0.0
  %3931 = vmatpush.msra.mxu0 0.0
  %3932 = vmatpush.msra.mxu0 0.0
  %3933 = vmatpush.msra.mxu0 0.0
  %3934 = vmatpush.msra.mxu0 0.0
  %3935 = vmatpush.msra.mxu0 0.0
  %3936 = vmatpush.msra.mxu0 0.0
  %3937 = vmatpush.msra.mxu0 0.0
  %3938 = vmatpush.msra.mxu0 0.0
  %3939 = vmatpush.msra.mxu0 %v307
  %3940 = vmatpush.msra.mxu0 %v306
  %3941 = vmatpush.msra.mxu0 %v305
  %3942 = vmatpush.msra.mxu0 %v304
  %3943 = vmatpush.msra.mxu0 %v303
  %3944 = vmatpush.msra.mxu0 %v302
  %3945 = vmatmul.f32.gmra.mxu0 %v3921
  %v3946 = vpop.f32.mrf.mxu0
  %v3947 = vadd.f32 %v3918, %v3946
  %3948 = vmatmul.f32.gmra.mxu0 %v3924
  %v3949 = vpop.f32.mrf.mxu0
  %v3950 = vadd.f32 %v3918, %v3949
  %3951 = vmatmul.f32.gmra.mxu0 %v3927
  %v3952 = vpop.f32.mrf.mxu0
  %v3953 = vadd.f32 %v3918, %v3952
  %3954 = vdwg.mxu0
  %v3955 = vmax.f32 %v3947, 0.0
  %v3956 = vmax.f32 %v3950, 0.0
  %v3957 = vmax.f32 %v3953, 0.0
  %v3959 = vperm.slane %v317, 0
  %v3962 = vsel %vm3053, %v3955, 0
  %v3965 = vsel %vm3053, %v3956, 0
  %v3968 = vsel %vm3053, %v3957, 0
  %3970 = vmatpush.msra.mxu0 0.0
  %3971 = vmatpush.msra.mxu0 0.0
  %3972 = vmatpush.msra.mxu0 0.0
  %3973 = vmatpush.msra.mxu0 0.0
  %3974 = vmatpush.msra.mxu0 0.0
  %3975 = vmatpush.msra.mxu0 0.0
  %3976 = vmatpush.msra.mxu0 0.0
  %3977 = vmatpush.msra.mxu0 0.0
  %3978 = vmatpush.msra.mxu0 %v316
  %3979 = vmatpush.msra.mxu0 %v315
  %3980 = vmatpush.msra.mxu0 %v314
  %3981 = vmatpush.msra.mxu0 %v313
  %3982 = vmatpush.msra.mxu0 %v312
  %3983 = vmatpush.msra.mxu0 %v311
  %3984 = vmatpush.msra.mxu0 %v310
  %3985 = vmatpush.msra.mxu0 %v309
  %3986 = vmatmul.f32.gmra.mxu0 %v3962
  %v3987 = vpop.f32.mrf.mxu0
  %v3988 = vadd.f32 %v3959, %v3987
  %3989 = vmatmul.f32.gmra.mxu0 %v3965
  %v3990 = vpop.f32.mrf.mxu0
  %v3991 = vadd.f32 %v3959, %v3990
  %3992 = vmatmul.f32.gmra.mxu0 %v3968
  %v3993 = vpop.f32.mrf.mxu0
  %v3994 = vadd.f32 %v3959, %v3993
  %3995 = vdwg.mxu0
  %v3996 = vadd.f32 %v3988, %v3914
  %v3997 = vadd.f32 %v3991, %v3915
  %v3998 = vadd.f32 %v3994, %v3916
  %v3999 = vsel %vm328, %v3996, 0.0
  %4000 = vadd.xlane.f32.xlu0 %v3999
  %v4001 = vpop.xlane.xlu0 %4000
  %v4002 = vsel %vm328, %v3997, 0.0
  %4003 = vadd.xlane.f32.xlu0 %v4002
  %v4004 = vpop.xlane.xlu0 %4003
  %v4005 = vsel %vm328, %v3998, 0.0
  %4006 = vadd.xlane.f32.xlu0 %v4005
  %v4007 = vpop.xlane.xlu0 %4006
  %v4008 = vrcp.pop 48.0
  %v4009 = vmul.f32 48.0, %v4008
  %v4010 = vsub.f32 1.0, %v4009
  %v4011 = vmul.f32 %v4008, %v4010
  %v4012 = vadd.f32 %v4008, %v4011
  %vm4013 = vweird.f32 %v4008
  %v4014 = vsel %vm4013, %v4008, %v4012
  %v4015 = vmul.f32 %v4001, %v4014
  %v4016 = vmul.f32 %v4004, %v4014
  %v4017 = vmul.f32 %v4007, %v4014
  %v4018 = vsub.f32 %v3996, %v4015
  %v4019 = vsub.f32 %v3997, %v4016
  %v4020 = vsub.f32 %v3998, %v4017
  %v4021 = vmul.f32 %v4018, %v4018
  %v4022 = vmul.f32 %v4019, %v4019
  %v4023 = vmul.f32 %v4020, %v4020
  %v4024 = vsel %vm328, %v4021, 0.0
  %4025 = vadd.xlane.f32.xlu0 %v4024
  %v4026 = vpop.xlane.xlu0 %4025
  %v4027 = vsel %vm328, %v4022, 0.0
  %4028 = vadd.xlane.f32.xlu0 %v4027
  %v4029 = vpop.xlane.xlu0 %4028
  %v4030 = vsel %vm328, %v4023, 0.0
  %4031 = vadd.xlane.f32.xlu0 %v4030
  %v4032 = vpop.xlane.xlu0 %4031
  %v4033 = vmul.f32 %v4026, %v4014
  %v4034 = vmul.f32 %v4029, %v4014
  %v4035 = vmul.f32 %v4032, %v4014
  %v4036 = vadd.f32 %v4033, 1e-05
  %v4037 = vadd.f32 %v4034, 1e-05
  %v4038 = vadd.f32 %v4035, 1e-05
  %v4039 = vrsqrt.pop %v4036
  %v4040 = vmul.f32 %v4039, %v4036
  %v4041 = vmul.f32 %v4040, %v4039
  %v4042 = vmul.f32 0.5, %v4041
  %v4043 = vsub.f32 1.5, %v4042
  %v4044 = vmul.f32 %v4039, %v4043
  %vm4045 = vweird.f32 %v4036
  %vm4046 = vweird.f32 %v4039
  %vm4047 = vmor %vm4045, %vm4046
  %v4048 = vsel %vm4047, %v4039, %v4044
  %v4049 = vrsqrt.pop %v4037
  %v4050 = vmul.f32 %v4049, %v4037
  %v4051 = vmul.f32 %v4050, %v4049
  %v4052 = vmul.f32 0.5, %v4051
  %v4053 = vsub.f32 1.5, %v4052
  %v4054 = vmul.f32 %v4049, %v4053
  %vm4055 = vweird.f32 %v4037
  %vm4056 = vweird.f32 %v4049
  %vm4057 = vmor %vm4055, %vm4056
  %v4058 = vsel %vm4057, %v4049, %v4054
  %v4059 = vrsqrt.pop %v4038
  %v4060 = vmul.f32 %v4059, %v4038
  %v4061 = vmul.f32 %v4060, %v4059
  %v4062 = vmul.f32 0.5, %v4061
  %v4063 = vsub.f32 1.5, %v4062
  %v4064 = vmul.f32 %v4059, %v4063
  %vm4065 = vweird.f32 %v4038
  %vm4066 = vweird.f32 %v4059
  %vm4067 = vmor %vm4065, %vm4066
  %v4068 = vsel %vm4067, %v4059, %v4064
  %v4069 = vmul.f32 %v4018, %v4048
  %v4070 = vmul.f32 %v4019, %v4058
  %v4071 = vmul.f32 %v4020, %v4068
  %v4073 = vperm.slane %v318, 0
  %v4075 = vmul.f32 %v4069, %v4073
  %v4076 = vmul.f32 %v4070, %v4073
  %v4077 = vmul.f32 %v4071, %v4073
  %v4079 = vperm.slane %v319, 0
  %v4081 = vadd.f32 %v4075, %v4079
  %v4082 = vadd.f32 %v4076, %v4079
  %v4083 = vadd.f32 %v4077, %v4079
  %v4085 = vsel %vm328, %v4081, 0
  %v4088 = vsel %vm328, %v4082, 0
  %v4091 = vsel %vm328, %v4083, 0
  %4093 = vmatpush.msra.mxu0 0.0
  %4094 = vmatpush.msra.mxu0 0.0
  %4095 = vmatpush.msra.mxu0 0.0
  %4096 = vmatpush.msra.mxu0 0.0
  %4097 = vmatpush.msra.mxu0 0.0
  %4098 = vmatpush.msra.mxu0 0.0
  %4099 = vmatpush.msra.mxu0 0.0
  %4100 = vmatpush.msra.mxu0 0.0
  %4101 = vmatpush.msra.mxu0 0.0
  %4102 = vmatpush.msra.mxu0 0.0
  %4103 = vmatpush.msra.mxu0 %v227
  %4104 = vmatpush.msra.mxu0 %v226
  %4105 = vmatpush.msra.mxu0 %v225
  %4106 = vmatpush.msra.mxu0 %v224
  %4107 = vmatpush.msra.mxu0 %v223
  %4108 = vmatpush.msra.mxu0 %v222
  %4109 = vmatmul.f32.gmra.mxu0 %v4085
  %v4110 = vpop.f32.mrf.mxu0
  %v4111 = vadd.f32 0.0, %v4110
  %4112 = vmatmul.f32.gmra.mxu0 %v4088
  %v4113 = vpop.f32.mrf.mxu0
  %v4114 = vadd.f32 0.0, %v4113
  %4115 = vmatmul.f32.gmra.mxu0 %v4091
  %v4116 = vpop.f32.mrf.mxu0
  %v4117 = vadd.f32 0.0, %v4116
  %4118 = vdwg.mxu0
  %v4120 = vsel %vm1507, %v4111, 0
  %v4123 = vsel %vm1507, %v4114, 0
  %v4126 = vsel %vm1507, %v4117, 0
  %4128 = vmatpush.msra.mxu0 0.0
  %4129 = vmatpush.msra.mxu0 0.0
  %4130 = vmatpush.msra.mxu0 0.0
  %4131 = vmatpush.msra.mxu0 0.0
  %4132 = vmatpush.msra.mxu0 0.0
  %4133 = vmatpush.msra.mxu0 0.0
  %4134 = vmatpush.msra.mxu0 0.0
  %4135 = vmatpush.msra.mxu0 0.0
  %4136 = vmatpush.msra.mxu0 0.0
  %4137 = vmatpush.msra.mxu0 0.0
  %4138 = vmatpush.msra.mxu0 0.0
  %4139 = vmatpush.msra.mxu0 0.0
  %4140 = vmatpush.msra.mxu0 %v231
  %4141 = vmatpush.msra.mxu0 %v230
  %4142 = vmatpush.msra.mxu0 %v229
  %4143 = vmatpush.msra.mxu0 %v228
  %4144 = vmatmul.f32.gmra.mxu0 %v4120
  %v4145 = vpop.f32.mrf.mxu0
  %v4146 = vadd.f32 0.0, %v4145
  %4147 = vmatmul.f32.gmra.mxu0 %v4123
  %v4148 = vpop.f32.mrf.mxu0
  %v4149 = vadd.f32 0.0, %v4148
  %4150 = vmatmul.f32.gmra.mxu0 %v4126
  %v4151 = vpop.f32.mrf.mxu0
  %v4152 = vadd.f32 0.0, %v4151
  %4153 = vdwg.mxu0
  %4154 = vxpose.xlu0.b32.start [1/16] %v4146, 128
  %4155 = vxpose.xlu0.b32.cont [2/16] %v4149, 128
  %4156 = vxpose.xlu0.b32.cont [3/16] %v4152, 128
  %4157 = vxpose.xlu0.b32.cont [4/16] 0.0, 128
  %4158 = vxpose.xlu0.b32.cont [5/16] 0.0, 128
  %4159 = vxpose.xlu0.b32.cont [6/16] 0.0, 128
  %4160 = vxpose.xlu0.b32.cont [7/16] 0.0, 128
  %4161 = vxpose.xlu0.b32.cont [8/16] 0.0, 128
  %4162 = vxpose.xlu0.b32.cont [9/16] 0.0, 128
  %4163 = vxpose.xlu0.b32.cont [10/16] 0.0, 128
  %4164 = vxpose.xlu0.b32.cont [11/16] 0.0, 128
  %4165 = vxpose.xlu0.b32.cont [12/16] 0.0, 128
  %4166 = vxpose.xlu0.b32.cont [13/16] 0.0, 128
  %4167 = vxpose.xlu0.b32.cont [14/16] 0.0, 128
  %4168 = vxpose.xlu0.b32.cont [15/16] 0.0, 128
  %4169 = vxpose.xlu0.b32.end [16/16] 0.0, 128
  %v4170 = vpop.trf.xlu0
  %v4171 = vpop.trf.xlu0
  %v4172 = vpop.trf.xlu0
  %v4173 = vpop.trf.xlu0
  %v4174 = vpop.trf.xlu0
  %v4175 = vpop.trf.xlu0
  %v4176 = vpop.trf.xlu0
  %v4177 = vpop.trf.xlu0
  %v4178 = vpop.trf.xlu0
  %v4179 = vpop.trf.xlu0
  %v4180 = vpop.trf.xlu0
  %v4181 = vpop.trf.xlu0
  %v4182 = vpop.trf.xlu0
  %v4183 = vpop.trf.xlu0
  %v4184 = vpop.trf.xlu0
  %v4185 = vpop.trf.xlu0
  %v4187 = vrot.slane %v4170, 1
  %v4188 = vrot.slane %v4170, 2
  %v4189 = vrot.slane %v4170, 3
  %v4190 = vperm.slane %v4170, 0
  %v4191 = vperm.slane %v4187, 0
  %v4192 = vperm.slane %v4188, 0
  %v4193 = vperm.slane %v4189, 0
  %v4198 = vadd.f32 %v4190, %v232
  %v4199 = vadd.f32 %v4191, %v233
  %v4200 = vadd.f32 %v4192, %v234
  %v4201 = vadd.f32 %v4193, %v235
  %vm4202 = vcmp.ge.f32.partialorder %v4198, 0.0
  %vm4203 = vcmp.ge.f32.partialorder %v4199, 0.0
  %vm4204 = vcmp.ge.f32.partialorder %v4200, 0.0
  %vm4205 = vcmp.ge.f32.partialorder %v4201, 0.0
  %v4206 = vmul.f32 %v4198, 0.01
  %v4207 = vmul.f32 %v4199, 0.01
  %v4208 = vmul.f32 %v4200, 0.01
  %v4209 = vmul.f32 %v4201, 0.01
  %v4210 = vsel %vm4202, %v4198, %v4206
  %v4211 = vsel %vm4203, %v4199, %v4207
  %v4212 = vsel %vm4204, %v4200, %v4208
  %v4213 = vsel %vm4205, %v4201, %v4209
  %v4214 = vsel %vm2854, %v4210, -1e+30
  %v4215 = vsel %vm2854, %v4211, -1e+30
  %v4216 = vsel %vm2854, %v4212, -1e+30
  %v4217 = vsel %vm2854, %v4213, -1e+30
  %v4218 = vsel %vm2859, %v4214, -inf
  %4219 = vmax.xlane.f32.xlu0 %v4218
  %v4220 = vpop.xlane.xlu0 %4219
  %v4221 = vsel %vm2859, %v4215, -inf
  %4222 = vmax.xlane.f32.xlu0 %v4221
  %v4223 = vpop.xlane.xlu0 %4222
  %v4224 = vsel %vm2859, %v4216, -inf
  %4225 = vmax.xlane.f32.xlu0 %v4224
  %v4226 = vpop.xlane.xlu0 %4225
  %v4227 = vsel %vm2859, %v4217, -inf
  %4228 = vmax.xlane.f32.xlu0 %v4227
  %v4229 = vpop.xlane.xlu0 %4228
  %v4230 = vsub.f32 %v4214, %v4220
  %v4231 = vsub.f32 %v4215, %v4223
  %v4232 = vsub.f32 %v4216, %v4226
  %v4233 = vsub.f32 %v4217, %v4229
  %v4234 = vmul.f32 %v4230, 1.442695
  %v4235 = vpow.pop %v4234
  %v4236 = vmul.f32 %v4231, 1.442695
  %v4237 = vpow.pop %v4236
  %v4238 = vmul.f32 %v4232, 1.442695
  %v4239 = vpow.pop %v4238
  %v4240 = vmul.f32 %v4233, 1.442695
  %v4241 = vpow.pop %v4240
  %v4242 = vmul.f32 %v4235, %v236
  %v4243 = vmul.f32 %v4237, %v236
  %v4244 = vmul.f32 %v4239, %v236
  %v4245 = vmul.f32 %v4241, %v236
  %v4246 = vsel %vm2859, %v4242, 0.0
  %4247 = vadd.xlane.f32.xlu0 %v4246
  %v4248 = vpop.xlane.xlu0 %4247
  %v4249 = vsel %vm2859, %v4243, 0.0
  %4250 = vadd.xlane.f32.xlu0 %v4249
  %v4251 = vpop.xlane.xlu0 %4250
  %v4252 = vsel %vm2859, %v4244, 0.0
  %4253 = vadd.xlane.f32.xlu0 %v4252
  %v4254 = vpop.xlane.xlu0 %4253
  %v4255 = vsel %vm2859, %v4245, 0.0
  %4256 = vadd.xlane.f32.xlu0 %v4255
  %v4257 = vpop.xlane.xlu0 %4256
  %v4258 = vmax.f32 %v4248, 1e-09
  %v4259 = vmax.f32 %v4251, 1e-09
  %v4260 = vmax.f32 %v4254, 1e-09
  %v4261 = vmax.f32 %v4257, 1e-09
  %v4262 = vrcp.pop %v4258
  %v4263 = vmul.f32 %v4258, %v4262
  %v4264 = vsub.f32 1.0, %v4263
  %v4265 = vmul.f32 %v4262, %v4264
  %v4266 = vadd.f32 %v4262, %v4265
  %vm4267 = vweird.f32 %v4258
  %vm4268 = vweird.f32 %v4262
  %vm4269 = vmor %vm4267, %vm4268
  %v4270 = vsel %vm4269, %v4262, %v4266
  %v4271 = vand.u32 2147483647, %v4258
  %vm4272 = vcmp.eq.f32.partialorder %v4271, 8.507059e+37
  %v4273 = vand.u32 %v4258, 2147483648
  %v4274 = vor.u32 1.1754944e-38, %v4273
  %v4275 = vsel %vm4272, %v4274, %v4270
  %v4276 = vmul.f32 %v4242, %v4275
  %v4277 = vrcp.pop %v4259
  %v4278 = vmul.f32 %v4259, %v4277
  %v4279 = vsub.f32 1.0, %v4278
  %v4280 = vmul.f32 %v4277, %v4279
  %v4281 = vadd.f32 %v4277, %v4280
  %vm4282 = vweird.f32 %v4259
  %vm4283 = vweird.f32 %v4277
  %vm4284 = vmor %vm4282, %vm4283
  %v4285 = vsel %vm4284, %v4277, %v4281
  %v4286 = vand.u32 2147483647, %v4259
  %vm4287 = vcmp.eq.f32.partialorder %v4286, 8.507059e+37
  %v4288 = vand.u32 %v4259, 2147483648
  %v4289 = vor.u32 1.1754944e-38, %v4288
  %v4290 = vsel %vm4287, %v4289, %v4285
  %v4291 = vmul.f32 %v4243, %v4290
  %v4292 = vrcp.pop %v4260
  %v4293 = vmul.f32 %v4260, %v4292
  %v4294 = vsub.f32 1.0, %v4293
  %v4295 = vmul.f32 %v4292, %v4294
  %v4296 = vadd.f32 %v4292, %v4295
  %vm4297 = vweird.f32 %v4260
  %vm4298 = vweird.f32 %v4292
  %vm4299 = vmor %vm4297, %vm4298
  %v4300 = vsel %vm4299, %v4292, %v4296
  %v4301 = vand.u32 2147483647, %v4260
  %vm4302 = vcmp.eq.f32.partialorder %v4301, 8.507059e+37
  %v4303 = vand.u32 %v4260, 2147483648
  %v4304 = vor.u32 1.1754944e-38, %v4303
  %v4305 = vsel %vm4302, %v4304, %v4300
  %v4306 = vmul.f32 %v4244, %v4305
  %v4307 = vrcp.pop %v4261
  %v4308 = vmul.f32 %v4261, %v4307
  %v4309 = vsub.f32 1.0, %v4308
  %v4310 = vmul.f32 %v4307, %v4309
  %v4311 = vadd.f32 %v4307, %v4310
  %vm4312 = vweird.f32 %v4261
  %vm4313 = vweird.f32 %v4307
  %vm4314 = vmor %vm4312, %vm4313
  %v4315 = vsel %vm4314, %v4307, %v4311
  %v4316 = vand.u32 2147483647, %v4261
  %vm4317 = vcmp.eq.f32.partialorder %v4316, 8.507059e+37
  %v4318 = vand.u32 %v4261, 2147483648
  %v4319 = vor.u32 1.1754944e-38, %v4318
  %v4320 = vsel %vm4317, %v4319, %v4315
  %v4321 = vmul.f32 %v4245, %v4320
  %4323 = vrot.lane.b32.xlu0 %v4291, 24
  %v4324 = vpop.permute.xlu0 %4323
  %4327 = vrot.lane.b32.xlu0 %v4306, 48
  %v4328 = vpop.permute.xlu0 %4327
  %4331 = vrot.lane.b32.xlu0 %v4321, 72
  %v4332 = vpop.permute.xlu0 %4331
  %v4334 = vsel %vm2859, %v4276, %v4324
  %v4335 = vsel %vm328, %v4334, %v4328
  %v4336 = vsel %vm2978, %v4335, %v4332
  %v4337 = vmul.f32 %v4111, %v237
  %v4338 = vmul.f32 %v4114, %v238
  %v4339 = vmul.f32 %v4117, %v239
  %v4340 = vmul.f32 %v4111, %v240
  %v4341 = vmul.f32 %v4114, %v241
  %v4342 = vmul.f32 %v4117, %v242
  %v4343 = vmul.f32 %v4111, %v243
  %v4344 = vmul.f32 %v4114, %v244
  %v4345 = vmul.f32 %v4117, %v245
  %v4346 = vmul.f32 %v4111, %v246
  %v4347 = vmul.f32 %v4114, %v247
  %v4348 = vmul.f32 %v4117, %v248
  %v4350 = vsel %vm2992, %v4336, 0
  %4352 = vmatpush.msra.mxu0 0.0
  %4353 = vmatpush.msra.mxu0 0.0
  %4354 = vmatpush.msra.mxu0 0.0
  %4355 = vmatpush.msra.mxu0 0.0
  %4356 = vmatpush.msra.mxu0 %v4348
  %4357 = vmatpush.msra.mxu0 %v4347
  %4358 = vmatpush.msra.mxu0 %v4346
  %4359 = vmatpush.msra.mxu0 %v4345
  %4360 = vmatpush.msra.mxu0 %v4344
  %4361 = vmatpush.msra.mxu0 %v4343
  %4362 = vmatpush.msra.mxu0 %v4342
  %4363 = vmatpush.msra.mxu0 %v4341
  %4364 = vmatpush.msra.mxu0 %v4340
  %4365 = vmatpush.msra.mxu0 %v4339
  %4366 = vmatpush.msra.mxu0 %v4338
  %4367 = vmatpush.msra.mxu0 %v4337
  %4368 = vmatmul.f32.gmra.mxu0 %v4350
  %v4369 = vpop.f32.mrf.mxu0
  %v4370 = vadd.f32 0.0, %v4369
  %4371 = vdwg.mxu0
  %vm4372 = vcmp.gt.f32.partialorder %v4370, 0.0
  %v4373 = vmin.f32 %v4370, 0.0
  %v4374 = vmul.f32 %v4373, 1.442695
  %v4375 = vpow.pop %v4374
  %v4376 = vsub.f32 %v4375, 1.0
  %v4377 = vsel %vm4372, %v4370, %v4376
  %v4378 = vadd.f32 %v4377, %v3114
  %v4380 = vsel %vm1507, %v4378, 0
  %4382 = vmatpush.msra.mxu0 0.0
  %4383 = vmatpush.msra.mxu0 0.0
  %4384 = vmatpush.msra.mxu0 0.0
  %4385 = vmatpush.msra.mxu0 0.0
  %4386 = vmatpush.msra.mxu0 0.0
  %4387 = vmatpush.msra.mxu0 0.0
  %4388 = vmatpush.msra.mxu0 0.0
  %4389 = vmatpush.msra.mxu0 0.0
  %4390 = vmatpush.msra.mxu0 0.0
  %4391 = vmatpush.msra.mxu0 0.0
  %4392 = vmatpush.msra.mxu0 0.0
  %4393 = vmatpush.msra.mxu0 0.0
  %4394 = vmatpush.msra.mxu0 %v252
  %4395 = vmatpush.msra.mxu0 %v251
  %4396 = vmatpush.msra.mxu0 %v250
  %4397 = vmatpush.msra.mxu0 %v249
  %4398 = vmatmul.f32.gmra.mxu0 %v4380
  %v4399 = vpop.f32.mrf.mxu0
  %v4400 = vadd.f32 %v3024, %v4399
  %4401 = vdwg.mxu0
  %v4402 = vmax.f32 %v4400, 0.0
  %v4404 = vsel %vm3053, %v4402, 0
  %4406 = vmatpush.msra.mxu0 0.0
  %4407 = vmatpush.msra.mxu0 0.0
  %4408 = vmatpush.msra.mxu0 0.0
  %4409 = vmatpush.msra.mxu0 0.0
  %4410 = vmatpush.msra.mxu0 0.0
  %4411 = vmatpush.msra.mxu0 0.0
  %4412 = vmatpush.msra.mxu0 0.0
  %4413 = vmatpush.msra.mxu0 0.0
  %4414 = vmatpush.msra.mxu0 %v261
  %4415 = vmatpush.msra.mxu0 %v260
  %4416 = vmatpush.msra.mxu0 %v259
  %4417 = vmatpush.msra.mxu0 %v258
  %4418 = vmatpush.msra.mxu0 %v257
  %4419 = vmatpush.msra.mxu0 %v256
  %4420 = vmatpush.msra.mxu0 %v255
  %4421 = vmatpush.msra.mxu0 %v254
  %4422 = vmatmul.f32.gmra.mxu0 %v4404
  %v4423 = vpop.f32.mrf.mxu0
  %v4424 = vadd.f32 %v3051, %v4423
  %4425 = vdwg.mxu0
  %v4426 = vadd.f32 %v4424, %v4378
  %v4427 = vsel %vm1507, %v4426, 0.0
  %4428 = vadd.xlane.f32.xlu0 %v4427
  %v4429 = vpop.xlane.xlu0 %4428
  %v4430 = vmul.f32 %v4429, %v3087
  %v4431 = vsub.f32 %v4426, %v4430
  %v4432 = vmul.f32 %v4431, %v4431
  %v4433 = vsel %vm1507, %v4432, 0.0
  %4434 = vadd.xlane.f32.xlu0 %v4433
  %v4435 = vpop.xlane.xlu0 %4434
  %v4436 = vmul.f32 %v4435, %v3087
  %v4437 = vadd.f32 %v4436, 1e-05
  %v4438 = vrsqrt.pop %v4437
  %v4439 = vmul.f32 %v4438, %v4437
  %v4440 = vmul.f32 %v4439, %v4438
  %v4441 = vmul.f32 0.5, %v4440
  %v4442 = vsub.f32 1.5, %v4441
  %v4443 = vmul.f32 %v4438, %v4442
  %vm4444 = vweird.f32 %v4437
  %vm4445 = vweird.f32 %v4438
  %vm4446 = vmor %vm4444, %vm4445
  %v4447 = vsel %vm4446, %v4438, %v4443
  %v4448 = vmul.f32 %v4431, %v4447
  %v4449 = vmul.f32 %v4448, %v3108
  %v4450 = vadd.f32 %v4449, %v3112
  %v4452 = vperm.slane %v324, 0
  %v4455 = vsel %vm1507, %v4450, 0
  %4457 = vmatpush.msra.mxu0 0.0
  %4458 = vmatpush.msra.mxu0 0.0
  %4459 = vmatpush.msra.mxu0 0.0
  %4460 = vmatpush.msra.mxu0 0.0
  %4461 = vmatpush.msra.mxu0 0.0
  %4462 = vmatpush.msra.mxu0 0.0
  %4463 = vmatpush.msra.mxu0 0.0
  %4464 = vmatpush.msra.mxu0 0.0
  %4465 = vmatpush.msra.mxu0 0.0
  %4466 = vmatpush.msra.mxu0 0.0
  %4467 = vmatpush.msra.mxu0 0.0
  %4468 = vmatpush.msra.mxu0 0.0
  %4469 = vmatpush.msra.mxu0 %v323
  %4470 = vmatpush.msra.mxu0 %v322
  %4471 = vmatpush.msra.mxu0 %v321
  %4472 = vmatpush.msra.mxu0 %v320
  %4473 = vmatmul.f32.gmra.mxu0 %v4455
  %v4474 = vpop.f32.mrf.mxu0
  %v4475 = vadd.f32 %v4452, %v4474
  %4476 = vdwg.mxu0
  %vm4477 = vcmask 15360
  %4478 = vst.msk [vmem:[%s85] sm:$0xff] %vm4477, %v4475
  // Predicated region
  $region170: #{hsum_graph_forward.1} parent=0 // pred_check
    _
  $region171: #{hsum_graph_forward.1} parent=0 // pred_check_branch
    %4480 = sbr.rel (0) target = $region173
  $region172: #{hsum_graph_forward.1} parent=0 // pred_region
    _
  $region173: #{hsum_graph_forward.1} parent=0 // pred_fallthru
    _
  // Predicated region
  $region174: #{hsum_graph_forward.1} parent=0 // pred_check
    _
  $region175: #{hsum_graph_forward.1} parent=0 // pred_check_branch
    %4482 = sbr.rel (0) target = $region177
  $region176: #{hsum_graph_forward.1} parent=0 // pred_region
    _
  $region177: #{hsum_graph_forward.1} parent=0 // pred_fallthru
    _

</llo_original>
